<compile_context>
chip_gen: v7x
topology: tpu7x:2x2x1
jax: 0.10.0
libtpu: 0.0.40
codegen_flags: <defaults>
</compile_context>

<pallas_src>
import functools
import math

import jax
import jax.numpy as jnp
from jax import lax
from jax.experimental import pallas as pl
from jax.experimental.pallas import tpu as pltpu


def _round_up(x, m):
    return ((x + m - 1) // m) * m


def _nbytes(shape, dtype):
    return math.prod(shape) * jnp.dtype(dtype).itemsize


# ----------------------------------------------------------------------------
# Pallas kernel: one grid step = Wb windows (M = Wb*N rows) processed together.
# ----------------------------------------------------------------------------
def _window_attention_kernel(x_ref, wqkv_ref, bqkv_ref, rbias_ref, mask_ref,
                             wproj_ref, bproj_ref, o_ref, qkv_ref, pv_ref, *,
                             num_heads, head_dim, windows_per_block, window_len):
    """Refs:
      x_ref    : (M, C)         input rows for this block (M = Wb*N)
      wqkv_ref : (C, 3C)        compact qkv weights (scale folded into q), cdt
      bqkv_ref : (1, 3C)        qkv bias (f32, scale folded into q part)
      rbias_ref: (H, N, N)      relative-position bias (f32, resident)
      mask_ref : (Wb, N, N)     per-window shifted-window mask for this block (f32)
      wproj_ref: (C, Cp)        output projection (columns zero-padded to Cp), cdt
      bproj_ref: (1, Cp)        output bias (f32, zero-padded)
      o_ref    : (M, Cp)        output block
      qkv_ref  : (M, 3C)  VMEM scratch, q/k/v activations (cdt)
      pv_ref   : (M, C)   VMEM scratch, per-head attn@v staging (cdt)
    """
    H, hd = num_heads, head_dim
    Wb, N = windows_per_block, window_len
    C = H * hd
    M = Wb * N
    cdt = qkv_ref.dtype                        # MXU operand dtype (bf16 / f32)

    # Fused q/k/v projection in the compact (M, 3C) layout; f32 accumulation.
    qkv = jnp.dot(x_ref[...], wqkv_ref[...], preferred_element_type=jnp.float32)
    qkv_ref[...] = (qkv + bqkv_ref[...]).astype(cdt)

    mask = mask_ref[...]                       # (Wb, N, N) additive window mask

    # TODO(synk): for realistic head counts (H >= 16) switch this to
    # lax.fori_loop(..., unroll=2) to bound live ranges; H is tiny here.
    for h in range(H):
        qh = qkv_ref[:, h * hd:(h + 1) * hd].reshape(Wb, N, hd)
        kh = qkv_ref[:, C + h * hd:C + (h + 1) * hd].reshape(Wb, N, hd)
        vh = qkv_ref[:, 2 * C + h * hd:2 * C + (h + 1) * hd].reshape(Wb, N, hd)

        # Block-diagonal scores: one batched MXU call per head -> (Wb, N, N).
        # Softmax work scales with Wb*N^2 instead of (Wb*N)^2.
        s = jnp.einsum('wqd,wkd->wqk', qh, kh,
                       preferred_element_type=jnp.float32)
        s = s + rbias_ref[h][None] + mask

        # Numerically stable softmax, f32; reciprocal on the EUP slot.
        s = s - jnp.max(s, axis=-1, keepdims=True)
        p = jnp.exp(s)
        p = p * pl.reciprocal(jnp.sum(p, axis=-1, keepdims=True), approx=True)

        pv = jnp.einsum('wqk,wkd->wqd', p.astype(cdt), vh,
                        preferred_element_type=jnp.float32)      # (Wb, N, hd)
        pv_ref[:, h * hd:(h + 1) * hd] = pv.reshape(M, hd).astype(cdt)

    # Single fused output projection over all heads (accumulation inside MXU);
    # proj bias added only at the final store.
    out = jnp.dot(pv_ref[...], wproj_ref[...], preferred_element_type=jnp.float32)
    o_ref[...] = (out + bproj_ref[...]).astype(o_ref.dtype)


# ----------------------------------------------------------------------------
# Host-side helpers
# ----------------------------------------------------------------------------
def _choose_windows_per_block(total_windows, window_len, target_rows=256):
    """Largest divisor Wb of the window count with Wb*N <= target_rows,
    preferring choices that leave an EVEN number of grid steps (>=2) so the
    'parallel' axis can shard across v7x's two TensorCores."""
    cands = [d for d in range(1, total_windows + 1)
             if total_windows % d == 0
             and d * window_len <= max(target_rows, window_len)]
    even = [d for d in cands if (total_windows // d) % 2 == 0]
    pool = even if even else cands
    return max(pool)


# ----------------------------------------------------------------------------
# Wrapper
# ----------------------------------------------------------------------------
def window_attention(x, wqkv, bqkv, rel_bias, mask, wproj, bproj, *,
                     num_heads, scale, windows_per_block=None,
                     compute_dtype=jnp.bfloat16, target_block_rows=256):
    """x: (B_, N, C); wqkv: (C, 3C) (transposed nn.Linear); mask: (nW, N, N) or None.

    compute_dtype: MXU operand dtype (default bf16: full-rate MXU on every
    generation); softmax and matmul accumulation stay f32.
    """
    B_, N, C = x.shape
    H = num_heads
    hd = C // H
    f32 = jnp.float32
    cdt = compute_dtype

    assert N % 8 == 0, "TODO(synk): N not a multiple of 8 needs seq padding + key masking"

    if mask is None:
        mask = jnp.zeros((1, N, N), dtype=f32)
    nW = mask.shape[0]
    assert B_ % nW == 0

    if windows_per_block is None:
        windows_per_block = _choose_windows_per_block(B_, N, target_block_rows)
    Wb = windows_per_block
    assert B_ % Wb == 0
    M = Wb * N
    n_blocks = B_ // Wb

    # Pad output channels only when needed for lane-dense stores.
    Cp = C if C % 128 == 0 else _round_up(C, 128)

    # Fold the attention scale into the q columns/bias (exact up to fp).
    wqkv_s = jnp.concatenate([wqkv[:, :C] * scale, wqkv[:, C:]], axis=1).astype(cdt)
    bqkv_s = jnp.concatenate([bqkv[:C] * scale, bqkv[C:]]).astype(f32)[None, :]

    wproj_p = jnp.zeros((C, Cp), f32).at[:, :C].set(wproj.astype(f32)).astype(cdt)
    bproj_p = jnp.zeros((1, Cp), f32).at[0, :C].set(bproj.astype(f32))

    rel_bias_f = rel_bias.astype(f32)                       # (H, N, N) resident

    # Per-window additive mask tiled over the flattened window batch so the block
    # size is decoupled from nW (window i uses mask[i % nW], as in the reference).
    mask_full = jnp.tile(mask.astype(f32), (B_ // nW, 1, 1))   # (B_, N, N)

    x2 = x.reshape(B_ * N, C).astype(cdt)

    kernel = functools.partial(_window_attention_kernel, num_heads=H, head_dim=hd,
                               windows_per_block=Wb, window_len=N)

    # Explicit scoped-VMEM budget: residents + double-buffered blocks + scratch.
    vmem_bytes = (
        2 * (_nbytes((M, C), cdt) + _nbytes((Wb, N, N), f32)
             + _nbytes((M, Cp), x.dtype))
        + 2 * (_nbytes((C, 3 * C), cdt) + _nbytes((1, 3 * C), f32)
               + _nbytes((H, N, N), f32) + _nbytes((C, Cp), cdt)
               + _nbytes((1, Cp), f32))
        + _nbytes((M, 3 * C), cdt) + _nbytes((M, C), cdt))
    vmem_limit = int(min(max(2 * vmem_bytes + (8 << 20), 32 << 20), 64 << 20))

    out_wide = pl.pallas_call(
        kernel,
        out_shape=jax.ShapeDtypeStruct((B_ * N, Cp), x.dtype),
        grid=(n_blocks,),
        in_specs=[
            pl.BlockSpec((M, C), lambda g: (g, 0)),          # x rows for block g
            pl.BlockSpec((C, 3 * C), lambda g: (0, 0)),      # resident compact qkv W
            pl.BlockSpec((1, 3 * C), lambda g: (0, 0)),      # qkv bias
            pl.BlockSpec((H, N, N), lambda g: (0, 0, 0)),    # resident rel-pos bias
            pl.BlockSpec((Wb, N, N), lambda g: (g, 0, 0)),   # per-block window mask
            pl.BlockSpec((C, Cp), lambda g: (0, 0)),         # resident proj W
            pl.BlockSpec((1, Cp), lambda g: (0, 0)),         # proj bias
        ],
        out_specs=pl.BlockSpec((M, Cp), lambda g: (g, 0)),
        scratch_shapes=[
            pltpu.VMEM((M, 3 * C), cdt),                     # q/k/v activations
            pltpu.VMEM((M, C), cdt),                         # per-head attn@v staging
        ],
        compiler_params=pltpu.CompilerParams(
            dimension_semantics=("parallel",),               # independent blocks
            vmem_limit_bytes=vmem_limit),
    )(x2, wqkv_s, bqkv_s, rel_bias_f, mask_full, wproj_p, bproj_p)

    out = out_wide if Cp == C else out_wide[:, :C]
    return out.reshape(B_, N, C)


# ----------------------------------------------------------------------------
# Glue: relative position index (pure JAX, matches the torch __init__)
# ----------------------------------------------------------------------------
def make_relative_position_index(window_size):
    wh, ww = window_size
    coords = jnp.stack(jnp.meshgrid(jnp.arange(wh), jnp.arange(ww), indexing="ij"))
    coords_flatten = coords.reshape(2, -1)                                # (2, N)
    rel = coords_flatten[:, :, None] - coords_flatten[:, None, :]         # (2, N, N)
    rel = rel.transpose(1, 2, 0)                                          # (N, N, 2)
    rel = rel.at[:, :, 0].add(wh - 1)
    rel = rel.at[:, :, 1].add(ww - 1)
    rel = rel.at[:, :, 0].multiply(2 * ww - 1)
    return rel.sum(-1)                                                    # (N, N)


# ----------------------------------------------------------------------------
# Pure-JAX reference (mirrors the torch forward) for verification
# ----------------------------------------------------------------------------
def reference(x, wqkv, bqkv, rel_bias, mask, wproj, bproj, *, num_heads, scale):
    B_, N, C = x.shape
    hd = C // num_heads
    qkv = x @ wqkv + bqkv
    qkv = qkv.reshape(B_, N, 3, num_heads, hd).transpose(2, 0, 3, 1, 4)
    q, k, v = qkv[0], qkv[1], qkv[2]
    q = q * scale
    attn = jnp.einsum("bhnd,bhmd->bhnm", q, k)
    attn = attn + rel_bias[None]
    nW = mask.shape[0]
    attn = attn.reshape(B_ // nW, nW, num_heads, N, N) + mask[None, :, None]
    attn = attn.reshape(B_, num_heads, N, N)
    attn = jax.nn.softmax(attn, axis=-1)
    out = jnp.einsum("bhnm,bhmd->bhnd", attn, v)
    out = out.transpose(0, 2, 1, 3).reshape(B_, N, C)
    return out @ wproj + bproj


# ----------------------------------------------------------------------------
# Main
# ----------------------------------------------------------------------------
if __name__ == "__main__":
    dim = 32
    window_size = (4, 4)
    num_heads = 4
    head_dim = dim // num_heads
    scale = head_dim ** (-0.5)
    N = window_size[0] * window_size[1]          # 16
    B = 4
    nW = 4
    B_ = B * nW                                  # 16 windows total

    key = jax.random.PRNGKey(0)
    k0, k1, k2, k3, k4, k5 = jax.random.split(key, 6)

    x = jax.random.normal(k0, (B_, N, dim), dtype=jnp.float32)
    wqkv = jax.random.normal(k1, (dim, 3 * dim), dtype=jnp.float32) * 0.05
    bqkv = jax.random.normal(k2, (3 * dim,), dtype=jnp.float32) * 0.02
    wproj = jax.random.normal(k3, (dim, dim), dtype=jnp.float32) * 0.05
    bproj = jax.random.normal(k4, (dim,), dtype=jnp.float32) * 0.02
    table = jax.random.normal(
        k5, ((2 * window_size[0] - 1) * (2 * window_size[1] - 1), num_heads),
        dtype=jnp.float32) * 0.02

    # Relative position bias: (num_heads, N, N)
    rel_index = make_relative_position_index(window_size)
    rel_bias = table[rel_index.reshape(-1)].reshape(N, N, num_heads).transpose(2, 0, 1)

    # Deterministic shifted-window-style mask (nW, N, N): block-diagonal 0/-100
    # on odd windows, all-zero on even windows.
    group = jnp.arange(N) // (N // 2)
    blockdiag = jnp.where(group[:, None] == group[None, :], 0.0, -100.0)
    mask = jnp.stack([blockdiag if w % 2 == 1 else jnp.zeros((N, N))
                      for w in range(nW)]).astype(jnp.float32)

    ref = reference(x, wqkv, bqkv, rel_bias, mask, wproj, bproj,
                    num_heads=num_heads, scale=scale)

    # --- f32 operand path (tight semantics check; only deviation is the EUP
    #     approx reciprocal in the softmax normalization)
    out_f32 = window_attention(x, wqkv, bqkv, rel_bias, mask, wproj, bproj,
                               num_heads=num_heads, scale=scale,
                               compute_dtype=jnp.float32)
    out_f32 = jax.block_until_ready(out_f32)
    assert out_f32.shape == (B_, N, dim)
    err_f32 = float(jnp.max(jnp.abs(out_f32 - ref)))
    assert jnp.allclose(out_f32, ref, rtol=5e-3, atol=5e-3), err_f32

    # --- default bf16 MXU-operand path (production path on v5e/v6e/v7x);
    #     softmax / accumulation stay f32
    out = window_attention(x, wqkv, bqkv, rel_bias, mask, wproj, bproj,
                           num_heads=num_heads, scale=scale)
    out = jax.block_until_ready(out)
    err = float(jnp.max(jnp.abs(out - ref)))
    assert jnp.allclose(out, ref, rtol=3e-2, atol=3e-2), err

    print("KERNEL_OK")
</pallas_src>

<mosaic_0001>
module attributes {stable_mosaic.version = 11 : i64} {
  func.func @_window_attention_kernel(%arg0: i32, %arg1: memref<128x32xf32, #tpu.memory_space<vmem>>, %arg2: memref<32x96xf32, #tpu.memory_space<vmem>>, %arg3: memref<1x96xf32, #tpu.memory_space<vmem>>, %arg4: memref<4x16x16xf32, #tpu.memory_space<vmem>>, %arg5: memref<8x16x16xf32, #tpu.memory_space<vmem>>, %arg6: memref<32x128xf32, #tpu.memory_space<vmem>>, %arg7: memref<1x128xf32, #tpu.memory_space<vmem>>, %arg8: memref<128x128xf32, #tpu.memory_space<vmem>>, %arg9: memref<128x96xf32, #tpu.memory_space<vmem>>, %arg10: memref<128x32xf32, #tpu.memory_space<vmem>>) attributes {dimension_semantics = [#tpu.dimension_semantics<parallel>], iteration_bounds = array<i64: 2>, scalar_prefetch = 0 : i64, scratch_operands = 2 : i64, tpu.core_type = #tpu.core_type<tc>, window_params = [{transform_indices = @transform_0, window_bounds = array<i64: 128, 32>}, {pipeline_mode = #tpu.pipeline_mode<synchronous>, transform_indices = @transform_1, window_bounds = array<i64: 32, 96>}, {pipeline_mode = #tpu.pipeline_mode<synchronous>, transform_indices = @transform_2, window_bounds = array<i64: 1, 96>}, {pipeline_mode = #tpu.pipeline_mode<synchronous>, transform_indices = @transform_3, window_bounds = array<i64: 4, 16, 16>}, {transform_indices = @transform_4, window_bounds = array<i64: 8, 16, 16>}, {pipeline_mode = #tpu.pipeline_mode<synchronous>, transform_indices = @transform_5, window_bounds = array<i64: 32, 128>}, {pipeline_mode = #tpu.pipeline_mode<synchronous>, transform_indices = @transform_6, window_bounds = array<i64: 1, 128>}, {transform_indices = @transform_7, window_bounds = array<i64: 128, 128>}]} {
    %c0 = arith.constant 0 : index
    %c0_0 = arith.constant 0 : index
    %0 = vector.load %arg1[%c0, %c0_0] : memref<128x32xf32, #tpu.memory_space<vmem>>, vector<128x32xf32>
    %c0_1 = arith.constant 0 : index
    %c0_2 = arith.constant 0 : index
    %1 = vector.load %arg2[%c0_1, %c0_2] : memref<32x96xf32, #tpu.memory_space<vmem>>, vector<32x96xf32>
    %cst = arith.constant dense<0.000000e+00> : vector<128x96xf32>
    %2 = tpu.matmul %0, %1, %cst {dimension_numbers = #tpu.dot_dimension_numbers<[1], [0], [0], [1], [0, 0, 1, 1], [], []>} : vector<128x32xf32>, vector<32x96xf32>, vector<128x96xf32> -> vector<128x96xf32>
    %c0_3 = arith.constant 0 : index
    %c0_4 = arith.constant 0 : index
    %3 = vector.load %arg3[%c0_3, %c0_4] : memref<1x96xf32, #tpu.memory_space<vmem>>, vector<1x96xf32>
    %4 = vector.broadcast %3 : vector<1x96xf32> to vector<128x96xf32>
    %5 = arith.addf %2, %4 : vector<128x96xf32>
    %c0_5 = arith.constant 0 : index
    %c0_6 = arith.constant 0 : index
    %6 = vector.load %arg9[%c0_5, %c0_6] : memref<128x96xf32, #tpu.memory_space<vmem>>, vector<128x96xf32>
    tpu.vector_store %arg9[%c0_5, %c0_6], %5 {strides = array<i32>} : memref<128x96xf32, #tpu.memory_space<vmem>>, vector<128x96xf32>,
    %c0_7 = arith.constant 0 : index
    %c0_8 = arith.constant 0 : index
    %c0_9 = arith.constant 0 : index
    %7 = vector.load %arg5[%c0_7, %c0_8, %c0_9] : memref<8x16x16xf32, #tpu.memory_space<vmem>>, vector<8x16x16xf32>
    %c0_10 = arith.constant 0 : index
    %c0_11 = arith.constant 0 : index
    %8 = vector.load %arg9[%c0_10, %c0_11] : memref<128x96xf32, #tpu.memory_space<vmem>>, vector<128x8xf32>
    %9 = vector.shape_cast %8 : vector<128x8xf32> to vector<8x16x8xf32>
    %c0_12 = arith.constant 0 : index
    %c32 = arith.constant 32 : index
    %10 = vector.load %arg9[%c0_12, %c32] : memref<128x96xf32, #tpu.memory_space<vmem>>, vector<128x8xf32>
    %11 = vector.shape_cast %10 : vector<128x8xf32> to vector<8x16x8xf32>
    %c0_13 = arith.constant 0 : index
    %c64 = arith.constant 64 : index
    %12 = vector.load %arg9[%c0_13, %c64] : memref<128x96xf32, #tpu.memory_space<vmem>>, vector<128x8xf32>
    %13 = vector.shape_cast %12 : vector<128x8xf32> to vector<8x16x8xf32>
    "tpu.trace_start"() <{level = 10 : i32, message = "wqd,wkd->wqk"}> : () -> ()
    %cst_14 = arith.constant dense<0.000000e+00> : vector<8x16x16xf32>
    %14 = tpu.matmul %9, %11, %cst_14 {dimension_numbers = #tpu.dot_dimension_numbers<[2], [2], [1], [1], [0, 0, 0, 1, 1, 1], [0], [0]>} : vector<8x16x8xf32>, vector<8x16x8xf32>, vector<8x16x16xf32> -> vector<8x16x16xf32>
    "tpu.trace_stop"() : () -> ()
    %c0_15 = arith.constant 0 : index
    %c0_16 = arith.constant 0 : index
    %c0_17 = arith.constant 0 : index
    %15 = vector.load %arg4[%c0_15, %c0_16, %c0_17] : memref<4x16x16xf32, #tpu.memory_space<vmem>>, vector<1x16x16xf32>
    %16 = vector.shape_cast %15 : vector<1x16x16xf32> to vector<16x16xf32>
    %17 = vector.shape_cast %16 : vector<16x16xf32> to vector<1x16x16xf32>
    %18 = vector.broadcast %17 : vector<1x16x16xf32> to vector<8x16x16xf32>
    %19 = arith.addf %14, %18 : vector<8x16x16xf32>
    %20 = arith.addf %19, %7 : vector<8x16x16xf32>
    %cst_18 = arith.constant dense<0xFF800000> : vector<8x16xf32>
    %21 = vector.multi_reduction <maximumf>, %20, %cst_18 [2] : vector<8x16x16xf32> to vector<8x16xf32>
    %22 = vector.shape_cast %21 : vector<8x16xf32> to vector<8x16x1xf32>
    %23 = vector.broadcast %22 : vector<8x16x1xf32> to vector<8x16x16xf32>
    %24 = arith.subf %20, %23 : vector<8x16x16xf32>
    %25 = math.exp %24 : vector<8x16x16xf32>
    %cst_19 = arith.constant dense<0.000000e+00> : vector<8x16xf32>
    %26 = vector.multi_reduction <add>, %25, %cst_19 [2] : vector<8x16x16xf32> to vector<8x16xf32>
    %27 = vector.shape_cast %26 : vector<8x16xf32> to vector<8x16x1xf32>
    %28 = tpu.reciprocal %27 {approx = true} : vector<8x16x1xf32> -> vector<8x16x1xf32>
    %29 = vector.broadcast %28 : vector<8x16x1xf32> to vector<8x16x16xf32>
    %30 = arith.mulf %25, %29 : vector<8x16x16xf32>
    "tpu.trace_start"() <{level = 10 : i32, message = "wqk,wkd->wqd"}> : () -> ()
    %cst_20 = arith.constant dense<0.000000e+00> : vector<8x16x8xf32>
    %31 = tpu.matmul %30, %13, %cst_20 {dimension_numbers = #tpu.dot_dimension_numbers<[2], [1], [1], [2], [0, 0, 0, 1, 1, 2], [0], [0]>} : vector<8x16x16xf32>, vector<8x16x8xf32>, vector<8x16x8xf32> -> vector<8x16x8xf32>
    "tpu.trace_stop"() : () -> ()
    %32 = vector.shape_cast %31 : vector<8x16x8xf32> to vector<128x8xf32>
    %c0_21 = arith.constant 0 : index
    %c0_22 = arith.constant 0 : index
    %33 = vector.load %arg10[%c0_21, %c0_22] : memref<128x32xf32, #tpu.memory_space<vmem>>, vector<128x8xf32>
    tpu.vector_store %arg10[%c0_21, %c0_22], %32 {strides = array<i32>} : memref<128x32xf32, #tpu.memory_space<vmem>>, vector<128x8xf32>,
    %c0_23 = arith.constant 0 : index
    %c8 = arith.constant 8 : index
    %34 = vector.load %arg9[%c0_23, %c8] : memref<128x96xf32, #tpu.memory_space<vmem>>, vector<128x8xf32>
    %35 = vector.shape_cast %34 : vector<128x8xf32> to vector<8x16x8xf32>
    %c0_24 = arith.constant 0 : index
    %c40 = arith.constant 40 : index
    %36 = vector.load %arg9[%c0_24, %c40] : memref<128x96xf32, #tpu.memory_space<vmem>>, vector<128x8xf32>
    %37 = vector.shape_cast %36 : vector<128x8xf32> to vector<8x16x8xf32>
    %c0_25 = arith.constant 0 : index
    %c72 = arith.constant 72 : index
    %38 = vector.load %arg9[%c0_25, %c72] : memref<128x96xf32, #tpu.memory_space<vmem>>, vector<128x8xf32>
    %39 = vector.shape_cast %38 : vector<128x8xf32> to vector<8x16x8xf32>
    "tpu.trace_start"() <{level = 10 : i32, message = "wqd,wkd->wqk"}> : () -> ()
    %cst_26 = arith.constant dense<0.000000e+00> : vector<8x16x16xf32>
    %40 = tpu.matmul %35, %37, %cst_26 {dimension_numbers = #tpu.dot_dimension_numbers<[2], [2], [1], [1], [0, 0, 0, 1, 1, 1], [0], [0]>} : vector<8x16x8xf32>, vector<8x16x8xf32>, vector<8x16x16xf32> -> vector<8x16x16xf32>
    "tpu.trace_stop"() : () -> ()
    %c1 = arith.constant 1 : index
    %c0_27 = arith.constant 0 : index
    %c0_28 = arith.constant 0 : index
    %41 = vector.load %arg4[%c1, %c0_27, %c0_28] : memref<4x16x16xf32, #tpu.memory_space<vmem>>, vector<1x16x16xf32>
    %42 = vector.shape_cast %41 : vector<1x16x16xf32> to vector<16x16xf32>
    %43 = vector.shape_cast %42 : vector<16x16xf32> to vector<1x16x16xf32>
    %44 = vector.broadcast %43 : vector<1x16x16xf32> to vector<8x16x16xf32>
    %45 = arith.addf %40, %44 : vector<8x16x16xf32>
    %46 = arith.addf %45, %7 : vector<8x16x16xf32>
    %cst_29 = arith.constant dense<0xFF800000> : vector<8x16xf32>
    %47 = vector.multi_reduction <maximumf>, %46, %cst_29 [2] : vector<8x16x16xf32> to vector<8x16xf32>
    %48 = vector.shape_cast %47 : vector<8x16xf32> to vector<8x16x1xf32>
    %49 = vector.broadcast %48 : vector<8x16x1xf32> to vector<8x16x16xf32>
    %50 = arith.subf %46, %49 : vector<8x16x16xf32>
    %51 = math.exp %50 : vector<8x16x16xf32>
    %cst_30 = arith.constant dense<0.000000e+00> : vector<8x16xf32>
    %52 = vector.multi_reduction <add>, %51, %cst_30 [2] : vector<8x16x16xf32> to vector<8x16xf32>
    %53 = vector.shape_cast %52 : vector<8x16xf32> to vector<8x16x1xf32>
    %54 = tpu.reciprocal %53 {approx = true} : vector<8x16x1xf32> -> vector<8x16x1xf32>
    %55 = vector.broadcast %54 : vector<8x16x1xf32> to vector<8x16x16xf32>
    %56 = arith.mulf %51, %55 : vector<8x16x16xf32>
    "tpu.trace_start"() <{level = 10 : i32, message = "wqk,wkd->wqd"}> : () -> ()
    %cst_31 = arith.constant dense<0.000000e+00> : vector<8x16x8xf32>
    %57 = tpu.matmul %56, %39, %cst_31 {dimension_numbers = #tpu.dot_dimension_numbers<[2], [1], [1], [2], [0, 0, 0, 1, 1, 2], [0], [0]>} : vector<8x16x16xf32>, vector<8x16x8xf32>, vector<8x16x8xf32> -> vector<8x16x8xf32>
    "tpu.trace_stop"() : () -> ()
    %58 = vector.shape_cast %57 : vector<8x16x8xf32> to vector<128x8xf32>
    %c0_32 = arith.constant 0 : index
    %c8_33 = arith.constant 8 : index
    %59 = vector.load %arg10[%c0_32, %c8_33] : memref<128x32xf32, #tpu.memory_space<vmem>>, vector<128x8xf32>
    tpu.vector_store %arg10[%c0_32, %c8_33], %58 {strides = array<i32>} : memref<128x32xf32, #tpu.memory_space<vmem>>, vector<128x8xf32>,
    %c0_34 = arith.constant 0 : index
    %c16 = arith.constant 16 : index
    %60 = vector.load %arg9[%c0_34, %c16] : memref<128x96xf32, #tpu.memory_space<vmem>>, vector<128x8xf32>
    %61 = vector.shape_cast %60 : vector<128x8xf32> to vector<8x16x8xf32>
    %c0_35 = arith.constant 0 : index
    %c48 = arith.constant 48 : index
    %62 = vector.load %arg9[%c0_35, %c48] : memref<128x96xf32, #tpu.memory_space<vmem>>, vector<128x8xf32>
    %63 = vector.shape_cast %62 : vector<128x8xf32> to vector<8x16x8xf32>
    %c0_36 = arith.constant 0 : index
    %c80 = arith.constant 80 : index
    %64 = vector.load %arg9[%c0_36, %c80] : memref<128x96xf32, #tpu.memory_space<vmem>>, vector<128x8xf32>
    %65 = vector.shape_cast %64 : vector<128x8xf32> to vector<8x16x8xf32>
    "tpu.trace_start"() <{level = 10 : i32, message = "wqd,wkd->wqk"}> : () -> ()
    %cst_37 = arith.constant dense<0.000000e+00> : vector<8x16x16xf32>
    %66 = tpu.matmul %61, %63, %cst_37 {dimension_numbers = #tpu.dot_dimension_numbers<[2], [2], [1], [1], [0, 0, 0, 1, 1, 1], [0], [0]>} : vector<8x16x8xf32>, vector<8x16x8xf32>, vector<8x16x16xf32> -> vector<8x16x16xf32>
    "tpu.trace_stop"() : () -> ()
    %c2 = arith.constant 2 : index
    %c0_38 = arith.constant 0 : index
    %c0_39 = arith.constant 0 : index
    %67 = vector.load %arg4[%c2, %c0_38, %c0_39] : memref<4x16x16xf32, #tpu.memory_space<vmem>>, vector<1x16x16xf32>
    %68 = vector.shape_cast %67 : vector<1x16x16xf32> to vector<16x16xf32>
    %69 = vector.shape_cast %68 : vector<16x16xf32> to vector<1x16x16xf32>
    %70 = vector.broadcast %69 : vector<1x16x16xf32> to vector<8x16x16xf32>
    %71 = arith.addf %66, %70 : vector<8x16x16xf32>
    %72 = arith.addf %71, %7 : vector<8x16x16xf32>
    %cst_40 = arith.constant dense<0xFF800000> : vector<8x16xf32>
    %73 = vector.multi_reduction <maximumf>, %72, %cst_40 [2] : vector<8x16x16xf32> to vector<8x16xf32>
    %74 = vector.shape_cast %73 : vector<8x16xf32> to vector<8x16x1xf32>
    %75 = vector.broadcast %74 : vector<8x16x1xf32> to vector<8x16x16xf32>
    %76 = arith.subf %72, %75 : vector<8x16x16xf32>
    %77 = math.exp %76 : vector<8x16x16xf32>
    %cst_41 = arith.constant dense<0.000000e+00> : vector<8x16xf32>
    %78 = vector.multi_reduction <add>, %77, %cst_41 [2] : vector<8x16x16xf32> to vector<8x16xf32>
    %79 = vector.shape_cast %78 : vector<8x16xf32> to vector<8x16x1xf32>
    %80 = tpu.reciprocal %79 {approx = true} : vector<8x16x1xf32> -> vector<8x16x1xf32>
    %81 = vector.broadcast %80 : vector<8x16x1xf32> to vector<8x16x16xf32>
    %82 = arith.mulf %77, %81 : vector<8x16x16xf32>
    "tpu.trace_start"() <{level = 10 : i32, message = "wqk,wkd->wqd"}> : () -> ()
    %cst_42 = arith.constant dense<0.000000e+00> : vector<8x16x8xf32>
    %83 = tpu.matmul %82, %65, %cst_42 {dimension_numbers = #tpu.dot_dimension_numbers<[2], [1], [1], [2], [0, 0, 0, 1, 1, 2], [0], [0]>} : vector<8x16x16xf32>, vector<8x16x8xf32>, vector<8x16x8xf32> -> vector<8x16x8xf32>
    "tpu.trace_stop"() : () -> ()
    %84 = vector.shape_cast %83 : vector<8x16x8xf32> to vector<128x8xf32>
    %c0_43 = arith.constant 0 : index
    %c16_44 = arith.constant 16 : index
    %85 = vector.load %arg10[%c0_43, %c16_44] : memref<128x32xf32, #tpu.memory_space<vmem>>, vector<128x8xf32>
    tpu.vector_store %arg10[%c0_43, %c16_44], %84 {strides = array<i32>} : memref<128x32xf32, #tpu.memory_space<vmem>>, vector<128x8xf32>,
    %c0_45 = arith.constant 0 : index
    %c24 = arith.constant 24 : index
    %86 = vector.load %arg9[%c0_45, %c24] : memref<128x96xf32, #tpu.memory_space<vmem>>, vector<128x8xf32>
    %87 = vector.shape_cast %86 : vector<128x8xf32> to vector<8x16x8xf32>
    %c0_46 = arith.constant 0 : index
    %c56 = arith.constant 56 : index
    %88 = vector.load %arg9[%c0_46, %c56] : memref<128x96xf32, #tpu.memory_space<vmem>>, vector<128x8xf32>
    %89 = vector.shape_cast %88 : vector<128x8xf32> to vector<8x16x8xf32>
    %c0_47 = arith.constant 0 : index
    %c88 = arith.constant 88 : index
    %90 = vector.load %arg9[%c0_47, %c88] : memref<128x96xf32, #tpu.memory_space<vmem>>, vector<128x8xf32>
    %91 = vector.shape_cast %90 : vector<128x8xf32> to vector<8x16x8xf32>
    "tpu.trace_start"() <{level = 10 : i32, message = "wqd,wkd->wqk"}> : () -> ()
    %cst_48 = arith.constant dense<0.000000e+00> : vector<8x16x16xf32>
    %92 = tpu.matmul %87, %89, %cst_48 {dimension_numbers = #tpu.dot_dimension_numbers<[2], [2], [1], [1], [0, 0, 0, 1, 1, 1], [0], [0]>} : vector<8x16x8xf32>, vector<8x16x8xf32>, vector<8x16x16xf32> -> vector<8x16x16xf32>
    "tpu.trace_stop"() : () -> ()
    %c3 = arith.constant 3 : index
    %c0_49 = arith.constant 0 : index
    %c0_50 = arith.constant 0 : index
    %93 = vector.load %arg4[%c3, %c0_49, %c0_50] : memref<4x16x16xf32, #tpu.memory_space<vmem>>, vector<1x16x16xf32>
    %94 = vector.shape_cast %93 : vector<1x16x16xf32> to vector<16x16xf32>
    %95 = vector.shape_cast %94 : vector<16x16xf32> to vector<1x16x16xf32>
    %96 = vector.broadcast %95 : vector<1x16x16xf32> to vector<8x16x16xf32>
    %97 = arith.addf %92, %96 : vector<8x16x16xf32>
    %98 = arith.addf %97, %7 : vector<8x16x16xf32>
    %cst_51 = arith.constant dense<0xFF800000> : vector<8x16xf32>
    %99 = vector.multi_reduction <maximumf>, %98, %cst_51 [2] : vector<8x16x16xf32> to vector<8x16xf32>
    %100 = vector.shape_cast %99 : vector<8x16xf32> to vector<8x16x1xf32>
    %101 = vector.broadcast %100 : vector<8x16x1xf32> to vector<8x16x16xf32>
    %102 = arith.subf %98, %101 : vector<8x16x16xf32>
    %103 = math.exp %102 : vector<8x16x16xf32>
    %cst_52 = arith.constant dense<0.000000e+00> : vector<8x16xf32>
    %104 = vector.multi_reduction <add>, %103, %cst_52 [2] : vector<8x16x16xf32> to vector<8x16xf32>
    %105 = vector.shape_cast %104 : vector<8x16xf32> to vector<8x16x1xf32>
    %106 = tpu.reciprocal %105 {approx = true} : vector<8x16x1xf32> -> vector<8x16x1xf32>
    %107 = vector.broadcast %106 : vector<8x16x1xf32> to vector<8x16x16xf32>
    %108 = arith.mulf %103, %107 : vector<8x16x16xf32>
    "tpu.trace_start"() <{level = 10 : i32, message = "wqk,wkd->wqd"}> : () -> ()
    %cst_53 = arith.constant dense<0.000000e+00> : vector<8x16x8xf32>
    %109 = tpu.matmul %108, %91, %cst_53 {dimension_numbers = #tpu.dot_dimension_numbers<[2], [1], [1], [2], [0, 0, 0, 1, 1, 2], [0], [0]>} : vector<8x16x16xf32>, vector<8x16x8xf32>, vector<8x16x8xf32> -> vector<8x16x8xf32>
    "tpu.trace_stop"() : () -> ()
    %110 = vector.shape_cast %109 : vector<8x16x8xf32> to vector<128x8xf32>
    %c0_54 = arith.constant 0 : index
    %c24_55 = arith.constant 24 : index
    %111 = vector.load %arg10[%c0_54, %c24_55] : memref<128x32xf32, #tpu.memory_space<vmem>>, vector<128x8xf32>
    tpu.vector_store %arg10[%c0_54, %c24_55], %110 {strides = array<i32>} : memref<128x32xf32, #tpu.memory_space<vmem>>, vector<128x8xf32>,
    %c0_56 = arith.constant 0 : index
    %c0_57 = arith.constant 0 : index
    %112 = vector.load %arg10[%c0_56, %c0_57] : memref<128x32xf32, #tpu.memory_space<vmem>>, vector<128x32xf32>
    %c0_58 = arith.constant 0 : index
    %c0_59 = arith.constant 0 : index
    %113 = vector.load %arg6[%c0_58, %c0_59] : memref<32x128xf32, #tpu.memory_space<vmem>>, vector<32x128xf32>
    %cst_60 = arith.constant dense<0.000000e+00> : vector<128x128xf32>
    %114 = tpu.matmul %112, %113, %cst_60 {dimension_numbers = #tpu.dot_dimension_numbers<[1], [0], [0], [1], [0, 0, 1, 1], [], []>} : vector<128x32xf32>, vector<32x128xf32>, vector<128x128xf32> -> vector<128x128xf32>
    %c0_61 = arith.constant 0 : index
    %c0_62 = arith.constant 0 : index
    %115 = vector.load %arg7[%c0_61, %c0_62] : memref<1x128xf32, #tpu.memory_space<vmem>>, vector<1x128xf32>
    %116 = vector.broadcast %115 : vector<1x128xf32> to vector<128x128xf32>
    %117 = arith.addf %114, %116 : vector<128x128xf32>
    %c0_63 = arith.constant 0 : index
    %c0_64 = arith.constant 0 : index
    %118 = vector.load %arg8[%c0_63, %c0_64] : memref<128x128xf32, #tpu.memory_space<vmem>>, vector<128x128xf32>
    tpu.vector_store %arg8[%c0_63, %c0_64], %117 {strides = array<i32>} : memref<128x128xf32, #tpu.memory_space<vmem>>, vector<128x128xf32>,
    return
  }
  func.func @transform_0(%arg0: i32) -> (i32, i32) {
    %c0_i32 = arith.constant 0 : i32
    %c0_i32_0 = arith.constant 0 : i32
    return %arg0, %c0_i32 : i32, i32
  }
  func.func @transform_1(%arg0: i32) -> (i32, i32) {
    %c0_i32 = arith.constant 0 : i32
    %c0_i32_0 = arith.constant 0 : i32
    %c0_i32_1 = arith.constant 0 : i32
    return %c0_i32, %c0_i32_0 : i32, i32
  }
  func.func @transform_2(%arg0: i32) -> (i32, i32) {
    %c0_i32 = arith.constant 0 : i32
    %c0_i32_0 = arith.constant 0 : i32
    %c0_i32_1 = arith.constant 0 : i32
    return %c0_i32, %c0_i32_0 : i32, i32
  }
  func.func @transform_3(%arg0: i32) -> (i32, i32, i32) {
    %c0_i32 = arith.constant 0 : i32
    %c0_i32_0 = arith.constant 0 : i32
    %c0_i32_1 = arith.constant 0 : i32
    %c0_i32_2 = arith.constant 0 : i32
    return %c0_i32, %c0_i32_0, %c0_i32_1 : i32, i32, i32
  }
  func.func @transform_4(%arg0: i32) -> (i32, i32, i32) {
    %c0_i32 = arith.constant 0 : i32
    %c0_i32_0 = arith.constant 0 : i32
    %c0_i32_1 = arith.constant 0 : i32
    return %arg0, %c0_i32, %c0_i32_0 : i32, i32, i32
  }
  func.func @transform_5(%arg0: i32) -> (i32, i32) {
    %c0_i32 = arith.constant 0 : i32
    %c0_i32_0 = arith.constant 0 : i32
    %c0_i32_1 = arith.constant 0 : i32
    return %c0_i32, %c0_i32_0 : i32, i32
  }
  func.func @transform_6(%arg0: i32) -> (i32, i32) {
    %c0_i32 = arith.constant 0 : i32
    %c0_i32_0 = arith.constant 0 : i32
    %c0_i32_1 = arith.constant 0 : i32
    return %c0_i32, %c0_i32_0 : i32, i32
  }
  func.func @transform_7(%arg0: i32) -> (i32, i32) {
    %c0_i32 = arith.constant 0 : i32
    %c0_i32_0 = arith.constant 0 : i32
    return %arg0, %c0_i32 : i32, i32
  }
}

</mosaic_0001>

<llo_original>
// kernel: tpu_custom_call.1
$region0: #{tpu_custom_call.1}
  #allocation0 [shape = 'u32[]', space=smem, size = 0x4, offset = 0x4, fixed_abs, tag = 'smem constant byte address 0x4 - core index']
  #allocation1 [shape = 'u32[144,128]{1,0:T(1,128)}', space=vmem, size = 0x12000, scoped, tag = 'internal scratch']
  #allocation2 [shape = 'f32[128,96]{1,0:T(8,128)}', space=vmem, size = 0x10000, scoped, tag = 'scratch operand']
  #allocation3 [shape = 'f32[128,32]{1,0:T(8,128)}', space=vmem, size = 0x10000, scoped, tag = 'scratch operand']
  %s0 = inlined_call_operand.vmem [shape: f32[256,32], index: 0, kind: input, shape index: {}]
  %s1 = inlined_call_operand.hbm [shape: f32[32,96], index: 1, kind: input, shape index: {}]
  %s2 = inlined_call_operand.vmem [shape: f32[1,96], index: 2, kind: input, shape index: {}]
  %s3 = inlined_call_operand.vmem [shape: f32[4,16,16], index: 3, kind: input, shape index: {}]
  %s4 = inlined_call_operand.vmem [shape: f32[16,16,16], index: 4, kind: input, shape index: {}]
  %s5 = inlined_call_operand.hbm [shape: f32[32,128], index: 5, kind: input, shape index: {}]
  %s6 = inlined_call_operand.vmem [shape: f32[1,128], index: 6, kind: input, shape index: {}]
  %s7 = inlined_call_operand.hbm [shape: f32[256,128], index: 7, kind: output, shape index: {}]
  %s8 = sld [smem:[#allocation0]]
  $region69: #{tpu_custom_call.1} parent=0
    _
  %s10 = ssub.s32 1, %s8
  %s11 = scalar_select 0, %s10, %s8
  $region1: #{tpu_custom_call.1} parent=0
    #allocation4 [shape = 'u8[16384]{0}', space=vmem, size = 0x4000, scoped, tag = 'input window, operand 1, single buffered']
    #allocation5 [shape = 's32[2]{0}', space=sflag, size = 0x8, scoped, tag = 'scoped memory for tpu_custom_call.1']
    #allocation6 [shape = 's32[2]{0}', space=sflag, size = 0x8, scoped, tag = 'scoped memory for tpu_custom_call.1']
    #allocation7 [shape = 'u8[16384]{0}', space=vmem, size = 0x4000, scoped, tag = 'input window, operand 5, single buffered']
    #allocation8 [shape = 's32[1]{0}', space=sflag, size = 0x4, scoped, tag = 'scoped memory for tpu_custom_call.1']
    #allocation9 [shape = 'u8[131072]{0}', space=vmem, size = 0x20000, scoped, tag = 'output window, operand 0']
    %12 = vsyncpa [#allocation5], 0
    %13 = vsyncpa [#allocation8], 0
    %14 = vsyncpa [#allocation6], 0
    %s15 = scalar_lea.sflag [#allocation6], 1
    %16 = vsyncpa %s15, 0
    loop: start=0, step=1, limit=4
    $region2: #{tpu_custom_call.1} parent=1 // loop_pre_header
      _
    $region3: #{tpu_custom_call.1} parent=1 // loop_header
      %s18 = sphi 0, %s22
      %p19 = scmp.ge.s32.totalorder %s18, 4
      %s28 = sphi 0, %s30
      %s31 = sphi 0, %s28
      %s32 = sphi 0, %s31
      %s48 = sphi 0, %s32
      %s52 = sphi 0, %s52
      %s54 = sphi 0, %s52
      %s55 = sphi 0, %s54
      %s69 = sphi 0, %s55
      %s73 = sphi 0, %s73
      %s75 = sphi 0, %s73
      %s76 = sphi 0, %s75
      %s90 = sphi 0, %s76
      %s94 = sphi 0, %s94
      %s96 = sphi 0, %s94
      %s97 = sphi 0, %s96
      %s111 = sphi 0, %s97
      %s117 = sphi 0, %s119
      %s120 = sphi 0, %s117
      %s121 = sphi 0, %s120
      %s137 = sphi 0, %s121
      %s141 = sphi 0, %s141
      %s143 = sphi 0, %s141
      %s144 = sphi 0, %s143
      %s158 = sphi 0, %s144
      %s162 = sphi 0, %s162
      %s164 = sphi 0, %s162
      %s165 = sphi 0, %s164
      %s179 = sphi 0, %s165
      %s185 = sphi 0, %s187
      %s188 = sphi 0, %s185
      %s189 = sphi 0, %s188
      %s205 = sphi 0, %s189
    $region4: #{tpu_custom_call.1} parent=1 // loop_header_branch
      %21 = sbr.rel (%p19) target = $region8
    $region5: #{tpu_custom_call.1} parent=1 // loop_body
      %s23 = ssub.s32 %s18, 1
      %s24 = ssub.s32 %s18, 2
      %s25 = sadd.s32 %s18, 1
      %s26 = ssub.s32 %s18, %s25
      %p27 = scmp.eq.s32.totalorder %s26, 0
      %s29 = sadd.s32 %s28, 1
      %s30 = scalar_select %p27, %s28, %s29
      %p33 = pneg %p27
      %p34 = scmp.eq.s32.totalorder %s18, 1
      %p35 = por %p33, %p34
      %p36 = scmp.ne.s32.totalorder %s28, %s31
      %p37 = scmp.eq.s32.totalorder %s18, 0
      %p38 = por %p36, %p37
      %p39 = scmp.ne.s32.totalorder %s28, %s31
      %p40 = scmp.eq.s32.totalorder %s23, 1
      %p41 = por %p39, %p40
      %p42 = scmp.ne.s32.totalorder %s31, %s32
      %p43 = scmp.eq.s32.totalorder %s23, 0
      %p44 = por %p42, %p43
      %p45 = scmp.ne.s32.totalorder %s31, %s32
      %p46 = scmp.eq.s32.totalorder %s24, 1
      %p47 = por %p45, %p46
      %p49 = scmp.ne.s32.totalorder %s32, %s48
      %p50 = scmp.eq.s32.totalorder %s24, 0
      %p51 = por %p49, %p50
      %s53 = sadd.s32 %s52, 1
      %p56 = scmp.eq.s32.totalorder %s18, 1
      %p57 = scmp.ne.s32.totalorder %s52, %s54
      %p58 = scmp.eq.s32.totalorder %s18, 0
      %p59 = por %p57, %p58
      %p60 = scmp.ne.s32.totalorder %s52, %s54
      %p61 = scmp.eq.s32.totalorder %s23, 1
      %p62 = por %p60, %p61
      %p63 = scmp.ne.s32.totalorder %s54, %s55
      %p64 = scmp.eq.s32.totalorder %s23, 0
      %p65 = por %p63, %p64
      %p66 = scmp.ne.s32.totalorder %s54, %s55
      %p67 = scmp.eq.s32.totalorder %s24, 1
      %p68 = por %p66, %p67
      %p70 = scmp.ne.s32.totalorder %s55, %s69
      %p71 = scmp.eq.s32.totalorder %s24, 0
      %p72 = por %p70, %p71
      %s74 = sadd.s32 %s73, 1
      %p77 = scmp.eq.s32.totalorder %s18, 1
      %p78 = scmp.ne.s32.totalorder %s73, %s75
      %p79 = scmp.eq.s32.totalorder %s18, 0
      %p80 = por %p78, %p79
      %p81 = scmp.ne.s32.totalorder %s73, %s75
      %p82 = scmp.eq.s32.totalorder %s23, 1
      %p83 = por %p81, %p82
      %p84 = scmp.ne.s32.totalorder %s75, %s76
      %p85 = scmp.eq.s32.totalorder %s23, 0
      %p86 = por %p84, %p85
      %p87 = scmp.ne.s32.totalorder %s75, %s76
      %p88 = scmp.eq.s32.totalorder %s24, 1
      %p89 = por %p87, %p88
      %p91 = scmp.ne.s32.totalorder %s76, %s90
      %p92 = scmp.eq.s32.totalorder %s24, 0
      %p93 = por %p91, %p92
      %s95 = sadd.s32 %s94, 1
      %p98 = scmp.eq.s32.totalorder %s18, 1
      %p99 = scmp.ne.s32.totalorder %s94, %s96
      %p100 = scmp.eq.s32.totalorder %s18, 0
      %p101 = por %p99, %p100
      %p102 = scmp.ne.s32.totalorder %s94, %s96
      %p103 = scmp.eq.s32.totalorder %s23, 1
      %p104 = por %p102, %p103
      %p105 = scmp.ne.s32.totalorder %s96, %s97
      %p106 = scmp.eq.s32.totalorder %s23, 0
      %p107 = por %p105, %p106
      %p108 = scmp.ne.s32.totalorder %s96, %s97
      %p109 = scmp.eq.s32.totalorder %s24, 1
      %p110 = por %p108, %p109
      %p112 = scmp.ne.s32.totalorder %s97, %s111
      %p113 = scmp.eq.s32.totalorder %s24, 0
      %p114 = por %p112, %p113
      %s115 = ssub.s32 %s18, %s25
      %p116 = scmp.eq.s32.totalorder %s115, 0
      %s118 = sadd.s32 %s117, 1
      %s119 = scalar_select %p116, %s117, %s118
      %p122 = pneg %p116
      %p123 = scmp.eq.s32.totalorder %s18, 1
      %p124 = por %p122, %p123
      %p125 = scmp.ne.s32.totalorder %s117, %s120
      %p126 = scmp.eq.s32.totalorder %s18, 0
      %p127 = por %p125, %p126
      %p128 = scmp.ne.s32.totalorder %s117, %s120
      %p129 = scmp.eq.s32.totalorder %s23, 1
      %p130 = por %p128, %p129
      %p131 = scmp.ne.s32.totalorder %s120, %s121
      %p132 = scmp.eq.s32.totalorder %s23, 0
      %p133 = por %p131, %p132
      %p134 = scmp.ne.s32.totalorder %s120, %s121
      %p135 = scmp.eq.s32.totalorder %s24, 1
      %p136 = por %p134, %p135
      %p138 = scmp.ne.s32.totalorder %s121, %s137
      %p139 = scmp.eq.s32.totalorder %s24, 0
      %p140 = por %p138, %p139
      %s142 = sadd.s32 %s141, 1
      %p145 = scmp.eq.s32.totalorder %s18, 1
      %p146 = scmp.ne.s32.totalorder %s141, %s143
      %p147 = scmp.eq.s32.totalorder %s18, 0
      %p148 = por %p146, %p147
      %p149 = scmp.ne.s32.totalorder %s141, %s143
      %p150 = scmp.eq.s32.totalorder %s23, 1
      %p151 = por %p149, %p150
      %p152 = scmp.ne.s32.totalorder %s143, %s144
      %p153 = scmp.eq.s32.totalorder %s23, 0
      %p154 = por %p152, %p153
      %p155 = scmp.ne.s32.totalorder %s143, %s144
      %p156 = scmp.eq.s32.totalorder %s24, 1
      %p157 = por %p155, %p156
      %p159 = scmp.ne.s32.totalorder %s144, %s158
      %p160 = scmp.eq.s32.totalorder %s24, 0
      %p161 = por %p159, %p160
      %s163 = sadd.s32 %s162, 1
      %p166 = scmp.eq.s32.totalorder %s18, 1
      %p167 = scmp.ne.s32.totalorder %s162, %s164
      %p168 = scmp.eq.s32.totalorder %s18, 0
      %p169 = por %p167, %p168
      %p170 = scmp.ne.s32.totalorder %s162, %s164
      %p171 = scmp.eq.s32.totalorder %s23, 1
      %p172 = por %p170, %p171
      %p173 = scmp.ne.s32.totalorder %s164, %s165
      %p174 = scmp.eq.s32.totalorder %s23, 0
      %p175 = por %p173, %p174
      %p176 = scmp.ne.s32.totalorder %s164, %s165
      %p177 = scmp.eq.s32.totalorder %s24, 1
      %p178 = por %p176, %p177
      %p180 = scmp.ne.s32.totalorder %s165, %s179
      %p181 = scmp.eq.s32.totalorder %s24, 0
      %p182 = por %p180, %p181
      %s183 = ssub.s32 %s18, %s25
      %p184 = scmp.eq.s32.totalorder %s183, 0
      %s186 = sadd.s32 %s185, 1
      %s187 = scalar_select %p184, %s185, %s186
      %p190 = pneg %p184
      %p191 = scmp.eq.s32.totalorder %s18, 1
      %p192 = por %p190, %p191
      %p193 = scmp.ne.s32.totalorder %s185, %s188
      %p194 = scmp.eq.s32.totalorder %s18, 0
      %p195 = por %p193, %p194
      %p196 = scmp.ne.s32.totalorder %s185, %s188
      %p197 = scmp.eq.s32.totalorder %s23, 1
      %p198 = por %p196, %p197
      %p199 = scmp.ne.s32.totalorder %s188, %s189
      %p200 = scmp.eq.s32.totalorder %s23, 0
      %p201 = por %p199, %p200
      %p202 = scmp.ne.s32.totalorder %s188, %s189
      %p203 = scmp.eq.s32.totalorder %s24, 1
      %p204 = por %p202, %p203
      %p206 = scmp.ne.s32.totalorder %s189, %s205
      %p207 = scmp.eq.s32.totalorder %s24, 0
      %p208 = por %p206, %p207
      %p209 = scmp.le.s32.totalorder 1, %s18
      %p210 = scmp.lt.s32.totalorder %s18, 3
      %p211 = pnand %p209, %p210
      %p212 = pneg %p211
      // Predicated region
      $region9: #{tpu_custom_call.1} parent=5 // pred_check
        _
      $region10: #{tpu_custom_call.1} parent=5 // pred_check_branch
        %214 = sbr.rel (%p211) target = $region12
      $region11: #{tpu_custom_call.1} parent=5 // pred_region
        %s215 = ssub.s32 %s18, 1
        // Predicated region
        $region13: #{tpu_custom_call.1} parent=11 // pred_check
          %p216 = pneg %p65
        $region14: #{tpu_custom_call.1} parent=11 // pred_check_branch
          %218 = sbr.rel (%p216) target = $region16
        $region15: #{tpu_custom_call.1} parent=11 // pred_region
          %s220 = ssub.s32 512, 512
          %221 = vsyncadd [#allocation5], %s220
          %s222 = sshll.u32 [#allocation4], 4
          %s223 = int_to_ptr.vmem [resolvable:$true] %s222
          %228 = dma.hbm_to_vmem [thread:$0]  %s1, 512, %s223, [#allocation5], 128, 128, 8
        $region16: #{tpu_custom_call.1} parent=11 // pred_fallthru
          _
        // Predicated region
        $region17: #{tpu_custom_call.1} parent=11 // pred_check
          %p229 = pneg %p86
        $region18: #{tpu_custom_call.1} parent=11 // pred_check_branch
          %231 = sbr.rel (%p229) target = $region20
        $region19: #{tpu_custom_call.1} parent=11 // pred_region
          _
        $region20: #{tpu_custom_call.1} parent=11 // pred_fallthru
          _
        // Predicated region
        $region21: #{tpu_custom_call.1} parent=11 // pred_check
          %p232 = pneg %p107
        $region22: #{tpu_custom_call.1} parent=11 // pred_check_branch
          %234 = sbr.rel (%p232) target = $region24
        $region23: #{tpu_custom_call.1} parent=11 // pred_region
          _
        $region24: #{tpu_custom_call.1} parent=11 // pred_fallthru
          _
        // Predicated region
        $region25: #{tpu_custom_call.1} parent=11 // pred_check
          %p235 = pneg %p154
        $region26: #{tpu_custom_call.1} parent=11 // pred_check_branch
          %237 = sbr.rel (%p235) target = $region28
        $region27: #{tpu_custom_call.1} parent=11 // pred_region
          %s239 = ssub.s32 512, 512
          %240 = vsyncadd [#allocation8], %s239
          %s241 = sshll.u32 [#allocation7], 4
          %s242 = int_to_ptr.vmem [resolvable:$true] %s241
          %247 = dma.hbm_to_vmem [thread:$0]  %s5, 512, %s242, [#allocation8], 128, 128, 8
        $region28: #{tpu_custom_call.1} parent=11 // pred_fallthru
          _
        // Predicated region
        $region29: #{tpu_custom_call.1} parent=11 // pred_check
          %p248 = pneg %p175
        $region30: #{tpu_custom_call.1} parent=11 // pred_check_branch
          %250 = sbr.rel (%p248) target = $region32
        $region31: #{tpu_custom_call.1} parent=11 // pred_region
          _
        $region32: #{tpu_custom_call.1} parent=11 // pred_fallthru
          _
      $region12: #{tpu_custom_call.1} parent=5 // pred_fallthru
        _
      %p251 = scmp.lt.s32.totalorder %s18, 2
      // Predicated region
      $region33: #{tpu_custom_call.1} parent=5 // pred_check
        %p252 = pneg %p251
      $region34: #{tpu_custom_call.1} parent=5 // pred_check_branch
        %254 = sbr.rel (%p252) target = $region36
      $region35: #{tpu_custom_call.1} parent=5 // pred_region
        // Predicated region
        $region37: #{tpu_custom_call.1} parent=35 // pred_check
          %p255 = pneg %p38
        $region38: #{tpu_custom_call.1} parent=35 // pred_check_branch
          %257 = sbr.rel (%p255) target = $region40
        $region39: #{tpu_custom_call.1} parent=35 // pred_region
          %s258 = smul.u32 16, %s18
          %p259 = scmp.lt.s32.totalorder %s258, 31
          %s260 = scalar_select %p259, %s258, 31
          %s261 = smul.addr %s260, 8
          %s262 = scalar_lea.vmem %s0, %s261
          %s263 = smul.u32 16, %s18
        $region40: #{tpu_custom_call.1} parent=35 // pred_fallthru
          _
        // Predicated region
        $region41: #{tpu_custom_call.1} parent=35 // pred_check
          %p264 = pneg %p127
        $region42: #{tpu_custom_call.1} parent=35 // pred_check_branch
          %266 = sbr.rel (%p264) target = $region44
        $region43: #{tpu_custom_call.1} parent=35 // pred_region
          %s267 = smul.u32 8, %s18
          %p268 = scmp.lt.s32.totalorder %s267, 15
          %s269 = scalar_select %p268, %s267, 15
          %s270 = smul.addr %s269, 2
          %s271 = smul.addr %s270, 8
          %s272 = scalar_lea.vmem %s4, %s271
          %s273 = smul.u32 8, %s18
        $region44: #{tpu_custom_call.1} parent=35 // pred_fallthru
          _
      $region36: #{tpu_custom_call.1} parent=5 // pred_fallthru
        _
      %p274 = scmp.le.s32.totalorder 1, %s18
      %p275 = scmp.lt.s32.totalorder %s18, 3
      %p276 = pnand %p274, %p275
      %p277 = pneg %p276
      // Predicated region
      $region45: #{tpu_custom_call.1} parent=5 // pred_check
        _
      $region46: #{tpu_custom_call.1} parent=5 // pred_check_branch
        %279 = sbr.rel (%p276) target = $region48
      $region47: #{tpu_custom_call.1} parent=5 // pred_region
        %s280 = ssub.s32 %s18, 1
        // Predicated region
        $region49: #{tpu_custom_call.1} parent=47 // pred_check
          %p281 = pneg %p65
        $region50: #{tpu_custom_call.1} parent=47 // pred_check_branch
          %283 = sbr.rel (%p281) target = $region52
        $region51: #{tpu_custom_call.1} parent=47 // pred_region
          %284 = dma.done [#allocation5], 512
        $region52: #{tpu_custom_call.1} parent=47 // pred_fallthru
          _
        // Predicated region
        $region53: #{tpu_custom_call.1} parent=47 // pred_check
          %p285 = pneg %p154
        $region54: #{tpu_custom_call.1} parent=47 // pred_check_branch
          %287 = sbr.rel (%p285) target = $region56
        $region55: #{tpu_custom_call.1} parent=47 // pred_region
          %288 = dma.done [#allocation8], 512
        $region56: #{tpu_custom_call.1} parent=47 // pred_fallthru
          _
        %s289 = smul.u32 16, %s23
        %p290 = scmp.lt.s32.totalorder %s289, 31
        %s291 = scalar_select %p290, %s289, 31
        %s292 = smul.addr %s291, 8
        %s293 = scalar_lea.vmem %s0, %s292
        %p294 = pneg %p44
        %p295 = pneg %p41
        %p296 = pneg %p65
        %p297 = pneg %p62
        %p298 = pneg %p86
        %p299 = pneg %p83
        %p300 = pneg %p107
        %p301 = pneg %p104
        %s302 = smul.u32 8, %s23
        %p303 = scmp.lt.s32.totalorder %s302, 15
        %s304 = scalar_select %p303, %s302, 15
        %s305 = smul.addr %s304, 2
        %s306 = smul.addr %s305, 8
        %s307 = scalar_lea.vmem %s4, %s306
        %p308 = pneg %p133
        %p309 = pneg %p130
        %p310 = pneg %p154
        %p311 = pneg %p151
        %p312 = pneg %p175
        %p313 = pneg %p172
        %p314 = pneg %p201
        %p315 = pneg %p198
        %s316 = sand.u32 %s188, 1
        %s317 = scalar_lea.sflag [#allocation6], %s316
        %s318 = sand.u32 %s188, 1
        %s319 = smul.addr %s318, 128
        %s320 = scalar_lea.vmem [#allocation9], %s319
        %s321 = smul.u32 16, %s23
        %p322 = scmp.lt.s32.totalorder %s321, 31
        %s323 = scalar_select %p322, %s321, 31
        %s324 = smul.addr %s323, 8
        %s325 = scalar_lea.vmem %s0, %s324
        %s326 = smul.u32 16, %s23
        %s327 = smul.u32 8, %s23
        %p328 = scmp.lt.s32.totalorder %s327, 15
        %s329 = scalar_select %p328, %s327, 15
        %s330 = smul.addr %s329, 2
        %s331 = smul.addr %s330, 8
        %s332 = scalar_lea.vmem %s4, %s331
        %s333 = smul.u32 8, %s23
        %s334 = smul.u32 16, %s23
        %v335 = vld [vmem:[%s325] sm:$0xff]
        %v336 = vld [vmem:[%s325 + $0x8] sm:$0xff]
        %v337 = vld [vmem:[%s325 + $0x10] sm:$0xff]
        %v338 = vld [vmem:[%s325 + $0x18] sm:$0xff]
        %v339 = vld [vmem:[%s325 + $0x20] sm:$0xff]
        %v340 = vld [vmem:[%s325 + $0x28] sm:$0xff]
        %v341 = vld [vmem:[%s325 + $0x30] sm:$0xff]
        %v342 = vld [vmem:[%s325 + $0x38] sm:$0xff]
        %v343 = vld [vmem:[%s325 + $0x40] sm:$0xff]
        %v344 = vld [vmem:[%s325 + $0x48] sm:$0xff]
        %v345 = vld [vmem:[%s325 + $0x50] sm:$0xff]
        %v346 = vld [vmem:[%s325 + $0x58] sm:$0xff]
        %v347 = vld [vmem:[%s325 + $0x60] sm:$0xff]
        %v348 = vld [vmem:[%s325 + $0x68] sm:$0xff]
        %v349 = vld [vmem:[%s325 + $0x70] sm:$0xff]
        %v350 = vld [vmem:[%s325 + $0x78] sm:$0xff]
        %v351 = vld [vmem:[#allocation4] sm:$0xff]
        %v352 = vld [vmem:[#allocation4 + $0x8] sm:$0xff]
        %v353 = vld [vmem:[#allocation4 + $0x10] sm:$0xff]
        %v354 = vld [vmem:[#allocation4 + $0x18] sm:$0xff]
        %v355 = vld [vmem:[%s2] sm:$0x1]
        %v357 = vlaneseq
        %v358 = vshrl.u32 %v357, 7
        %v359 = vsub.s32 0, %v358
        %v360 = vrot.slane %v355, %v359
        %vm362 = vcmask 261120
        %v364 = vsel %vm362, %v335, 0
        %v367 = vsel %vm362, %v336, 0
        %v370 = vsel %vm362, %v337, 0
        %v373 = vsel %vm362, %v338, 0
        %v376 = vsel %vm362, %v339, 0
        %v379 = vsel %vm362, %v340, 0
        %v382 = vsel %vm362, %v341, 0
        %v385 = vsel %vm362, %v342, 0
        %v388 = vsel %vm362, %v343, 0
        %v391 = vsel %vm362, %v344, 0
        %v394 = vsel %vm362, %v345, 0
        %v397 = vsel %vm362, %v346, 0
        %v400 = vsel %vm362, %v347, 0
        %v403 = vsel %vm362, %v348, 0
        %v406 = vsel %vm362, %v349, 0
        %v409 = vsel %vm362, %v350, 0
        %411 = vmatprep.subr.mxu0 0.0
        %412 = vmatpush1.msra.mxu0 %v351
        %413 = vmatprep.subr.mxu0 0.0
        %414 = vmatpush1.msra.mxu0 %v352
        %415 = vmatprep.subr.mxu0 0.0
        %416 = vmatpush1.msra.mxu0 %v353
        %417 = vmatprep.subr.mxu0 0.0
        %418 = vmatpush1.msra.mxu0 %v354
        %419 = vmatprep.subr.mxu0 0.0
        %420 = vmatpush1.msra.mxu0 0.0
        %421 = vmatprep.subr.mxu0 0.0
        %422 = vmatpush1.msra.mxu0 0.0
        %423 = vmatprep.subr.mxu0 0.0
        %424 = vmatpush1.msra.mxu0 0.0
        %425 = vmatprep.subr.mxu0 0.0
        %426 = vmatpush1.msra.mxu0 0.0
        %427 = vmatprep.subr.mxu0 0.0
        %428 = vmatpush1.msra.mxu0 0.0
        %429 = vmatprep.subr.mxu0 0.0
        %430 = vmatpush1.msra.mxu0 0.0
        %431 = vmatprep.subr.mxu0 0.0
        %432 = vmatpush1.msra.mxu0 0.0
        %433 = vmatprep.subr.mxu0 0.0
        %434 = vmatpush1.msra.mxu0 0.0
        %435 = vmatprep.subr.mxu0 0.0
        %436 = vmatpush1.msra.mxu0 0.0
        %437 = vmatprep.subr.mxu0 0.0
        %438 = vmatpush1.msra.mxu0 0.0
        %439 = vmatprep.subr.mxu0 0.0
        %440 = vmatpush1.msra.mxu0 0.0
        %441 = vmatprep.subr.mxu0 0.0
        %442 = vmatpush1.msra.mxu0 0.0
        %443 = vmatprep.subr.mxu0 0.0
        %444 = vmatpush1.msra.mxu0 0.0
        %445 = vmatprep.subr.mxu0 0.0
        %446 = vmatpush1.msra.mxu0 0.0
        %447 = vmatprep.subr.mxu0 0.0
        %448 = vmatpush1.msra.mxu0 0.0
        %449 = vmatprep.subr.mxu0 0.0
        %450 = vmatpush1.msra.mxu0 0.0
        %451 = vmatprep.subr.mxu0 0.0
        %452 = vmatpush1.msra.mxu0 0.0
        %453 = vmatprep.subr.mxu0 0.0
        %454 = vmatpush1.msra.mxu0 0.0
        %455 = vmatprep.subr.mxu0 0.0
        %456 = vmatpush1.msra.mxu0 0.0
        %457 = vmatprep.subr.mxu0 0.0
        %458 = vmatpush1.msra.mxu0 0.0
        %459 = vmatprep.subr.mxu0 0.0
        %460 = vmatpush1.msra.mxu0 0.0
        %461 = vmatprep.subr.mxu0 0.0
        %462 = vmatpush1.msra.mxu0 0.0
        %463 = vmatprep.subr.mxu0 0.0
        %464 = vmatpush1.msra.mxu0 0.0
        %465 = vmatprep.subr.mxu0 0.0
        %466 = vmatpush1.msra.mxu0 0.0
        %467 = vmatprep.subr.mxu0 0.0
        %468 = vmatpush1.msra.mxu0 0.0
        %469 = vmatprep.subr.mxu0 0.0
        %470 = vmatpush1.msra.mxu0 0.0
        %471 = vmatprep.subr.mxu0 0.0
        %472 = vmatpush1.msra.mxu0 0.0
        %473 = vmatprep.subr.mxu0 0.0
        %474 = vmatpush1.msra.mxu0 0.0
        %475 = vmatprep.mubr.f32.mxu0 0.0
        %476 = vmatmul.mubr.f32.gmra.mrb[0].mxu0 %v364
        %v477 = vpop.f32.mrb[0].mxu0
        %v478 = vadd.f32 %v360, %v477
        %v479 = vpop.f32.mrb[0].mxu0
        %480 = vmatprep.mubr.f32.mxu0 0.0
        %481 = vmatmul.mubr.f32.gmra.mrb[0].mxu0 %v367
        %v482 = vpop.f32.mrb[0].mxu0
        %v483 = vadd.f32 %v360, %v482
        %v484 = vpop.f32.mrb[0].mxu0
        %485 = vmatprep.mubr.f32.mxu0 0.0
        %486 = vmatmul.mubr.f32.gmra.mrb[0].mxu0 %v370
        %v487 = vpop.f32.mrb[0].mxu0
        %v488 = vadd.f32 %v360, %v487
        %v489 = vpop.f32.mrb[0].mxu0
        %490 = vmatprep.mubr.f32.mxu0 0.0
        %491 = vmatmul.mubr.f32.gmra.mrb[0].mxu0 %v373
        %v492 = vpop.f32.mrb[0].mxu0
        %v493 = vadd.f32 %v360, %v492
        %v494 = vpop.f32.mrb[0].mxu0
        %495 = vmatprep.mubr.f32.mxu0 0.0
        %496 = vmatmul.mubr.f32.gmra.mrb[0].mxu0 %v376
        %v497 = vpop.f32.mrb[0].mxu0
        %v498 = vadd.f32 %v360, %v497
        %v499 = vpop.f32.mrb[0].mxu0
        %500 = vmatprep.mubr.f32.mxu0 0.0
        %501 = vmatmul.mubr.f32.gmra.mrb[0].mxu0 %v379
        %v502 = vpop.f32.mrb[0].mxu0
        %v503 = vadd.f32 %v360, %v502
        %v504 = vpop.f32.mrb[0].mxu0
        %505 = vmatprep.mubr.f32.mxu0 0.0
        %506 = vmatmul.mubr.f32.gmra.mrb[0].mxu0 %v382
        %v507 = vpop.f32.mrb[0].mxu0
        %v508 = vadd.f32 %v360, %v507
        %v509 = vpop.f32.mrb[0].mxu0
        %510 = vmatprep.mubr.f32.mxu0 0.0
        %511 = vmatmul.mubr.f32.gmra.mrb[0].mxu0 %v385
        %v512 = vpop.f32.mrb[0].mxu0
        %v513 = vadd.f32 %v360, %v512
        %v514 = vpop.f32.mrb[0].mxu0
        %515 = vmatprep.mubr.f32.mxu0 0.0
        %516 = vmatmul.mubr.f32.gmra.mrb[0].mxu0 %v388
        %v517 = vpop.f32.mrb[0].mxu0
        %v518 = vadd.f32 %v360, %v517
        %v519 = vpop.f32.mrb[0].mxu0
        %520 = vmatprep.mubr.f32.mxu0 0.0
        %521 = vmatmul.mubr.f32.gmra.mrb[0].mxu0 %v391
        %v522 = vpop.f32.mrb[0].mxu0
        %v523 = vadd.f32 %v360, %v522
        %v524 = vpop.f32.mrb[0].mxu0
        %525 = vmatprep.mubr.f32.mxu0 0.0
        %526 = vmatmul.mubr.f32.gmra.mrb[0].mxu0 %v394
        %v527 = vpop.f32.mrb[0].mxu0
        %v528 = vadd.f32 %v360, %v527
        %v529 = vpop.f32.mrb[0].mxu0
        %530 = vmatprep.mubr.f32.mxu0 0.0
        %531 = vmatmul.mubr.f32.gmra.mrb[0].mxu0 %v397
        %v532 = vpop.f32.mrb[0].mxu0
        %v533 = vadd.f32 %v360, %v532
        %v534 = vpop.f32.mrb[0].mxu0
        %535 = vmatprep.mubr.f32.mxu0 0.0
        %536 = vmatmul.mubr.f32.gmra.mrb[0].mxu0 %v400
        %v537 = vpop.f32.mrb[0].mxu0
        %v538 = vadd.f32 %v360, %v537
        %v539 = vpop.f32.mrb[0].mxu0
        %540 = vmatprep.mubr.f32.mxu0 0.0
        %541 = vmatmul.mubr.f32.gmra.mrb[0].mxu0 %v403
        %v542 = vpop.f32.mrb[0].mxu0
        %v543 = vadd.f32 %v360, %v542
        %v544 = vpop.f32.mrb[0].mxu0
        %545 = vmatprep.mubr.f32.mxu0 0.0
        %546 = vmatmul.mubr.f32.gmra.mrb[0].mxu0 %v406
        %v547 = vpop.f32.mrb[0].mxu0
        %v548 = vadd.f32 %v360, %v547
        %v549 = vpop.f32.mrb[0].mxu0
        %550 = vmatprep.mubr.f32.mxu0 0.0
        %551 = vmatmul.mubr.f32.gmra.mrb[0].mxu0 %v409
        %v552 = vpop.f32.mrb[0].mxu0
        %v553 = vadd.f32 %v360, %v552
        %v554 = vpop.f32.mrb[0].mxu0
        %555 = vdwg.mxu0
        %vm556 = vcmask 785408
        %557 = vst.msk [vmem:[#allocation2] sm:$0xff] %vm556, %v478
        %558 = vst.msk [vmem:[#allocation2 + $0x8] sm:$0xff] %vm556, %v483
        %559 = vst.msk [vmem:[#allocation2 + $0x10] sm:$0xff] %vm556, %v488
        %560 = vst.msk [vmem:[#allocation2 + $0x18] sm:$0xff] %vm556, %v493
        %561 = vst.msk [vmem:[#allocation2 + $0x20] sm:$0xff] %vm556, %v498
        %562 = vst.msk [vmem:[#allocation2 + $0x28] sm:$0xff] %vm556, %v503
        %563 = vst.msk [vmem:[#allocation2 + $0x30] sm:$0xff] %vm556, %v508
        %564 = vst.msk [vmem:[#allocation2 + $0x38] sm:$0xff] %vm556, %v513
        %565 = vst.msk [vmem:[#allocation2 + $0x40] sm:$0xff] %vm556, %v518
        %566 = vst.msk [vmem:[#allocation2 + $0x48] sm:$0xff] %vm556, %v523
        %567 = vst.msk [vmem:[#allocation2 + $0x50] sm:$0xff] %vm556, %v528
        %568 = vst.msk [vmem:[#allocation2 + $0x58] sm:$0xff] %vm556, %v533
        %569 = vst.msk [vmem:[#allocation2 + $0x60] sm:$0xff] %vm556, %v538
        %570 = vst.msk [vmem:[#allocation2 + $0x68] sm:$0xff] %vm556, %v543
        %571 = vst.msk [vmem:[#allocation2 + $0x70] sm:$0xff] %vm556, %v548
        %572 = vst.msk [vmem:[#allocation2 + $0x78] sm:$0xff] %vm556, %v553
        %v573 = vld [vmem:[%s332] sm:$0xff]
        %v574 = vld [vmem:[%s332 + $0x8] sm:$0xff]
        %v575 = vld [vmem:[%s332 + $0x10] sm:$0xff]
        %v576 = vld [vmem:[%s332 + $0x18] sm:$0xff]
        %v577 = vld [vmem:[%s332 + $0x20] sm:$0xff]
        %v578 = vld [vmem:[%s332 + $0x28] sm:$0xff]
        %v579 = vld [vmem:[%s332 + $0x30] sm:$0xff]
        %v580 = vld [vmem:[%s332 + $0x38] sm:$0xff]
        %v581 = vld [vmem:[%s332 + $0x40] sm:$0xff]
        %v582 = vld [vmem:[%s332 + $0x48] sm:$0xff]
        %v583 = vld [vmem:[%s332 + $0x50] sm:$0xff]
        %v584 = vld [vmem:[%s332 + $0x58] sm:$0xff]
        %v585 = vld [vmem:[%s332 + $0x60] sm:$0xff]
        %v586 = vld [vmem:[%s332 + $0x68] sm:$0xff]
        %v587 = vld [vmem:[%s332 + $0x70] sm:$0xff]
        %v588 = vld [vmem:[%s332 + $0x78] sm:$0xff]
        %v589 = vld [vmem:[#allocation2] sm:$0xff]
        %v590 = vld [vmem:[#allocation2 + $0x8] sm:$0xff]
        %v591 = vld [vmem:[#allocation2 + $0x10] sm:$0xff]
        %v592 = vld [vmem:[#allocation2 + $0x18] sm:$0xff]
        %v593 = vld [vmem:[#allocation2 + $0x20] sm:$0xff]
        %v594 = vld [vmem:[#allocation2 + $0x28] sm:$0xff]
        %v595 = vld [vmem:[#allocation2 + $0x30] sm:$0xff]
        %v596 = vld [vmem:[#allocation2 + $0x38] sm:$0xff]
        %v597 = vld [vmem:[#allocation2 + $0x40] sm:$0xff]
        %v598 = vld [vmem:[#allocation2 + $0x48] sm:$0xff]
        %v599 = vld [vmem:[#allocation2 + $0x50] sm:$0xff]
        %v600 = vld [vmem:[#allocation2 + $0x58] sm:$0xff]
        %v601 = vld [vmem:[#allocation2 + $0x60] sm:$0xff]
        %v602 = vld [vmem:[#allocation2 + $0x68] sm:$0xff]
        %v603 = vld [vmem:[#allocation2 + $0x70] sm:$0xff]
        %v604 = vld [vmem:[#allocation2 + $0x78] sm:$0xff]
        %v605 = vld [vmem:[%s3] sm:$0xff]
        %v606 = vld [vmem:[%s3 + $0x8] sm:$0xff]
        %609 = vrot.lane.b32.xlu0 %v589, 96
        %v610 = vpop.permute.xlu0 %609
        %611 = vrot.lane.b32.xlu0 %v590, 96
        %v612 = vpop.permute.xlu0 %611
        %vm613 = vcmask 64512
        %v614 = vsel %vm613, %v589, 0
        %v616 = vsel %vm613, %v590, 0
        %v618 = vsel %vm613, %v610, 0
        %v620 = vsel %vm613, %v612, 0
        %622 = vmatprep.subr.mxu0 0.0
        %623 = vmatpush1.xpose.msra.mxu0 %v618
        %624 = vmatprep.subr.mxu0 0.0
        %625 = vmatpush1.xpose.msra.mxu0 %v620
        %626 = vmatprep.subr.mxu0 0.0
        %627 = vmatpush1.xpose.msra.mxu0 0.0
        %628 = vmatprep.subr.mxu0 0.0
        %629 = vmatpush1.xpose.msra.mxu0 0.0
        %630 = vmatprep.subr.mxu0 0.0
        %631 = vmatpush1.xpose.msra.mxu0 0.0
        %632 = vmatprep.subr.mxu0 0.0
        %633 = vmatpush1.xpose.msra.mxu0 0.0
        %634 = vmatprep.subr.mxu0 0.0
        %635 = vmatpush1.xpose.msra.mxu0 0.0
        %636 = vmatprep.subr.mxu0 0.0
        %637 = vmatpush1.xpose.msra.mxu0 0.0
        %638 = vmatprep.subr.mxu0 0.0
        %639 = vmatpush1.xpose.msra.mxu0 0.0
        %640 = vmatprep.subr.mxu0 0.0
        %641 = vmatpush1.xpose.msra.mxu0 0.0
        %642 = vmatprep.subr.mxu0 0.0
        %643 = vmatpush1.xpose.msra.mxu0 0.0
        %644 = vmatprep.subr.mxu0 0.0
        %645 = vmatpush1.xpose.msra.mxu0 0.0
        %646 = vmatprep.subr.mxu0 0.0
        %647 = vmatpush1.xpose.msra.mxu0 0.0
        %648 = vmatprep.subr.mxu0 0.0
        %649 = vmatpush1.xpose.msra.mxu0 0.0
        %650 = vmatprep.subr.mxu0 0.0
        %651 = vmatpush1.xpose.msra.mxu0 0.0
        %652 = vmatprep.subr.mxu0 0.0
        %653 = vmatpush1.xpose.msra.mxu0 0.0
        %654 = vmatprep.subr.mxu0 0.0
        %655 = vmatpush1.xpose.msra.mxu0 0.0
        %656 = vmatprep.subr.mxu0 0.0
        %657 = vmatpush1.xpose.msra.mxu0 0.0
        %658 = vmatprep.subr.mxu0 0.0
        %659 = vmatpush1.xpose.msra.mxu0 0.0
        %660 = vmatprep.subr.mxu0 0.0
        %661 = vmatpush1.xpose.msra.mxu0 0.0
        %662 = vmatprep.subr.mxu0 0.0
        %663 = vmatpush1.xpose.msra.mxu0 0.0
        %664 = vmatprep.subr.mxu0 0.0
        %665 = vmatpush1.xpose.msra.mxu0 0.0
        %666 = vmatprep.subr.mxu0 0.0
        %667 = vmatpush1.xpose.msra.mxu0 0.0
        %668 = vmatprep.subr.mxu0 0.0
        %669 = vmatpush1.xpose.msra.mxu0 0.0
        %670 = vmatprep.subr.mxu0 0.0
        %671 = vmatpush1.xpose.msra.mxu0 0.0
        %672 = vmatprep.subr.mxu0 0.0
        %673 = vmatpush1.xpose.msra.mxu0 0.0
        %674 = vmatprep.subr.mxu0 0.0
        %675 = vmatpush1.xpose.msra.mxu0 0.0
        %676 = vmatprep.subr.mxu0 0.0
        %677 = vmatpush1.xpose.msra.mxu0 0.0
        %678 = vmatprep.subr.mxu0 0.0
        %679 = vmatpush1.xpose.msra.mxu0 0.0
        %680 = vmatprep.subr.mxu0 0.0
        %681 = vmatpush1.xpose.msra.mxu0 0.0
        %682 = vmatprep.subr.mxu0 0.0
        %683 = vmatpush1.xpose.msra.mxu0 0.0
        %684 = vmatprep.subr.mxu0 0.0
        %685 = vmatpush1.xpose.msra.mxu0 0.0
        %686 = vmatprep.mubr.f32.mxu0 0.0
        %687 = vmatmul.mubr.f32.gmra.mrb[0].mxu0 %v614
        %v688 = vpop.f32.mrb[0].mxu0
        %v689 = vadd.f32 %v605, %v688
        %v690 = vpop.f32.mrb[0].mxu0
        %691 = vmatprep.mubr.f32.mxu0 0.0
        %692 = vmatmul.mubr.f32.gmra.mrb[0].mxu0 %v616
        %v693 = vpop.f32.mrb[0].mxu0
        %v694 = vadd.f32 %v606, %v693
        %v695 = vpop.f32.mrb[0].mxu0
        %696 = vdwg.mxu0
        %699 = vrot.lane.b32.xlu0 %v591, 96
        %v700 = vpop.permute.xlu0 %699
        %701 = vrot.lane.b32.xlu0 %v592, 96
        %v702 = vpop.permute.xlu0 %701
        %v703 = vsel %vm613, %v591, 0
        %v705 = vsel %vm613, %v592, 0
        %v707 = vsel %vm613, %v700, 0
        %v709 = vsel %vm613, %v702, 0
        %711 = vmatprep.subr.mxu0 0.0
        %712 = vmatpush1.xpose.msra.mxu0 %v707
        %713 = vmatprep.subr.mxu0 0.0
        %714 = vmatpush1.xpose.msra.mxu0 %v709
        %715 = vmatprep.subr.mxu0 0.0
        %716 = vmatpush1.xpose.msra.mxu0 0.0
        %717 = vmatprep.subr.mxu0 0.0
        %718 = vmatpush1.xpose.msra.mxu0 0.0
        %719 = vmatprep.subr.mxu0 0.0
        %720 = vmatpush1.xpose.msra.mxu0 0.0
        %721 = vmatprep.subr.mxu0 0.0
        %722 = vmatpush1.xpose.msra.mxu0 0.0
        %723 = vmatprep.subr.mxu0 0.0
        %724 = vmatpush1.xpose.msra.mxu0 0.0
        %725 = vmatprep.subr.mxu0 0.0
        %726 = vmatpush1.xpose.msra.mxu0 0.0
        %727 = vmatprep.subr.mxu0 0.0
        %728 = vmatpush1.xpose.msra.mxu0 0.0
        %729 = vmatprep.subr.mxu0 0.0
        %730 = vmatpush1.xpose.msra.mxu0 0.0
        %731 = vmatprep.subr.mxu0 0.0
        %732 = vmatpush1.xpose.msra.mxu0 0.0
        %733 = vmatprep.subr.mxu0 0.0
        %734 = vmatpush1.xpose.msra.mxu0 0.0
        %735 = vmatprep.subr.mxu0 0.0
        %736 = vmatpush1.xpose.msra.mxu0 0.0
        %737 = vmatprep.subr.mxu0 0.0
        %738 = vmatpush1.xpose.msra.mxu0 0.0
        %739 = vmatprep.subr.mxu0 0.0
        %740 = vmatpush1.xpose.msra.mxu0 0.0
        %741 = vmatprep.subr.mxu0 0.0
        %742 = vmatpush1.xpose.msra.mxu0 0.0
        %743 = vmatprep.subr.mxu0 0.0
        %744 = vmatpush1.xpose.msra.mxu0 0.0
        %745 = vmatprep.subr.mxu0 0.0
        %746 = vmatpush1.xpose.msra.mxu0 0.0
        %747 = vmatprep.subr.mxu0 0.0
        %748 = vmatpush1.xpose.msra.mxu0 0.0
        %749 = vmatprep.subr.mxu0 0.0
        %750 = vmatpush1.xpose.msra.mxu0 0.0
        %751 = vmatprep.subr.mxu0 0.0
        %752 = vmatpush1.xpose.msra.mxu0 0.0
        %753 = vmatprep.subr.mxu0 0.0
        %754 = vmatpush1.xpose.msra.mxu0 0.0
        %755 = vmatprep.subr.mxu0 0.0
        %756 = vmatpush1.xpose.msra.mxu0 0.0
        %757 = vmatprep.subr.mxu0 0.0
        %758 = vmatpush1.xpose.msra.mxu0 0.0
        %759 = vmatprep.subr.mxu0 0.0
        %760 = vmatpush1.xpose.msra.mxu0 0.0
        %761 = vmatprep.subr.mxu0 0.0
        %762 = vmatpush1.xpose.msra.mxu0 0.0
        %763 = vmatprep.subr.mxu0 0.0
        %764 = vmatpush1.xpose.msra.mxu0 0.0
        %765 = vmatprep.subr.mxu0 0.0
        %766 = vmatpush1.xpose.msra.mxu0 0.0
        %767 = vmatprep.subr.mxu0 0.0
        %768 = vmatpush1.xpose.msra.mxu0 0.0
        %769 = vmatprep.subr.mxu0 0.0
        %770 = vmatpush1.xpose.msra.mxu0 0.0
        %771 = vmatprep.subr.mxu0 0.0
        %772 = vmatpush1.xpose.msra.mxu0 0.0
        %773 = vmatprep.subr.mxu0 0.0
        %774 = vmatpush1.xpose.msra.mxu0 0.0
        %775 = vmatprep.mubr.f32.mxu0 0.0
        %776 = vmatmul.mubr.f32.gmra.mrb[0].mxu0 %v703
        %v777 = vpop.f32.mrb[0].mxu0
        %v778 = vadd.f32 %v605, %v777
        %v779 = vpop.f32.mrb[0].mxu0
        %780 = vmatprep.mubr.f32.mxu0 0.0
        %781 = vmatmul.mubr.f32.gmra.mrb[0].mxu0 %v705
        %v782 = vpop.f32.mrb[0].mxu0
        %v783 = vadd.f32 %v606, %v782
        %v784 = vpop.f32.mrb[0].mxu0
        %785 = vdwg.mxu0
        %788 = vrot.lane.b32.xlu0 %v593, 96
        %v789 = vpop.permute.xlu0 %788
        %790 = vrot.lane.b32.xlu0 %v594, 96
        %v791 = vpop.permute.xlu0 %790
        %v792 = vsel %vm613, %v593, 0
        %v794 = vsel %vm613, %v594, 0
        %v796 = vsel %vm613, %v789, 0
        %v798 = vsel %vm613, %v791, 0
        %800 = vmatprep.subr.mxu0 0.0
        %801 = vmatpush1.xpose.msra.mxu0 %v796
        %802 = vmatprep.subr.mxu0 0.0
        %803 = vmatpush1.xpose.msra.mxu0 %v798
        %804 = vmatprep.subr.mxu0 0.0
        %805 = vmatpush1.xpose.msra.mxu0 0.0
        %806 = vmatprep.subr.mxu0 0.0
        %807 = vmatpush1.xpose.msra.mxu0 0.0
        %808 = vmatprep.subr.mxu0 0.0
        %809 = vmatpush1.xpose.msra.mxu0 0.0
        %810 = vmatprep.subr.mxu0 0.0
        %811 = vmatpush1.xpose.msra.mxu0 0.0
        %812 = vmatprep.subr.mxu0 0.0
        %813 = vmatpush1.xpose.msra.mxu0 0.0
        %814 = vmatprep.subr.mxu0 0.0
        %815 = vmatpush1.xpose.msra.mxu0 0.0
        %816 = vmatprep.subr.mxu0 0.0
        %817 = vmatpush1.xpose.msra.mxu0 0.0
        %818 = vmatprep.subr.mxu0 0.0
        %819 = vmatpush1.xpose.msra.mxu0 0.0
        %820 = vmatprep.subr.mxu0 0.0
        %821 = vmatpush1.xpose.msra.mxu0 0.0
        %822 = vmatprep.subr.mxu0 0.0
        %823 = vmatpush1.xpose.msra.mxu0 0.0
        %824 = vmatprep.subr.mxu0 0.0
        %825 = vmatpush1.xpose.msra.mxu0 0.0
        %826 = vmatprep.subr.mxu0 0.0
        %827 = vmatpush1.xpose.msra.mxu0 0.0
        %828 = vmatprep.subr.mxu0 0.0
        %829 = vmatpush1.xpose.msra.mxu0 0.0
        %830 = vmatprep.subr.mxu0 0.0
        %831 = vmatpush1.xpose.msra.mxu0 0.0
        %832 = vmatprep.subr.mxu0 0.0
        %833 = vmatpush1.xpose.msra.mxu0 0.0
        %834 = vmatprep.subr.mxu0 0.0
        %835 = vmatpush1.xpose.msra.mxu0 0.0
        %836 = vmatprep.subr.mxu0 0.0
        %837 = vmatpush1.xpose.msra.mxu0 0.0
        %838 = vmatprep.subr.mxu0 0.0
        %839 = vmatpush1.xpose.msra.mxu0 0.0
        %840 = vmatprep.subr.mxu0 0.0
        %841 = vmatpush1.xpose.msra.mxu0 0.0
        %842 = vmatprep.subr.mxu0 0.0
        %843 = vmatpush1.xpose.msra.mxu0 0.0
        %844 = vmatprep.subr.mxu0 0.0
        %845 = vmatpush1.xpose.msra.mxu0 0.0
        %846 = vmatprep.subr.mxu0 0.0
        %847 = vmatpush1.xpose.msra.mxu0 0.0
        %848 = vmatprep.subr.mxu0 0.0
        %849 = vmatpush1.xpose.msra.mxu0 0.0
        %850 = vmatprep.subr.mxu0 0.0
        %851 = vmatpush1.xpose.msra.mxu0 0.0
        %852 = vmatprep.subr.mxu0 0.0
        %853 = vmatpush1.xpose.msra.mxu0 0.0
        %854 = vmatprep.subr.mxu0 0.0
        %855 = vmatpush1.xpose.msra.mxu0 0.0
        %856 = vmatprep.subr.mxu0 0.0
        %857 = vmatpush1.xpose.msra.mxu0 0.0
        %858 = vmatprep.subr.mxu0 0.0
        %859 = vmatpush1.xpose.msra.mxu0 0.0
        %860 = vmatprep.subr.mxu0 0.0
        %861 = vmatpush1.xpose.msra.mxu0 0.0
        %862 = vmatprep.subr.mxu0 0.0
        %863 = vmatpush1.xpose.msra.mxu0 0.0
        %864 = vmatprep.mubr.f32.mxu0 0.0
        %865 = vmatmul.mubr.f32.gmra.mrb[0].mxu0 %v792
        %v866 = vpop.f32.mrb[0].mxu0
        %v867 = vadd.f32 %v605, %v866
        %v868 = vpop.f32.mrb[0].mxu0
        %869 = vmatprep.mubr.f32.mxu0 0.0
        %870 = vmatmul.mubr.f32.gmra.mrb[0].mxu0 %v794
        %v871 = vpop.f32.mrb[0].mxu0
        %v872 = vadd.f32 %v606, %v871
        %v873 = vpop.f32.mrb[0].mxu0
        %874 = vdwg.mxu0
        %877 = vrot.lane.b32.xlu0 %v595, 96
        %v878 = vpop.permute.xlu0 %877
        %879 = vrot.lane.b32.xlu0 %v596, 96
        %v880 = vpop.permute.xlu0 %879
        %v881 = vsel %vm613, %v595, 0
        %v883 = vsel %vm613, %v596, 0
        %v885 = vsel %vm613, %v878, 0
        %v887 = vsel %vm613, %v880, 0
        %889 = vmatprep.subr.mxu0 0.0
        %890 = vmatpush1.xpose.msra.mxu0 %v885
        %891 = vmatprep.subr.mxu0 0.0
        %892 = vmatpush1.xpose.msra.mxu0 %v887
        %893 = vmatprep.subr.mxu0 0.0
        %894 = vmatpush1.xpose.msra.mxu0 0.0
        %895 = vmatprep.subr.mxu0 0.0
        %896 = vmatpush1.xpose.msra.mxu0 0.0
        %897 = vmatprep.subr.mxu0 0.0
        %898 = vmatpush1.xpose.msra.mxu0 0.0
        %899 = vmatprep.subr.mxu0 0.0
        %900 = vmatpush1.xpose.msra.mxu0 0.0
        %901 = vmatprep.subr.mxu0 0.0
        %902 = vmatpush1.xpose.msra.mxu0 0.0
        %903 = vmatprep.subr.mxu0 0.0
        %904 = vmatpush1.xpose.msra.mxu0 0.0
        %905 = vmatprep.subr.mxu0 0.0
        %906 = vmatpush1.xpose.msra.mxu0 0.0
        %907 = vmatprep.subr.mxu0 0.0
        %908 = vmatpush1.xpose.msra.mxu0 0.0
        %909 = vmatprep.subr.mxu0 0.0
        %910 = vmatpush1.xpose.msra.mxu0 0.0
        %911 = vmatprep.subr.mxu0 0.0
        %912 = vmatpush1.xpose.msra.mxu0 0.0
        %913 = vmatprep.subr.mxu0 0.0
        %914 = vmatpush1.xpose.msra.mxu0 0.0
        %915 = vmatprep.subr.mxu0 0.0
        %916 = vmatpush1.xpose.msra.mxu0 0.0
        %917 = vmatprep.subr.mxu0 0.0
        %918 = vmatpush1.xpose.msra.mxu0 0.0
        %919 = vmatprep.subr.mxu0 0.0
        %920 = vmatpush1.xpose.msra.mxu0 0.0
        %921 = vmatprep.subr.mxu0 0.0
        %922 = vmatpush1.xpose.msra.mxu0 0.0
        %923 = vmatprep.subr.mxu0 0.0
        %924 = vmatpush1.xpose.msra.mxu0 0.0
        %925 = vmatprep.subr.mxu0 0.0
        %926 = vmatpush1.xpose.msra.mxu0 0.0
        %927 = vmatprep.subr.mxu0 0.0
        %928 = vmatpush1.xpose.msra.mxu0 0.0
        %929 = vmatprep.subr.mxu0 0.0
        %930 = vmatpush1.xpose.msra.mxu0 0.0
        %931 = vmatprep.subr.mxu0 0.0
        %932 = vmatpush1.xpose.msra.mxu0 0.0
        %933 = vmatprep.subr.mxu0 0.0
        %934 = vmatpush1.xpose.msra.mxu0 0.0
        %935 = vmatprep.subr.mxu0 0.0
        %936 = vmatpush1.xpose.msra.mxu0 0.0
        %937 = vmatprep.subr.mxu0 0.0
        %938 = vmatpush1.xpose.msra.mxu0 0.0
        %939 = vmatprep.subr.mxu0 0.0
        %940 = vmatpush1.xpose.msra.mxu0 0.0
        %941 = vmatprep.subr.mxu0 0.0
        %942 = vmatpush1.xpose.msra.mxu0 0.0
        %943 = vmatprep.subr.mxu0 0.0
        %944 = vmatpush1.xpose.msra.mxu0 0.0
        %945 = vmatprep.subr.mxu0 0.0
        %946 = vmatpush1.xpose.msra.mxu0 0.0
        %947 = vmatprep.subr.mxu0 0.0
        %948 = vmatpush1.xpose.msra.mxu0 0.0
        %949 = vmatprep.subr.mxu0 0.0
        %950 = vmatpush1.xpose.msra.mxu0 0.0
        %951 = vmatprep.subr.mxu0 0.0
        %952 = vmatpush1.xpose.msra.mxu0 0.0
        %953 = vmatprep.mubr.f32.mxu0 0.0
        %954 = vmatmul.mubr.f32.gmra.mrb[0].mxu0 %v881
        %v955 = vpop.f32.mrb[0].mxu0
        %v956 = vadd.f32 %v605, %v955
        %v957 = vpop.f32.mrb[0].mxu0
        %958 = vmatprep.mubr.f32.mxu0 0.0
        %959 = vmatmul.mubr.f32.gmra.mrb[0].mxu0 %v883
        %v960 = vpop.f32.mrb[0].mxu0
        %v961 = vadd.f32 %v606, %v960
        %v962 = vpop.f32.mrb[0].mxu0
        %963 = vdwg.mxu0
        %966 = vrot.lane.b32.xlu0 %v597, 96
        %v967 = vpop.permute.xlu0 %966
        %968 = vrot.lane.b32.xlu0 %v598, 96
        %v969 = vpop.permute.xlu0 %968
        %v970 = vsel %vm613, %v597, 0
        %v972 = vsel %vm613, %v598, 0
        %v974 = vsel %vm613, %v967, 0
        %v976 = vsel %vm613, %v969, 0
        %978 = vmatprep.subr.mxu0 0.0
        %979 = vmatpush1.xpose.msra.mxu0 %v974
        %980 = vmatprep.subr.mxu0 0.0
        %981 = vmatpush1.xpose.msra.mxu0 %v976
        %982 = vmatprep.subr.mxu0 0.0
        %983 = vmatpush1.xpose.msra.mxu0 0.0
        %984 = vmatprep.subr.mxu0 0.0
        %985 = vmatpush1.xpose.msra.mxu0 0.0
        %986 = vmatprep.subr.mxu0 0.0
        %987 = vmatpush1.xpose.msra.mxu0 0.0
        %988 = vmatprep.subr.mxu0 0.0
        %989 = vmatpush1.xpose.msra.mxu0 0.0
        %990 = vmatprep.subr.mxu0 0.0
        %991 = vmatpush1.xpose.msra.mxu0 0.0
        %992 = vmatprep.subr.mxu0 0.0
        %993 = vmatpush1.xpose.msra.mxu0 0.0
        %994 = vmatprep.subr.mxu0 0.0
        %995 = vmatpush1.xpose.msra.mxu0 0.0
        %996 = vmatprep.subr.mxu0 0.0
        %997 = vmatpush1.xpose.msra.mxu0 0.0
        %998 = vmatprep.subr.mxu0 0.0
        %999 = vmatpush1.xpose.msra.mxu0 0.0
        %1000 = vmatprep.subr.mxu0 0.0
        %1001 = vmatpush1.xpose.msra.mxu0 0.0
        %1002 = vmatprep.subr.mxu0 0.0
        %1003 = vmatpush1.xpose.msra.mxu0 0.0
        %1004 = vmatprep.subr.mxu0 0.0
        %1005 = vmatpush1.xpose.msra.mxu0 0.0
        %1006 = vmatprep.subr.mxu0 0.0
        %1007 = vmatpush1.xpose.msra.mxu0 0.0
        %1008 = vmatprep.subr.mxu0 0.0
        %1009 = vmatpush1.xpose.msra.mxu0 0.0
        %1010 = vmatprep.subr.mxu0 0.0
        %1011 = vmatpush1.xpose.msra.mxu0 0.0
        %1012 = vmatprep.subr.mxu0 0.0
        %1013 = vmatpush1.xpose.msra.mxu0 0.0
        %1014 = vmatprep.subr.mxu0 0.0
        %1015 = vmatpush1.xpose.msra.mxu0 0.0
        %1016 = vmatprep.subr.mxu0 0.0
        %1017 = vmatpush1.xpose.msra.mxu0 0.0
        %1018 = vmatprep.subr.mxu0 0.0
        %1019 = vmatpush1.xpose.msra.mxu0 0.0
        %1020 = vmatprep.subr.mxu0 0.0
        %1021 = vmatpush1.xpose.msra.mxu0 0.0
        %1022 = vmatprep.subr.mxu0 0.0
        %1023 = vmatpush1.xpose.msra.mxu0 0.0
        %1024 = vmatprep.subr.mxu0 0.0
        %1025 = vmatpush1.xpose.msra.mxu0 0.0
        %1026 = vmatprep.subr.mxu0 0.0
        %1027 = vmatpush1.xpose.msra.mxu0 0.0
        %1028 = vmatprep.subr.mxu0 0.0
        %1029 = vmatpush1.xpose.msra.mxu0 0.0
        %1030 = vmatprep.subr.mxu0 0.0
        %1031 = vmatpush1.xpose.msra.mxu0 0.0
        %1032 = vmatprep.subr.mxu0 0.0
        %1033 = vmatpush1.xpose.msra.mxu0 0.0
        %1034 = vmatprep.subr.mxu0 0.0
        %1035 = vmatpush1.xpose.msra.mxu0 0.0
        %1036 = vmatprep.subr.mxu0 0.0
        %1037 = vmatpush1.xpose.msra.mxu0 0.0
        %1038 = vmatprep.subr.mxu0 0.0
        %1039 = vmatpush1.xpose.msra.mxu0 0.0
        %1040 = vmatprep.subr.mxu0 0.0
        %1041 = vmatpush1.xpose.msra.mxu0 0.0
        %1042 = vmatprep.mubr.f32.mxu0 0.0
        %1043 = vmatmul.mubr.f32.gmra.mrb[0].mxu0 %v970
        %v1044 = vpop.f32.mrb[0].mxu0
        %v1045 = vadd.f32 %v605, %v1044
        %v1046 = vpop.f32.mrb[0].mxu0
        %1047 = vmatprep.mubr.f32.mxu0 0.0
        %1048 = vmatmul.mubr.f32.gmra.mrb[0].mxu0 %v972
        %v1049 = vpop.f32.mrb[0].mxu0
        %v1050 = vadd.f32 %v606, %v1049
        %v1051 = vpop.f32.mrb[0].mxu0
        %1052 = vdwg.mxu0
        %1055 = vrot.lane.b32.xlu0 %v599, 96
        %v1056 = vpop.permute.xlu0 %1055
        %1057 = vrot.lane.b32.xlu0 %v600, 96
        %v1058 = vpop.permute.xlu0 %1057
        %v1059 = vsel %vm613, %v599, 0
        %v1061 = vsel %vm613, %v600, 0
        %v1063 = vsel %vm613, %v1056, 0
        %v1065 = vsel %vm613, %v1058, 0
        %1067 = vmatprep.subr.mxu0 0.0
        %1068 = vmatpush1.xpose.msra.mxu0 %v1063
        %1069 = vmatprep.subr.mxu0 0.0
        %1070 = vmatpush1.xpose.msra.mxu0 %v1065
        %1071 = vmatprep.subr.mxu0 0.0
        %1072 = vmatpush1.xpose.msra.mxu0 0.0
        %1073 = vmatprep.subr.mxu0 0.0
        %1074 = vmatpush1.xpose.msra.mxu0 0.0
        %1075 = vmatprep.subr.mxu0 0.0
        %1076 = vmatpush1.xpose.msra.mxu0 0.0
        %1077 = vmatprep.subr.mxu0 0.0
        %1078 = vmatpush1.xpose.msra.mxu0 0.0
        %1079 = vmatprep.subr.mxu0 0.0
        %1080 = vmatpush1.xpose.msra.mxu0 0.0
        %1081 = vmatprep.subr.mxu0 0.0
        %1082 = vmatpush1.xpose.msra.mxu0 0.0
        %1083 = vmatprep.subr.mxu0 0.0
        %1084 = vmatpush1.xpose.msra.mxu0 0.0
        %1085 = vmatprep.subr.mxu0 0.0
        %1086 = vmatpush1.xpose.msra.mxu0 0.0
        %1087 = vmatprep.subr.mxu0 0.0
        %1088 = vmatpush1.xpose.msra.mxu0 0.0
        %1089 = vmatprep.subr.mxu0 0.0
        %1090 = vmatpush1.xpose.msra.mxu0 0.0
        %1091 = vmatprep.subr.mxu0 0.0
        %1092 = vmatpush1.xpose.msra.mxu0 0.0
        %1093 = vmatprep.subr.mxu0 0.0
        %1094 = vmatpush1.xpose.msra.mxu0 0.0
        %1095 = vmatprep.subr.mxu0 0.0
        %1096 = vmatpush1.xpose.msra.mxu0 0.0
        %1097 = vmatprep.subr.mxu0 0.0
        %1098 = vmatpush1.xpose.msra.mxu0 0.0
        %1099 = vmatprep.subr.mxu0 0.0
        %1100 = vmatpush1.xpose.msra.mxu0 0.0
        %1101 = vmatprep.subr.mxu0 0.0
        %1102 = vmatpush1.xpose.msra.mxu0 0.0
        %1103 = vmatprep.subr.mxu0 0.0
        %1104 = vmatpush1.xpose.msra.mxu0 0.0
        %1105 = vmatprep.subr.mxu0 0.0
        %1106 = vmatpush1.xpose.msra.mxu0 0.0
        %1107 = vmatprep.subr.mxu0 0.0
        %1108 = vmatpush1.xpose.msra.mxu0 0.0
        %1109 = vmatprep.subr.mxu0 0.0
        %1110 = vmatpush1.xpose.msra.mxu0 0.0
        %1111 = vmatprep.subr.mxu0 0.0
        %1112 = vmatpush1.xpose.msra.mxu0 0.0
        %1113 = vmatprep.subr.mxu0 0.0
        %1114 = vmatpush1.xpose.msra.mxu0 0.0
        %1115 = vmatprep.subr.mxu0 0.0
        %1116 = vmatpush1.xpose.msra.mxu0 0.0
        %1117 = vmatprep.subr.mxu0 0.0
        %1118 = vmatpush1.xpose.msra.mxu0 0.0
        %1119 = vmatprep.subr.mxu0 0.0
        %1120 = vmatpush1.xpose.msra.mxu0 0.0
        %1121 = vmatprep.subr.mxu0 0.0
        %1122 = vmatpush1.xpose.msra.mxu0 0.0
        %1123 = vmatprep.subr.mxu0 0.0
        %1124 = vmatpush1.xpose.msra.mxu0 0.0
        %1125 = vmatprep.subr.mxu0 0.0
        %1126 = vmatpush1.xpose.msra.mxu0 0.0
        %1127 = vmatprep.subr.mxu0 0.0
        %1128 = vmatpush1.xpose.msra.mxu0 0.0
        %1129 = vmatprep.subr.mxu0 0.0
        %1130 = vmatpush1.xpose.msra.mxu0 0.0
        %1131 = vmatprep.mubr.f32.mxu0 0.0
        %1132 = vmatmul.mubr.f32.gmra.mrb[0].mxu0 %v1059
        %v1133 = vpop.f32.mrb[0].mxu0
        %v1134 = vadd.f32 %v605, %v1133
        %v1135 = vpop.f32.mrb[0].mxu0
        %1136 = vmatprep.mubr.f32.mxu0 0.0
        %1137 = vmatmul.mubr.f32.gmra.mrb[0].mxu0 %v1061
        %v1138 = vpop.f32.mrb[0].mxu0
        %v1139 = vadd.f32 %v606, %v1138
        %v1140 = vpop.f32.mrb[0].mxu0
        %1141 = vdwg.mxu0
        %1144 = vrot.lane.b32.xlu0 %v601, 96
        %v1145 = vpop.permute.xlu0 %1144
        %1146 = vrot.lane.b32.xlu0 %v602, 96
        %v1147 = vpop.permute.xlu0 %1146
        %v1148 = vsel %vm613, %v601, 0
        %v1150 = vsel %vm613, %v602, 0
        %v1152 = vsel %vm613, %v1145, 0
        %v1154 = vsel %vm613, %v1147, 0
        %1156 = vmatprep.subr.mxu0 0.0
        %1157 = vmatpush1.xpose.msra.mxu0 %v1152
        %1158 = vmatprep.subr.mxu0 0.0
        %1159 = vmatpush1.xpose.msra.mxu0 %v1154
        %1160 = vmatprep.subr.mxu0 0.0
        %1161 = vmatpush1.xpose.msra.mxu0 0.0
        %1162 = vmatprep.subr.mxu0 0.0
        %1163 = vmatpush1.xpose.msra.mxu0 0.0
        %1164 = vmatprep.subr.mxu0 0.0
        %1165 = vmatpush1.xpose.msra.mxu0 0.0
        %1166 = vmatprep.subr.mxu0 0.0
        %1167 = vmatpush1.xpose.msra.mxu0 0.0
        %1168 = vmatprep.subr.mxu0 0.0
        %1169 = vmatpush1.xpose.msra.mxu0 0.0
        %1170 = vmatprep.subr.mxu0 0.0
        %1171 = vmatpush1.xpose.msra.mxu0 0.0
        %1172 = vmatprep.subr.mxu0 0.0
        %1173 = vmatpush1.xpose.msra.mxu0 0.0
        %1174 = vmatprep.subr.mxu0 0.0
        %1175 = vmatpush1.xpose.msra.mxu0 0.0
        %1176 = vmatprep.subr.mxu0 0.0
        %1177 = vmatpush1.xpose.msra.mxu0 0.0
        %1178 = vmatprep.subr.mxu0 0.0
        %1179 = vmatpush1.xpose.msra.mxu0 0.0
        %1180 = vmatprep.subr.mxu0 0.0
        %1181 = vmatpush1.xpose.msra.mxu0 0.0
        %1182 = vmatprep.subr.mxu0 0.0
        %1183 = vmatpush1.xpose.msra.mxu0 0.0
        %1184 = vmatprep.subr.mxu0 0.0
        %1185 = vmatpush1.xpose.msra.mxu0 0.0
        %1186 = vmatprep.subr.mxu0 0.0
        %1187 = vmatpush1.xpose.msra.mxu0 0.0
        %1188 = vmatprep.subr.mxu0 0.0
        %1189 = vmatpush1.xpose.msra.mxu0 0.0
        %1190 = vmatprep.subr.mxu0 0.0
        %1191 = vmatpush1.xpose.msra.mxu0 0.0
        %1192 = vmatprep.subr.mxu0 0.0
        %1193 = vmatpush1.xpose.msra.mxu0 0.0
        %1194 = vmatprep.subr.mxu0 0.0
        %1195 = vmatpush1.xpose.msra.mxu0 0.0
        %1196 = vmatprep.subr.mxu0 0.0
        %1197 = vmatpush1.xpose.msra.mxu0 0.0
        %1198 = vmatprep.subr.mxu0 0.0
        %1199 = vmatpush1.xpose.msra.mxu0 0.0
        %1200 = vmatprep.subr.mxu0 0.0
        %1201 = vmatpush1.xpose.msra.mxu0 0.0
        %1202 = vmatprep.subr.mxu0 0.0
        %1203 = vmatpush1.xpose.msra.mxu0 0.0
        %1204 = vmatprep.subr.mxu0 0.0
        %1205 = vmatpush1.xpose.msra.mxu0 0.0
        %1206 = vmatprep.subr.mxu0 0.0
        %1207 = vmatpush1.xpose.msra.mxu0 0.0
        %1208 = vmatprep.subr.mxu0 0.0
        %1209 = vmatpush1.xpose.msra.mxu0 0.0
        %1210 = vmatprep.subr.mxu0 0.0
        %1211 = vmatpush1.xpose.msra.mxu0 0.0
        %1212 = vmatprep.subr.mxu0 0.0
        %1213 = vmatpush1.xpose.msra.mxu0 0.0
        %1214 = vmatprep.subr.mxu0 0.0
        %1215 = vmatpush1.xpose.msra.mxu0 0.0
        %1216 = vmatprep.subr.mxu0 0.0
        %1217 = vmatpush1.xpose.msra.mxu0 0.0
        %1218 = vmatprep.subr.mxu0 0.0
        %1219 = vmatpush1.xpose.msra.mxu0 0.0
        %1220 = vmatprep.mubr.f32.mxu0 0.0
        %1221 = vmatmul.mubr.f32.gmra.mrb[0].mxu0 %v1148
        %v1222 = vpop.f32.mrb[0].mxu0
        %v1223 = vadd.f32 %v605, %v1222
        %v1224 = vpop.f32.mrb[0].mxu0
        %1225 = vmatprep.mubr.f32.mxu0 0.0
        %1226 = vmatmul.mubr.f32.gmra.mrb[0].mxu0 %v1150
        %v1227 = vpop.f32.mrb[0].mxu0
        %v1228 = vadd.f32 %v606, %v1227
        %v1229 = vpop.f32.mrb[0].mxu0
        %1230 = vdwg.mxu0
        %1233 = vrot.lane.b32.xlu0 %v603, 96
        %v1234 = vpop.permute.xlu0 %1233
        %1235 = vrot.lane.b32.xlu0 %v604, 96
        %v1236 = vpop.permute.xlu0 %1235
        %v1237 = vsel %vm613, %v603, 0
        %v1239 = vsel %vm613, %v604, 0
        %v1241 = vsel %vm613, %v1234, 0
        %v1243 = vsel %vm613, %v1236, 0
        %1245 = vmatprep.subr.mxu0 0.0
        %1246 = vmatpush1.xpose.msra.mxu0 %v1241
        %1247 = vmatprep.subr.mxu0 0.0
        %1248 = vmatpush1.xpose.msra.mxu0 %v1243
        %1249 = vmatprep.subr.mxu0 0.0
        %1250 = vmatpush1.xpose.msra.mxu0 0.0
        %1251 = vmatprep.subr.mxu0 0.0
        %1252 = vmatpush1.xpose.msra.mxu0 0.0
        %1253 = vmatprep.subr.mxu0 0.0
        %1254 = vmatpush1.xpose.msra.mxu0 0.0
        %1255 = vmatprep.subr.mxu0 0.0
        %1256 = vmatpush1.xpose.msra.mxu0 0.0
        %1257 = vmatprep.subr.mxu0 0.0
        %1258 = vmatpush1.xpose.msra.mxu0 0.0
        %1259 = vmatprep.subr.mxu0 0.0
        %1260 = vmatpush1.xpose.msra.mxu0 0.0
        %1261 = vmatprep.subr.mxu0 0.0
        %1262 = vmatpush1.xpose.msra.mxu0 0.0
        %1263 = vmatprep.subr.mxu0 0.0
        %1264 = vmatpush1.xpose.msra.mxu0 0.0
        %1265 = vmatprep.subr.mxu0 0.0
        %1266 = vmatpush1.xpose.msra.mxu0 0.0
        %1267 = vmatprep.subr.mxu0 0.0
        %1268 = vmatpush1.xpose.msra.mxu0 0.0
        %1269 = vmatprep.subr.mxu0 0.0
        %1270 = vmatpush1.xpose.msra.mxu0 0.0
        %1271 = vmatprep.subr.mxu0 0.0
        %1272 = vmatpush1.xpose.msra.mxu0 0.0
        %1273 = vmatprep.subr.mxu0 0.0
        %1274 = vmatpush1.xpose.msra.mxu0 0.0
        %1275 = vmatprep.subr.mxu0 0.0
        %1276 = vmatpush1.xpose.msra.mxu0 0.0
        %1277 = vmatprep.subr.mxu0 0.0
        %1278 = vmatpush1.xpose.msra.mxu0 0.0
        %1279 = vmatprep.subr.mxu0 0.0
        %1280 = vmatpush1.xpose.msra.mxu0 0.0
        %1281 = vmatprep.subr.mxu0 0.0
        %1282 = vmatpush1.xpose.msra.mxu0 0.0
        %1283 = vmatprep.subr.mxu0 0.0
        %1284 = vmatpush1.xpose.msra.mxu0 0.0
        %1285 = vmatprep.subr.mxu0 0.0
        %1286 = vmatpush1.xpose.msra.mxu0 0.0
        %1287 = vmatprep.subr.mxu0 0.0
        %1288 = vmatpush1.xpose.msra.mxu0 0.0
        %1289 = vmatprep.subr.mxu0 0.0
        %1290 = vmatpush1.xpose.msra.mxu0 0.0
        %1291 = vmatprep.subr.mxu0 0.0
        %1292 = vmatpush1.xpose.msra.mxu0 0.0
        %1293 = vmatprep.subr.mxu0 0.0
        %1294 = vmatpush1.xpose.msra.mxu0 0.0
        %1295 = vmatprep.subr.mxu0 0.0
        %1296 = vmatpush1.xpose.msra.mxu0 0.0
        %1297 = vmatprep.subr.mxu0 0.0
        %1298 = vmatpush1.xpose.msra.mxu0 0.0
        %1299 = vmatprep.subr.mxu0 0.0
        %1300 = vmatpush1.xpose.msra.mxu0 0.0
        %1301 = vmatprep.subr.mxu0 0.0
        %1302 = vmatpush1.xpose.msra.mxu0 0.0
        %1303 = vmatprep.subr.mxu0 0.0
        %1304 = vmatpush1.xpose.msra.mxu0 0.0
        %1305 = vmatprep.subr.mxu0 0.0
        %1306 = vmatpush1.xpose.msra.mxu0 0.0
        %1307 = vmatprep.subr.mxu0 0.0
        %1308 = vmatpush1.xpose.msra.mxu0 0.0
        %1309 = vmatprep.mubr.f32.mxu0 0.0
        %1310 = vmatmul.mubr.f32.gmra.mrb[0].mxu0 %v1237
        %v1311 = vpop.f32.mrb[0].mxu0
        %v1312 = vadd.f32 %v605, %v1311
        %v1313 = vpop.f32.mrb[0].mxu0
        %1314 = vmatprep.mubr.f32.mxu0 0.0
        %1315 = vmatmul.mubr.f32.gmra.mrb[0].mxu0 %v1239
        %v1316 = vpop.f32.mrb[0].mxu0
        %v1317 = vadd.f32 %v606, %v1316
        %v1318 = vpop.f32.mrb[0].mxu0
        %1319 = vdwg.mxu0
        %v1320 = vadd.f32 %v689, %v573
        %v1321 = vadd.f32 %v694, %v574
        %v1322 = vadd.f32 %v778, %v575
        %v1323 = vadd.f32 %v783, %v576
        %v1324 = vadd.f32 %v867, %v577
        %v1325 = vadd.f32 %v872, %v578
        %v1326 = vadd.f32 %v956, %v579
        %v1327 = vadd.f32 %v961, %v580
        %v1328 = vadd.f32 %v1045, %v581
        %v1329 = vadd.f32 %v1050, %v582
        %v1330 = vadd.f32 %v1134, %v583
        %v1331 = vadd.f32 %v1139, %v584
        %v1332 = vadd.f32 %v1223, %v585
        %v1333 = vadd.f32 %v1228, %v586
        %v1334 = vadd.f32 %v1312, %v587
        %v1335 = vadd.f32 %v1317, %v588
        %vm1336 = vcmask 130048
        %v1337 = vsel %vm1336, %v1320, -inf
        %1338 = vmax.xlane.f32.xlu0 %v1337
        %v1339 = vpop.xlane.xlu0 %1338
        %v1340 = vsel %vm1336, %v1321, -inf
        %1341 = vmax.xlane.f32.xlu0 %v1340
        %v1342 = vpop.xlane.xlu0 %1341
        %v1343 = vsel %vm1336, %v1322, -inf
        %1344 = vmax.xlane.f32.xlu0 %v1343
        %v1345 = vpop.xlane.xlu0 %1344
        %v1346 = vsel %vm1336, %v1323, -inf
        %1347 = vmax.xlane.f32.xlu0 %v1346
        %v1348 = vpop.xlane.xlu0 %1347
        %v1349 = vsel %vm1336, %v1324, -inf
        %1350 = vmax.xlane.f32.xlu0 %v1349
        %v1351 = vpop.xlane.xlu0 %1350
        %v1352 = vsel %vm1336, %v1325, -inf
        %1353 = vmax.xlane.f32.xlu0 %v1352
        %v1354 = vpop.xlane.xlu0 %1353
        %v1355 = vsel %vm1336, %v1326, -inf
        %1356 = vmax.xlane.f32.xlu0 %v1355
        %v1357 = vpop.xlane.xlu0 %1356
        %v1358 = vsel %vm1336, %v1327, -inf
        %1359 = vmax.xlane.f32.xlu0 %v1358
        %v1360 = vpop.xlane.xlu0 %1359
        %v1361 = vsel %vm1336, %v1328, -inf
        %1362 = vmax.xlane.f32.xlu0 %v1361
        %v1363 = vpop.xlane.xlu0 %1362
        %v1364 = vsel %vm1336, %v1329, -inf
        %1365 = vmax.xlane.f32.xlu0 %v1364
        %v1366 = vpop.xlane.xlu0 %1365
        %v1367 = vsel %vm1336, %v1330, -inf
        %1368 = vmax.xlane.f32.xlu0 %v1367
        %v1369 = vpop.xlane.xlu0 %1368
        %v1370 = vsel %vm1336, %v1331, -inf
        %1371 = vmax.xlane.f32.xlu0 %v1370
        %v1372 = vpop.xlane.xlu0 %1371
        %v1373 = vsel %vm1336, %v1332, -inf
        %1374 = vmax.xlane.f32.xlu0 %v1373
        %v1375 = vpop.xlane.xlu0 %1374
        %v1376 = vsel %vm1336, %v1333, -inf
        %1377 = vmax.xlane.f32.xlu0 %v1376
        %v1378 = vpop.xlane.xlu0 %1377
        %v1379 = vsel %vm1336, %v1334, -inf
        %1380 = vmax.xlane.f32.xlu0 %v1379
        %v1381 = vpop.xlane.xlu0 %1380
        %v1382 = vsel %vm1336, %v1335, -inf
        %1383 = vmax.xlane.f32.xlu0 %v1382
        %v1384 = vpop.xlane.xlu0 %1383
        %v1385 = vsub.f32 %v1320, %v1339
        %v1386 = vsub.f32 %v1321, %v1342
        %v1387 = vsub.f32 %v1322, %v1345
        %v1388 = vsub.f32 %v1323, %v1348
        %v1389 = vsub.f32 %v1324, %v1351
        %v1390 = vsub.f32 %v1325, %v1354
        %v1391 = vsub.f32 %v1326, %v1357
        %v1392 = vsub.f32 %v1327, %v1360
        %v1393 = vsub.f32 %v1328, %v1363
        %v1394 = vsub.f32 %v1329, %v1366
        %v1395 = vsub.f32 %v1330, %v1369
        %v1396 = vsub.f32 %v1331, %v1372
        %v1397 = vsub.f32 %v1332, %v1375
        %v1398 = vsub.f32 %v1333, %v1378
        %v1399 = vsub.f32 %v1334, %v1381
        %v1400 = vsub.f32 %v1335, %v1384
        %v1401 = vmul.f32 %v1385, 1.442695
        %v1402 = vpow.pop %v1401
        %v1403 = vmul.f32 %v1386, 1.442695
        %v1404 = vpow.pop %v1403
        %v1405 = vmul.f32 %v1387, 1.442695
        %v1406 = vpow.pop %v1405
        %v1407 = vmul.f32 %v1388, 1.442695
        %v1408 = vpow.pop %v1407
        %v1409 = vmul.f32 %v1389, 1.442695
        %v1410 = vpow.pop %v1409
        %v1411 = vmul.f32 %v1390, 1.442695
        %v1412 = vpow.pop %v1411
        %v1413 = vmul.f32 %v1391, 1.442695
        %v1414 = vpow.pop %v1413
        %v1415 = vmul.f32 %v1392, 1.442695
        %v1416 = vpow.pop %v1415
        %v1417 = vmul.f32 %v1393, 1.442695
        %v1418 = vpow.pop %v1417
        %v1419 = vmul.f32 %v1394, 1.442695
        %v1420 = vpow.pop %v1419
        %v1421 = vmul.f32 %v1395, 1.442695
        %v1422 = vpow.pop %v1421
        %v1423 = vmul.f32 %v1396, 1.442695
        %v1424 = vpow.pop %v1423
        %v1425 = vmul.f32 %v1397, 1.442695
        %v1426 = vpow.pop %v1425
        %v1427 = vmul.f32 %v1398, 1.442695
        %v1428 = vpow.pop %v1427
        %v1429 = vmul.f32 %v1399, 1.442695
        %v1430 = vpow.pop %v1429
        %v1431 = vmul.f32 %v1400, 1.442695
        %v1432 = vpow.pop %v1431
        %v1433 = vsel %vm1336, %v1402, 0.0
        %1434 = vadd.xlane.f32.xlu0 %v1433
        %v1435 = vpop.xlane.xlu0 %1434
        %v1436 = vsel %vm1336, %v1404, 0.0
        %1437 = vadd.xlane.f32.xlu0 %v1436
        %v1438 = vpop.xlane.xlu0 %1437
        %v1439 = vsel %vm1336, %v1406, 0.0
        %1440 = vadd.xlane.f32.xlu0 %v1439
        %v1441 = vpop.xlane.xlu0 %1440
        %v1442 = vsel %vm1336, %v1408, 0.0
        %1443 = vadd.xlane.f32.xlu0 %v1442
        %v1444 = vpop.xlane.xlu0 %1443
        %v1445 = vsel %vm1336, %v1410, 0.0
        %1446 = vadd.xlane.f32.xlu0 %v1445
        %v1447 = vpop.xlane.xlu0 %1446
        %v1448 = vsel %vm1336, %v1412, 0.0
        %1449 = vadd.xlane.f32.xlu0 %v1448
        %v1450 = vpop.xlane.xlu0 %1449
        %v1451 = vsel %vm1336, %v1414, 0.0
        %1452 = vadd.xlane.f32.xlu0 %v1451
        %v1453 = vpop.xlane.xlu0 %1452
        %v1454 = vsel %vm1336, %v1416, 0.0
        %1455 = vadd.xlane.f32.xlu0 %v1454
        %v1456 = vpop.xlane.xlu0 %1455
        %v1457 = vsel %vm1336, %v1418, 0.0
        %1458 = vadd.xlane.f32.xlu0 %v1457
        %v1459 = vpop.xlane.xlu0 %1458
        %v1460 = vsel %vm1336, %v1420, 0.0
        %1461 = vadd.xlane.f32.xlu0 %v1460
        %v1462 = vpop.xlane.xlu0 %1461
        %v1463 = vsel %vm1336, %v1422, 0.0
        %1464 = vadd.xlane.f32.xlu0 %v1463
        %v1465 = vpop.xlane.xlu0 %1464
        %v1466 = vsel %vm1336, %v1424, 0.0
        %1467 = vadd.xlane.f32.xlu0 %v1466
        %v1468 = vpop.xlane.xlu0 %1467
        %v1469 = vsel %vm1336, %v1426, 0.0
        %1470 = vadd.xlane.f32.xlu0 %v1469
        %v1471 = vpop.xlane.xlu0 %1470
        %v1472 = vsel %vm1336, %v1428, 0.0
        %1473 = vadd.xlane.f32.xlu0 %v1472
        %v1474 = vpop.xlane.xlu0 %1473
        %v1475 = vsel %vm1336, %v1430, 0.0
        %1476 = vadd.xlane.f32.xlu0 %v1475
        %v1477 = vpop.xlane.xlu0 %1476
        %v1478 = vsel %vm1336, %v1432, 0.0
        %1479 = vadd.xlane.f32.xlu0 %v1478
        %v1480 = vpop.xlane.xlu0 %1479
        %v1481 = vrcp.pop %v1435
        %v1482 = vrcp.pop %v1438
        %v1483 = vrcp.pop %v1441
        %v1484 = vrcp.pop %v1444
        %v1485 = vrcp.pop %v1447
        %v1486 = vrcp.pop %v1450
        %v1487 = vrcp.pop %v1453
        %v1488 = vrcp.pop %v1456
        %v1489 = vrcp.pop %v1459
        %v1490 = vrcp.pop %v1462
        %v1491 = vrcp.pop %v1465
        %v1492 = vrcp.pop %v1468
        %v1493 = vrcp.pop %v1471
        %v1494 = vrcp.pop %v1474
        %v1495 = vrcp.pop %v1477
        %v1496 = vrcp.pop %v1480
        %v1497 = vmul.f32 %v1402, %v1481
        %v1498 = vmul.f32 %v1404, %v1482
        %v1499 = vmul.f32 %v1406, %v1483
        %v1500 = vmul.f32 %v1408, %v1484
        %v1501 = vmul.f32 %v1410, %v1485
        %v1502 = vmul.f32 %v1412, %v1486
        %v1503 = vmul.f32 %v1414, %v1487
        %v1504 = vmul.f32 %v1416, %v1488
        %v1505 = vmul.f32 %v1418, %v1489
        %v1506 = vmul.f32 %v1420, %v1490
        %v1507 = vmul.f32 %v1422, %v1491
        %v1508 = vmul.f32 %v1424, %v1492
        %v1509 = vmul.f32 %v1426, %v1493
        %v1510 = vmul.f32 %v1428, %v1494
        %v1511 = vmul.f32 %v1430, %v1495
        %v1512 = vmul.f32 %v1432, %v1496
        %1513 = vrot.lane.b32.xlu0 %v589, 64
        %v1514 = vpop.permute.xlu0 %1513
        %1515 = vrot.lane.b32.xlu0 %v590, 64
        %v1516 = vpop.permute.xlu0 %1515
        %v1520 = vsel %vm1336, %v1497, 0
        %v1523 = vsel %vm1336, %v1498, 0
        %1525 = vmatprep.subr.mxu0 0.0
        %1526 = vmatpush1.msra.mxu0 %v1514
        %1527 = vmatprep.subr.mxu0 0.0
        %1528 = vmatpush1.msra.mxu0 %v1516
        %1529 = vmatprep.subr.mxu0 0.0
        %1530 = vmatpush1.msra.mxu0 0.0
        %1531 = vmatprep.subr.mxu0 0.0
        %1532 = vmatpush1.msra.mxu0 0.0
        %1533 = vmatprep.subr.mxu0 0.0
        %1534 = vmatpush1.msra.mxu0 0.0
        %1535 = vmatprep.subr.mxu0 0.0
        %1536 = vmatpush1.msra.mxu0 0.0
        %1537 = vmatprep.subr.mxu0 0.0
        %1538 = vmatpush1.msra.mxu0 0.0
        %1539 = vmatprep.subr.mxu0 0.0
        %1540 = vmatpush1.msra.mxu0 0.0
        %1541 = vmatprep.subr.mxu0 0.0
        %1542 = vmatpush1.msra.mxu0 0.0
        %1543 = vmatprep.subr.mxu0 0.0
        %1544 = vmatpush1.msra.mxu0 0.0
        %1545 = vmatprep.subr.mxu0 0.0
        %1546 = vmatpush1.msra.mxu0 0.0
        %1547 = vmatprep.subr.mxu0 0.0
        %1548 = vmatpush1.msra.mxu0 0.0
        %1549 = vmatprep.subr.mxu0 0.0
        %1550 = vmatpush1.msra.mxu0 0.0
        %1551 = vmatprep.subr.mxu0 0.0
        %1552 = vmatpush1.msra.mxu0 0.0
        %1553 = vmatprep.subr.mxu0 0.0
        %1554 = vmatpush1.msra.mxu0 0.0
        %1555 = vmatprep.subr.mxu0 0.0
        %1556 = vmatpush1.msra.mxu0 0.0
        %1557 = vmatprep.subr.mxu0 0.0
        %1558 = vmatpush1.msra.mxu0 0.0
        %1559 = vmatprep.subr.mxu0 0.0
        %1560 = vmatpush1.msra.mxu0 0.0
        %1561 = vmatprep.subr.mxu0 0.0
        %1562 = vmatpush1.msra.mxu0 0.0
        %1563 = vmatprep.subr.mxu0 0.0
        %1564 = vmatpush1.msra.mxu0 0.0
        %1565 = vmatprep.subr.mxu0 0.0
        %1566 = vmatpush1.msra.mxu0 0.0
        %1567 = vmatprep.subr.mxu0 0.0
        %1568 = vmatpush1.msra.mxu0 0.0
        %1569 = vmatprep.subr.mxu0 0.0
        %1570 = vmatpush1.msra.mxu0 0.0
        %1571 = vmatprep.subr.mxu0 0.0
        %1572 = vmatpush1.msra.mxu0 0.0
        %1573 = vmatprep.subr.mxu0 0.0
        %1574 = vmatpush1.msra.mxu0 0.0
        %1575 = vmatprep.subr.mxu0 0.0
        %1576 = vmatpush1.msra.mxu0 0.0
        %1577 = vmatprep.subr.mxu0 0.0
        %1578 = vmatpush1.msra.mxu0 0.0
        %1579 = vmatprep.subr.mxu0 0.0
        %1580 = vmatpush1.msra.mxu0 0.0
        %1581 = vmatprep.subr.mxu0 0.0
        %1582 = vmatpush1.msra.mxu0 0.0
        %1583 = vmatprep.subr.mxu0 0.0
        %1584 = vmatpush1.msra.mxu0 0.0
        %1585 = vmatprep.subr.mxu0 0.0
        %1586 = vmatpush1.msra.mxu0 0.0
        %1587 = vmatprep.subr.mxu0 0.0
        %1588 = vmatpush1.msra.mxu0 0.0
        %1589 = vmatprep.mubr.f32.mxu0 0.0
        %1590 = vmatmul.mubr.f32.gmra.mrb[0].mxu0 %v1520
        %v1591 = vpop.f32.mrb[0].mxu0
        %v1592 = vadd.f32 0.0, %v1591
        %v1593 = vpop.f32.mrb[0].mxu0
        %1594 = vmatprep.mubr.f32.mxu0 0.0
        %1595 = vmatmul.mubr.f32.gmra.mrb[0].mxu0 %v1523
        %v1596 = vpop.f32.mrb[0].mxu0
        %v1597 = vadd.f32 0.0, %v1596
        %v1598 = vpop.f32.mrb[0].mxu0
        %1599 = vdwg.mxu0
        %1600 = vrot.lane.b32.xlu0 %v591, 64
        %v1601 = vpop.permute.xlu0 %1600
        %1602 = vrot.lane.b32.xlu0 %v592, 64
        %v1603 = vpop.permute.xlu0 %1602
        %v1607 = vsel %vm1336, %v1499, 0
        %v1610 = vsel %vm1336, %v1500, 0
        %1612 = vmatprep.subr.mxu0 0.0
        %1613 = vmatpush1.msra.mxu0 %v1601
        %1614 = vmatprep.subr.mxu0 0.0
        %1615 = vmatpush1.msra.mxu0 %v1603
        %1616 = vmatprep.subr.mxu0 0.0
        %1617 = vmatpush1.msra.mxu0 0.0
        %1618 = vmatprep.subr.mxu0 0.0
        %1619 = vmatpush1.msra.mxu0 0.0
        %1620 = vmatprep.subr.mxu0 0.0
        %1621 = vmatpush1.msra.mxu0 0.0
        %1622 = vmatprep.subr.mxu0 0.0
        %1623 = vmatpush1.msra.mxu0 0.0
        %1624 = vmatprep.subr.mxu0 0.0
        %1625 = vmatpush1.msra.mxu0 0.0
        %1626 = vmatprep.subr.mxu0 0.0
        %1627 = vmatpush1.msra.mxu0 0.0
        %1628 = vmatprep.subr.mxu0 0.0
        %1629 = vmatpush1.msra.mxu0 0.0
        %1630 = vmatprep.subr.mxu0 0.0
        %1631 = vmatpush1.msra.mxu0 0.0
        %1632 = vmatprep.subr.mxu0 0.0
        %1633 = vmatpush1.msra.mxu0 0.0
        %1634 = vmatprep.subr.mxu0 0.0
        %1635 = vmatpush1.msra.mxu0 0.0
        %1636 = vmatprep.subr.mxu0 0.0
        %1637 = vmatpush1.msra.mxu0 0.0
        %1638 = vmatprep.subr.mxu0 0.0
        %1639 = vmatpush1.msra.mxu0 0.0
        %1640 = vmatprep.subr.mxu0 0.0
        %1641 = vmatpush1.msra.mxu0 0.0
        %1642 = vmatprep.subr.mxu0 0.0
        %1643 = vmatpush1.msra.mxu0 0.0
        %1644 = vmatprep.subr.mxu0 0.0
        %1645 = vmatpush1.msra.mxu0 0.0
        %1646 = vmatprep.subr.mxu0 0.0
        %1647 = vmatpush1.msra.mxu0 0.0
        %1648 = vmatprep.subr.mxu0 0.0
        %1649 = vmatpush1.msra.mxu0 0.0
        %1650 = vmatprep.subr.mxu0 0.0
        %1651 = vmatpush1.msra.mxu0 0.0
        %1652 = vmatprep.subr.mxu0 0.0
        %1653 = vmatpush1.msra.mxu0 0.0
        %1654 = vmatprep.subr.mxu0 0.0
        %1655 = vmatpush1.msra.mxu0 0.0
        %1656 = vmatprep.subr.mxu0 0.0
        %1657 = vmatpush1.msra.mxu0 0.0
        %1658 = vmatprep.subr.mxu0 0.0
        %1659 = vmatpush1.msra.mxu0 0.0
        %1660 = vmatprep.subr.mxu0 0.0
        %1661 = vmatpush1.msra.mxu0 0.0
        %1662 = vmatprep.subr.mxu0 0.0
        %1663 = vmatpush1.msra.mxu0 0.0
        %1664 = vmatprep.subr.mxu0 0.0
        %1665 = vmatpush1.msra.mxu0 0.0
        %1666 = vmatprep.subr.mxu0 0.0
        %1667 = vmatpush1.msra.mxu0 0.0
        %1668 = vmatprep.subr.mxu0 0.0
        %1669 = vmatpush1.msra.mxu0 0.0
        %1670 = vmatprep.subr.mxu0 0.0
        %1671 = vmatpush1.msra.mxu0 0.0
        %1672 = vmatprep.subr.mxu0 0.0
        %1673 = vmatpush1.msra.mxu0 0.0
        %1674 = vmatprep.subr.mxu0 0.0
        %1675 = vmatpush1.msra.mxu0 0.0
        %1676 = vmatprep.mubr.f32.mxu0 0.0
        %1677 = vmatmul.mubr.f32.gmra.mrb[0].mxu0 %v1607
        %v1678 = vpop.f32.mrb[0].mxu0
        %v1679 = vadd.f32 0.0, %v1678
        %v1680 = vpop.f32.mrb[0].mxu0
        %1681 = vmatprep.mubr.f32.mxu0 0.0
        %1682 = vmatmul.mubr.f32.gmra.mrb[0].mxu0 %v1610
        %v1683 = vpop.f32.mrb[0].mxu0
        %v1684 = vadd.f32 0.0, %v1683
        %v1685 = vpop.f32.mrb[0].mxu0
        %1686 = vdwg.mxu0
        %1687 = vrot.lane.b32.xlu0 %v593, 64
        %v1688 = vpop.permute.xlu0 %1687
        %1689 = vrot.lane.b32.xlu0 %v594, 64
        %v1690 = vpop.permute.xlu0 %1689
        %v1694 = vsel %vm1336, %v1501, 0
        %v1697 = vsel %vm1336, %v1502, 0
        %1699 = vmatprep.subr.mxu0 0.0
        %1700 = vmatpush1.msra.mxu0 %v1688
        %1701 = vmatprep.subr.mxu0 0.0
        %1702 = vmatpush1.msra.mxu0 %v1690
        %1703 = vmatprep.subr.mxu0 0.0
        %1704 = vmatpush1.msra.mxu0 0.0
        %1705 = vmatprep.subr.mxu0 0.0
        %1706 = vmatpush1.msra.mxu0 0.0
        %1707 = vmatprep.subr.mxu0 0.0
        %1708 = vmatpush1.msra.mxu0 0.0
        %1709 = vmatprep.subr.mxu0 0.0
        %1710 = vmatpush1.msra.mxu0 0.0
        %1711 = vmatprep.subr.mxu0 0.0
        %1712 = vmatpush1.msra.mxu0 0.0
        %1713 = vmatprep.subr.mxu0 0.0
        %1714 = vmatpush1.msra.mxu0 0.0
        %1715 = vmatprep.subr.mxu0 0.0
        %1716 = vmatpush1.msra.mxu0 0.0
        %1717 = vmatprep.subr.mxu0 0.0
        %1718 = vmatpush1.msra.mxu0 0.0
        %1719 = vmatprep.subr.mxu0 0.0
        %1720 = vmatpush1.msra.mxu0 0.0
        %1721 = vmatprep.subr.mxu0 0.0
        %1722 = vmatpush1.msra.mxu0 0.0
        %1723 = vmatprep.subr.mxu0 0.0
        %1724 = vmatpush1.msra.mxu0 0.0
        %1725 = vmatprep.subr.mxu0 0.0
        %1726 = vmatpush1.msra.mxu0 0.0
        %1727 = vmatprep.subr.mxu0 0.0
        %1728 = vmatpush1.msra.mxu0 0.0
        %1729 = vmatprep.subr.mxu0 0.0
        %1730 = vmatpush1.msra.mxu0 0.0
        %1731 = vmatprep.subr.mxu0 0.0
        %1732 = vmatpush1.msra.mxu0 0.0
        %1733 = vmatprep.subr.mxu0 0.0
        %1734 = vmatpush1.msra.mxu0 0.0
        %1735 = vmatprep.subr.mxu0 0.0
        %1736 = vmatpush1.msra.mxu0 0.0
        %1737 = vmatprep.subr.mxu0 0.0
        %1738 = vmatpush1.msra.mxu0 0.0
        %1739 = vmatprep.subr.mxu0 0.0
        %1740 = vmatpush1.msra.mxu0 0.0
        %1741 = vmatprep.subr.mxu0 0.0
        %1742 = vmatpush1.msra.mxu0 0.0
        %1743 = vmatprep.subr.mxu0 0.0
        %1744 = vmatpush1.msra.mxu0 0.0
        %1745 = vmatprep.subr.mxu0 0.0
        %1746 = vmatpush1.msra.mxu0 0.0
        %1747 = vmatprep.subr.mxu0 0.0
        %1748 = vmatpush1.msra.mxu0 0.0
        %1749 = vmatprep.subr.mxu0 0.0
        %1750 = vmatpush1.msra.mxu0 0.0
        %1751 = vmatprep.subr.mxu0 0.0
        %1752 = vmatpush1.msra.mxu0 0.0
        %1753 = vmatprep.subr.mxu0 0.0
        %1754 = vmatpush1.msra.mxu0 0.0
        %1755 = vmatprep.subr.mxu0 0.0
        %1756 = vmatpush1.msra.mxu0 0.0
        %1757 = vmatprep.subr.mxu0 0.0
        %1758 = vmatpush1.msra.mxu0 0.0
        %1759 = vmatprep.subr.mxu0 0.0
        %1760 = vmatpush1.msra.mxu0 0.0
        %1761 = vmatprep.subr.mxu0 0.0
        %1762 = vmatpush1.msra.mxu0 0.0
        %1763 = vmatprep.mubr.f32.mxu0 0.0
        %1764 = vmatmul.mubr.f32.gmra.mrb[0].mxu0 %v1694
        %v1765 = vpop.f32.mrb[0].mxu0
        %v1766 = vadd.f32 0.0, %v1765
        %v1767 = vpop.f32.mrb[0].mxu0
        %1768 = vmatprep.mubr.f32.mxu0 0.0
        %1769 = vmatmul.mubr.f32.gmra.mrb[0].mxu0 %v1697
        %v1770 = vpop.f32.mrb[0].mxu0
        %v1771 = vadd.f32 0.0, %v1770
        %v1772 = vpop.f32.mrb[0].mxu0
        %1773 = vdwg.mxu0
        %1774 = vrot.lane.b32.xlu0 %v595, 64
        %v1775 = vpop.permute.xlu0 %1774
        %1776 = vrot.lane.b32.xlu0 %v596, 64
        %v1777 = vpop.permute.xlu0 %1776
        %v1781 = vsel %vm1336, %v1503, 0
        %v1784 = vsel %vm1336, %v1504, 0
        %1786 = vmatprep.subr.mxu0 0.0
        %1787 = vmatpush1.msra.mxu0 %v1775
        %1788 = vmatprep.subr.mxu0 0.0
        %1789 = vmatpush1.msra.mxu0 %v1777
        %1790 = vmatprep.subr.mxu0 0.0
        %1791 = vmatpush1.msra.mxu0 0.0
        %1792 = vmatprep.subr.mxu0 0.0
        %1793 = vmatpush1.msra.mxu0 0.0
        %1794 = vmatprep.subr.mxu0 0.0
        %1795 = vmatpush1.msra.mxu0 0.0
        %1796 = vmatprep.subr.mxu0 0.0
        %1797 = vmatpush1.msra.mxu0 0.0
        %1798 = vmatprep.subr.mxu0 0.0
        %1799 = vmatpush1.msra.mxu0 0.0
        %1800 = vmatprep.subr.mxu0 0.0
        %1801 = vmatpush1.msra.mxu0 0.0
        %1802 = vmatprep.subr.mxu0 0.0
        %1803 = vmatpush1.msra.mxu0 0.0
        %1804 = vmatprep.subr.mxu0 0.0
        %1805 = vmatpush1.msra.mxu0 0.0
        %1806 = vmatprep.subr.mxu0 0.0
        %1807 = vmatpush1.msra.mxu0 0.0
        %1808 = vmatprep.subr.mxu0 0.0
        %1809 = vmatpush1.msra.mxu0 0.0
        %1810 = vmatprep.subr.mxu0 0.0
        %1811 = vmatpush1.msra.mxu0 0.0
        %1812 = vmatprep.subr.mxu0 0.0
        %1813 = vmatpush1.msra.mxu0 0.0
        %1814 = vmatprep.subr.mxu0 0.0
        %1815 = vmatpush1.msra.mxu0 0.0
        %1816 = vmatprep.subr.mxu0 0.0
        %1817 = vmatpush1.msra.mxu0 0.0
        %1818 = vmatprep.subr.mxu0 0.0
        %1819 = vmatpush1.msra.mxu0 0.0
        %1820 = vmatprep.subr.mxu0 0.0
        %1821 = vmatpush1.msra.mxu0 0.0
        %1822 = vmatprep.subr.mxu0 0.0
        %1823 = vmatpush1.msra.mxu0 0.0
        %1824 = vmatprep.subr.mxu0 0.0
        %1825 = vmatpush1.msra.mxu0 0.0
        %1826 = vmatprep.subr.mxu0 0.0
        %1827 = vmatpush1.msra.mxu0 0.0
        %1828 = vmatprep.subr.mxu0 0.0
        %1829 = vmatpush1.msra.mxu0 0.0
        %1830 = vmatprep.subr.mxu0 0.0
        %1831 = vmatpush1.msra.mxu0 0.0
        %1832 = vmatprep.subr.mxu0 0.0
        %1833 = vmatpush1.msra.mxu0 0.0
        %1834 = vmatprep.subr.mxu0 0.0
        %1835 = vmatpush1.msra.mxu0 0.0
        %1836 = vmatprep.subr.mxu0 0.0
        %1837 = vmatpush1.msra.mxu0 0.0
        %1838 = vmatprep.subr.mxu0 0.0
        %1839 = vmatpush1.msra.mxu0 0.0
        %1840 = vmatprep.subr.mxu0 0.0
        %1841 = vmatpush1.msra.mxu0 0.0
        %1842 = vmatprep.subr.mxu0 0.0
        %1843 = vmatpush1.msra.mxu0 0.0
        %1844 = vmatprep.subr.mxu0 0.0
        %1845 = vmatpush1.msra.mxu0 0.0
        %1846 = vmatprep.subr.mxu0 0.0
        %1847 = vmatpush1.msra.mxu0 0.0
        %1848 = vmatprep.subr.mxu0 0.0
        %1849 = vmatpush1.msra.mxu0 0.0
        %1850 = vmatprep.mubr.f32.mxu0 0.0
        %1851 = vmatmul.mubr.f32.gmra.mrb[0].mxu0 %v1781
        %v1852 = vpop.f32.mrb[0].mxu0
        %v1853 = vadd.f32 0.0, %v1852
        %v1854 = vpop.f32.mrb[0].mxu0
        %1855 = vmatprep.mubr.f32.mxu0 0.0
        %1856 = vmatmul.mubr.f32.gmra.mrb[0].mxu0 %v1784
        %v1857 = vpop.f32.mrb[0].mxu0
        %v1858 = vadd.f32 0.0, %v1857
        %v1859 = vpop.f32.mrb[0].mxu0
        %1860 = vdwg.mxu0
        %1861 = vrot.lane.b32.xlu0 %v597, 64
        %v1862 = vpop.permute.xlu0 %1861
        %1863 = vrot.lane.b32.xlu0 %v598, 64
        %v1864 = vpop.permute.xlu0 %1863
        %v1868 = vsel %vm1336, %v1505, 0
        %v1871 = vsel %vm1336, %v1506, 0
        %1873 = vmatprep.subr.mxu0 0.0
        %1874 = vmatpush1.msra.mxu0 %v1862
        %1875 = vmatprep.subr.mxu0 0.0
        %1876 = vmatpush1.msra.mxu0 %v1864
        %1877 = vmatprep.subr.mxu0 0.0
        %1878 = vmatpush1.msra.mxu0 0.0
        %1879 = vmatprep.subr.mxu0 0.0
        %1880 = vmatpush1.msra.mxu0 0.0
        %1881 = vmatprep.subr.mxu0 0.0
        %1882 = vmatpush1.msra.mxu0 0.0
        %1883 = vmatprep.subr.mxu0 0.0
        %1884 = vmatpush1.msra.mxu0 0.0
        %1885 = vmatprep.subr.mxu0 0.0
        %1886 = vmatpush1.msra.mxu0 0.0
        %1887 = vmatprep.subr.mxu0 0.0
        %1888 = vmatpush1.msra.mxu0 0.0
        %1889 = vmatprep.subr.mxu0 0.0
        %1890 = vmatpush1.msra.mxu0 0.0
        %1891 = vmatprep.subr.mxu0 0.0
        %1892 = vmatpush1.msra.mxu0 0.0
        %1893 = vmatprep.subr.mxu0 0.0
        %1894 = vmatpush1.msra.mxu0 0.0
        %1895 = vmatprep.subr.mxu0 0.0
        %1896 = vmatpush1.msra.mxu0 0.0
        %1897 = vmatprep.subr.mxu0 0.0
        %1898 = vmatpush1.msra.mxu0 0.0
        %1899 = vmatprep.subr.mxu0 0.0
        %1900 = vmatpush1.msra.mxu0 0.0
        %1901 = vmatprep.subr.mxu0 0.0
        %1902 = vmatpush1.msra.mxu0 0.0
        %1903 = vmatprep.subr.mxu0 0.0
        %1904 = vmatpush1.msra.mxu0 0.0
        %1905 = vmatprep.subr.mxu0 0.0
        %1906 = vmatpush1.msra.mxu0 0.0
        %1907 = vmatprep.subr.mxu0 0.0
        %1908 = vmatpush1.msra.mxu0 0.0
        %1909 = vmatprep.subr.mxu0 0.0
        %1910 = vmatpush1.msra.mxu0 0.0
        %1911 = vmatprep.subr.mxu0 0.0
        %1912 = vmatpush1.msra.mxu0 0.0
        %1913 = vmatprep.subr.mxu0 0.0
        %1914 = vmatpush1.msra.mxu0 0.0
        %1915 = vmatprep.subr.mxu0 0.0
        %1916 = vmatpush1.msra.mxu0 0.0
        %1917 = vmatprep.subr.mxu0 0.0
        %1918 = vmatpush1.msra.mxu0 0.0
        %1919 = vmatprep.subr.mxu0 0.0
        %1920 = vmatpush1.msra.mxu0 0.0
        %1921 = vmatprep.subr.mxu0 0.0
        %1922 = vmatpush1.msra.mxu0 0.0
        %1923 = vmatprep.subr.mxu0 0.0
        %1924 = vmatpush1.msra.mxu0 0.0
        %1925 = vmatprep.subr.mxu0 0.0
        %1926 = vmatpush1.msra.mxu0 0.0
        %1927 = vmatprep.subr.mxu0 0.0
        %1928 = vmatpush1.msra.mxu0 0.0
        %1929 = vmatprep.subr.mxu0 0.0
        %1930 = vmatpush1.msra.mxu0 0.0
        %1931 = vmatprep.subr.mxu0 0.0
        %1932 = vmatpush1.msra.mxu0 0.0
        %1933 = vmatprep.subr.mxu0 0.0
        %1934 = vmatpush1.msra.mxu0 0.0
        %1935 = vmatprep.subr.mxu0 0.0
        %1936 = vmatpush1.msra.mxu0 0.0
        %1937 = vmatprep.mubr.f32.mxu0 0.0
        %1938 = vmatmul.mubr.f32.gmra.mrb[0].mxu0 %v1868
        %v1939 = vpop.f32.mrb[0].mxu0
        %v1940 = vadd.f32 0.0, %v1939
        %v1941 = vpop.f32.mrb[0].mxu0
        %1942 = vmatprep.mubr.f32.mxu0 0.0
        %1943 = vmatmul.mubr.f32.gmra.mrb[0].mxu0 %v1871
        %v1944 = vpop.f32.mrb[0].mxu0
        %v1945 = vadd.f32 0.0, %v1944
        %v1946 = vpop.f32.mrb[0].mxu0
        %1947 = vdwg.mxu0
        %1948 = vrot.lane.b32.xlu0 %v599, 64
        %v1949 = vpop.permute.xlu0 %1948
        %1950 = vrot.lane.b32.xlu0 %v600, 64
        %v1951 = vpop.permute.xlu0 %1950
        %v1955 = vsel %vm1336, %v1507, 0
        %v1958 = vsel %vm1336, %v1508, 0
        %1960 = vmatprep.subr.mxu0 0.0
        %1961 = vmatpush1.msra.mxu0 %v1949
        %1962 = vmatprep.subr.mxu0 0.0
        %1963 = vmatpush1.msra.mxu0 %v1951
        %1964 = vmatprep.subr.mxu0 0.0
        %1965 = vmatpush1.msra.mxu0 0.0
        %1966 = vmatprep.subr.mxu0 0.0
        %1967 = vmatpush1.msra.mxu0 0.0
        %1968 = vmatprep.subr.mxu0 0.0
        %1969 = vmatpush1.msra.mxu0 0.0
        %1970 = vmatprep.subr.mxu0 0.0
        %1971 = vmatpush1.msra.mxu0 0.0
        %1972 = vmatprep.subr.mxu0 0.0
        %1973 = vmatpush1.msra.mxu0 0.0
        %1974 = vmatprep.subr.mxu0 0.0
        %1975 = vmatpush1.msra.mxu0 0.0
        %1976 = vmatprep.subr.mxu0 0.0
        %1977 = vmatpush1.msra.mxu0 0.0
        %1978 = vmatprep.subr.mxu0 0.0
        %1979 = vmatpush1.msra.mxu0 0.0
        %1980 = vmatprep.subr.mxu0 0.0
        %1981 = vmatpush1.msra.mxu0 0.0
        %1982 = vmatprep.subr.mxu0 0.0
        %1983 = vmatpush1.msra.mxu0 0.0
        %1984 = vmatprep.subr.mxu0 0.0
        %1985 = vmatpush1.msra.mxu0 0.0
        %1986 = vmatprep.subr.mxu0 0.0
        %1987 = vmatpush1.msra.mxu0 0.0
        %1988 = vmatprep.subr.mxu0 0.0
        %1989 = vmatpush1.msra.mxu0 0.0
        %1990 = vmatprep.subr.mxu0 0.0
        %1991 = vmatpush1.msra.mxu0 0.0
        %1992 = vmatprep.subr.mxu0 0.0
        %1993 = vmatpush1.msra.mxu0 0.0
        %1994 = vmatprep.subr.mxu0 0.0
        %1995 = vmatpush1.msra.mxu0 0.0
        %1996 = vmatprep.subr.mxu0 0.0
        %1997 = vmatpush1.msra.mxu0 0.0
        %1998 = vmatprep.subr.mxu0 0.0
        %1999 = vmatpush1.msra.mxu0 0.0
        %2000 = vmatprep.subr.mxu0 0.0
        %2001 = vmatpush1.msra.mxu0 0.0
        %2002 = vmatprep.subr.mxu0 0.0
        %2003 = vmatpush1.msra.mxu0 0.0
        %2004 = vmatprep.subr.mxu0 0.0
        %2005 = vmatpush1.msra.mxu0 0.0
        %2006 = vmatprep.subr.mxu0 0.0
        %2007 = vmatpush1.msra.mxu0 0.0
        %2008 = vmatprep.subr.mxu0 0.0
        %2009 = vmatpush1.msra.mxu0 0.0
        %2010 = vmatprep.subr.mxu0 0.0
        %2011 = vmatpush1.msra.mxu0 0.0
        %2012 = vmatprep.subr.mxu0 0.0
        %2013 = vmatpush1.msra.mxu0 0.0
        %2014 = vmatprep.subr.mxu0 0.0
        %2015 = vmatpush1.msra.mxu0 0.0
        %2016 = vmatprep.subr.mxu0 0.0
        %2017 = vmatpush1.msra.mxu0 0.0
        %2018 = vmatprep.subr.mxu0 0.0
        %2019 = vmatpush1.msra.mxu0 0.0
        %2020 = vmatprep.subr.mxu0 0.0
        %2021 = vmatpush1.msra.mxu0 0.0
        %2022 = vmatprep.subr.mxu0 0.0
        %2023 = vmatpush1.msra.mxu0 0.0
        %2024 = vmatprep.mubr.f32.mxu0 0.0
        %2025 = vmatmul.mubr.f32.gmra.mrb[0].mxu0 %v1955
        %v2026 = vpop.f32.mrb[0].mxu0
        %v2027 = vadd.f32 0.0, %v2026
        %v2028 = vpop.f32.mrb[0].mxu0
        %2029 = vmatprep.mubr.f32.mxu0 0.0
        %2030 = vmatmul.mubr.f32.gmra.mrb[0].mxu0 %v1958
        %v2031 = vpop.f32.mrb[0].mxu0
        %v2032 = vadd.f32 0.0, %v2031
        %v2033 = vpop.f32.mrb[0].mxu0
        %2034 = vdwg.mxu0
        %2035 = vrot.lane.b32.xlu0 %v601, 64
        %v2036 = vpop.permute.xlu0 %2035
        %2037 = vrot.lane.b32.xlu0 %v602, 64
        %v2038 = vpop.permute.xlu0 %2037
        %v2042 = vsel %vm1336, %v1509, 0
        %v2045 = vsel %vm1336, %v1510, 0
        %2047 = vmatprep.subr.mxu0 0.0
        %2048 = vmatpush1.msra.mxu0 %v2036
        %2049 = vmatprep.subr.mxu0 0.0
        %2050 = vmatpush1.msra.mxu0 %v2038
        %2051 = vmatprep.subr.mxu0 0.0
        %2052 = vmatpush1.msra.mxu0 0.0
        %2053 = vmatprep.subr.mxu0 0.0
        %2054 = vmatpush1.msra.mxu0 0.0
        %2055 = vmatprep.subr.mxu0 0.0
        %2056 = vmatpush1.msra.mxu0 0.0
        %2057 = vmatprep.subr.mxu0 0.0
        %2058 = vmatpush1.msra.mxu0 0.0
        %2059 = vmatprep.subr.mxu0 0.0
        %2060 = vmatpush1.msra.mxu0 0.0
        %2061 = vmatprep.subr.mxu0 0.0
        %2062 = vmatpush1.msra.mxu0 0.0
        %2063 = vmatprep.subr.mxu0 0.0
        %2064 = vmatpush1.msra.mxu0 0.0
        %2065 = vmatprep.subr.mxu0 0.0
        %2066 = vmatpush1.msra.mxu0 0.0
        %2067 = vmatprep.subr.mxu0 0.0
        %2068 = vmatpush1.msra.mxu0 0.0
        %2069 = vmatprep.subr.mxu0 0.0
        %2070 = vmatpush1.msra.mxu0 0.0
        %2071 = vmatprep.subr.mxu0 0.0
        %2072 = vmatpush1.msra.mxu0 0.0
        %2073 = vmatprep.subr.mxu0 0.0
        %2074 = vmatpush1.msra.mxu0 0.0
        %2075 = vmatprep.subr.mxu0 0.0
        %2076 = vmatpush1.msra.mxu0 0.0
        %2077 = vmatprep.subr.mxu0 0.0
        %2078 = vmatpush1.msra.mxu0 0.0
        %2079 = vmatprep.subr.mxu0 0.0
        %2080 = vmatpush1.msra.mxu0 0.0
        %2081 = vmatprep.subr.mxu0 0.0
        %2082 = vmatpush1.msra.mxu0 0.0
        %2083 = vmatprep.subr.mxu0 0.0
        %2084 = vmatpush1.msra.mxu0 0.0
        %2085 = vmatprep.subr.mxu0 0.0
        %2086 = vmatpush1.msra.mxu0 0.0
        %2087 = vmatprep.subr.mxu0 0.0
        %2088 = vmatpush1.msra.mxu0 0.0
        %2089 = vmatprep.subr.mxu0 0.0
        %2090 = vmatpush1.msra.mxu0 0.0
        %2091 = vmatprep.subr.mxu0 0.0
        %2092 = vmatpush1.msra.mxu0 0.0
        %2093 = vmatprep.subr.mxu0 0.0
        %2094 = vmatpush1.msra.mxu0 0.0
        %2095 = vmatprep.subr.mxu0 0.0
        %2096 = vmatpush1.msra.mxu0 0.0
        %2097 = vmatprep.subr.mxu0 0.0
        %2098 = vmatpush1.msra.mxu0 0.0
        %2099 = vmatprep.subr.mxu0 0.0
        %2100 = vmatpush1.msra.mxu0 0.0
        %2101 = vmatprep.subr.mxu0 0.0
        %2102 = vmatpush1.msra.mxu0 0.0
        %2103 = vmatprep.subr.mxu0 0.0
        %2104 = vmatpush1.msra.mxu0 0.0
        %2105 = vmatprep.subr.mxu0 0.0
        %2106 = vmatpush1.msra.mxu0 0.0
        %2107 = vmatprep.subr.mxu0 0.0
        %2108 = vmatpush1.msra.mxu0 0.0
        %2109 = vmatprep.subr.mxu0 0.0
        %2110 = vmatpush1.msra.mxu0 0.0
        %2111 = vmatprep.mubr.f32.mxu0 0.0
        %2112 = vmatmul.mubr.f32.gmra.mrb[0].mxu0 %v2042
        %v2113 = vpop.f32.mrb[0].mxu0
        %v2114 = vadd.f32 0.0, %v2113
        %v2115 = vpop.f32.mrb[0].mxu0
        %2116 = vmatprep.mubr.f32.mxu0 0.0
        %2117 = vmatmul.mubr.f32.gmra.mrb[0].mxu0 %v2045
        %v2118 = vpop.f32.mrb[0].mxu0
        %v2119 = vadd.f32 0.0, %v2118
        %v2120 = vpop.f32.mrb[0].mxu0
        %2121 = vdwg.mxu0
        %2122 = vrot.lane.b32.xlu0 %v603, 64
        %v2123 = vpop.permute.xlu0 %2122
        %2124 = vrot.lane.b32.xlu0 %v604, 64
        %v2125 = vpop.permute.xlu0 %2124
        %v2129 = vsel %vm1336, %v1511, 0
        %v2132 = vsel %vm1336, %v1512, 0
        %2134 = vmatprep.subr.mxu0 0.0
        %2135 = vmatpush1.msra.mxu0 %v2123
        %2136 = vmatprep.subr.mxu0 0.0
        %2137 = vmatpush1.msra.mxu0 %v2125
        %2138 = vmatprep.subr.mxu0 0.0
        %2139 = vmatpush1.msra.mxu0 0.0
        %2140 = vmatprep.subr.mxu0 0.0
        %2141 = vmatpush1.msra.mxu0 0.0
        %2142 = vmatprep.subr.mxu0 0.0
        %2143 = vmatpush1.msra.mxu0 0.0
        %2144 = vmatprep.subr.mxu0 0.0
        %2145 = vmatpush1.msra.mxu0 0.0
        %2146 = vmatprep.subr.mxu0 0.0
        %2147 = vmatpush1.msra.mxu0 0.0
        %2148 = vmatprep.subr.mxu0 0.0
        %2149 = vmatpush1.msra.mxu0 0.0
        %2150 = vmatprep.subr.mxu0 0.0
        %2151 = vmatpush1.msra.mxu0 0.0
        %2152 = vmatprep.subr.mxu0 0.0
        %2153 = vmatpush1.msra.mxu0 0.0
        %2154 = vmatprep.subr.mxu0 0.0
        %2155 = vmatpush1.msra.mxu0 0.0
        %2156 = vmatprep.subr.mxu0 0.0
        %2157 = vmatpush1.msra.mxu0 0.0
        %2158 = vmatprep.subr.mxu0 0.0
        %2159 = vmatpush1.msra.mxu0 0.0
        %2160 = vmatprep.subr.mxu0 0.0
        %2161 = vmatpush1.msra.mxu0 0.0
        %2162 = vmatprep.subr.mxu0 0.0
        %2163 = vmatpush1.msra.mxu0 0.0
        %2164 = vmatprep.subr.mxu0 0.0
        %2165 = vmatpush1.msra.mxu0 0.0
        %2166 = vmatprep.subr.mxu0 0.0
        %2167 = vmatpush1.msra.mxu0 0.0
        %2168 = vmatprep.subr.mxu0 0.0
        %2169 = vmatpush1.msra.mxu0 0.0
        %2170 = vmatprep.subr.mxu0 0.0
        %2171 = vmatpush1.msra.mxu0 0.0
        %2172 = vmatprep.subr.mxu0 0.0
        %2173 = vmatpush1.msra.mxu0 0.0
        %2174 = vmatprep.subr.mxu0 0.0
        %2175 = vmatpush1.msra.mxu0 0.0
        %2176 = vmatprep.subr.mxu0 0.0
        %2177 = vmatpush1.msra.mxu0 0.0
        %2178 = vmatprep.subr.mxu0 0.0
        %2179 = vmatpush1.msra.mxu0 0.0
        %2180 = vmatprep.subr.mxu0 0.0
        %2181 = vmatpush1.msra.mxu0 0.0
        %2182 = vmatprep.subr.mxu0 0.0
        %2183 = vmatpush1.msra.mxu0 0.0
        %2184 = vmatprep.subr.mxu0 0.0
        %2185 = vmatpush1.msra.mxu0 0.0
        %2186 = vmatprep.subr.mxu0 0.0
        %2187 = vmatpush1.msra.mxu0 0.0
        %2188 = vmatprep.subr.mxu0 0.0
        %2189 = vmatpush1.msra.mxu0 0.0
        %2190 = vmatprep.subr.mxu0 0.0
        %2191 = vmatpush1.msra.mxu0 0.0
        %2192 = vmatprep.subr.mxu0 0.0
        %2193 = vmatpush1.msra.mxu0 0.0
        %2194 = vmatprep.subr.mxu0 0.0
        %2195 = vmatpush1.msra.mxu0 0.0
        %2196 = vmatprep.subr.mxu0 0.0
        %2197 = vmatpush1.msra.mxu0 0.0
        %2198 = vmatprep.mubr.f32.mxu0 0.0
        %2199 = vmatmul.mubr.f32.gmra.mrb[0].mxu0 %v2129
        %v2200 = vpop.f32.mrb[0].mxu0
        %v2201 = vadd.f32 0.0, %v2200
        %v2202 = vpop.f32.mrb[0].mxu0
        %2203 = vmatprep.mubr.f32.mxu0 0.0
        %2204 = vmatmul.mubr.f32.gmra.mrb[0].mxu0 %v2132
        %v2205 = vpop.f32.mrb[0].mxu0
        %v2206 = vadd.f32 0.0, %v2205
        %v2207 = vpop.f32.mrb[0].mxu0
        %2208 = vdwg.mxu0
        %2209 = vst.msk [vmem:[#allocation3] sm:$0xff] %vm613, %v1592
        %2210 = vst.msk [vmem:[#allocation3 + $0x8] sm:$0xff] %vm613, %v1597
        %2211 = vst.msk [vmem:[#allocation3 + $0x10] sm:$0xff] %vm613, %v1679
        %2212 = vst.msk [vmem:[#allocation3 + $0x18] sm:$0xff] %vm613, %v1684
        %2213 = vst.msk [vmem:[#allocation3 + $0x20] sm:$0xff] %vm613, %v1766
        %2214 = vst.msk [vmem:[#allocation3 + $0x28] sm:$0xff] %vm613, %v1771
        %2215 = vst.msk [vmem:[#allocation3 + $0x30] sm:$0xff] %vm613, %v1853
        %2216 = vst.msk [vmem:[#allocation3 + $0x38] sm:$0xff] %vm613, %v1858
        %2217 = vst.msk [vmem:[#allocation3 + $0x40] sm:$0xff] %vm613, %v1940
        %2218 = vst.msk [vmem:[#allocation3 + $0x48] sm:$0xff] %vm613, %v1945
        %2219 = vst.msk [vmem:[#allocation3 + $0x50] sm:$0xff] %vm613, %v2027
        %2220 = vst.msk [vmem:[#allocation3 + $0x58] sm:$0xff] %vm613, %v2032
        %2221 = vst.msk [vmem:[#allocation3 + $0x60] sm:$0xff] %vm613, %v2114
        %2222 = vst.msk [vmem:[#allocation3 + $0x68] sm:$0xff] %vm613, %v2119
        %2223 = vst.msk [vmem:[#allocation3 + $0x70] sm:$0xff] %vm613, %v2201
        %2224 = vst.msk [vmem:[#allocation3 + $0x78] sm:$0xff] %vm613, %v2206
        %v2225 = vld [vmem:[#allocation2] sm:$0xff]
        %v2226 = vld [vmem:[#allocation2 + $0x8] sm:$0xff]
        %v2227 = vld [vmem:[#allocation2 + $0x10] sm:$0xff]
        %v2228 = vld [vmem:[#allocation2 + $0x18] sm:$0xff]
        %v2229 = vld [vmem:[#allocation2 + $0x20] sm:$0xff]
        %v2230 = vld [vmem:[#allocation2 + $0x28] sm:$0xff]
        %v2231 = vld [vmem:[#allocation2 + $0x30] sm:$0xff]
        %v2232 = vld [vmem:[#allocation2 + $0x38] sm:$0xff]
        %v2233 = vld [vmem:[#allocation2 + $0x40] sm:$0xff]
        %v2234 = vld [vmem:[#allocation2 + $0x48] sm:$0xff]
        %v2235 = vld [vmem:[#allocation2 + $0x50] sm:$0xff]
        %v2236 = vld [vmem:[#allocation2 + $0x58] sm:$0xff]
        %v2237 = vld [vmem:[#allocation2 + $0x60] sm:$0xff]
        %v2238 = vld [vmem:[#allocation2 + $0x68] sm:$0xff]
        %v2239 = vld [vmem:[#allocation2 + $0x70] sm:$0xff]
        %v2240 = vld [vmem:[#allocation2 + $0x78] sm:$0xff]
        %s2241 = scalar_lea.vmem %s3, 16
        %v2242 = vld [vmem:[%s2241] sm:$0xff]
        %v2243 = vld [vmem:[%s2241 + $0x8] sm:$0xff]
        %2246 = vrot.lane.b32.xlu0 %v2225, 120
        %v2247 = vpop.permute.xlu0 %2246
        %2248 = vrot.lane.b32.xlu0 %v2226, 120
        %v2249 = vpop.permute.xlu0 %2248
        %2250 = vrot.lane.b32.xlu0 %v2225, 88
        %v2251 = vpop.permute.xlu0 %2250
        %2252 = vrot.lane.b32.xlu0 %v2226, 88
        %v2253 = vpop.permute.xlu0 %2252
        %v2254 = vsel %vm613, %v2247, 0
        %v2256 = vsel %vm613, %v2249, 0
        %v2258 = vsel %vm613, %v2251, 0
        %v2260 = vsel %vm613, %v2253, 0
        %2262 = vmatprep.subr.mxu0 0.0
        %2263 = vmatpush1.xpose.msra.mxu0 %v2258
        %2264 = vmatprep.subr.mxu0 0.0
        %2265 = vmatpush1.xpose.msra.mxu0 %v2260
        %2266 = vmatprep.subr.mxu0 0.0
        %2267 = vmatpush1.xpose.msra.mxu0 0.0
        %2268 = vmatprep.subr.mxu0 0.0
        %2269 = vmatpush1.xpose.msra.mxu0 0.0
        %2270 = vmatprep.subr.mxu0 0.0
        %2271 = vmatpush1.xpose.msra.mxu0 0.0
        %2272 = vmatprep.subr.mxu0 0.0
        %2273 = vmatpush1.xpose.msra.mxu0 0.0
        %2274 = vmatprep.subr.mxu0 0.0
        %2275 = vmatpush1.xpose.msra.mxu0 0.0
        %2276 = vmatprep.subr.mxu0 0.0
        %2277 = vmatpush1.xpose.msra.mxu0 0.0
        %2278 = vmatprep.subr.mxu0 0.0
        %2279 = vmatpush1.xpose.msra.mxu0 0.0
        %2280 = vmatprep.subr.mxu0 0.0
        %2281 = vmatpush1.xpose.msra.mxu0 0.0
        %2282 = vmatprep.subr.mxu0 0.0
        %2283 = vmatpush1.xpose.msra.mxu0 0.0
        %2284 = vmatprep.subr.mxu0 0.0
        %2285 = vmatpush1.xpose.msra.mxu0 0.0
        %2286 = vmatprep.subr.mxu0 0.0
        %2287 = vmatpush1.xpose.msra.mxu0 0.0
        %2288 = vmatprep.subr.mxu0 0.0
        %2289 = vmatpush1.xpose.msra.mxu0 0.0
        %2290 = vmatprep.subr.mxu0 0.0
        %2291 = vmatpush1.xpose.msra.mxu0 0.0
        %2292 = vmatprep.subr.mxu0 0.0
        %2293 = vmatpush1.xpose.msra.mxu0 0.0
        %2294 = vmatprep.subr.mxu0 0.0
        %2295 = vmatpush1.xpose.msra.mxu0 0.0
        %2296 = vmatprep.subr.mxu0 0.0
        %2297 = vmatpush1.xpose.msra.mxu0 0.0
        %2298 = vmatprep.subr.mxu0 0.0
        %2299 = vmatpush1.xpose.msra.mxu0 0.0
        %2300 = vmatprep.subr.mxu0 0.0
        %2301 = vmatpush1.xpose.msra.mxu0 0.0
        %2302 = vmatprep.subr.mxu0 0.0
        %2303 = vmatpush1.xpose.msra.mxu0 0.0
        %2304 = vmatprep.subr.mxu0 0.0
        %2305 = vmatpush1.xpose.msra.mxu0 0.0
        %2306 = vmatprep.subr.mxu0 0.0
        %2307 = vmatpush1.xpose.msra.mxu0 0.0
        %2308 = vmatprep.subr.mxu0 0.0
        %2309 = vmatpush1.xpose.msra.mxu0 0.0
        %2310 = vmatprep.subr.mxu0 0.0
        %2311 = vmatpush1.xpose.msra.mxu0 0.0
        %2312 = vmatprep.subr.mxu0 0.0
        %2313 = vmatpush1.xpose.msra.mxu0 0.0
        %2314 = vmatprep.subr.mxu0 0.0
        %2315 = vmatpush1.xpose.msra.mxu0 0.0
        %2316 = vmatprep.subr.mxu0 0.0
        %2317 = vmatpush1.xpose.msra.mxu0 0.0
        %2318 = vmatprep.subr.mxu0 0.0
        %2319 = vmatpush1.xpose.msra.mxu0 0.0
        %2320 = vmatprep.subr.mxu0 0.0
        %2321 = vmatpush1.xpose.msra.mxu0 0.0
        %2322 = vmatprep.subr.mxu0 0.0
        %2323 = vmatpush1.xpose.msra.mxu0 0.0
        %2324 = vmatprep.subr.mxu0 0.0
        %2325 = vmatpush1.xpose.msra.mxu0 0.0
        %2326 = vmatprep.mubr.f32.mxu0 0.0
        %2327 = vmatmul.mubr.f32.gmra.mrb[0].mxu0 %v2254
        %v2328 = vpop.f32.mrb[0].mxu0
        %v2329 = vadd.f32 %v2242, %v2328
        %v2330 = vpop.f32.mrb[0].mxu0
        %2331 = vmatprep.mubr.f32.mxu0 0.0
        %2332 = vmatmul.mubr.f32.gmra.mrb[0].mxu0 %v2256
        %v2333 = vpop.f32.mrb[0].mxu0
        %v2334 = vadd.f32 %v2243, %v2333
        %v2335 = vpop.f32.mrb[0].mxu0
        %2336 = vdwg.mxu0
        %2339 = vrot.lane.b32.xlu0 %v2227, 120
        %v2340 = vpop.permute.xlu0 %2339
        %2341 = vrot.lane.b32.xlu0 %v2228, 120
        %v2342 = vpop.permute.xlu0 %2341
        %2343 = vrot.lane.b32.xlu0 %v2227, 88
        %v2344 = vpop.permute.xlu0 %2343
        %2345 = vrot.lane.b32.xlu0 %v2228, 88
        %v2346 = vpop.permute.xlu0 %2345
        %v2347 = vsel %vm613, %v2340, 0
        %v2349 = vsel %vm613, %v2342, 0
        %v2351 = vsel %vm613, %v2344, 0
        %v2353 = vsel %vm613, %v2346, 0
        %2355 = vmatprep.subr.mxu0 0.0
        %2356 = vmatpush1.xpose.msra.mxu0 %v2351
        %2357 = vmatprep.subr.mxu0 0.0
        %2358 = vmatpush1.xpose.msra.mxu0 %v2353
        %2359 = vmatprep.subr.mxu0 0.0
        %2360 = vmatpush1.xpose.msra.mxu0 0.0
        %2361 = vmatprep.subr.mxu0 0.0
        %2362 = vmatpush1.xpose.msra.mxu0 0.0
        %2363 = vmatprep.subr.mxu0 0.0
        %2364 = vmatpush1.xpose.msra.mxu0 0.0
        %2365 = vmatprep.subr.mxu0 0.0
        %2366 = vmatpush1.xpose.msra.mxu0 0.0
        %2367 = vmatprep.subr.mxu0 0.0
        %2368 = vmatpush1.xpose.msra.mxu0 0.0
        %2369 = vmatprep.subr.mxu0 0.0
        %2370 = vmatpush1.xpose.msra.mxu0 0.0
        %2371 = vmatprep.subr.mxu0 0.0
        %2372 = vmatpush1.xpose.msra.mxu0 0.0
        %2373 = vmatprep.subr.mxu0 0.0
        %2374 = vmatpush1.xpose.msra.mxu0 0.0
        %2375 = vmatprep.subr.mxu0 0.0
        %2376 = vmatpush1.xpose.msra.mxu0 0.0
        %2377 = vmatprep.subr.mxu0 0.0
        %2378 = vmatpush1.xpose.msra.mxu0 0.0
        %2379 = vmatprep.subr.mxu0 0.0
        %2380 = vmatpush1.xpose.msra.mxu0 0.0
        %2381 = vmatprep.subr.mxu0 0.0
        %2382 = vmatpush1.xpose.msra.mxu0 0.0
        %2383 = vmatprep.subr.mxu0 0.0
        %2384 = vmatpush1.xpose.msra.mxu0 0.0
        %2385 = vmatprep.subr.mxu0 0.0
        %2386 = vmatpush1.xpose.msra.mxu0 0.0
        %2387 = vmatprep.subr.mxu0 0.0
        %2388 = vmatpush1.xpose.msra.mxu0 0.0
        %2389 = vmatprep.subr.mxu0 0.0
        %2390 = vmatpush1.xpose.msra.mxu0 0.0
        %2391 = vmatprep.subr.mxu0 0.0
        %2392 = vmatpush1.xpose.msra.mxu0 0.0
        %2393 = vmatprep.subr.mxu0 0.0
        %2394 = vmatpush1.xpose.msra.mxu0 0.0
        %2395 = vmatprep.subr.mxu0 0.0
        %2396 = vmatpush1.xpose.msra.mxu0 0.0
        %2397 = vmatprep.subr.mxu0 0.0
        %2398 = vmatpush1.xpose.msra.mxu0 0.0
        %2399 = vmatprep.subr.mxu0 0.0
        %2400 = vmatpush1.xpose.msra.mxu0 0.0
        %2401 = vmatprep.subr.mxu0 0.0
        %2402 = vmatpush1.xpose.msra.mxu0 0.0
        %2403 = vmatprep.subr.mxu0 0.0
        %2404 = vmatpush1.xpose.msra.mxu0 0.0
        %2405 = vmatprep.subr.mxu0 0.0
        %2406 = vmatpush1.xpose.msra.mxu0 0.0
        %2407 = vmatprep.subr.mxu0 0.0
        %2408 = vmatpush1.xpose.msra.mxu0 0.0
        %2409 = vmatprep.subr.mxu0 0.0
        %2410 = vmatpush1.xpose.msra.mxu0 0.0
        %2411 = vmatprep.subr.mxu0 0.0
        %2412 = vmatpush1.xpose.msra.mxu0 0.0
        %2413 = vmatprep.subr.mxu0 0.0
        %2414 = vmatpush1.xpose.msra.mxu0 0.0
        %2415 = vmatprep.subr.mxu0 0.0
        %2416 = vmatpush1.xpose.msra.mxu0 0.0
        %2417 = vmatprep.subr.mxu0 0.0
        %2418 = vmatpush1.xpose.msra.mxu0 0.0
        %2419 = vmatprep.mubr.f32.mxu0 0.0
        %2420 = vmatmul.mubr.f32.gmra.mrb[0].mxu0 %v2347
        %v2421 = vpop.f32.mrb[0].mxu0
        %v2422 = vadd.f32 %v2242, %v2421
        %v2423 = vpop.f32.mrb[0].mxu0
        %2424 = vmatprep.mubr.f32.mxu0 0.0
        %2425 = vmatmul.mubr.f32.gmra.mrb[0].mxu0 %v2349
        %v2426 = vpop.f32.mrb[0].mxu0
        %v2427 = vadd.f32 %v2243, %v2426
        %v2428 = vpop.f32.mrb[0].mxu0
        %2429 = vdwg.mxu0
        %2432 = vrot.lane.b32.xlu0 %v2229, 120
        %v2433 = vpop.permute.xlu0 %2432
        %2434 = vrot.lane.b32.xlu0 %v2230, 120
        %v2435 = vpop.permute.xlu0 %2434
        %2436 = vrot.lane.b32.xlu0 %v2229, 88
        %v2437 = vpop.permute.xlu0 %2436
        %2438 = vrot.lane.b32.xlu0 %v2230, 88
        %v2439 = vpop.permute.xlu0 %2438
        %v2440 = vsel %vm613, %v2433, 0
        %v2442 = vsel %vm613, %v2435, 0
        %v2444 = vsel %vm613, %v2437, 0
        %v2446 = vsel %vm613, %v2439, 0
        %2448 = vmatprep.subr.mxu0 0.0
        %2449 = vmatpush1.xpose.msra.mxu0 %v2444
        %2450 = vmatprep.subr.mxu0 0.0
        %2451 = vmatpush1.xpose.msra.mxu0 %v2446
        %2452 = vmatprep.subr.mxu0 0.0
        %2453 = vmatpush1.xpose.msra.mxu0 0.0
        %2454 = vmatprep.subr.mxu0 0.0
        %2455 = vmatpush1.xpose.msra.mxu0 0.0
        %2456 = vmatprep.subr.mxu0 0.0
        %2457 = vmatpush1.xpose.msra.mxu0 0.0
        %2458 = vmatprep.subr.mxu0 0.0
        %2459 = vmatpush1.xpose.msra.mxu0 0.0
        %2460 = vmatprep.subr.mxu0 0.0
        %2461 = vmatpush1.xpose.msra.mxu0 0.0
        %2462 = vmatprep.subr.mxu0 0.0
        %2463 = vmatpush1.xpose.msra.mxu0 0.0
        %2464 = vmatprep.subr.mxu0 0.0
        %2465 = vmatpush1.xpose.msra.mxu0 0.0
        %2466 = vmatprep.subr.mxu0 0.0
        %2467 = vmatpush1.xpose.msra.mxu0 0.0
        %2468 = vmatprep.subr.mxu0 0.0
        %2469 = vmatpush1.xpose.msra.mxu0 0.0
        %2470 = vmatprep.subr.mxu0 0.0
        %2471 = vmatpush1.xpose.msra.mxu0 0.0
        %2472 = vmatprep.subr.mxu0 0.0
        %2473 = vmatpush1.xpose.msra.mxu0 0.0
        %2474 = vmatprep.subr.mxu0 0.0
        %2475 = vmatpush1.xpose.msra.mxu0 0.0
        %2476 = vmatprep.subr.mxu0 0.0
        %2477 = vmatpush1.xpose.msra.mxu0 0.0
        %2478 = vmatprep.subr.mxu0 0.0
        %2479 = vmatpush1.xpose.msra.mxu0 0.0
        %2480 = vmatprep.subr.mxu0 0.0
        %2481 = vmatpush1.xpose.msra.mxu0 0.0
        %2482 = vmatprep.subr.mxu0 0.0
        %2483 = vmatpush1.xpose.msra.mxu0 0.0
        %2484 = vmatprep.subr.mxu0 0.0
        %2485 = vmatpush1.xpose.msra.mxu0 0.0
        %2486 = vmatprep.subr.mxu0 0.0
        %2487 = vmatpush1.xpose.msra.mxu0 0.0
        %2488 = vmatprep.subr.mxu0 0.0
        %2489 = vmatpush1.xpose.msra.mxu0 0.0
        %2490 = vmatprep.subr.mxu0 0.0
        %2491 = vmatpush1.xpose.msra.mxu0 0.0
        %2492 = vmatprep.subr.mxu0 0.0
        %2493 = vmatpush1.xpose.msra.mxu0 0.0
        %2494 = vmatprep.subr.mxu0 0.0
        %2495 = vmatpush1.xpose.msra.mxu0 0.0
        %2496 = vmatprep.subr.mxu0 0.0
        %2497 = vmatpush1.xpose.msra.mxu0 0.0
        %2498 = vmatprep.subr.mxu0 0.0
        %2499 = vmatpush1.xpose.msra.mxu0 0.0
        %2500 = vmatprep.subr.mxu0 0.0
        %2501 = vmatpush1.xpose.msra.mxu0 0.0
        %2502 = vmatprep.subr.mxu0 0.0
        %2503 = vmatpush1.xpose.msra.mxu0 0.0
        %2504 = vmatprep.subr.mxu0 0.0
        %2505 = vmatpush1.xpose.msra.mxu0 0.0
        %2506 = vmatprep.subr.mxu0 0.0
        %2507 = vmatpush1.xpose.msra.mxu0 0.0
        %2508 = vmatprep.subr.mxu0 0.0
        %2509 = vmatpush1.xpose.msra.mxu0 0.0
        %2510 = vmatprep.subr.mxu0 0.0
        %2511 = vmatpush1.xpose.msra.mxu0 0.0
        %2512 = vmatprep.mubr.f32.mxu0 0.0
        %2513 = vmatmul.mubr.f32.gmra.mrb[0].mxu0 %v2440
        %v2514 = vpop.f32.mrb[0].mxu0
        %v2515 = vadd.f32 %v2242, %v2514
        %v2516 = vpop.f32.mrb[0].mxu0
        %2517 = vmatprep.mubr.f32.mxu0 0.0
        %2518 = vmatmul.mubr.f32.gmra.mrb[0].mxu0 %v2442
        %v2519 = vpop.f32.mrb[0].mxu0
        %v2520 = vadd.f32 %v2243, %v2519
        %v2521 = vpop.f32.mrb[0].mxu0
        %2522 = vdwg.mxu0
        %2525 = vrot.lane.b32.xlu0 %v2231, 120
        %v2526 = vpop.permute.xlu0 %2525
        %2527 = vrot.lane.b32.xlu0 %v2232, 120
        %v2528 = vpop.permute.xlu0 %2527
        %2529 = vrot.lane.b32.xlu0 %v2231, 88
        %v2530 = vpop.permute.xlu0 %2529
        %2531 = vrot.lane.b32.xlu0 %v2232, 88
        %v2532 = vpop.permute.xlu0 %2531
        %v2533 = vsel %vm613, %v2526, 0
        %v2535 = vsel %vm613, %v2528, 0
        %v2537 = vsel %vm613, %v2530, 0
        %v2539 = vsel %vm613, %v2532, 0
        %2541 = vmatprep.subr.mxu0 0.0
        %2542 = vmatpush1.xpose.msra.mxu0 %v2537
        %2543 = vmatprep.subr.mxu0 0.0
        %2544 = vmatpush1.xpose.msra.mxu0 %v2539
        %2545 = vmatprep.subr.mxu0 0.0
        %2546 = vmatpush1.xpose.msra.mxu0 0.0
        %2547 = vmatprep.subr.mxu0 0.0
        %2548 = vmatpush1.xpose.msra.mxu0 0.0
        %2549 = vmatprep.subr.mxu0 0.0
        %2550 = vmatpush1.xpose.msra.mxu0 0.0
        %2551 = vmatprep.subr.mxu0 0.0
        %2552 = vmatpush1.xpose.msra.mxu0 0.0
        %2553 = vmatprep.subr.mxu0 0.0
        %2554 = vmatpush1.xpose.msra.mxu0 0.0
        %2555 = vmatprep.subr.mxu0 0.0
        %2556 = vmatpush1.xpose.msra.mxu0 0.0
        %2557 = vmatprep.subr.mxu0 0.0
        %2558 = vmatpush1.xpose.msra.mxu0 0.0
        %2559 = vmatprep.subr.mxu0 0.0
        %2560 = vmatpush1.xpose.msra.mxu0 0.0
        %2561 = vmatprep.subr.mxu0 0.0
        %2562 = vmatpush1.xpose.msra.mxu0 0.0
        %2563 = vmatprep.subr.mxu0 0.0
        %2564 = vmatpush1.xpose.msra.mxu0 0.0
        %2565 = vmatprep.subr.mxu0 0.0
        %2566 = vmatpush1.xpose.msra.mxu0 0.0
        %2567 = vmatprep.subr.mxu0 0.0
        %2568 = vmatpush1.xpose.msra.mxu0 0.0
        %2569 = vmatprep.subr.mxu0 0.0
        %2570 = vmatpush1.xpose.msra.mxu0 0.0
        %2571 = vmatprep.subr.mxu0 0.0
        %2572 = vmatpush1.xpose.msra.mxu0 0.0
        %2573 = vmatprep.subr.mxu0 0.0
        %2574 = vmatpush1.xpose.msra.mxu0 0.0
        %2575 = vmatprep.subr.mxu0 0.0
        %2576 = vmatpush1.xpose.msra.mxu0 0.0
        %2577 = vmatprep.subr.mxu0 0.0
        %2578 = vmatpush1.xpose.msra.mxu0 0.0
        %2579 = vmatprep.subr.mxu0 0.0
        %2580 = vmatpush1.xpose.msra.mxu0 0.0
        %2581 = vmatprep.subr.mxu0 0.0
        %2582 = vmatpush1.xpose.msra.mxu0 0.0
        %2583 = vmatprep.subr.mxu0 0.0
        %2584 = vmatpush1.xpose.msra.mxu0 0.0
        %2585 = vmatprep.subr.mxu0 0.0
        %2586 = vmatpush1.xpose.msra.mxu0 0.0
        %2587 = vmatprep.subr.mxu0 0.0
        %2588 = vmatpush1.xpose.msra.mxu0 0.0
        %2589 = vmatprep.subr.mxu0 0.0
        %2590 = vmatpush1.xpose.msra.mxu0 0.0
        %2591 = vmatprep.subr.mxu0 0.0
        %2592 = vmatpush1.xpose.msra.mxu0 0.0
        %2593 = vmatprep.subr.mxu0 0.0
        %2594 = vmatpush1.xpose.msra.mxu0 0.0
        %2595 = vmatprep.subr.mxu0 0.0
        %2596 = vmatpush1.xpose.msra.mxu0 0.0
        %2597 = vmatprep.subr.mxu0 0.0
        %2598 = vmatpush1.xpose.msra.mxu0 0.0
        %2599 = vmatprep.subr.mxu0 0.0
        %2600 = vmatpush1.xpose.msra.mxu0 0.0
        %2601 = vmatprep.subr.mxu0 0.0
        %2602 = vmatpush1.xpose.msra.mxu0 0.0
        %2603 = vmatprep.subr.mxu0 0.0
        %2604 = vmatpush1.xpose.msra.mxu0 0.0
        %2605 = vmatprep.mubr.f32.mxu0 0.0
        %2606 = vmatmul.mubr.f32.gmra.mrb[0].mxu0 %v2533
        %v2607 = vpop.f32.mrb[0].mxu0
        %v2608 = vadd.f32 %v2242, %v2607
        %v2609 = vpop.f32.mrb[0].mxu0
        %2610 = vmatprep.mubr.f32.mxu0 0.0
        %2611 = vmatmul.mubr.f32.gmra.mrb[0].mxu0 %v2535
        %v2612 = vpop.f32.mrb[0].mxu0
        %v2613 = vadd.f32 %v2243, %v2612
        %v2614 = vpop.f32.mrb[0].mxu0
        %2615 = vdwg.mxu0
        %2618 = vrot.lane.b32.xlu0 %v2233, 120
        %v2619 = vpop.permute.xlu0 %2618
        %2620 = vrot.lane.b32.xlu0 %v2234, 120
        %v2621 = vpop.permute.xlu0 %2620
        %2622 = vrot.lane.b32.xlu0 %v2233, 88
        %v2623 = vpop.permute.xlu0 %2622
        %2624 = vrot.lane.b32.xlu0 %v2234, 88
        %v2625 = vpop.permute.xlu0 %2624
        %v2626 = vsel %vm613, %v2619, 0
        %v2628 = vsel %vm613, %v2621, 0
        %v2630 = vsel %vm613, %v2623, 0
        %v2632 = vsel %vm613, %v2625, 0
        %2634 = vmatprep.subr.mxu0 0.0
        %2635 = vmatpush1.xpose.msra.mxu0 %v2630
        %2636 = vmatprep.subr.mxu0 0.0
        %2637 = vmatpush1.xpose.msra.mxu0 %v2632
        %2638 = vmatprep.subr.mxu0 0.0
        %2639 = vmatpush1.xpose.msra.mxu0 0.0
        %2640 = vmatprep.subr.mxu0 0.0
        %2641 = vmatpush1.xpose.msra.mxu0 0.0
        %2642 = vmatprep.subr.mxu0 0.0
        %2643 = vmatpush1.xpose.msra.mxu0 0.0
        %2644 = vmatprep.subr.mxu0 0.0
        %2645 = vmatpush1.xpose.msra.mxu0 0.0
        %2646 = vmatprep.subr.mxu0 0.0
        %2647 = vmatpush1.xpose.msra.mxu0 0.0
        %2648 = vmatprep.subr.mxu0 0.0
        %2649 = vmatpush1.xpose.msra.mxu0 0.0
        %2650 = vmatprep.subr.mxu0 0.0
        %2651 = vmatpush1.xpose.msra.mxu0 0.0
        %2652 = vmatprep.subr.mxu0 0.0
        %2653 = vmatpush1.xpose.msra.mxu0 0.0
        %2654 = vmatprep.subr.mxu0 0.0
        %2655 = vmatpush1.xpose.msra.mxu0 0.0
        %2656 = vmatprep.subr.mxu0 0.0
        %2657 = vmatpush1.xpose.msra.mxu0 0.0
        %2658 = vmatprep.subr.mxu0 0.0
        %2659 = vmatpush1.xpose.msra.mxu0 0.0
        %2660 = vmatprep.subr.mxu0 0.0
        %2661 = vmatpush1.xpose.msra.mxu0 0.0
        %2662 = vmatprep.subr.mxu0 0.0
        %2663 = vmatpush1.xpose.msra.mxu0 0.0
        %2664 = vmatprep.subr.mxu0 0.0
        %2665 = vmatpush1.xpose.msra.mxu0 0.0
        %2666 = vmatprep.subr.mxu0 0.0
        %2667 = vmatpush1.xpose.msra.mxu0 0.0
        %2668 = vmatprep.subr.mxu0 0.0
        %2669 = vmatpush1.xpose.msra.mxu0 0.0
        %2670 = vmatprep.subr.mxu0 0.0
        %2671 = vmatpush1.xpose.msra.mxu0 0.0
        %2672 = vmatprep.subr.mxu0 0.0
        %2673 = vmatpush1.xpose.msra.mxu0 0.0
        %2674 = vmatprep.subr.mxu0 0.0
        %2675 = vmatpush1.xpose.msra.mxu0 0.0
        %2676 = vmatprep.subr.mxu0 0.0
        %2677 = vmatpush1.xpose.msra.mxu0 0.0
        %2678 = vmatprep.subr.mxu0 0.0
        %2679 = vmatpush1.xpose.msra.mxu0 0.0
        %2680 = vmatprep.subr.mxu0 0.0
        %2681 = vmatpush1.xpose.msra.mxu0 0.0
        %2682 = vmatprep.subr.mxu0 0.0
        %2683 = vmatpush1.xpose.msra.mxu0 0.0
        %2684 = vmatprep.subr.mxu0 0.0
        %2685 = vmatpush1.xpose.msra.mxu0 0.0
        %2686 = vmatprep.subr.mxu0 0.0
        %2687 = vmatpush1.xpose.msra.mxu0 0.0
        %2688 = vmatprep.subr.mxu0 0.0
        %2689 = vmatpush1.xpose.msra.mxu0 0.0
        %2690 = vmatprep.subr.mxu0 0.0
        %2691 = vmatpush1.xpose.msra.mxu0 0.0
        %2692 = vmatprep.subr.mxu0 0.0
        %2693 = vmatpush1.xpose.msra.mxu0 0.0
        %2694 = vmatprep.subr.mxu0 0.0
        %2695 = vmatpush1.xpose.msra.mxu0 0.0
        %2696 = vmatprep.subr.mxu0 0.0
        %2697 = vmatpush1.xpose.msra.mxu0 0.0
        %2698 = vmatprep.mubr.f32.mxu0 0.0
        %2699 = vmatmul.mubr.f32.gmra.mrb[0].mxu0 %v2626
        %v2700 = vpop.f32.mrb[0].mxu0
        %v2701 = vadd.f32 %v2242, %v2700
        %v2702 = vpop.f32.mrb[0].mxu0
        %2703 = vmatprep.mubr.f32.mxu0 0.0
        %2704 = vmatmul.mubr.f32.gmra.mrb[0].mxu0 %v2628
        %v2705 = vpop.f32.mrb[0].mxu0
        %v2706 = vadd.f32 %v2243, %v2705
        %v2707 = vpop.f32.mrb[0].mxu0
        %2708 = vdwg.mxu0
        %2711 = vrot.lane.b32.xlu0 %v2235, 120
        %v2712 = vpop.permute.xlu0 %2711
        %2713 = vrot.lane.b32.xlu0 %v2236, 120
        %v2714 = vpop.permute.xlu0 %2713
        %2715 = vrot.lane.b32.xlu0 %v2235, 88
        %v2716 = vpop.permute.xlu0 %2715
        %2717 = vrot.lane.b32.xlu0 %v2236, 88
        %v2718 = vpop.permute.xlu0 %2717
        %v2719 = vsel %vm613, %v2712, 0
        %v2721 = vsel %vm613, %v2714, 0
        %v2723 = vsel %vm613, %v2716, 0
        %v2725 = vsel %vm613, %v2718, 0
        %2727 = vmatprep.subr.mxu0 0.0
        %2728 = vmatpush1.xpose.msra.mxu0 %v2723
        %2729 = vmatprep.subr.mxu0 0.0
        %2730 = vmatpush1.xpose.msra.mxu0 %v2725
        %2731 = vmatprep.subr.mxu0 0.0
        %2732 = vmatpush1.xpose.msra.mxu0 0.0
        %2733 = vmatprep.subr.mxu0 0.0
        %2734 = vmatpush1.xpose.msra.mxu0 0.0
        %2735 = vmatprep.subr.mxu0 0.0
        %2736 = vmatpush1.xpose.msra.mxu0 0.0
        %2737 = vmatprep.subr.mxu0 0.0
        %2738 = vmatpush1.xpose.msra.mxu0 0.0
        %2739 = vmatprep.subr.mxu0 0.0
        %2740 = vmatpush1.xpose.msra.mxu0 0.0
        %2741 = vmatprep.subr.mxu0 0.0
        %2742 = vmatpush1.xpose.msra.mxu0 0.0
        %2743 = vmatprep.subr.mxu0 0.0
        %2744 = vmatpush1.xpose.msra.mxu0 0.0
        %2745 = vmatprep.subr.mxu0 0.0
        %2746 = vmatpush1.xpose.msra.mxu0 0.0
        %2747 = vmatprep.subr.mxu0 0.0
        %2748 = vmatpush1.xpose.msra.mxu0 0.0
        %2749 = vmatprep.subr.mxu0 0.0
        %2750 = vmatpush1.xpose.msra.mxu0 0.0
        %2751 = vmatprep.subr.mxu0 0.0
        %2752 = vmatpush1.xpose.msra.mxu0 0.0
        %2753 = vmatprep.subr.mxu0 0.0
        %2754 = vmatpush1.xpose.msra.mxu0 0.0
        %2755 = vmatprep.subr.mxu0 0.0
        %2756 = vmatpush1.xpose.msra.mxu0 0.0
        %2757 = vmatprep.subr.mxu0 0.0
        %2758 = vmatpush1.xpose.msra.mxu0 0.0
        %2759 = vmatprep.subr.mxu0 0.0
        %2760 = vmatpush1.xpose.msra.mxu0 0.0
        %2761 = vmatprep.subr.mxu0 0.0
        %2762 = vmatpush1.xpose.msra.mxu0 0.0
        %2763 = vmatprep.subr.mxu0 0.0
        %2764 = vmatpush1.xpose.msra.mxu0 0.0
        %2765 = vmatprep.subr.mxu0 0.0
        %2766 = vmatpush1.xpose.msra.mxu0 0.0
        %2767 = vmatprep.subr.mxu0 0.0
        %2768 = vmatpush1.xpose.msra.mxu0 0.0
        %2769 = vmatprep.subr.mxu0 0.0
        %2770 = vmatpush1.xpose.msra.mxu0 0.0
        %2771 = vmatprep.subr.mxu0 0.0
        %2772 = vmatpush1.xpose.msra.mxu0 0.0
        %2773 = vmatprep.subr.mxu0 0.0
        %2774 = vmatpush1.xpose.msra.mxu0 0.0
        %2775 = vmatprep.subr.mxu0 0.0
        %2776 = vmatpush1.xpose.msra.mxu0 0.0
        %2777 = vmatprep.subr.mxu0 0.0
        %2778 = vmatpush1.xpose.msra.mxu0 0.0
        %2779 = vmatprep.subr.mxu0 0.0
        %2780 = vmatpush1.xpose.msra.mxu0 0.0
        %2781 = vmatprep.subr.mxu0 0.0
        %2782 = vmatpush1.xpose.msra.mxu0 0.0
        %2783 = vmatprep.subr.mxu0 0.0
        %2784 = vmatpush1.xpose.msra.mxu0 0.0
        %2785 = vmatprep.subr.mxu0 0.0
        %2786 = vmatpush1.xpose.msra.mxu0 0.0
        %2787 = vmatprep.subr.mxu0 0.0
        %2788 = vmatpush1.xpose.msra.mxu0 0.0
        %2789 = vmatprep.subr.mxu0 0.0
        %2790 = vmatpush1.xpose.msra.mxu0 0.0
        %2791 = vmatprep.mubr.f32.mxu0 0.0
        %2792 = vmatmul.mubr.f32.gmra.mrb[0].mxu0 %v2719
        %v2793 = vpop.f32.mrb[0].mxu0
        %v2794 = vadd.f32 %v2242, %v2793
        %v2795 = vpop.f32.mrb[0].mxu0
        %2796 = vmatprep.mubr.f32.mxu0 0.0
        %2797 = vmatmul.mubr.f32.gmra.mrb[0].mxu0 %v2721
        %v2798 = vpop.f32.mrb[0].mxu0
        %v2799 = vadd.f32 %v2243, %v2798
        %v2800 = vpop.f32.mrb[0].mxu0
        %2801 = vdwg.mxu0
        %2804 = vrot.lane.b32.xlu0 %v2237, 120
        %v2805 = vpop.permute.xlu0 %2804
        %2806 = vrot.lane.b32.xlu0 %v2238, 120
        %v2807 = vpop.permute.xlu0 %2806
        %2808 = vrot.lane.b32.xlu0 %v2237, 88
        %v2809 = vpop.permute.xlu0 %2808
        %2810 = vrot.lane.b32.xlu0 %v2238, 88
        %v2811 = vpop.permute.xlu0 %2810
        %v2812 = vsel %vm613, %v2805, 0
        %v2814 = vsel %vm613, %v2807, 0
        %v2816 = vsel %vm613, %v2809, 0
        %v2818 = vsel %vm613, %v2811, 0
        %2820 = vmatprep.subr.mxu0 0.0
        %2821 = vmatpush1.xpose.msra.mxu0 %v2816
        %2822 = vmatprep.subr.mxu0 0.0
        %2823 = vmatpush1.xpose.msra.mxu0 %v2818
        %2824 = vmatprep.subr.mxu0 0.0
        %2825 = vmatpush1.xpose.msra.mxu0 0.0
        %2826 = vmatprep.subr.mxu0 0.0
        %2827 = vmatpush1.xpose.msra.mxu0 0.0
        %2828 = vmatprep.subr.mxu0 0.0
        %2829 = vmatpush1.xpose.msra.mxu0 0.0
        %2830 = vmatprep.subr.mxu0 0.0
        %2831 = vmatpush1.xpose.msra.mxu0 0.0
        %2832 = vmatprep.subr.mxu0 0.0
        %2833 = vmatpush1.xpose.msra.mxu0 0.0
        %2834 = vmatprep.subr.mxu0 0.0
        %2835 = vmatpush1.xpose.msra.mxu0 0.0
        %2836 = vmatprep.subr.mxu0 0.0
        %2837 = vmatpush1.xpose.msra.mxu0 0.0
        %2838 = vmatprep.subr.mxu0 0.0
        %2839 = vmatpush1.xpose.msra.mxu0 0.0
        %2840 = vmatprep.subr.mxu0 0.0
        %2841 = vmatpush1.xpose.msra.mxu0 0.0
        %2842 = vmatprep.subr.mxu0 0.0
        %2843 = vmatpush1.xpose.msra.mxu0 0.0
        %2844 = vmatprep.subr.mxu0 0.0
        %2845 = vmatpush1.xpose.msra.mxu0 0.0
        %2846 = vmatprep.subr.mxu0 0.0
        %2847 = vmatpush1.xpose.msra.mxu0 0.0
        %2848 = vmatprep.subr.mxu0 0.0
        %2849 = vmatpush1.xpose.msra.mxu0 0.0
        %2850 = vmatprep.subr.mxu0 0.0
        %2851 = vmatpush1.xpose.msra.mxu0 0.0
        %2852 = vmatprep.subr.mxu0 0.0
        %2853 = vmatpush1.xpose.msra.mxu0 0.0
        %2854 = vmatprep.subr.mxu0 0.0
        %2855 = vmatpush1.xpose.msra.mxu0 0.0
        %2856 = vmatprep.subr.mxu0 0.0
        %2857 = vmatpush1.xpose.msra.mxu0 0.0
        %2858 = vmatprep.subr.mxu0 0.0
        %2859 = vmatpush1.xpose.msra.mxu0 0.0
        %2860 = vmatprep.subr.mxu0 0.0
        %2861 = vmatpush1.xpose.msra.mxu0 0.0
        %2862 = vmatprep.subr.mxu0 0.0
        %2863 = vmatpush1.xpose.msra.mxu0 0.0
        %2864 = vmatprep.subr.mxu0 0.0
        %2865 = vmatpush1.xpose.msra.mxu0 0.0
        %2866 = vmatprep.subr.mxu0 0.0
        %2867 = vmatpush1.xpose.msra.mxu0 0.0
        %2868 = vmatprep.subr.mxu0 0.0
        %2869 = vmatpush1.xpose.msra.mxu0 0.0
        %2870 = vmatprep.subr.mxu0 0.0
        %2871 = vmatpush1.xpose.msra.mxu0 0.0
        %2872 = vmatprep.subr.mxu0 0.0
        %2873 = vmatpush1.xpose.msra.mxu0 0.0
        %2874 = vmatprep.subr.mxu0 0.0
        %2875 = vmatpush1.xpose.msra.mxu0 0.0
        %2876 = vmatprep.subr.mxu0 0.0
        %2877 = vmatpush1.xpose.msra.mxu0 0.0
        %2878 = vmatprep.subr.mxu0 0.0
        %2879 = vmatpush1.xpose.msra.mxu0 0.0
        %2880 = vmatprep.subr.mxu0 0.0
        %2881 = vmatpush1.xpose.msra.mxu0 0.0
        %2882 = vmatprep.subr.mxu0 0.0
        %2883 = vmatpush1.xpose.msra.mxu0 0.0
        %2884 = vmatprep.mubr.f32.mxu0 0.0
        %2885 = vmatmul.mubr.f32.gmra.mrb[0].mxu0 %v2812
        %v2886 = vpop.f32.mrb[0].mxu0
        %v2887 = vadd.f32 %v2242, %v2886
        %v2888 = vpop.f32.mrb[0].mxu0
        %2889 = vmatprep.mubr.f32.mxu0 0.0
        %2890 = vmatmul.mubr.f32.gmra.mrb[0].mxu0 %v2814
        %v2891 = vpop.f32.mrb[0].mxu0
        %v2892 = vadd.f32 %v2243, %v2891
        %v2893 = vpop.f32.mrb[0].mxu0
        %2894 = vdwg.mxu0
        %2897 = vrot.lane.b32.xlu0 %v2239, 120
        %v2898 = vpop.permute.xlu0 %2897
        %2899 = vrot.lane.b32.xlu0 %v2240, 120
        %v2900 = vpop.permute.xlu0 %2899
        %2901 = vrot.lane.b32.xlu0 %v2239, 88
        %v2902 = vpop.permute.xlu0 %2901
        %2903 = vrot.lane.b32.xlu0 %v2240, 88
        %v2904 = vpop.permute.xlu0 %2903
        %v2905 = vsel %vm613, %v2898, 0
        %v2907 = vsel %vm613, %v2900, 0
        %v2909 = vsel %vm613, %v2902, 0
        %v2911 = vsel %vm613, %v2904, 0
        %2913 = vmatprep.subr.mxu0 0.0
        %2914 = vmatpush1.xpose.msra.mxu0 %v2909
        %2915 = vmatprep.subr.mxu0 0.0
        %2916 = vmatpush1.xpose.msra.mxu0 %v2911
        %2917 = vmatprep.subr.mxu0 0.0
        %2918 = vmatpush1.xpose.msra.mxu0 0.0
        %2919 = vmatprep.subr.mxu0 0.0
        %2920 = vmatpush1.xpose.msra.mxu0 0.0
        %2921 = vmatprep.subr.mxu0 0.0
        %2922 = vmatpush1.xpose.msra.mxu0 0.0
        %2923 = vmatprep.subr.mxu0 0.0
        %2924 = vmatpush1.xpose.msra.mxu0 0.0
        %2925 = vmatprep.subr.mxu0 0.0
        %2926 = vmatpush1.xpose.msra.mxu0 0.0
        %2927 = vmatprep.subr.mxu0 0.0
        %2928 = vmatpush1.xpose.msra.mxu0 0.0
        %2929 = vmatprep.subr.mxu0 0.0
        %2930 = vmatpush1.xpose.msra.mxu0 0.0
        %2931 = vmatprep.subr.mxu0 0.0
        %2932 = vmatpush1.xpose.msra.mxu0 0.0
        %2933 = vmatprep.subr.mxu0 0.0
        %2934 = vmatpush1.xpose.msra.mxu0 0.0
        %2935 = vmatprep.subr.mxu0 0.0
        %2936 = vmatpush1.xpose.msra.mxu0 0.0
        %2937 = vmatprep.subr.mxu0 0.0
        %2938 = vmatpush1.xpose.msra.mxu0 0.0
        %2939 = vmatprep.subr.mxu0 0.0
        %2940 = vmatpush1.xpose.msra.mxu0 0.0
        %2941 = vmatprep.subr.mxu0 0.0
        %2942 = vmatpush1.xpose.msra.mxu0 0.0
        %2943 = vmatprep.subr.mxu0 0.0
        %2944 = vmatpush1.xpose.msra.mxu0 0.0
        %2945 = vmatprep.subr.mxu0 0.0
        %2946 = vmatpush1.xpose.msra.mxu0 0.0
        %2947 = vmatprep.subr.mxu0 0.0
        %2948 = vmatpush1.xpose.msra.mxu0 0.0
        %2949 = vmatprep.subr.mxu0 0.0
        %2950 = vmatpush1.xpose.msra.mxu0 0.0
        %2951 = vmatprep.subr.mxu0 0.0
        %2952 = vmatpush1.xpose.msra.mxu0 0.0
        %2953 = vmatprep.subr.mxu0 0.0
        %2954 = vmatpush1.xpose.msra.mxu0 0.0
        %2955 = vmatprep.subr.mxu0 0.0
        %2956 = vmatpush1.xpose.msra.mxu0 0.0
        %2957 = vmatprep.subr.mxu0 0.0
        %2958 = vmatpush1.xpose.msra.mxu0 0.0
        %2959 = vmatprep.subr.mxu0 0.0
        %2960 = vmatpush1.xpose.msra.mxu0 0.0
        %2961 = vmatprep.subr.mxu0 0.0
        %2962 = vmatpush1.xpose.msra.mxu0 0.0
        %2963 = vmatprep.subr.mxu0 0.0
        %2964 = vmatpush1.xpose.msra.mxu0 0.0
        %2965 = vmatprep.subr.mxu0 0.0
        %2966 = vmatpush1.xpose.msra.mxu0 0.0
        %2967 = vmatprep.subr.mxu0 0.0
        %2968 = vmatpush1.xpose.msra.mxu0 0.0
        %2969 = vmatprep.subr.mxu0 0.0
        %2970 = vmatpush1.xpose.msra.mxu0 0.0
        %2971 = vmatprep.subr.mxu0 0.0
        %2972 = vmatpush1.xpose.msra.mxu0 0.0
        %2973 = vmatprep.subr.mxu0 0.0
        %2974 = vmatpush1.xpose.msra.mxu0 0.0
        %2975 = vmatprep.subr.mxu0 0.0
        %2976 = vmatpush1.xpose.msra.mxu0 0.0
        %2977 = vmatprep.mubr.f32.mxu0 0.0
        %2978 = vmatmul.mubr.f32.gmra.mrb[0].mxu0 %v2905
        %v2979 = vpop.f32.mrb[0].mxu0
        %v2980 = vadd.f32 %v2242, %v2979
        %v2981 = vpop.f32.mrb[0].mxu0
        %2982 = vmatprep.mubr.f32.mxu0 0.0
        %2983 = vmatmul.mubr.f32.gmra.mrb[0].mxu0 %v2907
        %v2984 = vpop.f32.mrb[0].mxu0
        %v2985 = vadd.f32 %v2243, %v2984
        %v2986 = vpop.f32.mrb[0].mxu0
        %2987 = vdwg.mxu0
        %v2988 = vadd.f32 %v2329, %v573
        %v2989 = vadd.f32 %v2334, %v574
        %v2990 = vadd.f32 %v2422, %v575
        %v2991 = vadd.f32 %v2427, %v576
        %v2992 = vadd.f32 %v2515, %v577
        %v2993 = vadd.f32 %v2520, %v578
        %v2994 = vadd.f32 %v2608, %v579
        %v2995 = vadd.f32 %v2613, %v580
        %v2996 = vadd.f32 %v2701, %v581
        %v2997 = vadd.f32 %v2706, %v582
        %v2998 = vadd.f32 %v2794, %v583
        %v2999 = vadd.f32 %v2799, %v584
        %v3000 = vadd.f32 %v2887, %v585
        %v3001 = vadd.f32 %v2892, %v586
        %v3002 = vadd.f32 %v2980, %v587
        %v3003 = vadd.f32 %v2985, %v588
        %v3004 = vsel %vm1336, %v2988, -inf
        %3005 = vmax.xlane.f32.xlu0 %v3004
        %v3006 = vpop.xlane.xlu0 %3005
        %v3007 = vsel %vm1336, %v2989, -inf
        %3008 = vmax.xlane.f32.xlu0 %v3007
        %v3009 = vpop.xlane.xlu0 %3008
        %v3010 = vsel %vm1336, %v2990, -inf
        %3011 = vmax.xlane.f32.xlu0 %v3010
        %v3012 = vpop.xlane.xlu0 %3011
        %v3013 = vsel %vm1336, %v2991, -inf
        %3014 = vmax.xlane.f32.xlu0 %v3013
        %v3015 = vpop.xlane.xlu0 %3014
        %v3016 = vsel %vm1336, %v2992, -inf
        %3017 = vmax.xlane.f32.xlu0 %v3016
        %v3018 = vpop.xlane.xlu0 %3017
        %v3019 = vsel %vm1336, %v2993, -inf
        %3020 = vmax.xlane.f32.xlu0 %v3019
        %v3021 = vpop.xlane.xlu0 %3020
        %v3022 = vsel %vm1336, %v2994, -inf
        %3023 = vmax.xlane.f32.xlu0 %v3022
        %v3024 = vpop.xlane.xlu0 %3023
        %v3025 = vsel %vm1336, %v2995, -inf
        %3026 = vmax.xlane.f32.xlu0 %v3025
        %v3027 = vpop.xlane.xlu0 %3026
        %v3028 = vsel %vm1336, %v2996, -inf
        %3029 = vmax.xlane.f32.xlu0 %v3028
        %v3030 = vpop.xlane.xlu0 %3029
        %v3031 = vsel %vm1336, %v2997, -inf
        %3032 = vmax.xlane.f32.xlu0 %v3031
        %v3033 = vpop.xlane.xlu0 %3032
        %v3034 = vsel %vm1336, %v2998, -inf
        %3035 = vmax.xlane.f32.xlu0 %v3034
        %v3036 = vpop.xlane.xlu0 %3035
        %v3037 = vsel %vm1336, %v2999, -inf
        %3038 = vmax.xlane.f32.xlu0 %v3037
        %v3039 = vpop.xlane.xlu0 %3038
        %v3040 = vsel %vm1336, %v3000, -inf
        %3041 = vmax.xlane.f32.xlu0 %v3040
        %v3042 = vpop.xlane.xlu0 %3041
        %v3043 = vsel %vm1336, %v3001, -inf
        %3044 = vmax.xlane.f32.xlu0 %v3043
        %v3045 = vpop.xlane.xlu0 %3044
        %v3046 = vsel %vm1336, %v3002, -inf
        %3047 = vmax.xlane.f32.xlu0 %v3046
        %v3048 = vpop.xlane.xlu0 %3047
        %v3049 = vsel %vm1336, %v3003, -inf
        %3050 = vmax.xlane.f32.xlu0 %v3049
        %v3051 = vpop.xlane.xlu0 %3050
        %v3052 = vsub.f32 %v2988, %v3006
        %v3053 = vsub.f32 %v2989, %v3009
        %v3054 = vsub.f32 %v2990, %v3012
        %v3055 = vsub.f32 %v2991, %v3015
        %v3056 = vsub.f32 %v2992, %v3018
        %v3057 = vsub.f32 %v2993, %v3021
        %v3058 = vsub.f32 %v2994, %v3024
        %v3059 = vsub.f32 %v2995, %v3027
        %v3060 = vsub.f32 %v2996, %v3030
        %v3061 = vsub.f32 %v2997, %v3033
        %v3062 = vsub.f32 %v2998, %v3036
        %v3063 = vsub.f32 %v2999, %v3039
        %v3064 = vsub.f32 %v3000, %v3042
        %v3065 = vsub.f32 %v3001, %v3045
        %v3066 = vsub.f32 %v3002, %v3048
        %v3067 = vsub.f32 %v3003, %v3051
        %v3068 = vmul.f32 %v3052, 1.442695
        %v3069 = vpow.pop %v3068
        %v3070 = vmul.f32 %v3053, 1.442695
        %v3071 = vpow.pop %v3070
        %v3072 = vmul.f32 %v3054, 1.442695
        %v3073 = vpow.pop %v3072
        %v3074 = vmul.f32 %v3055, 1.442695
        %v3075 = vpow.pop %v3074
        %v3076 = vmul.f32 %v3056, 1.442695
        %v3077 = vpow.pop %v3076
        %v3078 = vmul.f32 %v3057, 1.442695
        %v3079 = vpow.pop %v3078
        %v3080 = vmul.f32 %v3058, 1.442695
        %v3081 = vpow.pop %v3080
        %v3082 = vmul.f32 %v3059, 1.442695
        %v3083 = vpow.pop %v3082
        %v3084 = vmul.f32 %v3060, 1.442695
        %v3085 = vpow.pop %v3084
        %v3086 = vmul.f32 %v3061, 1.442695
        %v3087 = vpow.pop %v3086
        %v3088 = vmul.f32 %v3062, 1.442695
        %v3089 = vpow.pop %v3088
        %v3090 = vmul.f32 %v3063, 1.442695
        %v3091 = vpow.pop %v3090
        %v3092 = vmul.f32 %v3064, 1.442695
        %v3093 = vpow.pop %v3092
        %v3094 = vmul.f32 %v3065, 1.442695
        %v3095 = vpow.pop %v3094
        %v3096 = vmul.f32 %v3066, 1.442695
        %v3097 = vpow.pop %v3096
        %v3098 = vmul.f32 %v3067, 1.442695
        %v3099 = vpow.pop %v3098
        %v3100 = vsel %vm1336, %v3069, 0.0
        %3101 = vadd.xlane.f32.xlu0 %v3100
        %v3102 = vpop.xlane.xlu0 %3101
        %v3103 = vsel %vm1336, %v3071, 0.0
        %3104 = vadd.xlane.f32.xlu0 %v3103
        %v3105 = vpop.xlane.xlu0 %3104
        %v3106 = vsel %vm1336, %v3073, 0.0
        %3107 = vadd.xlane.f32.xlu0 %v3106
        %v3108 = vpop.xlane.xlu0 %3107
        %v3109 = vsel %vm1336, %v3075, 0.0
        %3110 = vadd.xlane.f32.xlu0 %v3109
        %v3111 = vpop.xlane.xlu0 %3110
        %v3112 = vsel %vm1336, %v3077, 0.0
        %3113 = vadd.xlane.f32.xlu0 %v3112
        %v3114 = vpop.xlane.xlu0 %3113
        %v3115 = vsel %vm1336, %v3079, 0.0
        %3116 = vadd.xlane.f32.xlu0 %v3115
        %v3117 = vpop.xlane.xlu0 %3116
        %v3118 = vsel %vm1336, %v3081, 0.0
        %3119 = vadd.xlane.f32.xlu0 %v3118
        %v3120 = vpop.xlane.xlu0 %3119
        %v3121 = vsel %vm1336, %v3083, 0.0
        %3122 = vadd.xlane.f32.xlu0 %v3121
        %v3123 = vpop.xlane.xlu0 %3122
        %v3124 = vsel %vm1336, %v3085, 0.0
        %3125 = vadd.xlane.f32.xlu0 %v3124
        %v3126 = vpop.xlane.xlu0 %3125
        %v3127 = vsel %vm1336, %v3087, 0.0
        %3128 = vadd.xlane.f32.xlu0 %v3127
        %v3129 = vpop.xlane.xlu0 %3128
        %v3130 = vsel %vm1336, %v3089, 0.0
        %3131 = vadd.xlane.f32.xlu0 %v3130
        %v3132 = vpop.xlane.xlu0 %3131
        %v3133 = vsel %vm1336, %v3091, 0.0
        %3134 = vadd.xlane.f32.xlu0 %v3133
        %v3135 = vpop.xlane.xlu0 %3134
        %v3136 = vsel %vm1336, %v3093, 0.0
        %3137 = vadd.xlane.f32.xlu0 %v3136
        %v3138 = vpop.xlane.xlu0 %3137
        %v3139 = vsel %vm1336, %v3095, 0.0
        %3140 = vadd.xlane.f32.xlu0 %v3139
        %v3141 = vpop.xlane.xlu0 %3140
        %v3142 = vsel %vm1336, %v3097, 0.0
        %3143 = vadd.xlane.f32.xlu0 %v3142
        %v3144 = vpop.xlane.xlu0 %3143
        %v3145 = vsel %vm1336, %v3099, 0.0
        %3146 = vadd.xlane.f32.xlu0 %v3145
        %v3147 = vpop.xlane.xlu0 %3146
        %v3148 = vrcp.pop %v3102
        %v3149 = vrcp.pop %v3105
        %v3150 = vrcp.pop %v3108
        %v3151 = vrcp.pop %v3111
        %v3152 = vrcp.pop %v3114
        %v3153 = vrcp.pop %v3117
        %v3154 = vrcp.pop %v3120
        %v3155 = vrcp.pop %v3123
        %v3156 = vrcp.pop %v3126
        %v3157 = vrcp.pop %v3129
        %v3158 = vrcp.pop %v3132
        %v3159 = vrcp.pop %v3135
        %v3160 = vrcp.pop %v3138
        %v3161 = vrcp.pop %v3141
        %v3162 = vrcp.pop %v3144
        %v3163 = vrcp.pop %v3147
        %v3164 = vmul.f32 %v3069, %v3148
        %v3165 = vmul.f32 %v3071, %v3149
        %v3166 = vmul.f32 %v3073, %v3150
        %v3167 = vmul.f32 %v3075, %v3151
        %v3168 = vmul.f32 %v3077, %v3152
        %v3169 = vmul.f32 %v3079, %v3153
        %v3170 = vmul.f32 %v3081, %v3154
        %v3171 = vmul.f32 %v3083, %v3155
        %v3172 = vmul.f32 %v3085, %v3156
        %v3173 = vmul.f32 %v3087, %v3157
        %v3174 = vmul.f32 %v3089, %v3158
        %v3175 = vmul.f32 %v3091, %v3159
        %v3176 = vmul.f32 %v3093, %v3160
        %v3177 = vmul.f32 %v3095, %v3161
        %v3178 = vmul.f32 %v3097, %v3162
        %v3179 = vmul.f32 %v3099, %v3163
        %3180 = vrot.lane.b32.xlu0 %v2225, 56
        %v3181 = vpop.permute.xlu0 %3180
        %3182 = vrot.lane.b32.xlu0 %v2226, 56
        %v3183 = vpop.permute.xlu0 %3182
        %v3187 = vsel %vm1336, %v3164, 0
        %v3190 = vsel %vm1336, %v3165, 0
        %3192 = vmatprep.subr.mxu0 0.0
        %3193 = vmatpush1.msra.mxu0 %v3181
        %3194 = vmatprep.subr.mxu0 0.0
        %3195 = vmatpush1.msra.mxu0 %v3183
        %3196 = vmatprep.subr.mxu0 0.0
        %3197 = vmatpush1.msra.mxu0 0.0
        %3198 = vmatprep.subr.mxu0 0.0
        %3199 = vmatpush1.msra.mxu0 0.0
        %3200 = vmatprep.subr.mxu0 0.0
        %3201 = vmatpush1.msra.mxu0 0.0
        %3202 = vmatprep.subr.mxu0 0.0
        %3203 = vmatpush1.msra.mxu0 0.0
        %3204 = vmatprep.subr.mxu0 0.0
        %3205 = vmatpush1.msra.mxu0 0.0
        %3206 = vmatprep.subr.mxu0 0.0
        %3207 = vmatpush1.msra.mxu0 0.0
        %3208 = vmatprep.subr.mxu0 0.0
        %3209 = vmatpush1.msra.mxu0 0.0
        %3210 = vmatprep.subr.mxu0 0.0
        %3211 = vmatpush1.msra.mxu0 0.0
        %3212 = vmatprep.subr.mxu0 0.0
        %3213 = vmatpush1.msra.mxu0 0.0
        %3214 = vmatprep.subr.mxu0 0.0
        %3215 = vmatpush1.msra.mxu0 0.0
        %3216 = vmatprep.subr.mxu0 0.0
        %3217 = vmatpush1.msra.mxu0 0.0
        %3218 = vmatprep.subr.mxu0 0.0
        %3219 = vmatpush1.msra.mxu0 0.0
        %3220 = vmatprep.subr.mxu0 0.0
        %3221 = vmatpush1.msra.mxu0 0.0
        %3222 = vmatprep.subr.mxu0 0.0
        %3223 = vmatpush1.msra.mxu0 0.0
        %3224 = vmatprep.subr.mxu0 0.0
        %3225 = vmatpush1.msra.mxu0 0.0
        %3226 = vmatprep.subr.mxu0 0.0
        %3227 = vmatpush1.msra.mxu0 0.0
        %3228 = vmatprep.subr.mxu0 0.0
        %3229 = vmatpush1.msra.mxu0 0.0
        %3230 = vmatprep.subr.mxu0 0.0
        %3231 = vmatpush1.msra.mxu0 0.0
        %3232 = vmatprep.subr.mxu0 0.0
        %3233 = vmatpush1.msra.mxu0 0.0
        %3234 = vmatprep.subr.mxu0 0.0
        %3235 = vmatpush1.msra.mxu0 0.0
        %3236 = vmatprep.subr.mxu0 0.0
        %3237 = vmatpush1.msra.mxu0 0.0
        %3238 = vmatprep.subr.mxu0 0.0
        %3239 = vmatpush1.msra.mxu0 0.0
        %3240 = vmatprep.subr.mxu0 0.0
        %3241 = vmatpush1.msra.mxu0 0.0
        %3242 = vmatprep.subr.mxu0 0.0
        %3243 = vmatpush1.msra.mxu0 0.0
        %3244 = vmatprep.subr.mxu0 0.0
        %3245 = vmatpush1.msra.mxu0 0.0
        %3246 = vmatprep.subr.mxu0 0.0
        %3247 = vmatpush1.msra.mxu0 0.0
        %3248 = vmatprep.subr.mxu0 0.0
        %3249 = vmatpush1.msra.mxu0 0.0
        %3250 = vmatprep.subr.mxu0 0.0
        %3251 = vmatpush1.msra.mxu0 0.0
        %3252 = vmatprep.subr.mxu0 0.0
        %3253 = vmatpush1.msra.mxu0 0.0
        %3254 = vmatprep.subr.mxu0 0.0
        %3255 = vmatpush1.msra.mxu0 0.0
        %3256 = vmatprep.mubr.f32.mxu0 0.0
        %3257 = vmatmul.mubr.f32.gmra.mrb[0].mxu0 %v3187
        %v3258 = vpop.f32.mrb[0].mxu0
        %v3259 = vadd.f32 0.0, %v3258
        %v3260 = vpop.f32.mrb[0].mxu0
        %3261 = vmatprep.mubr.f32.mxu0 0.0
        %3262 = vmatmul.mubr.f32.gmra.mrb[0].mxu0 %v3190
        %v3263 = vpop.f32.mrb[0].mxu0
        %v3264 = vadd.f32 0.0, %v3263
        %v3265 = vpop.f32.mrb[0].mxu0
        %3266 = vdwg.mxu0
        %3267 = vrot.lane.b32.xlu0 %v2227, 56
        %v3268 = vpop.permute.xlu0 %3267
        %3269 = vrot.lane.b32.xlu0 %v2228, 56
        %v3270 = vpop.permute.xlu0 %3269
        %v3274 = vsel %vm1336, %v3166, 0
        %v3277 = vsel %vm1336, %v3167, 0
        %3279 = vmatprep.subr.mxu0 0.0
        %3280 = vmatpush1.msra.mxu0 %v3268
        %3281 = vmatprep.subr.mxu0 0.0
        %3282 = vmatpush1.msra.mxu0 %v3270
        %3283 = vmatprep.subr.mxu0 0.0
        %3284 = vmatpush1.msra.mxu0 0.0
        %3285 = vmatprep.subr.mxu0 0.0
        %3286 = vmatpush1.msra.mxu0 0.0
        %3287 = vmatprep.subr.mxu0 0.0
        %3288 = vmatpush1.msra.mxu0 0.0
        %3289 = vmatprep.subr.mxu0 0.0
        %3290 = vmatpush1.msra.mxu0 0.0
        %3291 = vmatprep.subr.mxu0 0.0
        %3292 = vmatpush1.msra.mxu0 0.0
        %3293 = vmatprep.subr.mxu0 0.0
        %3294 = vmatpush1.msra.mxu0 0.0
        %3295 = vmatprep.subr.mxu0 0.0
        %3296 = vmatpush1.msra.mxu0 0.0
        %3297 = vmatprep.subr.mxu0 0.0
        %3298 = vmatpush1.msra.mxu0 0.0
        %3299 = vmatprep.subr.mxu0 0.0
        %3300 = vmatpush1.msra.mxu0 0.0
        %3301 = vmatprep.subr.mxu0 0.0
        %3302 = vmatpush1.msra.mxu0 0.0
        %3303 = vmatprep.subr.mxu0 0.0
        %3304 = vmatpush1.msra.mxu0 0.0
        %3305 = vmatprep.subr.mxu0 0.0
        %3306 = vmatpush1.msra.mxu0 0.0
        %3307 = vmatprep.subr.mxu0 0.0
        %3308 = vmatpush1.msra.mxu0 0.0
        %3309 = vmatprep.subr.mxu0 0.0
        %3310 = vmatpush1.msra.mxu0 0.0
        %3311 = vmatprep.subr.mxu0 0.0
        %3312 = vmatpush1.msra.mxu0 0.0
        %3313 = vmatprep.subr.mxu0 0.0
        %3314 = vmatpush1.msra.mxu0 0.0
        %3315 = vmatprep.subr.mxu0 0.0
        %3316 = vmatpush1.msra.mxu0 0.0
        %3317 = vmatprep.subr.mxu0 0.0
        %3318 = vmatpush1.msra.mxu0 0.0
        %3319 = vmatprep.subr.mxu0 0.0
        %3320 = vmatpush1.msra.mxu0 0.0
        %3321 = vmatprep.subr.mxu0 0.0
        %3322 = vmatpush1.msra.mxu0 0.0
        %3323 = vmatprep.subr.mxu0 0.0
        %3324 = vmatpush1.msra.mxu0 0.0
        %3325 = vmatprep.subr.mxu0 0.0
        %3326 = vmatpush1.msra.mxu0 0.0
        %3327 = vmatprep.subr.mxu0 0.0
        %3328 = vmatpush1.msra.mxu0 0.0
        %3329 = vmatprep.subr.mxu0 0.0
        %3330 = vmatpush1.msra.mxu0 0.0
        %3331 = vmatprep.subr.mxu0 0.0
        %3332 = vmatpush1.msra.mxu0 0.0
        %3333 = vmatprep.subr.mxu0 0.0
        %3334 = vmatpush1.msra.mxu0 0.0
        %3335 = vmatprep.subr.mxu0 0.0
        %3336 = vmatpush1.msra.mxu0 0.0
        %3337 = vmatprep.subr.mxu0 0.0
        %3338 = vmatpush1.msra.mxu0 0.0
        %3339 = vmatprep.subr.mxu0 0.0
        %3340 = vmatpush1.msra.mxu0 0.0
        %3341 = vmatprep.subr.mxu0 0.0
        %3342 = vmatpush1.msra.mxu0 0.0
        %3343 = vmatprep.mubr.f32.mxu0 0.0
        %3344 = vmatmul.mubr.f32.gmra.mrb[0].mxu0 %v3274
        %v3345 = vpop.f32.mrb[0].mxu0
        %v3346 = vadd.f32 0.0, %v3345
        %v3347 = vpop.f32.mrb[0].mxu0
        %3348 = vmatprep.mubr.f32.mxu0 0.0
        %3349 = vmatmul.mubr.f32.gmra.mrb[0].mxu0 %v3277
        %v3350 = vpop.f32.mrb[0].mxu0
        %v3351 = vadd.f32 0.0, %v3350
        %v3352 = vpop.f32.mrb[0].mxu0
        %3353 = vdwg.mxu0
        %3354 = vrot.lane.b32.xlu0 %v2229, 56
        %v3355 = vpop.permute.xlu0 %3354
        %3356 = vrot.lane.b32.xlu0 %v2230, 56
        %v3357 = vpop.permute.xlu0 %3356
        %v3361 = vsel %vm1336, %v3168, 0
        %v3364 = vsel %vm1336, %v3169, 0
        %3366 = vmatprep.subr.mxu0 0.0
        %3367 = vmatpush1.msra.mxu0 %v3355
        %3368 = vmatprep.subr.mxu0 0.0
        %3369 = vmatpush1.msra.mxu0 %v3357
        %3370 = vmatprep.subr.mxu0 0.0
        %3371 = vmatpush1.msra.mxu0 0.0
        %3372 = vmatprep.subr.mxu0 0.0
        %3373 = vmatpush1.msra.mxu0 0.0
        %3374 = vmatprep.subr.mxu0 0.0
        %3375 = vmatpush1.msra.mxu0 0.0
        %3376 = vmatprep.subr.mxu0 0.0
        %3377 = vmatpush1.msra.mxu0 0.0
        %3378 = vmatprep.subr.mxu0 0.0
        %3379 = vmatpush1.msra.mxu0 0.0
        %3380 = vmatprep.subr.mxu0 0.0
        %3381 = vmatpush1.msra.mxu0 0.0
        %3382 = vmatprep.subr.mxu0 0.0
        %3383 = vmatpush1.msra.mxu0 0.0
        %3384 = vmatprep.subr.mxu0 0.0
        %3385 = vmatpush1.msra.mxu0 0.0
        %3386 = vmatprep.subr.mxu0 0.0
        %3387 = vmatpush1.msra.mxu0 0.0
        %3388 = vmatprep.subr.mxu0 0.0
        %3389 = vmatpush1.msra.mxu0 0.0
        %3390 = vmatprep.subr.mxu0 0.0
        %3391 = vmatpush1.msra.mxu0 0.0
        %3392 = vmatprep.subr.mxu0 0.0
        %3393 = vmatpush1.msra.mxu0 0.0
        %3394 = vmatprep.subr.mxu0 0.0
        %3395 = vmatpush1.msra.mxu0 0.0
        %3396 = vmatprep.subr.mxu0 0.0
        %3397 = vmatpush1.msra.mxu0 0.0
        %3398 = vmatprep.subr.mxu0 0.0
        %3399 = vmatpush1.msra.mxu0 0.0
        %3400 = vmatprep.subr.mxu0 0.0
        %3401 = vmatpush1.msra.mxu0 0.0
        %3402 = vmatprep.subr.mxu0 0.0
        %3403 = vmatpush1.msra.mxu0 0.0
        %3404 = vmatprep.subr.mxu0 0.0
        %3405 = vmatpush1.msra.mxu0 0.0
        %3406 = vmatprep.subr.mxu0 0.0
        %3407 = vmatpush1.msra.mxu0 0.0
        %3408 = vmatprep.subr.mxu0 0.0
        %3409 = vmatpush1.msra.mxu0 0.0
        %3410 = vmatprep.subr.mxu0 0.0
        %3411 = vmatpush1.msra.mxu0 0.0
        %3412 = vmatprep.subr.mxu0 0.0
        %3413 = vmatpush1.msra.mxu0 0.0
        %3414 = vmatprep.subr.mxu0 0.0
        %3415 = vmatpush1.msra.mxu0 0.0
        %3416 = vmatprep.subr.mxu0 0.0
        %3417 = vmatpush1.msra.mxu0 0.0
        %3418 = vmatprep.subr.mxu0 0.0
        %3419 = vmatpush1.msra.mxu0 0.0
        %3420 = vmatprep.subr.mxu0 0.0
        %3421 = vmatpush1.msra.mxu0 0.0
        %3422 = vmatprep.subr.mxu0 0.0
        %3423 = vmatpush1.msra.mxu0 0.0
        %3424 = vmatprep.subr.mxu0 0.0
        %3425 = vmatpush1.msra.mxu0 0.0
        %3426 = vmatprep.subr.mxu0 0.0
        %3427 = vmatpush1.msra.mxu0 0.0
        %3428 = vmatprep.subr.mxu0 0.0
        %3429 = vmatpush1.msra.mxu0 0.0
        %3430 = vmatprep.mubr.f32.mxu0 0.0
        %3431 = vmatmul.mubr.f32.gmra.mrb[0].mxu0 %v3361
        %v3432 = vpop.f32.mrb[0].mxu0
        %v3433 = vadd.f32 0.0, %v3432
        %v3434 = vpop.f32.mrb[0].mxu0
        %3435 = vmatprep.mubr.f32.mxu0 0.0
        %3436 = vmatmul.mubr.f32.gmra.mrb[0].mxu0 %v3364
        %v3437 = vpop.f32.mrb[0].mxu0
        %v3438 = vadd.f32 0.0, %v3437
        %v3439 = vpop.f32.mrb[0].mxu0
        %3440 = vdwg.mxu0
        %3441 = vrot.lane.b32.xlu0 %v2231, 56
        %v3442 = vpop.permute.xlu0 %3441
        %3443 = vrot.lane.b32.xlu0 %v2232, 56
        %v3444 = vpop.permute.xlu0 %3443
        %v3448 = vsel %vm1336, %v3170, 0
        %v3451 = vsel %vm1336, %v3171, 0
        %3453 = vmatprep.subr.mxu0 0.0
        %3454 = vmatpush1.msra.mxu0 %v3442
        %3455 = vmatprep.subr.mxu0 0.0
        %3456 = vmatpush1.msra.mxu0 %v3444
        %3457 = vmatprep.subr.mxu0 0.0
        %3458 = vmatpush1.msra.mxu0 0.0
        %3459 = vmatprep.subr.mxu0 0.0
        %3460 = vmatpush1.msra.mxu0 0.0
        %3461 = vmatprep.subr.mxu0 0.0
        %3462 = vmatpush1.msra.mxu0 0.0
        %3463 = vmatprep.subr.mxu0 0.0
        %3464 = vmatpush1.msra.mxu0 0.0
        %3465 = vmatprep.subr.mxu0 0.0
        %3466 = vmatpush1.msra.mxu0 0.0
        %3467 = vmatprep.subr.mxu0 0.0
        %3468 = vmatpush1.msra.mxu0 0.0
        %3469 = vmatprep.subr.mxu0 0.0
        %3470 = vmatpush1.msra.mxu0 0.0
        %3471 = vmatprep.subr.mxu0 0.0
        %3472 = vmatpush1.msra.mxu0 0.0
        %3473 = vmatprep.subr.mxu0 0.0
        %3474 = vmatpush1.msra.mxu0 0.0
        %3475 = vmatprep.subr.mxu0 0.0
        %3476 = vmatpush1.msra.mxu0 0.0
        %3477 = vmatprep.subr.mxu0 0.0
        %3478 = vmatpush1.msra.mxu0 0.0
        %3479 = vmatprep.subr.mxu0 0.0
        %3480 = vmatpush1.msra.mxu0 0.0
        %3481 = vmatprep.subr.mxu0 0.0
        %3482 = vmatpush1.msra.mxu0 0.0
        %3483 = vmatprep.subr.mxu0 0.0
        %3484 = vmatpush1.msra.mxu0 0.0
        %3485 = vmatprep.subr.mxu0 0.0
        %3486 = vmatpush1.msra.mxu0 0.0
        %3487 = vmatprep.subr.mxu0 0.0
        %3488 = vmatpush1.msra.mxu0 0.0
        %3489 = vmatprep.subr.mxu0 0.0
        %3490 = vmatpush1.msra.mxu0 0.0
        %3491 = vmatprep.subr.mxu0 0.0
        %3492 = vmatpush1.msra.mxu0 0.0
        %3493 = vmatprep.subr.mxu0 0.0
        %3494 = vmatpush1.msra.mxu0 0.0
        %3495 = vmatprep.subr.mxu0 0.0
        %3496 = vmatpush1.msra.mxu0 0.0
        %3497 = vmatprep.subr.mxu0 0.0
        %3498 = vmatpush1.msra.mxu0 0.0
        %3499 = vmatprep.subr.mxu0 0.0
        %3500 = vmatpush1.msra.mxu0 0.0
        %3501 = vmatprep.subr.mxu0 0.0
        %3502 = vmatpush1.msra.mxu0 0.0
        %3503 = vmatprep.subr.mxu0 0.0
        %3504 = vmatpush1.msra.mxu0 0.0
        %3505 = vmatprep.subr.mxu0 0.0
        %3506 = vmatpush1.msra.mxu0 0.0
        %3507 = vmatprep.subr.mxu0 0.0
        %3508 = vmatpush1.msra.mxu0 0.0
        %3509 = vmatprep.subr.mxu0 0.0
        %3510 = vmatpush1.msra.mxu0 0.0
        %3511 = vmatprep.subr.mxu0 0.0
        %3512 = vmatpush1.msra.mxu0 0.0
        %3513 = vmatprep.subr.mxu0 0.0
        %3514 = vmatpush1.msra.mxu0 0.0
        %3515 = vmatprep.subr.mxu0 0.0
        %3516 = vmatpush1.msra.mxu0 0.0
        %3517 = vmatprep.mubr.f32.mxu0 0.0
        %3518 = vmatmul.mubr.f32.gmra.mrb[0].mxu0 %v3448
        %v3519 = vpop.f32.mrb[0].mxu0
        %v3520 = vadd.f32 0.0, %v3519
        %v3521 = vpop.f32.mrb[0].mxu0
        %3522 = vmatprep.mubr.f32.mxu0 0.0
        %3523 = vmatmul.mubr.f32.gmra.mrb[0].mxu0 %v3451
        %v3524 = vpop.f32.mrb[0].mxu0
        %v3525 = vadd.f32 0.0, %v3524
        %v3526 = vpop.f32.mrb[0].mxu0
        %3527 = vdwg.mxu0
        %3528 = vrot.lane.b32.xlu0 %v2233, 56
        %v3529 = vpop.permute.xlu0 %3528
        %3530 = vrot.lane.b32.xlu0 %v2234, 56
        %v3531 = vpop.permute.xlu0 %3530
        %v3535 = vsel %vm1336, %v3172, 0
        %v3538 = vsel %vm1336, %v3173, 0
        %3540 = vmatprep.subr.mxu0 0.0
        %3541 = vmatpush1.msra.mxu0 %v3529
        %3542 = vmatprep.subr.mxu0 0.0
        %3543 = vmatpush1.msra.mxu0 %v3531
        %3544 = vmatprep.subr.mxu0 0.0
        %3545 = vmatpush1.msra.mxu0 0.0
        %3546 = vmatprep.subr.mxu0 0.0
        %3547 = vmatpush1.msra.mxu0 0.0
        %3548 = vmatprep.subr.mxu0 0.0
        %3549 = vmatpush1.msra.mxu0 0.0
        %3550 = vmatprep.subr.mxu0 0.0
        %3551 = vmatpush1.msra.mxu0 0.0
        %3552 = vmatprep.subr.mxu0 0.0
        %3553 = vmatpush1.msra.mxu0 0.0
        %3554 = vmatprep.subr.mxu0 0.0
        %3555 = vmatpush1.msra.mxu0 0.0
        %3556 = vmatprep.subr.mxu0 0.0
        %3557 = vmatpush1.msra.mxu0 0.0
        %3558 = vmatprep.subr.mxu0 0.0
        %3559 = vmatpush1.msra.mxu0 0.0
        %3560 = vmatprep.subr.mxu0 0.0
        %3561 = vmatpush1.msra.mxu0 0.0
        %3562 = vmatprep.subr.mxu0 0.0
        %3563 = vmatpush1.msra.mxu0 0.0
        %3564 = vmatprep.subr.mxu0 0.0
        %3565 = vmatpush1.msra.mxu0 0.0
        %3566 = vmatprep.subr.mxu0 0.0
        %3567 = vmatpush1.msra.mxu0 0.0
        %3568 = vmatprep.subr.mxu0 0.0
        %3569 = vmatpush1.msra.mxu0 0.0
        %3570 = vmatprep.subr.mxu0 0.0
        %3571 = vmatpush1.msra.mxu0 0.0
        %3572 = vmatprep.subr.mxu0 0.0
        %3573 = vmatpush1.msra.mxu0 0.0
        %3574 = vmatprep.subr.mxu0 0.0
        %3575 = vmatpush1.msra.mxu0 0.0
        %3576 = vmatprep.subr.mxu0 0.0
        %3577 = vmatpush1.msra.mxu0 0.0
        %3578 = vmatprep.subr.mxu0 0.0
        %3579 = vmatpush1.msra.mxu0 0.0
        %3580 = vmatprep.subr.mxu0 0.0
        %3581 = vmatpush1.msra.mxu0 0.0
        %3582 = vmatprep.subr.mxu0 0.0
        %3583 = vmatpush1.msra.mxu0 0.0
        %3584 = vmatprep.subr.mxu0 0.0
        %3585 = vmatpush1.msra.mxu0 0.0
        %3586 = vmatprep.subr.mxu0 0.0
        %3587 = vmatpush1.msra.mxu0 0.0
        %3588 = vmatprep.subr.mxu0 0.0
        %3589 = vmatpush1.msra.mxu0 0.0
        %3590 = vmatprep.subr.mxu0 0.0
        %3591 = vmatpush1.msra.mxu0 0.0
        %3592 = vmatprep.subr.mxu0 0.0
        %3593 = vmatpush1.msra.mxu0 0.0
        %3594 = vmatprep.subr.mxu0 0.0
        %3595 = vmatpush1.msra.mxu0 0.0
        %3596 = vmatprep.subr.mxu0 0.0
        %3597 = vmatpush1.msra.mxu0 0.0
        %3598 = vmatprep.subr.mxu0 0.0
        %3599 = vmatpush1.msra.mxu0 0.0
        %3600 = vmatprep.subr.mxu0 0.0
        %3601 = vmatpush1.msra.mxu0 0.0
        %3602 = vmatprep.subr.mxu0 0.0
        %3603 = vmatpush1.msra.mxu0 0.0
        %3604 = vmatprep.mubr.f32.mxu0 0.0
        %3605 = vmatmul.mubr.f32.gmra.mrb[0].mxu0 %v3535
        %v3606 = vpop.f32.mrb[0].mxu0
        %v3607 = vadd.f32 0.0, %v3606
        %v3608 = vpop.f32.mrb[0].mxu0
        %3609 = vmatprep.mubr.f32.mxu0 0.0
        %3610 = vmatmul.mubr.f32.gmra.mrb[0].mxu0 %v3538
        %v3611 = vpop.f32.mrb[0].mxu0
        %v3612 = vadd.f32 0.0, %v3611
        %v3613 = vpop.f32.mrb[0].mxu0
        %3614 = vdwg.mxu0
        %3615 = vrot.lane.b32.xlu0 %v2235, 56
        %v3616 = vpop.permute.xlu0 %3615
        %3617 = vrot.lane.b32.xlu0 %v2236, 56
        %v3618 = vpop.permute.xlu0 %3617
        %v3622 = vsel %vm1336, %v3174, 0
        %v3625 = vsel %vm1336, %v3175, 0
        %3627 = vmatprep.subr.mxu0 0.0
        %3628 = vmatpush1.msra.mxu0 %v3616
        %3629 = vmatprep.subr.mxu0 0.0
        %3630 = vmatpush1.msra.mxu0 %v3618
        %3631 = vmatprep.subr.mxu0 0.0
        %3632 = vmatpush1.msra.mxu0 0.0
        %3633 = vmatprep.subr.mxu0 0.0
        %3634 = vmatpush1.msra.mxu0 0.0
        %3635 = vmatprep.subr.mxu0 0.0
        %3636 = vmatpush1.msra.mxu0 0.0
        %3637 = vmatprep.subr.mxu0 0.0
        %3638 = vmatpush1.msra.mxu0 0.0
        %3639 = vmatprep.subr.mxu0 0.0
        %3640 = vmatpush1.msra.mxu0 0.0
        %3641 = vmatprep.subr.mxu0 0.0
        %3642 = vmatpush1.msra.mxu0 0.0
        %3643 = vmatprep.subr.mxu0 0.0
        %3644 = vmatpush1.msra.mxu0 0.0
        %3645 = vmatprep.subr.mxu0 0.0
        %3646 = vmatpush1.msra.mxu0 0.0
        %3647 = vmatprep.subr.mxu0 0.0
        %3648 = vmatpush1.msra.mxu0 0.0
        %3649 = vmatprep.subr.mxu0 0.0
        %3650 = vmatpush1.msra.mxu0 0.0
        %3651 = vmatprep.subr.mxu0 0.0
        %3652 = vmatpush1.msra.mxu0 0.0
        %3653 = vmatprep.subr.mxu0 0.0
        %3654 = vmatpush1.msra.mxu0 0.0
        %3655 = vmatprep.subr.mxu0 0.0
        %3656 = vmatpush1.msra.mxu0 0.0
        %3657 = vmatprep.subr.mxu0 0.0
        %3658 = vmatpush1.msra.mxu0 0.0
        %3659 = vmatprep.subr.mxu0 0.0
        %3660 = vmatpush1.msra.mxu0 0.0
        %3661 = vmatprep.subr.mxu0 0.0
        %3662 = vmatpush1.msra.mxu0 0.0
        %3663 = vmatprep.subr.mxu0 0.0
        %3664 = vmatpush1.msra.mxu0 0.0
        %3665 = vmatprep.subr.mxu0 0.0
        %3666 = vmatpush1.msra.mxu0 0.0
        %3667 = vmatprep.subr.mxu0 0.0
        %3668 = vmatpush1.msra.mxu0 0.0
        %3669 = vmatprep.subr.mxu0 0.0
        %3670 = vmatpush1.msra.mxu0 0.0
        %3671 = vmatprep.subr.mxu0 0.0
        %3672 = vmatpush1.msra.mxu0 0.0
        %3673 = vmatprep.subr.mxu0 0.0
        %3674 = vmatpush1.msra.mxu0 0.0
        %3675 = vmatprep.subr.mxu0 0.0
        %3676 = vmatpush1.msra.mxu0 0.0
        %3677 = vmatprep.subr.mxu0 0.0
        %3678 = vmatpush1.msra.mxu0 0.0
        %3679 = vmatprep.subr.mxu0 0.0
        %3680 = vmatpush1.msra.mxu0 0.0
        %3681 = vmatprep.subr.mxu0 0.0
        %3682 = vmatpush1.msra.mxu0 0.0
        %3683 = vmatprep.subr.mxu0 0.0
        %3684 = vmatpush1.msra.mxu0 0.0
        %3685 = vmatprep.subr.mxu0 0.0
        %3686 = vmatpush1.msra.mxu0 0.0
        %3687 = vmatprep.subr.mxu0 0.0
        %3688 = vmatpush1.msra.mxu0 0.0
        %3689 = vmatprep.subr.mxu0 0.0
        %3690 = vmatpush1.msra.mxu0 0.0
        %3691 = vmatprep.mubr.f32.mxu0 0.0
        %3692 = vmatmul.mubr.f32.gmra.mrb[0].mxu0 %v3622
        %v3693 = vpop.f32.mrb[0].mxu0
        %v3694 = vadd.f32 0.0, %v3693
        %v3695 = vpop.f32.mrb[0].mxu0
        %3696 = vmatprep.mubr.f32.mxu0 0.0
        %3697 = vmatmul.mubr.f32.gmra.mrb[0].mxu0 %v3625
        %v3698 = vpop.f32.mrb[0].mxu0
        %v3699 = vadd.f32 0.0, %v3698
        %v3700 = vpop.f32.mrb[0].mxu0
        %3701 = vdwg.mxu0
        %3702 = vrot.lane.b32.xlu0 %v2237, 56
        %v3703 = vpop.permute.xlu0 %3702
        %3704 = vrot.lane.b32.xlu0 %v2238, 56
        %v3705 = vpop.permute.xlu0 %3704
        %v3709 = vsel %vm1336, %v3176, 0
        %v3712 = vsel %vm1336, %v3177, 0
        %3714 = vmatprep.subr.mxu0 0.0
        %3715 = vmatpush1.msra.mxu0 %v3703
        %3716 = vmatprep.subr.mxu0 0.0
        %3717 = vmatpush1.msra.mxu0 %v3705
        %3718 = vmatprep.subr.mxu0 0.0
        %3719 = vmatpush1.msra.mxu0 0.0
        %3720 = vmatprep.subr.mxu0 0.0
        %3721 = vmatpush1.msra.mxu0 0.0
        %3722 = vmatprep.subr.mxu0 0.0
        %3723 = vmatpush1.msra.mxu0 0.0
        %3724 = vmatprep.subr.mxu0 0.0
        %3725 = vmatpush1.msra.mxu0 0.0
        %3726 = vmatprep.subr.mxu0 0.0
        %3727 = vmatpush1.msra.mxu0 0.0
        %3728 = vmatprep.subr.mxu0 0.0
        %3729 = vmatpush1.msra.mxu0 0.0
        %3730 = vmatprep.subr.mxu0 0.0
        %3731 = vmatpush1.msra.mxu0 0.0
        %3732 = vmatprep.subr.mxu0 0.0
        %3733 = vmatpush1.msra.mxu0 0.0
        %3734 = vmatprep.subr.mxu0 0.0
        %3735 = vmatpush1.msra.mxu0 0.0
        %3736 = vmatprep.subr.mxu0 0.0
        %3737 = vmatpush1.msra.mxu0 0.0
        %3738 = vmatprep.subr.mxu0 0.0
        %3739 = vmatpush1.msra.mxu0 0.0
        %3740 = vmatprep.subr.mxu0 0.0
        %3741 = vmatpush1.msra.mxu0 0.0
        %3742 = vmatprep.subr.mxu0 0.0
        %3743 = vmatpush1.msra.mxu0 0.0
        %3744 = vmatprep.subr.mxu0 0.0
        %3745 = vmatpush1.msra.mxu0 0.0
        %3746 = vmatprep.subr.mxu0 0.0
        %3747 = vmatpush1.msra.mxu0 0.0
        %3748 = vmatprep.subr.mxu0 0.0
        %3749 = vmatpush1.msra.mxu0 0.0
        %3750 = vmatprep.subr.mxu0 0.0
        %3751 = vmatpush1.msra.mxu0 0.0
        %3752 = vmatprep.subr.mxu0 0.0
        %3753 = vmatpush1.msra.mxu0 0.0
        %3754 = vmatprep.subr.mxu0 0.0
        %3755 = vmatpush1.msra.mxu0 0.0
        %3756 = vmatprep.subr.mxu0 0.0
        %3757 = vmatpush1.msra.mxu0 0.0
        %3758 = vmatprep.subr.mxu0 0.0
        %3759 = vmatpush1.msra.mxu0 0.0
        %3760 = vmatprep.subr.mxu0 0.0
        %3761 = vmatpush1.msra.mxu0 0.0
        %3762 = vmatprep.subr.mxu0 0.0
        %3763 = vmatpush1.msra.mxu0 0.0
        %3764 = vmatprep.subr.mxu0 0.0
        %3765 = vmatpush1.msra.mxu0 0.0
        %3766 = vmatprep.subr.mxu0 0.0
        %3767 = vmatpush1.msra.mxu0 0.0
        %3768 = vmatprep.subr.mxu0 0.0
        %3769 = vmatpush1.msra.mxu0 0.0
        %3770 = vmatprep.subr.mxu0 0.0
        %3771 = vmatpush1.msra.mxu0 0.0
        %3772 = vmatprep.subr.mxu0 0.0
        %3773 = vmatpush1.msra.mxu0 0.0
        %3774 = vmatprep.subr.mxu0 0.0
        %3775 = vmatpush1.msra.mxu0 0.0
        %3776 = vmatprep.subr.mxu0 0.0
        %3777 = vmatpush1.msra.mxu0 0.0
        %3778 = vmatprep.mubr.f32.mxu0 0.0
        %3779 = vmatmul.mubr.f32.gmra.mrb[0].mxu0 %v3709
        %v3780 = vpop.f32.mrb[0].mxu0
        %v3781 = vadd.f32 0.0, %v3780
        %v3782 = vpop.f32.mrb[0].mxu0
        %3783 = vmatprep.mubr.f32.mxu0 0.0
        %3784 = vmatmul.mubr.f32.gmra.mrb[0].mxu0 %v3712
        %v3785 = vpop.f32.mrb[0].mxu0
        %v3786 = vadd.f32 0.0, %v3785
        %v3787 = vpop.f32.mrb[0].mxu0
        %3788 = vdwg.mxu0
        %3789 = vrot.lane.b32.xlu0 %v2239, 56
        %v3790 = vpop.permute.xlu0 %3789
        %3791 = vrot.lane.b32.xlu0 %v2240, 56
        %v3792 = vpop.permute.xlu0 %3791
        %v3796 = vsel %vm1336, %v3178, 0
        %v3799 = vsel %vm1336, %v3179, 0
        %3801 = vmatprep.subr.mxu0 0.0
        %3802 = vmatpush1.msra.mxu0 %v3790
        %3803 = vmatprep.subr.mxu0 0.0
        %3804 = vmatpush1.msra.mxu0 %v3792
        %3805 = vmatprep.subr.mxu0 0.0
        %3806 = vmatpush1.msra.mxu0 0.0
        %3807 = vmatprep.subr.mxu0 0.0
        %3808 = vmatpush1.msra.mxu0 0.0
        %3809 = vmatprep.subr.mxu0 0.0
        %3810 = vmatpush1.msra.mxu0 0.0
        %3811 = vmatprep.subr.mxu0 0.0
        %3812 = vmatpush1.msra.mxu0 0.0
        %3813 = vmatprep.subr.mxu0 0.0
        %3814 = vmatpush1.msra.mxu0 0.0
        %3815 = vmatprep.subr.mxu0 0.0
        %3816 = vmatpush1.msra.mxu0 0.0
        %3817 = vmatprep.subr.mxu0 0.0
        %3818 = vmatpush1.msra.mxu0 0.0
        %3819 = vmatprep.subr.mxu0 0.0
        %3820 = vmatpush1.msra.mxu0 0.0
        %3821 = vmatprep.subr.mxu0 0.0
        %3822 = vmatpush1.msra.mxu0 0.0
        %3823 = vmatprep.subr.mxu0 0.0
        %3824 = vmatpush1.msra.mxu0 0.0
        %3825 = vmatprep.subr.mxu0 0.0
        %3826 = vmatpush1.msra.mxu0 0.0
        %3827 = vmatprep.subr.mxu0 0.0
        %3828 = vmatpush1.msra.mxu0 0.0
        %3829 = vmatprep.subr.mxu0 0.0
        %3830 = vmatpush1.msra.mxu0 0.0
        %3831 = vmatprep.subr.mxu0 0.0
        %3832 = vmatpush1.msra.mxu0 0.0
        %3833 = vmatprep.subr.mxu0 0.0
        %3834 = vmatpush1.msra.mxu0 0.0
        %3835 = vmatprep.subr.mxu0 0.0
        %3836 = vmatpush1.msra.mxu0 0.0
        %3837 = vmatprep.subr.mxu0 0.0
        %3838 = vmatpush1.msra.mxu0 0.0
        %3839 = vmatprep.subr.mxu0 0.0
        %3840 = vmatpush1.msra.mxu0 0.0
        %3841 = vmatprep.subr.mxu0 0.0
        %3842 = vmatpush1.msra.mxu0 0.0
        %3843 = vmatprep.subr.mxu0 0.0
        %3844 = vmatpush1.msra.mxu0 0.0
        %3845 = vmatprep.subr.mxu0 0.0
        %3846 = vmatpush1.msra.mxu0 0.0
        %3847 = vmatprep.subr.mxu0 0.0
        %3848 = vmatpush1.msra.mxu0 0.0
        %3849 = vmatprep.subr.mxu0 0.0
        %3850 = vmatpush1.msra.mxu0 0.0
        %3851 = vmatprep.subr.mxu0 0.0
        %3852 = vmatpush1.msra.mxu0 0.0
        %3853 = vmatprep.subr.mxu0 0.0
        %3854 = vmatpush1.msra.mxu0 0.0
        %3855 = vmatprep.subr.mxu0 0.0
        %3856 = vmatpush1.msra.mxu0 0.0
        %3857 = vmatprep.subr.mxu0 0.0
        %3858 = vmatpush1.msra.mxu0 0.0
        %3859 = vmatprep.subr.mxu0 0.0
        %3860 = vmatpush1.msra.mxu0 0.0
        %3861 = vmatprep.subr.mxu0 0.0
        %3862 = vmatpush1.msra.mxu0 0.0
        %3863 = vmatprep.subr.mxu0 0.0
        %3864 = vmatpush1.msra.mxu0 0.0
        %3865 = vmatprep.mubr.f32.mxu0 0.0
        %3866 = vmatmul.mubr.f32.gmra.mrb[0].mxu0 %v3796
        %v3867 = vpop.f32.mrb[0].mxu0
        %v3868 = vadd.f32 0.0, %v3867
        %v3869 = vpop.f32.mrb[0].mxu0
        %3870 = vmatprep.mubr.f32.mxu0 0.0
        %3871 = vmatmul.mubr.f32.gmra.mrb[0].mxu0 %v3799
        %v3872 = vpop.f32.mrb[0].mxu0
        %v3873 = vadd.f32 0.0, %v3872
        %v3874 = vpop.f32.mrb[0].mxu0
        %3875 = vdwg.mxu0
        %3892 = vrot.lane.b32.xlu0 %v3259, 8
        %v3893 = vpop.permute.xlu0 %3892
        %3894 = vrot.lane.b32.xlu0 %v3264, 8
        %v3895 = vpop.permute.xlu0 %3894
        %3896 = vrot.lane.b32.xlu0 %v3346, 8
        %v3897 = vpop.permute.xlu0 %3896
        %3898 = vrot.lane.b32.xlu0 %v3351, 8
        %v3899 = vpop.permute.xlu0 %3898
        %3900 = vrot.lane.b32.xlu0 %v3433, 8
        %v3901 = vpop.permute.xlu0 %3900
        %3902 = vrot.lane.b32.xlu0 %v3438, 8
        %v3903 = vpop.permute.xlu0 %3902
        %3904 = vrot.lane.b32.xlu0 %v3520, 8
        %v3905 = vpop.permute.xlu0 %3904
        %3906 = vrot.lane.b32.xlu0 %v3525, 8
        %v3907 = vpop.permute.xlu0 %3906
        %3908 = vrot.lane.b32.xlu0 %v3607, 8
        %v3909 = vpop.permute.xlu0 %3908
        %3910 = vrot.lane.b32.xlu0 %v3612, 8
        %v3911 = vpop.permute.xlu0 %3910
        %3912 = vrot.lane.b32.xlu0 %v3694, 8
        %v3913 = vpop.permute.xlu0 %3912
        %3914 = vrot.lane.b32.xlu0 %v3699, 8
        %v3915 = vpop.permute.xlu0 %3914
        %3916 = vrot.lane.b32.xlu0 %v3781, 8
        %v3917 = vpop.permute.xlu0 %3916
        %3918 = vrot.lane.b32.xlu0 %v3786, 8
        %v3919 = vpop.permute.xlu0 %3918
        %3920 = vrot.lane.b32.xlu0 %v3868, 8
        %v3921 = vpop.permute.xlu0 %3920
        %3922 = vrot.lane.b32.xlu0 %v3873, 8
        %v3923 = vpop.permute.xlu0 %3922
        %vm3940 = vcmask 130112
        %3941 = vst.msk [vmem:[#allocation3] sm:$0xff] %vm3940, %v3893
        %3942 = vst.msk [vmem:[#allocation3 + $0x8] sm:$0xff] %vm3940, %v3895
        %3943 = vst.msk [vmem:[#allocation3 + $0x10] sm:$0xff] %vm3940, %v3897
        %3944 = vst.msk [vmem:[#allocation3 + $0x18] sm:$0xff] %vm3940, %v3899
        %3945 = vst.msk [vmem:[#allocation3 + $0x20] sm:$0xff] %vm3940, %v3901
        %3946 = vst.msk [vmem:[#allocation3 + $0x28] sm:$0xff] %vm3940, %v3903
        %3947 = vst.msk [vmem:[#allocation3 + $0x30] sm:$0xff] %vm3940, %v3905
        %3948 = vst.msk [vmem:[#allocation3 + $0x38] sm:$0xff] %vm3940, %v3907
        %3949 = vst.msk [vmem:[#allocation3 + $0x40] sm:$0xff] %vm3940, %v3909
        %3950 = vst.msk [vmem:[#allocation3 + $0x48] sm:$0xff] %vm3940, %v3911
        %3951 = vst.msk [vmem:[#allocation3 + $0x50] sm:$0xff] %vm3940, %v3913
        %3952 = vst.msk [vmem:[#allocation3 + $0x58] sm:$0xff] %vm3940, %v3915
        %3953 = vst.msk [vmem:[#allocation3 + $0x60] sm:$0xff] %vm3940, %v3917
        %3954 = vst.msk [vmem:[#allocation3 + $0x68] sm:$0xff] %vm3940, %v3919
        %3955 = vst.msk [vmem:[#allocation3 + $0x70] sm:$0xff] %vm3940, %v3921
        %3956 = vst.msk [vmem:[#allocation3 + $0x78] sm:$0xff] %vm3940, %v3923
        %v3957 = vld [vmem:[#allocation2] sm:$0xff]
        %v3958 = vld [vmem:[#allocation2 + $0x8] sm:$0xff]
        %v3959 = vld [vmem:[#allocation2 + $0x10] sm:$0xff]
        %v3960 = vld [vmem:[#allocation2 + $0x18] sm:$0xff]
        %v3961 = vld [vmem:[#allocation2 + $0x20] sm:$0xff]
        %v3962 = vld [vmem:[#allocation2 + $0x28] sm:$0xff]
        %v3963 = vld [vmem:[#allocation2 + $0x30] sm:$0xff]
        %v3964 = vld [vmem:[#allocation2 + $0x38] sm:$0xff]
        %v3965 = vld [vmem:[#allocation2 + $0x40] sm:$0xff]
        %v3966 = vld [vmem:[#allocation2 + $0x48] sm:$0xff]
        %v3967 = vld [vmem:[#allocation2 + $0x50] sm:$0xff]
        %v3968 = vld [vmem:[#allocation2 + $0x58] sm:$0xff]
        %v3969 = vld [vmem:[#allocation2 + $0x60] sm:$0xff]
        %v3970 = vld [vmem:[#allocation2 + $0x68] sm:$0xff]
        %v3971 = vld [vmem:[#allocation2 + $0x70] sm:$0xff]
        %v3972 = vld [vmem:[#allocation2 + $0x78] sm:$0xff]
        %s3973 = scalar_lea.vmem %s3, 32
        %v3974 = vld [vmem:[%s3973] sm:$0xff]
        %v3975 = vld [vmem:[%s3973 + $0x8] sm:$0xff]
        %3978 = vrot.lane.b32.xlu0 %v3957, 112
        %v3979 = vpop.permute.xlu0 %3978
        %3980 = vrot.lane.b32.xlu0 %v3958, 112
        %v3981 = vpop.permute.xlu0 %3980
        %3982 = vrot.lane.b32.xlu0 %v3957, 80
        %v3983 = vpop.permute.xlu0 %3982
        %3984 = vrot.lane.b32.xlu0 %v3958, 80
        %v3985 = vpop.permute.xlu0 %3984
        %v3986 = vsel %vm613, %v3979, 0
        %v3988 = vsel %vm613, %v3981, 0
        %v3990 = vsel %vm613, %v3983, 0
        %v3992 = vsel %vm613, %v3985, 0
        %3994 = vmatprep.subr.mxu0 0.0
        %3995 = vmatpush1.xpose.msra.mxu0 %v3990
        %3996 = vmatprep.subr.mxu0 0.0
        %3997 = vmatpush1.xpose.msra.mxu0 %v3992
        %3998 = vmatprep.subr.mxu0 0.0
        %3999 = vmatpush1.xpose.msra.mxu0 0.0
        %4000 = vmatprep.subr.mxu0 0.0
        %4001 = vmatpush1.xpose.msra.mxu0 0.0
        %4002 = vmatprep.subr.mxu0 0.0
        %4003 = vmatpush1.xpose.msra.mxu0 0.0
        %4004 = vmatprep.subr.mxu0 0.0
        %4005 = vmatpush1.xpose.msra.mxu0 0.0
        %4006 = vmatprep.subr.mxu0 0.0
        %4007 = vmatpush1.xpose.msra.mxu0 0.0
        %4008 = vmatprep.subr.mxu0 0.0
        %4009 = vmatpush1.xpose.msra.mxu0 0.0
        %4010 = vmatprep.subr.mxu0 0.0
        %4011 = vmatpush1.xpose.msra.mxu0 0.0
        %4012 = vmatprep.subr.mxu0 0.0
        %4013 = vmatpush1.xpose.msra.mxu0 0.0
        %4014 = vmatprep.subr.mxu0 0.0
        %4015 = vmatpush1.xpose.msra.mxu0 0.0
        %4016 = vmatprep.subr.mxu0 0.0
        %4017 = vmatpush1.xpose.msra.mxu0 0.0
        %4018 = vmatprep.subr.mxu0 0.0
        %4019 = vmatpush1.xpose.msra.mxu0 0.0
        %4020 = vmatprep.subr.mxu0 0.0
        %4021 = vmatpush1.xpose.msra.mxu0 0.0
        %4022 = vmatprep.subr.mxu0 0.0
        %4023 = vmatpush1.xpose.msra.mxu0 0.0
        %4024 = vmatprep.subr.mxu0 0.0
        %4025 = vmatpush1.xpose.msra.mxu0 0.0
        %4026 = vmatprep.subr.mxu0 0.0
        %4027 = vmatpush1.xpose.msra.mxu0 0.0
        %4028 = vmatprep.subr.mxu0 0.0
        %4029 = vmatpush1.xpose.msra.mxu0 0.0
        %4030 = vmatprep.subr.mxu0 0.0
        %4031 = vmatpush1.xpose.msra.mxu0 0.0
        %4032 = vmatprep.subr.mxu0 0.0
        %4033 = vmatpush1.xpose.msra.mxu0 0.0
        %4034 = vmatprep.subr.mxu0 0.0
        %4035 = vmatpush1.xpose.msra.mxu0 0.0
        %4036 = vmatprep.subr.mxu0 0.0
        %4037 = vmatpush1.xpose.msra.mxu0 0.0
        %4038 = vmatprep.subr.mxu0 0.0
        %4039 = vmatpush1.xpose.msra.mxu0 0.0
        %4040 = vmatprep.subr.mxu0 0.0
        %4041 = vmatpush1.xpose.msra.mxu0 0.0
        %4042 = vmatprep.subr.mxu0 0.0
        %4043 = vmatpush1.xpose.msra.mxu0 0.0
        %4044 = vmatprep.subr.mxu0 0.0
        %4045 = vmatpush1.xpose.msra.mxu0 0.0
        %4046 = vmatprep.subr.mxu0 0.0
        %4047 = vmatpush1.xpose.msra.mxu0 0.0
        %4048 = vmatprep.subr.mxu0 0.0
        %4049 = vmatpush1.xpose.msra.mxu0 0.0
        %4050 = vmatprep.subr.mxu0 0.0
        %4051 = vmatpush1.xpose.msra.mxu0 0.0
        %4052 = vmatprep.subr.mxu0 0.0
        %4053 = vmatpush1.xpose.msra.mxu0 0.0
        %4054 = vmatprep.subr.mxu0 0.0
        %4055 = vmatpush1.xpose.msra.mxu0 0.0
        %4056 = vmatprep.subr.mxu0 0.0
        %4057 = vmatpush1.xpose.msra.mxu0 0.0
        %4058 = vmatprep.mubr.f32.mxu0 0.0
        %4059 = vmatmul.mubr.f32.gmra.mrb[0].mxu0 %v3986
        %v4060 = vpop.f32.mrb[0].mxu0
        %v4061 = vadd.f32 %v3974, %v4060
        %v4062 = vpop.f32.mrb[0].mxu0
        %4063 = vmatprep.mubr.f32.mxu0 0.0
        %4064 = vmatmul.mubr.f32.gmra.mrb[0].mxu0 %v3988
        %v4065 = vpop.f32.mrb[0].mxu0
        %v4066 = vadd.f32 %v3975, %v4065
        %v4067 = vpop.f32.mrb[0].mxu0
        %4068 = vdwg.mxu0
        %4071 = vrot.lane.b32.xlu0 %v3959, 112
        %v4072 = vpop.permute.xlu0 %4071
        %4073 = vrot.lane.b32.xlu0 %v3960, 112
        %v4074 = vpop.permute.xlu0 %4073
        %4075 = vrot.lane.b32.xlu0 %v3959, 80
        %v4076 = vpop.permute.xlu0 %4075
        %4077 = vrot.lane.b32.xlu0 %v3960, 80
        %v4078 = vpop.permute.xlu0 %4077
        %v4079 = vsel %vm613, %v4072, 0
        %v4081 = vsel %vm613, %v4074, 0
        %v4083 = vsel %vm613, %v4076, 0
        %v4085 = vsel %vm613, %v4078, 0
        %4087 = vmatprep.subr.mxu0 0.0
        %4088 = vmatpush1.xpose.msra.mxu0 %v4083
        %4089 = vmatprep.subr.mxu0 0.0
        %4090 = vmatpush1.xpose.msra.mxu0 %v4085
        %4091 = vmatprep.subr.mxu0 0.0
        %4092 = vmatpush1.xpose.msra.mxu0 0.0
        %4093 = vmatprep.subr.mxu0 0.0
        %4094 = vmatpush1.xpose.msra.mxu0 0.0
        %4095 = vmatprep.subr.mxu0 0.0
        %4096 = vmatpush1.xpose.msra.mxu0 0.0
        %4097 = vmatprep.subr.mxu0 0.0
        %4098 = vmatpush1.xpose.msra.mxu0 0.0
        %4099 = vmatprep.subr.mxu0 0.0
        %4100 = vmatpush1.xpose.msra.mxu0 0.0
        %4101 = vmatprep.subr.mxu0 0.0
        %4102 = vmatpush1.xpose.msra.mxu0 0.0
        %4103 = vmatprep.subr.mxu0 0.0
        %4104 = vmatpush1.xpose.msra.mxu0 0.0
        %4105 = vmatprep.subr.mxu0 0.0
        %4106 = vmatpush1.xpose.msra.mxu0 0.0
        %4107 = vmatprep.subr.mxu0 0.0
        %4108 = vmatpush1.xpose.msra.mxu0 0.0
        %4109 = vmatprep.subr.mxu0 0.0
        %4110 = vmatpush1.xpose.msra.mxu0 0.0
        %4111 = vmatprep.subr.mxu0 0.0
        %4112 = vmatpush1.xpose.msra.mxu0 0.0
        %4113 = vmatprep.subr.mxu0 0.0
        %4114 = vmatpush1.xpose.msra.mxu0 0.0
        %4115 = vmatprep.subr.mxu0 0.0
        %4116 = vmatpush1.xpose.msra.mxu0 0.0
        %4117 = vmatprep.subr.mxu0 0.0
        %4118 = vmatpush1.xpose.msra.mxu0 0.0
        %4119 = vmatprep.subr.mxu0 0.0
        %4120 = vmatpush1.xpose.msra.mxu0 0.0
        %4121 = vmatprep.subr.mxu0 0.0
        %4122 = vmatpush1.xpose.msra.mxu0 0.0
        %4123 = vmatprep.subr.mxu0 0.0
        %4124 = vmatpush1.xpose.msra.mxu0 0.0
        %4125 = vmatprep.subr.mxu0 0.0
        %4126 = vmatpush1.xpose.msra.mxu0 0.0
        %4127 = vmatprep.subr.mxu0 0.0
        %4128 = vmatpush1.xpose.msra.mxu0 0.0
        %4129 = vmatprep.subr.mxu0 0.0
        %4130 = vmatpush1.xpose.msra.mxu0 0.0
        %4131 = vmatprep.subr.mxu0 0.0
        %4132 = vmatpush1.xpose.msra.mxu0 0.0
        %4133 = vmatprep.subr.mxu0 0.0
        %4134 = vmatpush1.xpose.msra.mxu0 0.0
        %4135 = vmatprep.subr.mxu0 0.0
        %4136 = vmatpush1.xpose.msra.mxu0 0.0
        %4137 = vmatprep.subr.mxu0 0.0
        %4138 = vmatpush1.xpose.msra.mxu0 0.0
        %4139 = vmatprep.subr.mxu0 0.0
        %4140 = vmatpush1.xpose.msra.mxu0 0.0
        %4141 = vmatprep.subr.mxu0 0.0
        %4142 = vmatpush1.xpose.msra.mxu0 0.0
        %4143 = vmatprep.subr.mxu0 0.0
        %4144 = vmatpush1.xpose.msra.mxu0 0.0
        %4145 = vmatprep.subr.mxu0 0.0
        %4146 = vmatpush1.xpose.msra.mxu0 0.0
        %4147 = vmatprep.subr.mxu0 0.0
        %4148 = vmatpush1.xpose.msra.mxu0 0.0
        %4149 = vmatprep.subr.mxu0 0.0
        %4150 = vmatpush1.xpose.msra.mxu0 0.0
        %4151 = vmatprep.mubr.f32.mxu0 0.0
        %4152 = vmatmul.mubr.f32.gmra.mrb[0].mxu0 %v4079
        %v4153 = vpop.f32.mrb[0].mxu0
        %v4154 = vadd.f32 %v3974, %v4153
        %v4155 = vpop.f32.mrb[0].mxu0
        %4156 = vmatprep.mubr.f32.mxu0 0.0
        %4157 = vmatmul.mubr.f32.gmra.mrb[0].mxu0 %v4081
        %v4158 = vpop.f32.mrb[0].mxu0
        %v4159 = vadd.f32 %v3975, %v4158
        %v4160 = vpop.f32.mrb[0].mxu0
        %4161 = vdwg.mxu0
        %4164 = vrot.lane.b32.xlu0 %v3961, 112
        %v4165 = vpop.permute.xlu0 %4164
        %4166 = vrot.lane.b32.xlu0 %v3962, 112
        %v4167 = vpop.permute.xlu0 %4166
        %4168 = vrot.lane.b32.xlu0 %v3961, 80
        %v4169 = vpop.permute.xlu0 %4168
        %4170 = vrot.lane.b32.xlu0 %v3962, 80
        %v4171 = vpop.permute.xlu0 %4170
        %v4172 = vsel %vm613, %v4165, 0
        %v4174 = vsel %vm613, %v4167, 0
        %v4176 = vsel %vm613, %v4169, 0
        %v4178 = vsel %vm613, %v4171, 0
        %4180 = vmatprep.subr.mxu0 0.0
        %4181 = vmatpush1.xpose.msra.mxu0 %v4176
        %4182 = vmatprep.subr.mxu0 0.0
        %4183 = vmatpush1.xpose.msra.mxu0 %v4178
        %4184 = vmatprep.subr.mxu0 0.0
        %4185 = vmatpush1.xpose.msra.mxu0 0.0
        %4186 = vmatprep.subr.mxu0 0.0
        %4187 = vmatpush1.xpose.msra.mxu0 0.0
        %4188 = vmatprep.subr.mxu0 0.0
        %4189 = vmatpush1.xpose.msra.mxu0 0.0
        %4190 = vmatprep.subr.mxu0 0.0
        %4191 = vmatpush1.xpose.msra.mxu0 0.0
        %4192 = vmatprep.subr.mxu0 0.0
        %4193 = vmatpush1.xpose.msra.mxu0 0.0
        %4194 = vmatprep.subr.mxu0 0.0
        %4195 = vmatpush1.xpose.msra.mxu0 0.0
        %4196 = vmatprep.subr.mxu0 0.0
        %4197 = vmatpush1.xpose.msra.mxu0 0.0
        %4198 = vmatprep.subr.mxu0 0.0
        %4199 = vmatpush1.xpose.msra.mxu0 0.0
        %4200 = vmatprep.subr.mxu0 0.0
        %4201 = vmatpush1.xpose.msra.mxu0 0.0
        %4202 = vmatprep.subr.mxu0 0.0
        %4203 = vmatpush1.xpose.msra.mxu0 0.0
        %4204 = vmatprep.subr.mxu0 0.0
        %4205 = vmatpush1.xpose.msra.mxu0 0.0
        %4206 = vmatprep.subr.mxu0 0.0
        %4207 = vmatpush1.xpose.msra.mxu0 0.0
        %4208 = vmatprep.subr.mxu0 0.0
        %4209 = vmatpush1.xpose.msra.mxu0 0.0
        %4210 = vmatprep.subr.mxu0 0.0
        %4211 = vmatpush1.xpose.msra.mxu0 0.0
        %4212 = vmatprep.subr.mxu0 0.0
        %4213 = vmatpush1.xpose.msra.mxu0 0.0
        %4214 = vmatprep.subr.mxu0 0.0
        %4215 = vmatpush1.xpose.msra.mxu0 0.0
        %4216 = vmatprep.subr.mxu0 0.0
        %4217 = vmatpush1.xpose.msra.mxu0 0.0
        %4218 = vmatprep.subr.mxu0 0.0
        %4219 = vmatpush1.xpose.msra.mxu0 0.0
        %4220 = vmatprep.subr.mxu0 0.0
        %4221 = vmatpush1.xpose.msra.mxu0 0.0
        %4222 = vmatprep.subr.mxu0 0.0
        %4223 = vmatpush1.xpose.msra.mxu0 0.0
        %4224 = vmatprep.subr.mxu0 0.0
        %4225 = vmatpush1.xpose.msra.mxu0 0.0
        %4226 = vmatprep.subr.mxu0 0.0
        %4227 = vmatpush1.xpose.msra.mxu0 0.0
        %4228 = vmatprep.subr.mxu0 0.0
        %4229 = vmatpush1.xpose.msra.mxu0 0.0
        %4230 = vmatprep.subr.mxu0 0.0
        %4231 = vmatpush1.xpose.msra.mxu0 0.0
        %4232 = vmatprep.subr.mxu0 0.0
        %4233 = vmatpush1.xpose.msra.mxu0 0.0
        %4234 = vmatprep.subr.mxu0 0.0
        %4235 = vmatpush1.xpose.msra.mxu0 0.0
        %4236 = vmatprep.subr.mxu0 0.0
        %4237 = vmatpush1.xpose.msra.mxu0 0.0
        %4238 = vmatprep.subr.mxu0 0.0
        %4239 = vmatpush1.xpose.msra.mxu0 0.0
        %4240 = vmatprep.subr.mxu0 0.0
        %4241 = vmatpush1.xpose.msra.mxu0 0.0
        %4242 = vmatprep.subr.mxu0 0.0
        %4243 = vmatpush1.xpose.msra.mxu0 0.0
        %4244 = vmatprep.mubr.f32.mxu0 0.0
        %4245 = vmatmul.mubr.f32.gmra.mrb[0].mxu0 %v4172
        %v4246 = vpop.f32.mrb[0].mxu0
        %v4247 = vadd.f32 %v3974, %v4246
        %v4248 = vpop.f32.mrb[0].mxu0
        %4249 = vmatprep.mubr.f32.mxu0 0.0
        %4250 = vmatmul.mubr.f32.gmra.mrb[0].mxu0 %v4174
        %v4251 = vpop.f32.mrb[0].mxu0
        %v4252 = vadd.f32 %v3975, %v4251
        %v4253 = vpop.f32.mrb[0].mxu0
        %4254 = vdwg.mxu0
        %4257 = vrot.lane.b32.xlu0 %v3963, 112
        %v4258 = vpop.permute.xlu0 %4257
        %4259 = vrot.lane.b32.xlu0 %v3964, 112
        %v4260 = vpop.permute.xlu0 %4259
        %4261 = vrot.lane.b32.xlu0 %v3963, 80
        %v4262 = vpop.permute.xlu0 %4261
        %4263 = vrot.lane.b32.xlu0 %v3964, 80
        %v4264 = vpop.permute.xlu0 %4263
        %v4265 = vsel %vm613, %v4258, 0
        %v4267 = vsel %vm613, %v4260, 0
        %v4269 = vsel %vm613, %v4262, 0
        %v4271 = vsel %vm613, %v4264, 0
        %4273 = vmatprep.subr.mxu0 0.0
        %4274 = vmatpush1.xpose.msra.mxu0 %v4269
        %4275 = vmatprep.subr.mxu0 0.0
        %4276 = vmatpush1.xpose.msra.mxu0 %v4271
        %4277 = vmatprep.subr.mxu0 0.0
        %4278 = vmatpush1.xpose.msra.mxu0 0.0
        %4279 = vmatprep.subr.mxu0 0.0
        %4280 = vmatpush1.xpose.msra.mxu0 0.0
        %4281 = vmatprep.subr.mxu0 0.0
        %4282 = vmatpush1.xpose.msra.mxu0 0.0
        %4283 = vmatprep.subr.mxu0 0.0
        %4284 = vmatpush1.xpose.msra.mxu0 0.0
        %4285 = vmatprep.subr.mxu0 0.0
        %4286 = vmatpush1.xpose.msra.mxu0 0.0
        %4287 = vmatprep.subr.mxu0 0.0
        %4288 = vmatpush1.xpose.msra.mxu0 0.0
        %4289 = vmatprep.subr.mxu0 0.0
        %4290 = vmatpush1.xpose.msra.mxu0 0.0
        %4291 = vmatprep.subr.mxu0 0.0
        %4292 = vmatpush1.xpose.msra.mxu0 0.0
        %4293 = vmatprep.subr.mxu0 0.0
        %4294 = vmatpush1.xpose.msra.mxu0 0.0
        %4295 = vmatprep.subr.mxu0 0.0
        %4296 = vmatpush1.xpose.msra.mxu0 0.0
        %4297 = vmatprep.subr.mxu0 0.0
        %4298 = vmatpush1.xpose.msra.mxu0 0.0
        %4299 = vmatprep.subr.mxu0 0.0
        %4300 = vmatpush1.xpose.msra.mxu0 0.0
        %4301 = vmatprep.subr.mxu0 0.0
        %4302 = vmatpush1.xpose.msra.mxu0 0.0
        %4303 = vmatprep.subr.mxu0 0.0
        %4304 = vmatpush1.xpose.msra.mxu0 0.0
        %4305 = vmatprep.subr.mxu0 0.0
        %4306 = vmatpush1.xpose.msra.mxu0 0.0
        %4307 = vmatprep.subr.mxu0 0.0
        %4308 = vmatpush1.xpose.msra.mxu0 0.0
        %4309 = vmatprep.subr.mxu0 0.0
        %4310 = vmatpush1.xpose.msra.mxu0 0.0
        %4311 = vmatprep.subr.mxu0 0.0
        %4312 = vmatpush1.xpose.msra.mxu0 0.0
        %4313 = vmatprep.subr.mxu0 0.0
        %4314 = vmatpush1.xpose.msra.mxu0 0.0
        %4315 = vmatprep.subr.mxu0 0.0
        %4316 = vmatpush1.xpose.msra.mxu0 0.0
        %4317 = vmatprep.subr.mxu0 0.0
        %4318 = vmatpush1.xpose.msra.mxu0 0.0
        %4319 = vmatprep.subr.mxu0 0.0
        %4320 = vmatpush1.xpose.msra.mxu0 0.0
        %4321 = vmatprep.subr.mxu0 0.0
        %4322 = vmatpush1.xpose.msra.mxu0 0.0
        %4323 = vmatprep.subr.mxu0 0.0
        %4324 = vmatpush1.xpose.msra.mxu0 0.0
        %4325 = vmatprep.subr.mxu0 0.0
        %4326 = vmatpush1.xpose.msra.mxu0 0.0
        %4327 = vmatprep.subr.mxu0 0.0
        %4328 = vmatpush1.xpose.msra.mxu0 0.0
        %4329 = vmatprep.subr.mxu0 0.0
        %4330 = vmatpush1.xpose.msra.mxu0 0.0
        %4331 = vmatprep.subr.mxu0 0.0
        %4332 = vmatpush1.xpose.msra.mxu0 0.0
        %4333 = vmatprep.subr.mxu0 0.0
        %4334 = vmatpush1.xpose.msra.mxu0 0.0
        %4335 = vmatprep.subr.mxu0 0.0
        %4336 = vmatpush1.xpose.msra.mxu0 0.0
        %4337 = vmatprep.mubr.f32.mxu0 0.0
        %4338 = vmatmul.mubr.f32.gmra.mrb[0].mxu0 %v4265
        %v4339 = vpop.f32.mrb[0].mxu0
        %v4340 = vadd.f32 %v3974, %v4339
        %v4341 = vpop.f32.mrb[0].mxu0
        %4342 = vmatprep.mubr.f32.mxu0 0.0
        %4343 = vmatmul.mubr.f32.gmra.mrb[0].mxu0 %v4267
        %v4344 = vpop.f32.mrb[0].mxu0
        %v4345 = vadd.f32 %v3975, %v4344
        %v4346 = vpop.f32.mrb[0].mxu0
        %4347 = vdwg.mxu0
        %4350 = vrot.lane.b32.xlu0 %v3965, 112
        %v4351 = vpop.permute.xlu0 %4350
        %4352 = vrot.lane.b32.xlu0 %v3966, 112
        %v4353 = vpop.permute.xlu0 %4352
        %4354 = vrot.lane.b32.xlu0 %v3965, 80
        %v4355 = vpop.permute.xlu0 %4354
        %4356 = vrot.lane.b32.xlu0 %v3966, 80
        %v4357 = vpop.permute.xlu0 %4356
        %v4358 = vsel %vm613, %v4351, 0
        %v4360 = vsel %vm613, %v4353, 0
        %v4362 = vsel %vm613, %v4355, 0
        %v4364 = vsel %vm613, %v4357, 0
        %4366 = vmatprep.subr.mxu0 0.0
        %4367 = vmatpush1.xpose.msra.mxu0 %v4362
        %4368 = vmatprep.subr.mxu0 0.0
        %4369 = vmatpush1.xpose.msra.mxu0 %v4364
        %4370 = vmatprep.subr.mxu0 0.0
        %4371 = vmatpush1.xpose.msra.mxu0 0.0
        %4372 = vmatprep.subr.mxu0 0.0
        %4373 = vmatpush1.xpose.msra.mxu0 0.0
        %4374 = vmatprep.subr.mxu0 0.0
        %4375 = vmatpush1.xpose.msra.mxu0 0.0
        %4376 = vmatprep.subr.mxu0 0.0
        %4377 = vmatpush1.xpose.msra.mxu0 0.0
        %4378 = vmatprep.subr.mxu0 0.0
        %4379 = vmatpush1.xpose.msra.mxu0 0.0
        %4380 = vmatprep.subr.mxu0 0.0
        %4381 = vmatpush1.xpose.msra.mxu0 0.0
        %4382 = vmatprep.subr.mxu0 0.0
        %4383 = vmatpush1.xpose.msra.mxu0 0.0
        %4384 = vmatprep.subr.mxu0 0.0
        %4385 = vmatpush1.xpose.msra.mxu0 0.0
        %4386 = vmatprep.subr.mxu0 0.0
        %4387 = vmatpush1.xpose.msra.mxu0 0.0
        %4388 = vmatprep.subr.mxu0 0.0
        %4389 = vmatpush1.xpose.msra.mxu0 0.0
        %4390 = vmatprep.subr.mxu0 0.0
        %4391 = vmatpush1.xpose.msra.mxu0 0.0
        %4392 = vmatprep.subr.mxu0 0.0
        %4393 = vmatpush1.xpose.msra.mxu0 0.0
        %4394 = vmatprep.subr.mxu0 0.0
        %4395 = vmatpush1.xpose.msra.mxu0 0.0
        %4396 = vmatprep.subr.mxu0 0.0
        %4397 = vmatpush1.xpose.msra.mxu0 0.0
        %4398 = vmatprep.subr.mxu0 0.0
        %4399 = vmatpush1.xpose.msra.mxu0 0.0
        %4400 = vmatprep.subr.mxu0 0.0
        %4401 = vmatpush1.xpose.msra.mxu0 0.0
        %4402 = vmatprep.subr.mxu0 0.0
        %4403 = vmatpush1.xpose.msra.mxu0 0.0
        %4404 = vmatprep.subr.mxu0 0.0
        %4405 = vmatpush1.xpose.msra.mxu0 0.0
        %4406 = vmatprep.subr.mxu0 0.0
        %4407 = vmatpush1.xpose.msra.mxu0 0.0
        %4408 = vmatprep.subr.mxu0 0.0
        %4409 = vmatpush1.xpose.msra.mxu0 0.0
        %4410 = vmatprep.subr.mxu0 0.0
        %4411 = vmatpush1.xpose.msra.mxu0 0.0
        %4412 = vmatprep.subr.mxu0 0.0
        %4413 = vmatpush1.xpose.msra.mxu0 0.0
        %4414 = vmatprep.subr.mxu0 0.0
        %4415 = vmatpush1.xpose.msra.mxu0 0.0
        %4416 = vmatprep.subr.mxu0 0.0
        %4417 = vmatpush1.xpose.msra.mxu0 0.0
        %4418 = vmatprep.subr.mxu0 0.0
        %4419 = vmatpush1.xpose.msra.mxu0 0.0
        %4420 = vmatprep.subr.mxu0 0.0
        %4421 = vmatpush1.xpose.msra.mxu0 0.0
        %4422 = vmatprep.subr.mxu0 0.0
        %4423 = vmatpush1.xpose.msra.mxu0 0.0
        %4424 = vmatprep.subr.mxu0 0.0
        %4425 = vmatpush1.xpose.msra.mxu0 0.0
        %4426 = vmatprep.subr.mxu0 0.0
        %4427 = vmatpush1.xpose.msra.mxu0 0.0
        %4428 = vmatprep.subr.mxu0 0.0
        %4429 = vmatpush1.xpose.msra.mxu0 0.0
        %4430 = vmatprep.mubr.f32.mxu0 0.0
        %4431 = vmatmul.mubr.f32.gmra.mrb[0].mxu0 %v4358
        %v4432 = vpop.f32.mrb[0].mxu0
        %v4433 = vadd.f32 %v3974, %v4432
        %v4434 = vpop.f32.mrb[0].mxu0
        %4435 = vmatprep.mubr.f32.mxu0 0.0
        %4436 = vmatmul.mubr.f32.gmra.mrb[0].mxu0 %v4360
        %v4437 = vpop.f32.mrb[0].mxu0
        %v4438 = vadd.f32 %v3975, %v4437
        %v4439 = vpop.f32.mrb[0].mxu0
        %4440 = vdwg.mxu0
        %4443 = vrot.lane.b32.xlu0 %v3967, 112
        %v4444 = vpop.permute.xlu0 %4443
        %4445 = vrot.lane.b32.xlu0 %v3968, 112
        %v4446 = vpop.permute.xlu0 %4445
        %4447 = vrot.lane.b32.xlu0 %v3967, 80
        %v4448 = vpop.permute.xlu0 %4447
        %4449 = vrot.lane.b32.xlu0 %v3968, 80
        %v4450 = vpop.permute.xlu0 %4449
        %v4451 = vsel %vm613, %v4444, 0
        %v4453 = vsel %vm613, %v4446, 0
        %v4455 = vsel %vm613, %v4448, 0
        %v4457 = vsel %vm613, %v4450, 0
        %4459 = vmatprep.subr.mxu0 0.0
        %4460 = vmatpush1.xpose.msra.mxu0 %v4455
        %4461 = vmatprep.subr.mxu0 0.0
        %4462 = vmatpush1.xpose.msra.mxu0 %v4457
        %4463 = vmatprep.subr.mxu0 0.0
        %4464 = vmatpush1.xpose.msra.mxu0 0.0
        %4465 = vmatprep.subr.mxu0 0.0
        %4466 = vmatpush1.xpose.msra.mxu0 0.0
        %4467 = vmatprep.subr.mxu0 0.0
        %4468 = vmatpush1.xpose.msra.mxu0 0.0
        %4469 = vmatprep.subr.mxu0 0.0
        %4470 = vmatpush1.xpose.msra.mxu0 0.0
        %4471 = vmatprep.subr.mxu0 0.0
        %4472 = vmatpush1.xpose.msra.mxu0 0.0
        %4473 = vmatprep.subr.mxu0 0.0
        %4474 = vmatpush1.xpose.msra.mxu0 0.0
        %4475 = vmatprep.subr.mxu0 0.0
        %4476 = vmatpush1.xpose.msra.mxu0 0.0
        %4477 = vmatprep.subr.mxu0 0.0
        %4478 = vmatpush1.xpose.msra.mxu0 0.0
        %4479 = vmatprep.subr.mxu0 0.0
        %4480 = vmatpush1.xpose.msra.mxu0 0.0
        %4481 = vmatprep.subr.mxu0 0.0
        %4482 = vmatpush1.xpose.msra.mxu0 0.0
        %4483 = vmatprep.subr.mxu0 0.0
        %4484 = vmatpush1.xpose.msra.mxu0 0.0
        %4485 = vmatprep.subr.mxu0 0.0
        %4486 = vmatpush1.xpose.msra.mxu0 0.0
        %4487 = vmatprep.subr.mxu0 0.0
        %4488 = vmatpush1.xpose.msra.mxu0 0.0
        %4489 = vmatprep.subr.mxu0 0.0
        %4490 = vmatpush1.xpose.msra.mxu0 0.0
        %4491 = vmatprep.subr.mxu0 0.0
        %4492 = vmatpush1.xpose.msra.mxu0 0.0
        %4493 = vmatprep.subr.mxu0 0.0
        %4494 = vmatpush1.xpose.msra.mxu0 0.0
        %4495 = vmatprep.subr.mxu0 0.0
        %4496 = vmatpush1.xpose.msra.mxu0 0.0
        %4497 = vmatprep.subr.mxu0 0.0
        %4498 = vmatpush1.xpose.msra.mxu0 0.0
        %4499 = vmatprep.subr.mxu0 0.0
        %4500 = vmatpush1.xpose.msra.mxu0 0.0
        %4501 = vmatprep.subr.mxu0 0.0
        %4502 = vmatpush1.xpose.msra.mxu0 0.0
        %4503 = vmatprep.subr.mxu0 0.0
        %4504 = vmatpush1.xpose.msra.mxu0 0.0
        %4505 = vmatprep.subr.mxu0 0.0
        %4506 = vmatpush1.xpose.msra.mxu0 0.0
        %4507 = vmatprep.subr.mxu0 0.0
        %4508 = vmatpush1.xpose.msra.mxu0 0.0
        %4509 = vmatprep.subr.mxu0 0.0
        %4510 = vmatpush1.xpose.msra.mxu0 0.0
        %4511 = vmatprep.subr.mxu0 0.0
        %4512 = vmatpush1.xpose.msra.mxu0 0.0
        %4513 = vmatprep.subr.mxu0 0.0
        %4514 = vmatpush1.xpose.msra.mxu0 0.0
        %4515 = vmatprep.subr.mxu0 0.0
        %4516 = vmatpush1.xpose.msra.mxu0 0.0
        %4517 = vmatprep.subr.mxu0 0.0
        %4518 = vmatpush1.xpose.msra.mxu0 0.0
        %4519 = vmatprep.subr.mxu0 0.0
        %4520 = vmatpush1.xpose.msra.mxu0 0.0
        %4521 = vmatprep.subr.mxu0 0.0
        %4522 = vmatpush1.xpose.msra.mxu0 0.0
        %4523 = vmatprep.mubr.f32.mxu0 0.0
        %4524 = vmatmul.mubr.f32.gmra.mrb[0].mxu0 %v4451
        %v4525 = vpop.f32.mrb[0].mxu0
        %v4526 = vadd.f32 %v3974, %v4525
        %v4527 = vpop.f32.mrb[0].mxu0
        %4528 = vmatprep.mubr.f32.mxu0 0.0
        %4529 = vmatmul.mubr.f32.gmra.mrb[0].mxu0 %v4453
        %v4530 = vpop.f32.mrb[0].mxu0
        %v4531 = vadd.f32 %v3975, %v4530
        %v4532 = vpop.f32.mrb[0].mxu0
        %4533 = vdwg.mxu0
        %4536 = vrot.lane.b32.xlu0 %v3969, 112
        %v4537 = vpop.permute.xlu0 %4536
        %4538 = vrot.lane.b32.xlu0 %v3970, 112
        %v4539 = vpop.permute.xlu0 %4538
        %4540 = vrot.lane.b32.xlu0 %v3969, 80
        %v4541 = vpop.permute.xlu0 %4540
        %4542 = vrot.lane.b32.xlu0 %v3970, 80
        %v4543 = vpop.permute.xlu0 %4542
        %v4544 = vsel %vm613, %v4537, 0
        %v4546 = vsel %vm613, %v4539, 0
        %v4548 = vsel %vm613, %v4541, 0
        %v4550 = vsel %vm613, %v4543, 0
        %4552 = vmatprep.subr.mxu0 0.0
        %4553 = vmatpush1.xpose.msra.mxu0 %v4548
        %4554 = vmatprep.subr.mxu0 0.0
        %4555 = vmatpush1.xpose.msra.mxu0 %v4550
        %4556 = vmatprep.subr.mxu0 0.0
        %4557 = vmatpush1.xpose.msra.mxu0 0.0
        %4558 = vmatprep.subr.mxu0 0.0
        %4559 = vmatpush1.xpose.msra.mxu0 0.0
        %4560 = vmatprep.subr.mxu0 0.0
        %4561 = vmatpush1.xpose.msra.mxu0 0.0
        %4562 = vmatprep.subr.mxu0 0.0
        %4563 = vmatpush1.xpose.msra.mxu0 0.0
        %4564 = vmatprep.subr.mxu0 0.0
        %4565 = vmatpush1.xpose.msra.mxu0 0.0
        %4566 = vmatprep.subr.mxu0 0.0
        %4567 = vmatpush1.xpose.msra.mxu0 0.0
        %4568 = vmatprep.subr.mxu0 0.0
        %4569 = vmatpush1.xpose.msra.mxu0 0.0
        %4570 = vmatprep.subr.mxu0 0.0
        %4571 = vmatpush1.xpose.msra.mxu0 0.0
        %4572 = vmatprep.subr.mxu0 0.0
        %4573 = vmatpush1.xpose.msra.mxu0 0.0
        %4574 = vmatprep.subr.mxu0 0.0
        %4575 = vmatpush1.xpose.msra.mxu0 0.0
        %4576 = vmatprep.subr.mxu0 0.0
        %4577 = vmatpush1.xpose.msra.mxu0 0.0
        %4578 = vmatprep.subr.mxu0 0.0
        %4579 = vmatpush1.xpose.msra.mxu0 0.0
        %4580 = vmatprep.subr.mxu0 0.0
        %4581 = vmatpush1.xpose.msra.mxu0 0.0
        %4582 = vmatprep.subr.mxu0 0.0
        %4583 = vmatpush1.xpose.msra.mxu0 0.0
        %4584 = vmatprep.subr.mxu0 0.0
        %4585 = vmatpush1.xpose.msra.mxu0 0.0
        %4586 = vmatprep.subr.mxu0 0.0
        %4587 = vmatpush1.xpose.msra.mxu0 0.0
        %4588 = vmatprep.subr.mxu0 0.0
        %4589 = vmatpush1.xpose.msra.mxu0 0.0
        %4590 = vmatprep.subr.mxu0 0.0
        %4591 = vmatpush1.xpose.msra.mxu0 0.0
        %4592 = vmatprep.subr.mxu0 0.0
        %4593 = vmatpush1.xpose.msra.mxu0 0.0
        %4594 = vmatprep.subr.mxu0 0.0
        %4595 = vmatpush1.xpose.msra.mxu0 0.0
        %4596 = vmatprep.subr.mxu0 0.0
        %4597 = vmatpush1.xpose.msra.mxu0 0.0
        %4598 = vmatprep.subr.mxu0 0.0
        %4599 = vmatpush1.xpose.msra.mxu0 0.0
        %4600 = vmatprep.subr.mxu0 0.0
        %4601 = vmatpush1.xpose.msra.mxu0 0.0
        %4602 = vmatprep.subr.mxu0 0.0
        %4603 = vmatpush1.xpose.msra.mxu0 0.0
        %4604 = vmatprep.subr.mxu0 0.0
        %4605 = vmatpush1.xpose.msra.mxu0 0.0
        %4606 = vmatprep.subr.mxu0 0.0
        %4607 = vmatpush1.xpose.msra.mxu0 0.0
        %4608 = vmatprep.subr.mxu0 0.0
        %4609 = vmatpush1.xpose.msra.mxu0 0.0
        %4610 = vmatprep.subr.mxu0 0.0
        %4611 = vmatpush1.xpose.msra.mxu0 0.0
        %4612 = vmatprep.subr.mxu0 0.0
        %4613 = vmatpush1.xpose.msra.mxu0 0.0
        %4614 = vmatprep.subr.mxu0 0.0
        %4615 = vmatpush1.xpose.msra.mxu0 0.0
        %4616 = vmatprep.mubr.f32.mxu0 0.0
        %4617 = vmatmul.mubr.f32.gmra.mrb[0].mxu0 %v4544
        %v4618 = vpop.f32.mrb[0].mxu0
        %v4619 = vadd.f32 %v3974, %v4618
        %v4620 = vpop.f32.mrb[0].mxu0
        %4621 = vmatprep.mubr.f32.mxu0 0.0
        %4622 = vmatmul.mubr.f32.gmra.mrb[0].mxu0 %v4546
        %v4623 = vpop.f32.mrb[0].mxu0
        %v4624 = vadd.f32 %v3975, %v4623
        %v4625 = vpop.f32.mrb[0].mxu0
        %4626 = vdwg.mxu0
        %4629 = vrot.lane.b32.xlu0 %v3971, 112
        %v4630 = vpop.permute.xlu0 %4629
        %4631 = vrot.lane.b32.xlu0 %v3972, 112
        %v4632 = vpop.permute.xlu0 %4631
        %4633 = vrot.lane.b32.xlu0 %v3971, 80
        %v4634 = vpop.permute.xlu0 %4633
        %4635 = vrot.lane.b32.xlu0 %v3972, 80
        %v4636 = vpop.permute.xlu0 %4635
        %v4637 = vsel %vm613, %v4630, 0
        %v4639 = vsel %vm613, %v4632, 0
        %v4641 = vsel %vm613, %v4634, 0
        %v4643 = vsel %vm613, %v4636, 0
        %4645 = vmatprep.subr.mxu0 0.0
        %4646 = vmatpush1.xpose.msra.mxu0 %v4641
        %4647 = vmatprep.subr.mxu0 0.0
        %4648 = vmatpush1.xpose.msra.mxu0 %v4643
        %4649 = vmatprep.subr.mxu0 0.0
        %4650 = vmatpush1.xpose.msra.mxu0 0.0
        %4651 = vmatprep.subr.mxu0 0.0
        %4652 = vmatpush1.xpose.msra.mxu0 0.0
        %4653 = vmatprep.subr.mxu0 0.0
        %4654 = vmatpush1.xpose.msra.mxu0 0.0
        %4655 = vmatprep.subr.mxu0 0.0
        %4656 = vmatpush1.xpose.msra.mxu0 0.0
        %4657 = vmatprep.subr.mxu0 0.0
        %4658 = vmatpush1.xpose.msra.mxu0 0.0
        %4659 = vmatprep.subr.mxu0 0.0
        %4660 = vmatpush1.xpose.msra.mxu0 0.0
        %4661 = vmatprep.subr.mxu0 0.0
        %4662 = vmatpush1.xpose.msra.mxu0 0.0
        %4663 = vmatprep.subr.mxu0 0.0
        %4664 = vmatpush1.xpose.msra.mxu0 0.0
        %4665 = vmatprep.subr.mxu0 0.0
        %4666 = vmatpush1.xpose.msra.mxu0 0.0
        %4667 = vmatprep.subr.mxu0 0.0
        %4668 = vmatpush1.xpose.msra.mxu0 0.0
        %4669 = vmatprep.subr.mxu0 0.0
        %4670 = vmatpush1.xpose.msra.mxu0 0.0
        %4671 = vmatprep.subr.mxu0 0.0
        %4672 = vmatpush1.xpose.msra.mxu0 0.0
        %4673 = vmatprep.subr.mxu0 0.0
        %4674 = vmatpush1.xpose.msra.mxu0 0.0
        %4675 = vmatprep.subr.mxu0 0.0
        %4676 = vmatpush1.xpose.msra.mxu0 0.0
        %4677 = vmatprep.subr.mxu0 0.0
        %4678 = vmatpush1.xpose.msra.mxu0 0.0
        %4679 = vmatprep.subr.mxu0 0.0
        %4680 = vmatpush1.xpose.msra.mxu0 0.0
        %4681 = vmatprep.subr.mxu0 0.0
        %4682 = vmatpush1.xpose.msra.mxu0 0.0
        %4683 = vmatprep.subr.mxu0 0.0
        %4684 = vmatpush1.xpose.msra.mxu0 0.0
        %4685 = vmatprep.subr.mxu0 0.0
        %4686 = vmatpush1.xpose.msra.mxu0 0.0
        %4687 = vmatprep.subr.mxu0 0.0
        %4688 = vmatpush1.xpose.msra.mxu0 0.0
        %4689 = vmatprep.subr.mxu0 0.0
        %4690 = vmatpush1.xpose.msra.mxu0 0.0
        %4691 = vmatprep.subr.mxu0 0.0
        %4692 = vmatpush1.xpose.msra.mxu0 0.0
        %4693 = vmatprep.subr.mxu0 0.0
        %4694 = vmatpush1.xpose.msra.mxu0 0.0
        %4695 = vmatprep.subr.mxu0 0.0
        %4696 = vmatpush1.xpose.msra.mxu0 0.0
        %4697 = vmatprep.subr.mxu0 0.0
        %4698 = vmatpush1.xpose.msra.mxu0 0.0
        %4699 = vmatprep.subr.mxu0 0.0
        %4700 = vmatpush1.xpose.msra.mxu0 0.0
        %4701 = vmatprep.subr.mxu0 0.0
        %4702 = vmatpush1.xpose.msra.mxu0 0.0
        %4703 = vmatprep.subr.mxu0 0.0
        %4704 = vmatpush1.xpose.msra.mxu0 0.0
        %4705 = vmatprep.subr.mxu0 0.0
        %4706 = vmatpush1.xpose.msra.mxu0 0.0
        %4707 = vmatprep.subr.mxu0 0.0
        %4708 = vmatpush1.xpose.msra.mxu0 0.0
        %4709 = vmatprep.mubr.f32.mxu0 0.0
        %4710 = vmatmul.mubr.f32.gmra.mrb[0].mxu0 %v4637
        %v4711 = vpop.f32.mrb[0].mxu0
        %v4712 = vadd.f32 %v3974, %v4711
        %v4713 = vpop.f32.mrb[0].mxu0
        %4714 = vmatprep.mubr.f32.mxu0 0.0
        %4715 = vmatmul.mubr.f32.gmra.mrb[0].mxu0 %v4639
        %v4716 = vpop.f32.mrb[0].mxu0
        %v4717 = vadd.f32 %v3975, %v4716
        %v4718 = vpop.f32.mrb[0].mxu0
        %4719 = vdwg.mxu0
        %v4720 = vadd.f32 %v4061, %v573
        %v4721 = vadd.f32 %v4066, %v574
        %v4722 = vadd.f32 %v4154, %v575
        %v4723 = vadd.f32 %v4159, %v576
        %v4724 = vadd.f32 %v4247, %v577
        %v4725 = vadd.f32 %v4252, %v578
        %v4726 = vadd.f32 %v4340, %v579
        %v4727 = vadd.f32 %v4345, %v580
        %v4728 = vadd.f32 %v4433, %v581
        %v4729 = vadd.f32 %v4438, %v582
        %v4730 = vadd.f32 %v4526, %v583
        %v4731 = vadd.f32 %v4531, %v584
        %v4732 = vadd.f32 %v4619, %v585
        %v4733 = vadd.f32 %v4624, %v586
        %v4734 = vadd.f32 %v4712, %v587
        %v4735 = vadd.f32 %v4717, %v588
        %v4736 = vsel %vm1336, %v4720, -inf
        %4737 = vmax.xlane.f32.xlu0 %v4736
        %v4738 = vpop.xlane.xlu0 %4737
        %v4739 = vsel %vm1336, %v4721, -inf
        %4740 = vmax.xlane.f32.xlu0 %v4739
        %v4741 = vpop.xlane.xlu0 %4740
        %v4742 = vsel %vm1336, %v4722, -inf
        %4743 = vmax.xlane.f32.xlu0 %v4742
        %v4744 = vpop.xlane.xlu0 %4743
        %v4745 = vsel %vm1336, %v4723, -inf
        %4746 = vmax.xlane.f32.xlu0 %v4745
        %v4747 = vpop.xlane.xlu0 %4746
        %v4748 = vsel %vm1336, %v4724, -inf
        %4749 = vmax.xlane.f32.xlu0 %v4748
        %v4750 = vpop.xlane.xlu0 %4749
        %v4751 = vsel %vm1336, %v4725, -inf
        %4752 = vmax.xlane.f32.xlu0 %v4751
        %v4753 = vpop.xlane.xlu0 %4752
        %v4754 = vsel %vm1336, %v4726, -inf
        %4755 = vmax.xlane.f32.xlu0 %v4754
        %v4756 = vpop.xlane.xlu0 %4755
        %v4757 = vsel %vm1336, %v4727, -inf
        %4758 = vmax.xlane.f32.xlu0 %v4757
        %v4759 = vpop.xlane.xlu0 %4758
        %v4760 = vsel %vm1336, %v4728, -inf
        %4761 = vmax.xlane.f32.xlu0 %v4760
        %v4762 = vpop.xlane.xlu0 %4761
        %v4763 = vsel %vm1336, %v4729, -inf
        %4764 = vmax.xlane.f32.xlu0 %v4763
        %v4765 = vpop.xlane.xlu0 %4764
        %v4766 = vsel %vm1336, %v4730, -inf
        %4767 = vmax.xlane.f32.xlu0 %v4766
        %v4768 = vpop.xlane.xlu0 %4767
        %v4769 = vsel %vm1336, %v4731, -inf
        %4770 = vmax.xlane.f32.xlu0 %v4769
        %v4771 = vpop.xlane.xlu0 %4770
        %v4772 = vsel %vm1336, %v4732, -inf
        %4773 = vmax.xlane.f32.xlu0 %v4772
        %v4774 = vpop.xlane.xlu0 %4773
        %v4775 = vsel %vm1336, %v4733, -inf
        %4776 = vmax.xlane.f32.xlu0 %v4775
        %v4777 = vpop.xlane.xlu0 %4776
        %v4778 = vsel %vm1336, %v4734, -inf
        %4779 = vmax.xlane.f32.xlu0 %v4778
        %v4780 = vpop.xlane.xlu0 %4779
        %v4781 = vsel %vm1336, %v4735, -inf
        %4782 = vmax.xlane.f32.xlu0 %v4781
        %v4783 = vpop.xlane.xlu0 %4782
        %v4784 = vsub.f32 %v4720, %v4738
        %v4785 = vsub.f32 %v4721, %v4741
        %v4786 = vsub.f32 %v4722, %v4744
        %v4787 = vsub.f32 %v4723, %v4747
        %v4788 = vsub.f32 %v4724, %v4750
        %v4789 = vsub.f32 %v4725, %v4753
        %v4790 = vsub.f32 %v4726, %v4756
        %v4791 = vsub.f32 %v4727, %v4759
        %v4792 = vsub.f32 %v4728, %v4762
        %v4793 = vsub.f32 %v4729, %v4765
        %v4794 = vsub.f32 %v4730, %v4768
        %v4795 = vsub.f32 %v4731, %v4771
        %v4796 = vsub.f32 %v4732, %v4774
        %v4797 = vsub.f32 %v4733, %v4777
        %v4798 = vsub.f32 %v4734, %v4780
        %v4799 = vsub.f32 %v4735, %v4783
        %v4800 = vmul.f32 %v4784, 1.442695
        %v4801 = vpow.pop %v4800
        %v4802 = vmul.f32 %v4785, 1.442695
        %v4803 = vpow.pop %v4802
        %v4804 = vmul.f32 %v4786, 1.442695
        %v4805 = vpow.pop %v4804
        %v4806 = vmul.f32 %v4787, 1.442695
        %v4807 = vpow.pop %v4806
        %v4808 = vmul.f32 %v4788, 1.442695
        %v4809 = vpow.pop %v4808
        %v4810 = vmul.f32 %v4789, 1.442695
        %v4811 = vpow.pop %v4810
        %v4812 = vmul.f32 %v4790, 1.442695
        %v4813 = vpow.pop %v4812
        %v4814 = vmul.f32 %v4791, 1.442695
        %v4815 = vpow.pop %v4814
        %v4816 = vmul.f32 %v4792, 1.442695
        %v4817 = vpow.pop %v4816
        %v4818 = vmul.f32 %v4793, 1.442695
        %v4819 = vpow.pop %v4818
        %v4820 = vmul.f32 %v4794, 1.442695
        %v4821 = vpow.pop %v4820
        %v4822 = vmul.f32 %v4795, 1.442695
        %v4823 = vpow.pop %v4822
        %v4824 = vmul.f32 %v4796, 1.442695
        %v4825 = vpow.pop %v4824
        %v4826 = vmul.f32 %v4797, 1.442695
        %v4827 = vpow.pop %v4826
        %v4828 = vmul.f32 %v4798, 1.442695
        %v4829 = vpow.pop %v4828
        %v4830 = vmul.f32 %v4799, 1.442695
        %v4831 = vpow.pop %v4830
        %v4832 = vsel %vm1336, %v4801, 0.0
        %4833 = vadd.xlane.f32.xlu0 %v4832
        %v4834 = vpop.xlane.xlu0 %4833
        %v4835 = vsel %vm1336, %v4803, 0.0
        %4836 = vadd.xlane.f32.xlu0 %v4835
        %v4837 = vpop.xlane.xlu0 %4836
        %v4838 = vsel %vm1336, %v4805, 0.0
        %4839 = vadd.xlane.f32.xlu0 %v4838
        %v4840 = vpop.xlane.xlu0 %4839
        %v4841 = vsel %vm1336, %v4807, 0.0
        %4842 = vadd.xlane.f32.xlu0 %v4841
        %v4843 = vpop.xlane.xlu0 %4842
        %v4844 = vsel %vm1336, %v4809, 0.0
        %4845 = vadd.xlane.f32.xlu0 %v4844
        %v4846 = vpop.xlane.xlu0 %4845
        %v4847 = vsel %vm1336, %v4811, 0.0
        %4848 = vadd.xlane.f32.xlu0 %v4847
        %v4849 = vpop.xlane.xlu0 %4848
        %v4850 = vsel %vm1336, %v4813, 0.0
        %4851 = vadd.xlane.f32.xlu0 %v4850
        %v4852 = vpop.xlane.xlu0 %4851
        %v4853 = vsel %vm1336, %v4815, 0.0
        %4854 = vadd.xlane.f32.xlu0 %v4853
        %v4855 = vpop.xlane.xlu0 %4854
        %v4856 = vsel %vm1336, %v4817, 0.0
        %4857 = vadd.xlane.f32.xlu0 %v4856
        %v4858 = vpop.xlane.xlu0 %4857
        %v4859 = vsel %vm1336, %v4819, 0.0
        %4860 = vadd.xlane.f32.xlu0 %v4859
        %v4861 = vpop.xlane.xlu0 %4860
        %v4862 = vsel %vm1336, %v4821, 0.0
        %4863 = vadd.xlane.f32.xlu0 %v4862
        %v4864 = vpop.xlane.xlu0 %4863
        %v4865 = vsel %vm1336, %v4823, 0.0
        %4866 = vadd.xlane.f32.xlu0 %v4865
        %v4867 = vpop.xlane.xlu0 %4866
        %v4868 = vsel %vm1336, %v4825, 0.0
        %4869 = vadd.xlane.f32.xlu0 %v4868
        %v4870 = vpop.xlane.xlu0 %4869
        %v4871 = vsel %vm1336, %v4827, 0.0
        %4872 = vadd.xlane.f32.xlu0 %v4871
        %v4873 = vpop.xlane.xlu0 %4872
        %v4874 = vsel %vm1336, %v4829, 0.0
        %4875 = vadd.xlane.f32.xlu0 %v4874
        %v4876 = vpop.xlane.xlu0 %4875
        %v4877 = vsel %vm1336, %v4831, 0.0
        %4878 = vadd.xlane.f32.xlu0 %v4877
        %v4879 = vpop.xlane.xlu0 %4878
        %v4880 = vrcp.pop %v4834
        %v4881 = vrcp.pop %v4837
        %v4882 = vrcp.pop %v4840
        %v4883 = vrcp.pop %v4843
        %v4884 = vrcp.pop %v4846
        %v4885 = vrcp.pop %v4849
        %v4886 = vrcp.pop %v4852
        %v4887 = vrcp.pop %v4855
        %v4888 = vrcp.pop %v4858
        %v4889 = vrcp.pop %v4861
        %v4890 = vrcp.pop %v4864
        %v4891 = vrcp.pop %v4867
        %v4892 = vrcp.pop %v4870
        %v4893 = vrcp.pop %v4873
        %v4894 = vrcp.pop %v4876
        %v4895 = vrcp.pop %v4879
        %v4896 = vmul.f32 %v4801, %v4880
        %v4897 = vmul.f32 %v4803, %v4881
        %v4898 = vmul.f32 %v4805, %v4882
        %v4899 = vmul.f32 %v4807, %v4883
        %v4900 = vmul.f32 %v4809, %v4884
        %v4901 = vmul.f32 %v4811, %v4885
        %v4902 = vmul.f32 %v4813, %v4886
        %v4903 = vmul.f32 %v4815, %v4887
        %v4904 = vmul.f32 %v4817, %v4888
        %v4905 = vmul.f32 %v4819, %v4889
        %v4906 = vmul.f32 %v4821, %v4890
        %v4907 = vmul.f32 %v4823, %v4891
        %v4908 = vmul.f32 %v4825, %v4892
        %v4909 = vmul.f32 %v4827, %v4893
        %v4910 = vmul.f32 %v4829, %v4894
        %v4911 = vmul.f32 %v4831, %v4895
        %4912 = vrot.lane.b32.xlu0 %v3957, 48
        %v4913 = vpop.permute.xlu0 %4912
        %4914 = vrot.lane.b32.xlu0 %v3958, 48
        %v4915 = vpop.permute.xlu0 %4914
        %v4919 = vsel %vm1336, %v4896, 0
        %v4922 = vsel %vm1336, %v4897, 0
        %4924 = vmatprep.subr.mxu0 0.0
        %4925 = vmatpush1.msra.mxu0 %v4913
        %4926 = vmatprep.subr.mxu0 0.0
        %4927 = vmatpush1.msra.mxu0 %v4915
        %4928 = vmatprep.subr.mxu0 0.0
        %4929 = vmatpush1.msra.mxu0 0.0
        %4930 = vmatprep.subr.mxu0 0.0
        %4931 = vmatpush1.msra.mxu0 0.0
        %4932 = vmatprep.subr.mxu0 0.0
        %4933 = vmatpush1.msra.mxu0 0.0
        %4934 = vmatprep.subr.mxu0 0.0
        %4935 = vmatpush1.msra.mxu0 0.0
        %4936 = vmatprep.subr.mxu0 0.0
        %4937 = vmatpush1.msra.mxu0 0.0
        %4938 = vmatprep.subr.mxu0 0.0
        %4939 = vmatpush1.msra.mxu0 0.0
        %4940 = vmatprep.subr.mxu0 0.0
        %4941 = vmatpush1.msra.mxu0 0.0
        %4942 = vmatprep.subr.mxu0 0.0
        %4943 = vmatpush1.msra.mxu0 0.0
        %4944 = vmatprep.subr.mxu0 0.0
        %4945 = vmatpush1.msra.mxu0 0.0
        %4946 = vmatprep.subr.mxu0 0.0
        %4947 = vmatpush1.msra.mxu0 0.0
        %4948 = vmatprep.subr.mxu0 0.0
        %4949 = vmatpush1.msra.mxu0 0.0
        %4950 = vmatprep.subr.mxu0 0.0
        %4951 = vmatpush1.msra.mxu0 0.0
        %4952 = vmatprep.subr.mxu0 0.0
        %4953 = vmatpush1.msra.mxu0 0.0
        %4954 = vmatprep.subr.mxu0 0.0
        %4955 = vmatpush1.msra.mxu0 0.0
        %4956 = vmatprep.subr.mxu0 0.0
        %4957 = vmatpush1.msra.mxu0 0.0
        %4958 = vmatprep.subr.mxu0 0.0
        %4959 = vmatpush1.msra.mxu0 0.0
        %4960 = vmatprep.subr.mxu0 0.0
        %4961 = vmatpush1.msra.mxu0 0.0
        %4962 = vmatprep.subr.mxu0 0.0
        %4963 = vmatpush1.msra.mxu0 0.0
        %4964 = vmatprep.subr.mxu0 0.0
        %4965 = vmatpush1.msra.mxu0 0.0
        %4966 = vmatprep.subr.mxu0 0.0
        %4967 = vmatpush1.msra.mxu0 0.0
        %4968 = vmatprep.subr.mxu0 0.0
        %4969 = vmatpush1.msra.mxu0 0.0
        %4970 = vmatprep.subr.mxu0 0.0
        %4971 = vmatpush1.msra.mxu0 0.0
        %4972 = vmatprep.subr.mxu0 0.0
        %4973 = vmatpush1.msra.mxu0 0.0
        %4974 = vmatprep.subr.mxu0 0.0
        %4975 = vmatpush1.msra.mxu0 0.0
        %4976 = vmatprep.subr.mxu0 0.0
        %4977 = vmatpush1.msra.mxu0 0.0
        %4978 = vmatprep.subr.mxu0 0.0
        %4979 = vmatpush1.msra.mxu0 0.0
        %4980 = vmatprep.subr.mxu0 0.0
        %4981 = vmatpush1.msra.mxu0 0.0
        %4982 = vmatprep.subr.mxu0 0.0
        %4983 = vmatpush1.msra.mxu0 0.0
        %4984 = vmatprep.subr.mxu0 0.0
        %4985 = vmatpush1.msra.mxu0 0.0
        %4986 = vmatprep.subr.mxu0 0.0
        %4987 = vmatpush1.msra.mxu0 0.0
        %4988 = vmatprep.mubr.f32.mxu0 0.0
        %4989 = vmatmul.mubr.f32.gmra.mrb[0].mxu0 %v4919
        %v4990 = vpop.f32.mrb[0].mxu0
        %v4991 = vadd.f32 0.0, %v4990
        %v4992 = vpop.f32.mrb[0].mxu0
        %4993 = vmatprep.mubr.f32.mxu0 0.0
        %4994 = vmatmul.mubr.f32.gmra.mrb[0].mxu0 %v4922
        %v4995 = vpop.f32.mrb[0].mxu0
        %v4996 = vadd.f32 0.0, %v4995
        %v4997 = vpop.f32.mrb[0].mxu0
        %4998 = vdwg.mxu0
        %4999 = vrot.lane.b32.xlu0 %v3959, 48
        %v5000 = vpop.permute.xlu0 %4999
        %5001 = vrot.lane.b32.xlu0 %v3960, 48
        %v5002 = vpop.permute.xlu0 %5001
        %v5006 = vsel %vm1336, %v4898, 0
        %v5009 = vsel %vm1336, %v4899, 0
        %5011 = vmatprep.subr.mxu0 0.0
        %5012 = vmatpush1.msra.mxu0 %v5000
        %5013 = vmatprep.subr.mxu0 0.0
        %5014 = vmatpush1.msra.mxu0 %v5002
        %5015 = vmatprep.subr.mxu0 0.0
        %5016 = vmatpush1.msra.mxu0 0.0
        %5017 = vmatprep.subr.mxu0 0.0
        %5018 = vmatpush1.msra.mxu0 0.0
        %5019 = vmatprep.subr.mxu0 0.0
        %5020 = vmatpush1.msra.mxu0 0.0
        %5021 = vmatprep.subr.mxu0 0.0
        %5022 = vmatpush1.msra.mxu0 0.0
        %5023 = vmatprep.subr.mxu0 0.0
        %5024 = vmatpush1.msra.mxu0 0.0
        %5025 = vmatprep.subr.mxu0 0.0
        %5026 = vmatpush1.msra.mxu0 0.0
        %5027 = vmatprep.subr.mxu0 0.0
        %5028 = vmatpush1.msra.mxu0 0.0
        %5029 = vmatprep.subr.mxu0 0.0
        %5030 = vmatpush1.msra.mxu0 0.0
        %5031 = vmatprep.subr.mxu0 0.0
        %5032 = vmatpush1.msra.mxu0 0.0
        %5033 = vmatprep.subr.mxu0 0.0
        %5034 = vmatpush1.msra.mxu0 0.0
        %5035 = vmatprep.subr.mxu0 0.0
        %5036 = vmatpush1.msra.mxu0 0.0
        %5037 = vmatprep.subr.mxu0 0.0
        %5038 = vmatpush1.msra.mxu0 0.0
        %5039 = vmatprep.subr.mxu0 0.0
        %5040 = vmatpush1.msra.mxu0 0.0
        %5041 = vmatprep.subr.mxu0 0.0
        %5042 = vmatpush1.msra.mxu0 0.0
        %5043 = vmatprep.subr.mxu0 0.0
        %5044 = vmatpush1.msra.mxu0 0.0
        %5045 = vmatprep.subr.mxu0 0.0
        %5046 = vmatpush1.msra.mxu0 0.0
        %5047 = vmatprep.subr.mxu0 0.0
        %5048 = vmatpush1.msra.mxu0 0.0
        %5049 = vmatprep.subr.mxu0 0.0
        %5050 = vmatpush1.msra.mxu0 0.0
        %5051 = vmatprep.subr.mxu0 0.0
        %5052 = vmatpush1.msra.mxu0 0.0
        %5053 = vmatprep.subr.mxu0 0.0
        %5054 = vmatpush1.msra.mxu0 0.0
        %5055 = vmatprep.subr.mxu0 0.0
        %5056 = vmatpush1.msra.mxu0 0.0
        %5057 = vmatprep.subr.mxu0 0.0
        %5058 = vmatpush1.msra.mxu0 0.0
        %5059 = vmatprep.subr.mxu0 0.0
        %5060 = vmatpush1.msra.mxu0 0.0
        %5061 = vmatprep.subr.mxu0 0.0
        %5062 = vmatpush1.msra.mxu0 0.0
        %5063 = vmatprep.subr.mxu0 0.0
        %5064 = vmatpush1.msra.mxu0 0.0
        %5065 = vmatprep.subr.mxu0 0.0
        %5066 = vmatpush1.msra.mxu0 0.0
        %5067 = vmatprep.subr.mxu0 0.0
        %5068 = vmatpush1.msra.mxu0 0.0
        %5069 = vmatprep.subr.mxu0 0.0
        %5070 = vmatpush1.msra.mxu0 0.0
        %5071 = vmatprep.subr.mxu0 0.0
        %5072 = vmatpush1.msra.mxu0 0.0
        %5073 = vmatprep.subr.mxu0 0.0
        %5074 = vmatpush1.msra.mxu0 0.0
        %5075 = vmatprep.mubr.f32.mxu0 0.0
        %5076 = vmatmul.mubr.f32.gmra.mrb[0].mxu0 %v5006
        %v5077 = vpop.f32.mrb[0].mxu0
        %v5078 = vadd.f32 0.0, %v5077
        %v5079 = vpop.f32.mrb[0].mxu0
        %5080 = vmatprep.mubr.f32.mxu0 0.0
        %5081 = vmatmul.mubr.f32.gmra.mrb[0].mxu0 %v5009
        %v5082 = vpop.f32.mrb[0].mxu0
        %v5083 = vadd.f32 0.0, %v5082
        %v5084 = vpop.f32.mrb[0].mxu0
        %5085 = vdwg.mxu0
        %5086 = vrot.lane.b32.xlu0 %v3961, 48
        %v5087 = vpop.permute.xlu0 %5086
        %5088 = vrot.lane.b32.xlu0 %v3962, 48
        %v5089 = vpop.permute.xlu0 %5088
        %v5093 = vsel %vm1336, %v4900, 0
        %v5096 = vsel %vm1336, %v4901, 0
        %5098 = vmatprep.subr.mxu0 0.0
        %5099 = vmatpush1.msra.mxu0 %v5087
        %5100 = vmatprep.subr.mxu0 0.0
        %5101 = vmatpush1.msra.mxu0 %v5089
        %5102 = vmatprep.subr.mxu0 0.0
        %5103 = vmatpush1.msra.mxu0 0.0
        %5104 = vmatprep.subr.mxu0 0.0
        %5105 = vmatpush1.msra.mxu0 0.0
        %5106 = vmatprep.subr.mxu0 0.0
        %5107 = vmatpush1.msra.mxu0 0.0
        %5108 = vmatprep.subr.mxu0 0.0
        %5109 = vmatpush1.msra.mxu0 0.0
        %5110 = vmatprep.subr.mxu0 0.0
        %5111 = vmatpush1.msra.mxu0 0.0
        %5112 = vmatprep.subr.mxu0 0.0
        %5113 = vmatpush1.msra.mxu0 0.0
        %5114 = vmatprep.subr.mxu0 0.0
        %5115 = vmatpush1.msra.mxu0 0.0
        %5116 = vmatprep.subr.mxu0 0.0
        %5117 = vmatpush1.msra.mxu0 0.0
        %5118 = vmatprep.subr.mxu0 0.0
        %5119 = vmatpush1.msra.mxu0 0.0
        %5120 = vmatprep.subr.mxu0 0.0
        %5121 = vmatpush1.msra.mxu0 0.0
        %5122 = vmatprep.subr.mxu0 0.0
        %5123 = vmatpush1.msra.mxu0 0.0
        %5124 = vmatprep.subr.mxu0 0.0
        %5125 = vmatpush1.msra.mxu0 0.0
        %5126 = vmatprep.subr.mxu0 0.0
        %5127 = vmatpush1.msra.mxu0 0.0
        %5128 = vmatprep.subr.mxu0 0.0
        %5129 = vmatpush1.msra.mxu0 0.0
        %5130 = vmatprep.subr.mxu0 0.0
        %5131 = vmatpush1.msra.mxu0 0.0
        %5132 = vmatprep.subr.mxu0 0.0
        %5133 = vmatpush1.msra.mxu0 0.0
        %5134 = vmatprep.subr.mxu0 0.0
        %5135 = vmatpush1.msra.mxu0 0.0
        %5136 = vmatprep.subr.mxu0 0.0
        %5137 = vmatpush1.msra.mxu0 0.0
        %5138 = vmatprep.subr.mxu0 0.0
        %5139 = vmatpush1.msra.mxu0 0.0
        %5140 = vmatprep.subr.mxu0 0.0
        %5141 = vmatpush1.msra.mxu0 0.0
        %5142 = vmatprep.subr.mxu0 0.0
        %5143 = vmatpush1.msra.mxu0 0.0
        %5144 = vmatprep.subr.mxu0 0.0
        %5145 = vmatpush1.msra.mxu0 0.0
        %5146 = vmatprep.subr.mxu0 0.0
        %5147 = vmatpush1.msra.mxu0 0.0
        %5148 = vmatprep.subr.mxu0 0.0
        %5149 = vmatpush1.msra.mxu0 0.0
        %5150 = vmatprep.subr.mxu0 0.0
        %5151 = vmatpush1.msra.mxu0 0.0
        %5152 = vmatprep.subr.mxu0 0.0
        %5153 = vmatpush1.msra.mxu0 0.0
        %5154 = vmatprep.subr.mxu0 0.0
        %5155 = vmatpush1.msra.mxu0 0.0
        %5156 = vmatprep.subr.mxu0 0.0
        %5157 = vmatpush1.msra.mxu0 0.0
        %5158 = vmatprep.subr.mxu0 0.0
        %5159 = vmatpush1.msra.mxu0 0.0
        %5160 = vmatprep.subr.mxu0 0.0
        %5161 = vmatpush1.msra.mxu0 0.0
        %5162 = vmatprep.mubr.f32.mxu0 0.0
        %5163 = vmatmul.mubr.f32.gmra.mrb[0].mxu0 %v5093
        %v5164 = vpop.f32.mrb[0].mxu0
        %v5165 = vadd.f32 0.0, %v5164
        %v5166 = vpop.f32.mrb[0].mxu0
        %5167 = vmatprep.mubr.f32.mxu0 0.0
        %5168 = vmatmul.mubr.f32.gmra.mrb[0].mxu0 %v5096
        %v5169 = vpop.f32.mrb[0].mxu0
        %v5170 = vadd.f32 0.0, %v5169
        %v5171 = vpop.f32.mrb[0].mxu0
        %5172 = vdwg.mxu0
        %5173 = vrot.lane.b32.xlu0 %v3963, 48
        %v5174 = vpop.permute.xlu0 %5173
        %5175 = vrot.lane.b32.xlu0 %v3964, 48
        %v5176 = vpop.permute.xlu0 %5175
        %v5180 = vsel %vm1336, %v4902, 0
        %v5183 = vsel %vm1336, %v4903, 0
        %5185 = vmatprep.subr.mxu0 0.0
        %5186 = vmatpush1.msra.mxu0 %v5174
        %5187 = vmatprep.subr.mxu0 0.0
        %5188 = vmatpush1.msra.mxu0 %v5176
        %5189 = vmatprep.subr.mxu0 0.0
        %5190 = vmatpush1.msra.mxu0 0.0
        %5191 = vmatprep.subr.mxu0 0.0
        %5192 = vmatpush1.msra.mxu0 0.0
        %5193 = vmatprep.subr.mxu0 0.0
        %5194 = vmatpush1.msra.mxu0 0.0
        %5195 = vmatprep.subr.mxu0 0.0
        %5196 = vmatpush1.msra.mxu0 0.0
        %5197 = vmatprep.subr.mxu0 0.0
        %5198 = vmatpush1.msra.mxu0 0.0
        %5199 = vmatprep.subr.mxu0 0.0
        %5200 = vmatpush1.msra.mxu0 0.0
        %5201 = vmatprep.subr.mxu0 0.0
        %5202 = vmatpush1.msra.mxu0 0.0
        %5203 = vmatprep.subr.mxu0 0.0
        %5204 = vmatpush1.msra.mxu0 0.0
        %5205 = vmatprep.subr.mxu0 0.0
        %5206 = vmatpush1.msra.mxu0 0.0
        %5207 = vmatprep.subr.mxu0 0.0
        %5208 = vmatpush1.msra.mxu0 0.0
        %5209 = vmatprep.subr.mxu0 0.0
        %5210 = vmatpush1.msra.mxu0 0.0
        %5211 = vmatprep.subr.mxu0 0.0
        %5212 = vmatpush1.msra.mxu0 0.0
        %5213 = vmatprep.subr.mxu0 0.0
        %5214 = vmatpush1.msra.mxu0 0.0
        %5215 = vmatprep.subr.mxu0 0.0
        %5216 = vmatpush1.msra.mxu0 0.0
        %5217 = vmatprep.subr.mxu0 0.0
        %5218 = vmatpush1.msra.mxu0 0.0
        %5219 = vmatprep.subr.mxu0 0.0
        %5220 = vmatpush1.msra.mxu0 0.0
        %5221 = vmatprep.subr.mxu0 0.0
        %5222 = vmatpush1.msra.mxu0 0.0
        %5223 = vmatprep.subr.mxu0 0.0
        %5224 = vmatpush1.msra.mxu0 0.0
        %5225 = vmatprep.subr.mxu0 0.0
        %5226 = vmatpush1.msra.mxu0 0.0
        %5227 = vmatprep.subr.mxu0 0.0
        %5228 = vmatpush1.msra.mxu0 0.0
        %5229 = vmatprep.subr.mxu0 0.0
        %5230 = vmatpush1.msra.mxu0 0.0
        %5231 = vmatprep.subr.mxu0 0.0
        %5232 = vmatpush1.msra.mxu0 0.0
        %5233 = vmatprep.subr.mxu0 0.0
        %5234 = vmatpush1.msra.mxu0 0.0
        %5235 = vmatprep.subr.mxu0 0.0
        %5236 = vmatpush1.msra.mxu0 0.0
        %5237 = vmatprep.subr.mxu0 0.0
        %5238 = vmatpush1.msra.mxu0 0.0
        %5239 = vmatprep.subr.mxu0 0.0
        %5240 = vmatpush1.msra.mxu0 0.0
        %5241 = vmatprep.subr.mxu0 0.0
        %5242 = vmatpush1.msra.mxu0 0.0
        %5243 = vmatprep.subr.mxu0 0.0
        %5244 = vmatpush1.msra.mxu0 0.0
        %5245 = vmatprep.subr.mxu0 0.0
        %5246 = vmatpush1.msra.mxu0 0.0
        %5247 = vmatprep.subr.mxu0 0.0
        %5248 = vmatpush1.msra.mxu0 0.0
        %5249 = vmatprep.mubr.f32.mxu0 0.0
        %5250 = vmatmul.mubr.f32.gmra.mrb[0].mxu0 %v5180
        %v5251 = vpop.f32.mrb[0].mxu0
        %v5252 = vadd.f32 0.0, %v5251
        %v5253 = vpop.f32.mrb[0].mxu0
        %5254 = vmatprep.mubr.f32.mxu0 0.0
        %5255 = vmatmul.mubr.f32.gmra.mrb[0].mxu0 %v5183
        %v5256 = vpop.f32.mrb[0].mxu0
        %v5257 = vadd.f32 0.0, %v5256
        %v5258 = vpop.f32.mrb[0].mxu0
        %5259 = vdwg.mxu0
        %5260 = vrot.lane.b32.xlu0 %v3965, 48
        %v5261 = vpop.permute.xlu0 %5260
        %5262 = vrot.lane.b32.xlu0 %v3966, 48
        %v5263 = vpop.permute.xlu0 %5262
        %v5267 = vsel %vm1336, %v4904, 0
        %v5270 = vsel %vm1336, %v4905, 0
        %5272 = vmatprep.subr.mxu0 0.0
        %5273 = vmatpush1.msra.mxu0 %v5261
        %5274 = vmatprep.subr.mxu0 0.0
        %5275 = vmatpush1.msra.mxu0 %v5263
        %5276 = vmatprep.subr.mxu0 0.0
        %5277 = vmatpush1.msra.mxu0 0.0
        %5278 = vmatprep.subr.mxu0 0.0
        %5279 = vmatpush1.msra.mxu0 0.0
        %5280 = vmatprep.subr.mxu0 0.0
        %5281 = vmatpush1.msra.mxu0 0.0
        %5282 = vmatprep.subr.mxu0 0.0
        %5283 = vmatpush1.msra.mxu0 0.0
        %5284 = vmatprep.subr.mxu0 0.0
        %5285 = vmatpush1.msra.mxu0 0.0
        %5286 = vmatprep.subr.mxu0 0.0
        %5287 = vmatpush1.msra.mxu0 0.0
        %5288 = vmatprep.subr.mxu0 0.0
        %5289 = vmatpush1.msra.mxu0 0.0
        %5290 = vmatprep.subr.mxu0 0.0
        %5291 = vmatpush1.msra.mxu0 0.0
        %5292 = vmatprep.subr.mxu0 0.0
        %5293 = vmatpush1.msra.mxu0 0.0
        %5294 = vmatprep.subr.mxu0 0.0
        %5295 = vmatpush1.msra.mxu0 0.0
        %5296 = vmatprep.subr.mxu0 0.0
        %5297 = vmatpush1.msra.mxu0 0.0
        %5298 = vmatprep.subr.mxu0 0.0
        %5299 = vmatpush1.msra.mxu0 0.0
        %5300 = vmatprep.subr.mxu0 0.0
        %5301 = vmatpush1.msra.mxu0 0.0
        %5302 = vmatprep.subr.mxu0 0.0
        %5303 = vmatpush1.msra.mxu0 0.0
        %5304 = vmatprep.subr.mxu0 0.0
        %5305 = vmatpush1.msra.mxu0 0.0
        %5306 = vmatprep.subr.mxu0 0.0
        %5307 = vmatpush1.msra.mxu0 0.0
        %5308 = vmatprep.subr.mxu0 0.0
        %5309 = vmatpush1.msra.mxu0 0.0
        %5310 = vmatprep.subr.mxu0 0.0
        %5311 = vmatpush1.msra.mxu0 0.0
        %5312 = vmatprep.subr.mxu0 0.0
        %5313 = vmatpush1.msra.mxu0 0.0
        %5314 = vmatprep.subr.mxu0 0.0
        %5315 = vmatpush1.msra.mxu0 0.0
        %5316 = vmatprep.subr.mxu0 0.0
        %5317 = vmatpush1.msra.mxu0 0.0
        %5318 = vmatprep.subr.mxu0 0.0
        %5319 = vmatpush1.msra.mxu0 0.0
        %5320 = vmatprep.subr.mxu0 0.0
        %5321 = vmatpush1.msra.mxu0 0.0
        %5322 = vmatprep.subr.mxu0 0.0
        %5323 = vmatpush1.msra.mxu0 0.0
        %5324 = vmatprep.subr.mxu0 0.0
        %5325 = vmatpush1.msra.mxu0 0.0
        %5326 = vmatprep.subr.mxu0 0.0
        %5327 = vmatpush1.msra.mxu0 0.0
        %5328 = vmatprep.subr.mxu0 0.0
        %5329 = vmatpush1.msra.mxu0 0.0
        %5330 = vmatprep.subr.mxu0 0.0
        %5331 = vmatpush1.msra.mxu0 0.0
        %5332 = vmatprep.subr.mxu0 0.0
        %5333 = vmatpush1.msra.mxu0 0.0
        %5334 = vmatprep.subr.mxu0 0.0
        %5335 = vmatpush1.msra.mxu0 0.0
        %5336 = vmatprep.mubr.f32.mxu0 0.0
        %5337 = vmatmul.mubr.f32.gmra.mrb[0].mxu0 %v5267
        %v5338 = vpop.f32.mrb[0].mxu0
        %v5339 = vadd.f32 0.0, %v5338
        %v5340 = vpop.f32.mrb[0].mxu0
        %5341 = vmatprep.mubr.f32.mxu0 0.0
        %5342 = vmatmul.mubr.f32.gmra.mrb[0].mxu0 %v5270
        %v5343 = vpop.f32.mrb[0].mxu0
        %v5344 = vadd.f32 0.0, %v5343
        %v5345 = vpop.f32.mrb[0].mxu0
        %5346 = vdwg.mxu0
        %5347 = vrot.lane.b32.xlu0 %v3967, 48
        %v5348 = vpop.permute.xlu0 %5347
        %5349 = vrot.lane.b32.xlu0 %v3968, 48
        %v5350 = vpop.permute.xlu0 %5349
        %v5354 = vsel %vm1336, %v4906, 0
        %v5357 = vsel %vm1336, %v4907, 0
        %5359 = vmatprep.subr.mxu0 0.0
        %5360 = vmatpush1.msra.mxu0 %v5348
        %5361 = vmatprep.subr.mxu0 0.0
        %5362 = vmatpush1.msra.mxu0 %v5350
        %5363 = vmatprep.subr.mxu0 0.0
        %5364 = vmatpush1.msra.mxu0 0.0
        %5365 = vmatprep.subr.mxu0 0.0
        %5366 = vmatpush1.msra.mxu0 0.0
        %5367 = vmatprep.subr.mxu0 0.0
        %5368 = vmatpush1.msra.mxu0 0.0
        %5369 = vmatprep.subr.mxu0 0.0
        %5370 = vmatpush1.msra.mxu0 0.0
        %5371 = vmatprep.subr.mxu0 0.0
        %5372 = vmatpush1.msra.mxu0 0.0
        %5373 = vmatprep.subr.mxu0 0.0
        %5374 = vmatpush1.msra.mxu0 0.0
        %5375 = vmatprep.subr.mxu0 0.0
        %5376 = vmatpush1.msra.mxu0 0.0
        %5377 = vmatprep.subr.mxu0 0.0
        %5378 = vmatpush1.msra.mxu0 0.0
        %5379 = vmatprep.subr.mxu0 0.0
        %5380 = vmatpush1.msra.mxu0 0.0
        %5381 = vmatprep.subr.mxu0 0.0
        %5382 = vmatpush1.msra.mxu0 0.0
        %5383 = vmatprep.subr.mxu0 0.0
        %5384 = vmatpush1.msra.mxu0 0.0
        %5385 = vmatprep.subr.mxu0 0.0
        %5386 = vmatpush1.msra.mxu0 0.0
        %5387 = vmatprep.subr.mxu0 0.0
        %5388 = vmatpush1.msra.mxu0 0.0
        %5389 = vmatprep.subr.mxu0 0.0
        %5390 = vmatpush1.msra.mxu0 0.0
        %5391 = vmatprep.subr.mxu0 0.0
        %5392 = vmatpush1.msra.mxu0 0.0
        %5393 = vmatprep.subr.mxu0 0.0
        %5394 = vmatpush1.msra.mxu0 0.0
        %5395 = vmatprep.subr.mxu0 0.0
        %5396 = vmatpush1.msra.mxu0 0.0
        %5397 = vmatprep.subr.mxu0 0.0
        %5398 = vmatpush1.msra.mxu0 0.0
        %5399 = vmatprep.subr.mxu0 0.0
        %5400 = vmatpush1.msra.mxu0 0.0
        %5401 = vmatprep.subr.mxu0 0.0
        %5402 = vmatpush1.msra.mxu0 0.0
        %5403 = vmatprep.subr.mxu0 0.0
        %5404 = vmatpush1.msra.mxu0 0.0
        %5405 = vmatprep.subr.mxu0 0.0
        %5406 = vmatpush1.msra.mxu0 0.0
        %5407 = vmatprep.subr.mxu0 0.0
        %5408 = vmatpush1.msra.mxu0 0.0
        %5409 = vmatprep.subr.mxu0 0.0
        %5410 = vmatpush1.msra.mxu0 0.0
        %5411 = vmatprep.subr.mxu0 0.0
        %5412 = vmatpush1.msra.mxu0 0.0
        %5413 = vmatprep.subr.mxu0 0.0
        %5414 = vmatpush1.msra.mxu0 0.0
        %5415 = vmatprep.subr.mxu0 0.0
        %5416 = vmatpush1.msra.mxu0 0.0
        %5417 = vmatprep.subr.mxu0 0.0
        %5418 = vmatpush1.msra.mxu0 0.0
        %5419 = vmatprep.subr.mxu0 0.0
        %5420 = vmatpush1.msra.mxu0 0.0
        %5421 = vmatprep.subr.mxu0 0.0
        %5422 = vmatpush1.msra.mxu0 0.0
        %5423 = vmatprep.mubr.f32.mxu0 0.0
        %5424 = vmatmul.mubr.f32.gmra.mrb[0].mxu0 %v5354
        %v5425 = vpop.f32.mrb[0].mxu0
        %v5426 = vadd.f32 0.0, %v5425
        %v5427 = vpop.f32.mrb[0].mxu0
        %5428 = vmatprep.mubr.f32.mxu0 0.0
        %5429 = vmatmul.mubr.f32.gmra.mrb[0].mxu0 %v5357
        %v5430 = vpop.f32.mrb[0].mxu0
        %v5431 = vadd.f32 0.0, %v5430
        %v5432 = vpop.f32.mrb[0].mxu0
        %5433 = vdwg.mxu0
        %5434 = vrot.lane.b32.xlu0 %v3969, 48
        %v5435 = vpop.permute.xlu0 %5434
        %5436 = vrot.lane.b32.xlu0 %v3970, 48
        %v5437 = vpop.permute.xlu0 %5436
        %v5441 = vsel %vm1336, %v4908, 0
        %v5444 = vsel %vm1336, %v4909, 0
        %5446 = vmatprep.subr.mxu0 0.0
        %5447 = vmatpush1.msra.mxu0 %v5435
        %5448 = vmatprep.subr.mxu0 0.0
        %5449 = vmatpush1.msra.mxu0 %v5437
        %5450 = vmatprep.subr.mxu0 0.0
        %5451 = vmatpush1.msra.mxu0 0.0
        %5452 = vmatprep.subr.mxu0 0.0
        %5453 = vmatpush1.msra.mxu0 0.0
        %5454 = vmatprep.subr.mxu0 0.0
        %5455 = vmatpush1.msra.mxu0 0.0
        %5456 = vmatprep.subr.mxu0 0.0
        %5457 = vmatpush1.msra.mxu0 0.0
        %5458 = vmatprep.subr.mxu0 0.0
        %5459 = vmatpush1.msra.mxu0 0.0
        %5460 = vmatprep.subr.mxu0 0.0
        %5461 = vmatpush1.msra.mxu0 0.0
        %5462 = vmatprep.subr.mxu0 0.0
        %5463 = vmatpush1.msra.mxu0 0.0
        %5464 = vmatprep.subr.mxu0 0.0
        %5465 = vmatpush1.msra.mxu0 0.0
        %5466 = vmatprep.subr.mxu0 0.0
        %5467 = vmatpush1.msra.mxu0 0.0
        %5468 = vmatprep.subr.mxu0 0.0
        %5469 = vmatpush1.msra.mxu0 0.0
        %5470 = vmatprep.subr.mxu0 0.0
        %5471 = vmatpush1.msra.mxu0 0.0
        %5472 = vmatprep.subr.mxu0 0.0
        %5473 = vmatpush1.msra.mxu0 0.0
        %5474 = vmatprep.subr.mxu0 0.0
        %5475 = vmatpush1.msra.mxu0 0.0
        %5476 = vmatprep.subr.mxu0 0.0
        %5477 = vmatpush1.msra.mxu0 0.0
        %5478 = vmatprep.subr.mxu0 0.0
        %5479 = vmatpush1.msra.mxu0 0.0
        %5480 = vmatprep.subr.mxu0 0.0
        %5481 = vmatpush1.msra.mxu0 0.0
        %5482 = vmatprep.subr.mxu0 0.0
        %5483 = vmatpush1.msra.mxu0 0.0
        %5484 = vmatprep.subr.mxu0 0.0
        %5485 = vmatpush1.msra.mxu0 0.0
        %5486 = vmatprep.subr.mxu0 0.0
        %5487 = vmatpush1.msra.mxu0 0.0
        %5488 = vmatprep.subr.mxu0 0.0
        %5489 = vmatpush1.msra.mxu0 0.0
        %5490 = vmatprep.subr.mxu0 0.0
        %5491 = vmatpush1.msra.mxu0 0.0
        %5492 = vmatprep.subr.mxu0 0.0
        %5493 = vmatpush1.msra.mxu0 0.0
        %5494 = vmatprep.subr.mxu0 0.0
        %5495 = vmatpush1.msra.mxu0 0.0
        %5496 = vmatprep.subr.mxu0 0.0
        %5497 = vmatpush1.msra.mxu0 0.0
        %5498 = vmatprep.subr.mxu0 0.0
        %5499 = vmatpush1.msra.mxu0 0.0
        %5500 = vmatprep.subr.mxu0 0.0
        %5501 = vmatpush1.msra.mxu0 0.0
        %5502 = vmatprep.subr.mxu0 0.0
        %5503 = vmatpush1.msra.mxu0 0.0
        %5504 = vmatprep.subr.mxu0 0.0
        %5505 = vmatpush1.msra.mxu0 0.0
        %5506 = vmatprep.subr.mxu0 0.0
        %5507 = vmatpush1.msra.mxu0 0.0
        %5508 = vmatprep.subr.mxu0 0.0
        %5509 = vmatpush1.msra.mxu0 0.0
        %5510 = vmatprep.mubr.f32.mxu0 0.0
        %5511 = vmatmul.mubr.f32.gmra.mrb[0].mxu0 %v5441
        %v5512 = vpop.f32.mrb[0].mxu0
        %v5513 = vadd.f32 0.0, %v5512
        %v5514 = vpop.f32.mrb[0].mxu0
        %5515 = vmatprep.mubr.f32.mxu0 0.0
        %5516 = vmatmul.mubr.f32.gmra.mrb[0].mxu0 %v5444
        %v5517 = vpop.f32.mrb[0].mxu0
        %v5518 = vadd.f32 0.0, %v5517
        %v5519 = vpop.f32.mrb[0].mxu0
        %5520 = vdwg.mxu0
        %5521 = vrot.lane.b32.xlu0 %v3971, 48
        %v5522 = vpop.permute.xlu0 %5521
        %5523 = vrot.lane.b32.xlu0 %v3972, 48
        %v5524 = vpop.permute.xlu0 %5523
        %v5528 = vsel %vm1336, %v4910, 0
        %v5531 = vsel %vm1336, %v4911, 0
        %5533 = vmatprep.subr.mxu0 0.0
        %5534 = vmatpush1.msra.mxu0 %v5522
        %5535 = vmatprep.subr.mxu0 0.0
        %5536 = vmatpush1.msra.mxu0 %v5524
        %5537 = vmatprep.subr.mxu0 0.0
        %5538 = vmatpush1.msra.mxu0 0.0
        %5539 = vmatprep.subr.mxu0 0.0
        %5540 = vmatpush1.msra.mxu0 0.0
        %5541 = vmatprep.subr.mxu0 0.0
        %5542 = vmatpush1.msra.mxu0 0.0
        %5543 = vmatprep.subr.mxu0 0.0
        %5544 = vmatpush1.msra.mxu0 0.0
        %5545 = vmatprep.subr.mxu0 0.0
        %5546 = vmatpush1.msra.mxu0 0.0
        %5547 = vmatprep.subr.mxu0 0.0
        %5548 = vmatpush1.msra.mxu0 0.0
        %5549 = vmatprep.subr.mxu0 0.0
        %5550 = vmatpush1.msra.mxu0 0.0
        %5551 = vmatprep.subr.mxu0 0.0
        %5552 = vmatpush1.msra.mxu0 0.0
        %5553 = vmatprep.subr.mxu0 0.0
        %5554 = vmatpush1.msra.mxu0 0.0
        %5555 = vmatprep.subr.mxu0 0.0
        %5556 = vmatpush1.msra.mxu0 0.0
        %5557 = vmatprep.subr.mxu0 0.0
        %5558 = vmatpush1.msra.mxu0 0.0
        %5559 = vmatprep.subr.mxu0 0.0
        %5560 = vmatpush1.msra.mxu0 0.0
        %5561 = vmatprep.subr.mxu0 0.0
        %5562 = vmatpush1.msra.mxu0 0.0
        %5563 = vmatprep.subr.mxu0 0.0
        %5564 = vmatpush1.msra.mxu0 0.0
        %5565 = vmatprep.subr.mxu0 0.0
        %5566 = vmatpush1.msra.mxu0 0.0
        %5567 = vmatprep.subr.mxu0 0.0
        %5568 = vmatpush1.msra.mxu0 0.0
        %5569 = vmatprep.subr.mxu0 0.0
        %5570 = vmatpush1.msra.mxu0 0.0
        %5571 = vmatprep.subr.mxu0 0.0
        %5572 = vmatpush1.msra.mxu0 0.0
        %5573 = vmatprep.subr.mxu0 0.0
        %5574 = vmatpush1.msra.mxu0 0.0
        %5575 = vmatprep.subr.mxu0 0.0
        %5576 = vmatpush1.msra.mxu0 0.0
        %5577 = vmatprep.subr.mxu0 0.0
        %5578 = vmatpush1.msra.mxu0 0.0
        %5579 = vmatprep.subr.mxu0 0.0
        %5580 = vmatpush1.msra.mxu0 0.0
        %5581 = vmatprep.subr.mxu0 0.0
        %5582 = vmatpush1.msra.mxu0 0.0
        %5583 = vmatprep.subr.mxu0 0.0
        %5584 = vmatpush1.msra.mxu0 0.0
        %5585 = vmatprep.subr.mxu0 0.0
        %5586 = vmatpush1.msra.mxu0 0.0
        %5587 = vmatprep.subr.mxu0 0.0
        %5588 = vmatpush1.msra.mxu0 0.0
        %5589 = vmatprep.subr.mxu0 0.0
        %5590 = vmatpush1.msra.mxu0 0.0
        %5591 = vmatprep.subr.mxu0 0.0
        %5592 = vmatpush1.msra.mxu0 0.0
        %5593 = vmatprep.subr.mxu0 0.0
        %5594 = vmatpush1.msra.mxu0 0.0
        %5595 = vmatprep.subr.mxu0 0.0
        %5596 = vmatpush1.msra.mxu0 0.0
        %5597 = vmatprep.mubr.f32.mxu0 0.0
        %5598 = vmatmul.mubr.f32.gmra.mrb[0].mxu0 %v5528
        %v5599 = vpop.f32.mrb[0].mxu0
        %v5600 = vadd.f32 0.0, %v5599
        %v5601 = vpop.f32.mrb[0].mxu0
        %5602 = vmatprep.mubr.f32.mxu0 0.0
        %5603 = vmatmul.mubr.f32.gmra.mrb[0].mxu0 %v5531
        %v5604 = vpop.f32.mrb[0].mxu0
        %v5605 = vadd.f32 0.0, %v5604
        %v5606 = vpop.f32.mrb[0].mxu0
        %5607 = vdwg.mxu0
        %5624 = vrot.lane.b32.xlu0 %v4991, 16
        %v5625 = vpop.permute.xlu0 %5624
        %5626 = vrot.lane.b32.xlu0 %v4996, 16
        %v5627 = vpop.permute.xlu0 %5626
        %5628 = vrot.lane.b32.xlu0 %v5078, 16
        %v5629 = vpop.permute.xlu0 %5628
        %5630 = vrot.lane.b32.xlu0 %v5083, 16
        %v5631 = vpop.permute.xlu0 %5630
        %5632 = vrot.lane.b32.xlu0 %v5165, 16
        %v5633 = vpop.permute.xlu0 %5632
        %5634 = vrot.lane.b32.xlu0 %v5170, 16
        %v5635 = vpop.permute.xlu0 %5634
        %5636 = vrot.lane.b32.xlu0 %v5252, 16
        %v5637 = vpop.permute.xlu0 %5636
        %5638 = vrot.lane.b32.xlu0 %v5257, 16
        %v5639 = vpop.permute.xlu0 %5638
        %5640 = vrot.lane.b32.xlu0 %v5339, 16
        %v5641 = vpop.permute.xlu0 %5640
        %5642 = vrot.lane.b32.xlu0 %v5344, 16
        %v5643 = vpop.permute.xlu0 %5642
        %5644 = vrot.lane.b32.xlu0 %v5426, 16
        %v5645 = vpop.permute.xlu0 %5644
        %5646 = vrot.lane.b32.xlu0 %v5431, 16
        %v5647 = vpop.permute.xlu0 %5646
        %5648 = vrot.lane.b32.xlu0 %v5513, 16
        %v5649 = vpop.permute.xlu0 %5648
        %5650 = vrot.lane.b32.xlu0 %v5518, 16
        %v5651 = vpop.permute.xlu0 %5650
        %5652 = vrot.lane.b32.xlu0 %v5600, 16
        %v5653 = vpop.permute.xlu0 %5652
        %5654 = vrot.lane.b32.xlu0 %v5605, 16
        %v5655 = vpop.permute.xlu0 %5654
        %vm5672 = vcmask 195712
        %5673 = vst.msk [vmem:[#allocation3] sm:$0xff] %vm5672, %v5625
        %5674 = vst.msk [vmem:[#allocation3 + $0x8] sm:$0xff] %vm5672, %v5627
        %5675 = vst.msk [vmem:[#allocation3 + $0x10] sm:$0xff] %vm5672, %v5629
        %5676 = vst.msk [vmem:[#allocation3 + $0x18] sm:$0xff] %vm5672, %v5631
        %5677 = vst.msk [vmem:[#allocation3 + $0x20] sm:$0xff] %vm5672, %v5633
        %5678 = vst.msk [vmem:[#allocation3 + $0x28] sm:$0xff] %vm5672, %v5635
        %5679 = vst.msk [vmem:[#allocation3 + $0x30] sm:$0xff] %vm5672, %v5637
        %5680 = vst.msk [vmem:[#allocation3 + $0x38] sm:$0xff] %vm5672, %v5639
        %5681 = vst.msk [vmem:[#allocation3 + $0x40] sm:$0xff] %vm5672, %v5641
        %5682 = vst.msk [vmem:[#allocation3 + $0x48] sm:$0xff] %vm5672, %v5643
        %5683 = vst.msk [vmem:[#allocation3 + $0x50] sm:$0xff] %vm5672, %v5645
        %5684 = vst.msk [vmem:[#allocation3 + $0x58] sm:$0xff] %vm5672, %v5647
        %5685 = vst.msk [vmem:[#allocation3 + $0x60] sm:$0xff] %vm5672, %v5649
        %5686 = vst.msk [vmem:[#allocation3 + $0x68] sm:$0xff] %vm5672, %v5651
        %5687 = vst.msk [vmem:[#allocation3 + $0x70] sm:$0xff] %vm5672, %v5653
        %5688 = vst.msk [vmem:[#allocation3 + $0x78] sm:$0xff] %vm5672, %v5655
        %v5689 = vld [vmem:[#allocation2] sm:$0xff]
        %v5690 = vld [vmem:[#allocation2 + $0x8] sm:$0xff]
        %v5691 = vld [vmem:[#allocation2 + $0x10] sm:$0xff]
        %v5692 = vld [vmem:[#allocation2 + $0x18] sm:$0xff]
        %v5693 = vld [vmem:[#allocation2 + $0x20] sm:$0xff]
        %v5694 = vld [vmem:[#allocation2 + $0x28] sm:$0xff]
        %v5695 = vld [vmem:[#allocation2 + $0x30] sm:$0xff]
        %v5696 = vld [vmem:[#allocation2 + $0x38] sm:$0xff]
        %v5697 = vld [vmem:[#allocation2 + $0x40] sm:$0xff]
        %v5698 = vld [vmem:[#allocation2 + $0x48] sm:$0xff]
        %v5699 = vld [vmem:[#allocation2 + $0x50] sm:$0xff]
        %v5700 = vld [vmem:[#allocation2 + $0x58] sm:$0xff]
        %v5701 = vld [vmem:[#allocation2 + $0x60] sm:$0xff]
        %v5702 = vld [vmem:[#allocation2 + $0x68] sm:$0xff]
        %v5703 = vld [vmem:[#allocation2 + $0x70] sm:$0xff]
        %v5704 = vld [vmem:[#allocation2 + $0x78] sm:$0xff]
        %s5705 = scalar_lea.vmem %s3, 48
        %v5706 = vld [vmem:[%s5705] sm:$0xff]
        %v5707 = vld [vmem:[%s5705 + $0x8] sm:$0xff]
        %5710 = vrot.lane.b32.xlu0 %v5689, 104
        %v5711 = vpop.permute.xlu0 %5710
        %5712 = vrot.lane.b32.xlu0 %v5690, 104
        %v5713 = vpop.permute.xlu0 %5712
        %5714 = vrot.lane.b32.xlu0 %v5689, 72
        %v5715 = vpop.permute.xlu0 %5714
        %5716 = vrot.lane.b32.xlu0 %v5690, 72
        %v5717 = vpop.permute.xlu0 %5716
        %v5718 = vsel %vm613, %v5711, 0
        %v5720 = vsel %vm613, %v5713, 0
        %v5722 = vsel %vm613, %v5715, 0
        %v5724 = vsel %vm613, %v5717, 0
        %5726 = vmatprep.subr.mxu0 0.0
        %5727 = vmatpush1.xpose.msra.mxu0 %v5722
        %5728 = vmatprep.subr.mxu0 0.0
        %5729 = vmatpush1.xpose.msra.mxu0 %v5724
        %5730 = vmatprep.subr.mxu0 0.0
        %5731 = vmatpush1.xpose.msra.mxu0 0.0
        %5732 = vmatprep.subr.mxu0 0.0
        %5733 = vmatpush1.xpose.msra.mxu0 0.0
        %5734 = vmatprep.subr.mxu0 0.0
        %5735 = vmatpush1.xpose.msra.mxu0 0.0
        %5736 = vmatprep.subr.mxu0 0.0
        %5737 = vmatpush1.xpose.msra.mxu0 0.0
        %5738 = vmatprep.subr.mxu0 0.0
        %5739 = vmatpush1.xpose.msra.mxu0 0.0
        %5740 = vmatprep.subr.mxu0 0.0
        %5741 = vmatpush1.xpose.msra.mxu0 0.0
        %5742 = vmatprep.subr.mxu0 0.0
        %5743 = vmatpush1.xpose.msra.mxu0 0.0
        %5744 = vmatprep.subr.mxu0 0.0
        %5745 = vmatpush1.xpose.msra.mxu0 0.0
        %5746 = vmatprep.subr.mxu0 0.0
        %5747 = vmatpush1.xpose.msra.mxu0 0.0
        %5748 = vmatprep.subr.mxu0 0.0
        %5749 = vmatpush1.xpose.msra.mxu0 0.0
        %5750 = vmatprep.subr.mxu0 0.0
        %5751 = vmatpush1.xpose.msra.mxu0 0.0
        %5752 = vmatprep.subr.mxu0 0.0
        %5753 = vmatpush1.xpose.msra.mxu0 0.0
        %5754 = vmatprep.subr.mxu0 0.0
        %5755 = vmatpush1.xpose.msra.mxu0 0.0
        %5756 = vmatprep.subr.mxu0 0.0
        %5757 = vmatpush1.xpose.msra.mxu0 0.0
        %5758 = vmatprep.subr.mxu0 0.0
        %5759 = vmatpush1.xpose.msra.mxu0 0.0
        %5760 = vmatprep.subr.mxu0 0.0
        %5761 = vmatpush1.xpose.msra.mxu0 0.0
        %5762 = vmatprep.subr.mxu0 0.0
        %5763 = vmatpush1.xpose.msra.mxu0 0.0
        %5764 = vmatprep.subr.mxu0 0.0
        %5765 = vmatpush1.xpose.msra.mxu0 0.0
        %5766 = vmatprep.subr.mxu0 0.0
        %5767 = vmatpush1.xpose.msra.mxu0 0.0
        %5768 = vmatprep.subr.mxu0 0.0
        %5769 = vmatpush1.xpose.msra.mxu0 0.0
        %5770 = vmatprep.subr.mxu0 0.0
        %5771 = vmatpush1.xpose.msra.mxu0 0.0
        %5772 = vmatprep.subr.mxu0 0.0
        %5773 = vmatpush1.xpose.msra.mxu0 0.0
        %5774 = vmatprep.subr.mxu0 0.0
        %5775 = vmatpush1.xpose.msra.mxu0 0.0
        %5776 = vmatprep.subr.mxu0 0.0
        %5777 = vmatpush1.xpose.msra.mxu0 0.0
        %5778 = vmatprep.subr.mxu0 0.0
        %5779 = vmatpush1.xpose.msra.mxu0 0.0
        %5780 = vmatprep.subr.mxu0 0.0
        %5781 = vmatpush1.xpose.msra.mxu0 0.0
        %5782 = vmatprep.subr.mxu0 0.0
        %5783 = vmatpush1.xpose.msra.mxu0 0.0
        %5784 = vmatprep.subr.mxu0 0.0
        %5785 = vmatpush1.xpose.msra.mxu0 0.0
        %5786 = vmatprep.subr.mxu0 0.0
        %5787 = vmatpush1.xpose.msra.mxu0 0.0
        %5788 = vmatprep.subr.mxu0 0.0
        %5789 = vmatpush1.xpose.msra.mxu0 0.0
        %5790 = vmatprep.mubr.f32.mxu0 0.0
        %5791 = vmatmul.mubr.f32.gmra.mrb[0].mxu0 %v5718
        %v5792 = vpop.f32.mrb[0].mxu0
        %v5793 = vadd.f32 %v5706, %v5792
        %v5794 = vpop.f32.mrb[0].mxu0
        %5795 = vmatprep.mubr.f32.mxu0 0.0
        %5796 = vmatmul.mubr.f32.gmra.mrb[0].mxu0 %v5720
        %v5797 = vpop.f32.mrb[0].mxu0
        %v5798 = vadd.f32 %v5707, %v5797
        %v5799 = vpop.f32.mrb[0].mxu0
        %5800 = vdwg.mxu0
        %5803 = vrot.lane.b32.xlu0 %v5691, 104
        %v5804 = vpop.permute.xlu0 %5803
        %5805 = vrot.lane.b32.xlu0 %v5692, 104
        %v5806 = vpop.permute.xlu0 %5805
        %5807 = vrot.lane.b32.xlu0 %v5691, 72
        %v5808 = vpop.permute.xlu0 %5807
        %5809 = vrot.lane.b32.xlu0 %v5692, 72
        %v5810 = vpop.permute.xlu0 %5809
        %v5811 = vsel %vm613, %v5804, 0
        %v5813 = vsel %vm613, %v5806, 0
        %v5815 = vsel %vm613, %v5808, 0
        %v5817 = vsel %vm613, %v5810, 0
        %5819 = vmatprep.subr.mxu0 0.0
        %5820 = vmatpush1.xpose.msra.mxu0 %v5815
        %5821 = vmatprep.subr.mxu0 0.0
        %5822 = vmatpush1.xpose.msra.mxu0 %v5817
        %5823 = vmatprep.subr.mxu0 0.0
        %5824 = vmatpush1.xpose.msra.mxu0 0.0
        %5825 = vmatprep.subr.mxu0 0.0
        %5826 = vmatpush1.xpose.msra.mxu0 0.0
        %5827 = vmatprep.subr.mxu0 0.0
        %5828 = vmatpush1.xpose.msra.mxu0 0.0
        %5829 = vmatprep.subr.mxu0 0.0
        %5830 = vmatpush1.xpose.msra.mxu0 0.0
        %5831 = vmatprep.subr.mxu0 0.0
        %5832 = vmatpush1.xpose.msra.mxu0 0.0
        %5833 = vmatprep.subr.mxu0 0.0
        %5834 = vmatpush1.xpose.msra.mxu0 0.0
        %5835 = vmatprep.subr.mxu0 0.0
        %5836 = vmatpush1.xpose.msra.mxu0 0.0
        %5837 = vmatprep.subr.mxu0 0.0
        %5838 = vmatpush1.xpose.msra.mxu0 0.0
        %5839 = vmatprep.subr.mxu0 0.0
        %5840 = vmatpush1.xpose.msra.mxu0 0.0
        %5841 = vmatprep.subr.mxu0 0.0
        %5842 = vmatpush1.xpose.msra.mxu0 0.0
        %5843 = vmatprep.subr.mxu0 0.0
        %5844 = vmatpush1.xpose.msra.mxu0 0.0
        %5845 = vmatprep.subr.mxu0 0.0
        %5846 = vmatpush1.xpose.msra.mxu0 0.0
        %5847 = vmatprep.subr.mxu0 0.0
        %5848 = vmatpush1.xpose.msra.mxu0 0.0
        %5849 = vmatprep.subr.mxu0 0.0
        %5850 = vmatpush1.xpose.msra.mxu0 0.0
        %5851 = vmatprep.subr.mxu0 0.0
        %5852 = vmatpush1.xpose.msra.mxu0 0.0
        %5853 = vmatprep.subr.mxu0 0.0
        %5854 = vmatpush1.xpose.msra.mxu0 0.0
        %5855 = vmatprep.subr.mxu0 0.0
        %5856 = vmatpush1.xpose.msra.mxu0 0.0
        %5857 = vmatprep.subr.mxu0 0.0
        %5858 = vmatpush1.xpose.msra.mxu0 0.0
        %5859 = vmatprep.subr.mxu0 0.0
        %5860 = vmatpush1.xpose.msra.mxu0 0.0
        %5861 = vmatprep.subr.mxu0 0.0
        %5862 = vmatpush1.xpose.msra.mxu0 0.0
        %5863 = vmatprep.subr.mxu0 0.0
        %5864 = vmatpush1.xpose.msra.mxu0 0.0
        %5865 = vmatprep.subr.mxu0 0.0
        %5866 = vmatpush1.xpose.msra.mxu0 0.0
        %5867 = vmatprep.subr.mxu0 0.0
        %5868 = vmatpush1.xpose.msra.mxu0 0.0
        %5869 = vmatprep.subr.mxu0 0.0
        %5870 = vmatpush1.xpose.msra.mxu0 0.0
        %5871 = vmatprep.subr.mxu0 0.0
        %5872 = vmatpush1.xpose.msra.mxu0 0.0
        %5873 = vmatprep.subr.mxu0 0.0
        %5874 = vmatpush1.xpose.msra.mxu0 0.0
        %5875 = vmatprep.subr.mxu0 0.0
        %5876 = vmatpush1.xpose.msra.mxu0 0.0
        %5877 = vmatprep.subr.mxu0 0.0
        %5878 = vmatpush1.xpose.msra.mxu0 0.0
        %5879 = vmatprep.subr.mxu0 0.0
        %5880 = vmatpush1.xpose.msra.mxu0 0.0
        %5881 = vmatprep.subr.mxu0 0.0
        %5882 = vmatpush1.xpose.msra.mxu0 0.0
        %5883 = vmatprep.mubr.f32.mxu0 0.0
        %5884 = vmatmul.mubr.f32.gmra.mrb[0].mxu0 %v5811
        %v5885 = vpop.f32.mrb[0].mxu0
        %v5886 = vadd.f32 %v5706, %v5885
        %v5887 = vpop.f32.mrb[0].mxu0
        %5888 = vmatprep.mubr.f32.mxu0 0.0
        %5889 = vmatmul.mubr.f32.gmra.mrb[0].mxu0 %v5813
        %v5890 = vpop.f32.mrb[0].mxu0
        %v5891 = vadd.f32 %v5707, %v5890
        %v5892 = vpop.f32.mrb[0].mxu0
        %5893 = vdwg.mxu0
        %5896 = vrot.lane.b32.xlu0 %v5693, 104
        %v5897 = vpop.permute.xlu0 %5896
        %5898 = vrot.lane.b32.xlu0 %v5694, 104
        %v5899 = vpop.permute.xlu0 %5898
        %5900 = vrot.lane.b32.xlu0 %v5693, 72
        %v5901 = vpop.permute.xlu0 %5900
        %5902 = vrot.lane.b32.xlu0 %v5694, 72
        %v5903 = vpop.permute.xlu0 %5902
        %v5904 = vsel %vm613, %v5897, 0
        %v5906 = vsel %vm613, %v5899, 0
        %v5908 = vsel %vm613, %v5901, 0
        %v5910 = vsel %vm613, %v5903, 0
        %5912 = vmatprep.subr.mxu0 0.0
        %5913 = vmatpush1.xpose.msra.mxu0 %v5908
        %5914 = vmatprep.subr.mxu0 0.0
        %5915 = vmatpush1.xpose.msra.mxu0 %v5910
        %5916 = vmatprep.subr.mxu0 0.0
        %5917 = vmatpush1.xpose.msra.mxu0 0.0
        %5918 = vmatprep.subr.mxu0 0.0
        %5919 = vmatpush1.xpose.msra.mxu0 0.0
        %5920 = vmatprep.subr.mxu0 0.0
        %5921 = vmatpush1.xpose.msra.mxu0 0.0
        %5922 = vmatprep.subr.mxu0 0.0
        %5923 = vmatpush1.xpose.msra.mxu0 0.0
        %5924 = vmatprep.subr.mxu0 0.0
        %5925 = vmatpush1.xpose.msra.mxu0 0.0
        %5926 = vmatprep.subr.mxu0 0.0
        %5927 = vmatpush1.xpose.msra.mxu0 0.0
        %5928 = vmatprep.subr.mxu0 0.0
        %5929 = vmatpush1.xpose.msra.mxu0 0.0
        %5930 = vmatprep.subr.mxu0 0.0
        %5931 = vmatpush1.xpose.msra.mxu0 0.0
        %5932 = vmatprep.subr.mxu0 0.0
        %5933 = vmatpush1.xpose.msra.mxu0 0.0
        %5934 = vmatprep.subr.mxu0 0.0
        %5935 = vmatpush1.xpose.msra.mxu0 0.0
        %5936 = vmatprep.subr.mxu0 0.0
        %5937 = vmatpush1.xpose.msra.mxu0 0.0
        %5938 = vmatprep.subr.mxu0 0.0
        %5939 = vmatpush1.xpose.msra.mxu0 0.0
        %5940 = vmatprep.subr.mxu0 0.0
        %5941 = vmatpush1.xpose.msra.mxu0 0.0
        %5942 = vmatprep.subr.mxu0 0.0
        %5943 = vmatpush1.xpose.msra.mxu0 0.0
        %5944 = vmatprep.subr.mxu0 0.0
        %5945 = vmatpush1.xpose.msra.mxu0 0.0
        %5946 = vmatprep.subr.mxu0 0.0
        %5947 = vmatpush1.xpose.msra.mxu0 0.0
        %5948 = vmatprep.subr.mxu0 0.0
        %5949 = vmatpush1.xpose.msra.mxu0 0.0
        %5950 = vmatprep.subr.mxu0 0.0
        %5951 = vmatpush1.xpose.msra.mxu0 0.0
        %5952 = vmatprep.subr.mxu0 0.0
        %5953 = vmatpush1.xpose.msra.mxu0 0.0
        %5954 = vmatprep.subr.mxu0 0.0
        %5955 = vmatpush1.xpose.msra.mxu0 0.0
        %5956 = vmatprep.subr.mxu0 0.0
        %5957 = vmatpush1.xpose.msra.mxu0 0.0
        %5958 = vmatprep.subr.mxu0 0.0
        %5959 = vmatpush1.xpose.msra.mxu0 0.0
        %5960 = vmatprep.subr.mxu0 0.0
        %5961 = vmatpush1.xpose.msra.mxu0 0.0
        %5962 = vmatprep.subr.mxu0 0.0
        %5963 = vmatpush1.xpose.msra.mxu0 0.0
        %5964 = vmatprep.subr.mxu0 0.0
        %5965 = vmatpush1.xpose.msra.mxu0 0.0
        %5966 = vmatprep.subr.mxu0 0.0
        %5967 = vmatpush1.xpose.msra.mxu0 0.0
        %5968 = vmatprep.subr.mxu0 0.0
        %5969 = vmatpush1.xpose.msra.mxu0 0.0
        %5970 = vmatprep.subr.mxu0 0.0
        %5971 = vmatpush1.xpose.msra.mxu0 0.0
        %5972 = vmatprep.subr.mxu0 0.0
        %5973 = vmatpush1.xpose.msra.mxu0 0.0
        %5974 = vmatprep.subr.mxu0 0.0
        %5975 = vmatpush1.xpose.msra.mxu0 0.0
        %5976 = vmatprep.mubr.f32.mxu0 0.0
        %5977 = vmatmul.mubr.f32.gmra.mrb[0].mxu0 %v5904
        %v5978 = vpop.f32.mrb[0].mxu0
        %v5979 = vadd.f32 %v5706, %v5978
        %v5980 = vpop.f32.mrb[0].mxu0
        %5981 = vmatprep.mubr.f32.mxu0 0.0
        %5982 = vmatmul.mubr.f32.gmra.mrb[0].mxu0 %v5906
        %v5983 = vpop.f32.mrb[0].mxu0
        %v5984 = vadd.f32 %v5707, %v5983
        %v5985 = vpop.f32.mrb[0].mxu0
        %5986 = vdwg.mxu0
        %5989 = vrot.lane.b32.xlu0 %v5695, 104
        %v5990 = vpop.permute.xlu0 %5989
        %5991 = vrot.lane.b32.xlu0 %v5696, 104
        %v5992 = vpop.permute.xlu0 %5991
        %5993 = vrot.lane.b32.xlu0 %v5695, 72
        %v5994 = vpop.permute.xlu0 %5993
        %5995 = vrot.lane.b32.xlu0 %v5696, 72
        %v5996 = vpop.permute.xlu0 %5995
        %v5997 = vsel %vm613, %v5990, 0
        %v5999 = vsel %vm613, %v5992, 0
        %v6001 = vsel %vm613, %v5994, 0
        %v6003 = vsel %vm613, %v5996, 0
        %6005 = vmatprep.subr.mxu0 0.0
        %6006 = vmatpush1.xpose.msra.mxu0 %v6001
        %6007 = vmatprep.subr.mxu0 0.0
        %6008 = vmatpush1.xpose.msra.mxu0 %v6003
        %6009 = vmatprep.subr.mxu0 0.0
        %6010 = vmatpush1.xpose.msra.mxu0 0.0
        %6011 = vmatprep.subr.mxu0 0.0
        %6012 = vmatpush1.xpose.msra.mxu0 0.0
        %6013 = vmatprep.subr.mxu0 0.0
        %6014 = vmatpush1.xpose.msra.mxu0 0.0
        %6015 = vmatprep.subr.mxu0 0.0
        %6016 = vmatpush1.xpose.msra.mxu0 0.0
        %6017 = vmatprep.subr.mxu0 0.0
        %6018 = vmatpush1.xpose.msra.mxu0 0.0
        %6019 = vmatprep.subr.mxu0 0.0
        %6020 = vmatpush1.xpose.msra.mxu0 0.0
        %6021 = vmatprep.subr.mxu0 0.0
        %6022 = vmatpush1.xpose.msra.mxu0 0.0
        %6023 = vmatprep.subr.mxu0 0.0
        %6024 = vmatpush1.xpose.msra.mxu0 0.0
        %6025 = vmatprep.subr.mxu0 0.0
        %6026 = vmatpush1.xpose.msra.mxu0 0.0
        %6027 = vmatprep.subr.mxu0 0.0
        %6028 = vmatpush1.xpose.msra.mxu0 0.0
        %6029 = vmatprep.subr.mxu0 0.0
        %6030 = vmatpush1.xpose.msra.mxu0 0.0
        %6031 = vmatprep.subr.mxu0 0.0
        %6032 = vmatpush1.xpose.msra.mxu0 0.0
        %6033 = vmatprep.subr.mxu0 0.0
        %6034 = vmatpush1.xpose.msra.mxu0 0.0
        %6035 = vmatprep.subr.mxu0 0.0
        %6036 = vmatpush1.xpose.msra.mxu0 0.0
        %6037 = vmatprep.subr.mxu0 0.0
        %6038 = vmatpush1.xpose.msra.mxu0 0.0
        %6039 = vmatprep.subr.mxu0 0.0
        %6040 = vmatpush1.xpose.msra.mxu0 0.0
        %6041 = vmatprep.subr.mxu0 0.0
        %6042 = vmatpush1.xpose.msra.mxu0 0.0
        %6043 = vmatprep.subr.mxu0 0.0
        %6044 = vmatpush1.xpose.msra.mxu0 0.0
        %6045 = vmatprep.subr.mxu0 0.0
        %6046 = vmatpush1.xpose.msra.mxu0 0.0
        %6047 = vmatprep.subr.mxu0 0.0
        %6048 = vmatpush1.xpose.msra.mxu0 0.0
        %6049 = vmatprep.subr.mxu0 0.0
        %6050 = vmatpush1.xpose.msra.mxu0 0.0
        %6051 = vmatprep.subr.mxu0 0.0
        %6052 = vmatpush1.xpose.msra.mxu0 0.0
        %6053 = vmatprep.subr.mxu0 0.0
        %6054 = vmatpush1.xpose.msra.mxu0 0.0
        %6055 = vmatprep.subr.mxu0 0.0
        %6056 = vmatpush1.xpose.msra.mxu0 0.0
        %6057 = vmatprep.subr.mxu0 0.0
        %6058 = vmatpush1.xpose.msra.mxu0 0.0
        %6059 = vmatprep.subr.mxu0 0.0
        %6060 = vmatpush1.xpose.msra.mxu0 0.0
        %6061 = vmatprep.subr.mxu0 0.0
        %6062 = vmatpush1.xpose.msra.mxu0 0.0
        %6063 = vmatprep.subr.mxu0 0.0
        %6064 = vmatpush1.xpose.msra.mxu0 0.0
        %6065 = vmatprep.subr.mxu0 0.0
        %6066 = vmatpush1.xpose.msra.mxu0 0.0
        %6067 = vmatprep.subr.mxu0 0.0
        %6068 = vmatpush1.xpose.msra.mxu0 0.0
        %6069 = vmatprep.mubr.f32.mxu0 0.0
        %6070 = vmatmul.mubr.f32.gmra.mrb[0].mxu0 %v5997
        %v6071 = vpop.f32.mrb[0].mxu0
        %v6072 = vadd.f32 %v5706, %v6071
        %v6073 = vpop.f32.mrb[0].mxu0
        %6074 = vmatprep.mubr.f32.mxu0 0.0
        %6075 = vmatmul.mubr.f32.gmra.mrb[0].mxu0 %v5999
        %v6076 = vpop.f32.mrb[0].mxu0
        %v6077 = vadd.f32 %v5707, %v6076
        %v6078 = vpop.f32.mrb[0].mxu0
        %6079 = vdwg.mxu0
        %6082 = vrot.lane.b32.xlu0 %v5697, 104
        %v6083 = vpop.permute.xlu0 %6082
        %6084 = vrot.lane.b32.xlu0 %v5698, 104
        %v6085 = vpop.permute.xlu0 %6084
        %6086 = vrot.lane.b32.xlu0 %v5697, 72
        %v6087 = vpop.permute.xlu0 %6086
        %6088 = vrot.lane.b32.xlu0 %v5698, 72
        %v6089 = vpop.permute.xlu0 %6088
        %v6090 = vsel %vm613, %v6083, 0
        %v6092 = vsel %vm613, %v6085, 0
        %v6094 = vsel %vm613, %v6087, 0
        %v6096 = vsel %vm613, %v6089, 0
        %6098 = vmatprep.subr.mxu0 0.0
        %6099 = vmatpush1.xpose.msra.mxu0 %v6094
        %6100 = vmatprep.subr.mxu0 0.0
        %6101 = vmatpush1.xpose.msra.mxu0 %v6096
        %6102 = vmatprep.subr.mxu0 0.0
        %6103 = vmatpush1.xpose.msra.mxu0 0.0
        %6104 = vmatprep.subr.mxu0 0.0
        %6105 = vmatpush1.xpose.msra.mxu0 0.0
        %6106 = vmatprep.subr.mxu0 0.0
        %6107 = vmatpush1.xpose.msra.mxu0 0.0
        %6108 = vmatprep.subr.mxu0 0.0
        %6109 = vmatpush1.xpose.msra.mxu0 0.0
        %6110 = vmatprep.subr.mxu0 0.0
        %6111 = vmatpush1.xpose.msra.mxu0 0.0
        %6112 = vmatprep.subr.mxu0 0.0
        %6113 = vmatpush1.xpose.msra.mxu0 0.0
        %6114 = vmatprep.subr.mxu0 0.0
        %6115 = vmatpush1.xpose.msra.mxu0 0.0
        %6116 = vmatprep.subr.mxu0 0.0
        %6117 = vmatpush1.xpose.msra.mxu0 0.0
        %6118 = vmatprep.subr.mxu0 0.0
        %6119 = vmatpush1.xpose.msra.mxu0 0.0
        %6120 = vmatprep.subr.mxu0 0.0
        %6121 = vmatpush1.xpose.msra.mxu0 0.0
        %6122 = vmatprep.subr.mxu0 0.0
        %6123 = vmatpush1.xpose.msra.mxu0 0.0
        %6124 = vmatprep.subr.mxu0 0.0
        %6125 = vmatpush1.xpose.msra.mxu0 0.0
        %6126 = vmatprep.subr.mxu0 0.0
        %6127 = vmatpush1.xpose.msra.mxu0 0.0
        %6128 = vmatprep.subr.mxu0 0.0
        %6129 = vmatpush1.xpose.msra.mxu0 0.0
        %6130 = vmatprep.subr.mxu0 0.0
        %6131 = vmatpush1.xpose.msra.mxu0 0.0
        %6132 = vmatprep.subr.mxu0 0.0
        %6133 = vmatpush1.xpose.msra.mxu0 0.0
        %6134 = vmatprep.subr.mxu0 0.0
        %6135 = vmatpush1.xpose.msra.mxu0 0.0
        %6136 = vmatprep.subr.mxu0 0.0
        %6137 = vmatpush1.xpose.msra.mxu0 0.0
        %6138 = vmatprep.subr.mxu0 0.0
        %6139 = vmatpush1.xpose.msra.mxu0 0.0
        %6140 = vmatprep.subr.mxu0 0.0
        %6141 = vmatpush1.xpose.msra.mxu0 0.0
        %6142 = vmatprep.subr.mxu0 0.0
        %6143 = vmatpush1.xpose.msra.mxu0 0.0
        %6144 = vmatprep.subr.mxu0 0.0
        %6145 = vmatpush1.xpose.msra.mxu0 0.0
        %6146 = vmatprep.subr.mxu0 0.0
        %6147 = vmatpush1.xpose.msra.mxu0 0.0
        %6148 = vmatprep.subr.mxu0 0.0
        %6149 = vmatpush1.xpose.msra.mxu0 0.0
        %6150 = vmatprep.subr.mxu0 0.0
        %6151 = vmatpush1.xpose.msra.mxu0 0.0
        %6152 = vmatprep.subr.mxu0 0.0
        %6153 = vmatpush1.xpose.msra.mxu0 0.0
        %6154 = vmatprep.subr.mxu0 0.0
        %6155 = vmatpush1.xpose.msra.mxu0 0.0
        %6156 = vmatprep.subr.mxu0 0.0
        %6157 = vmatpush1.xpose.msra.mxu0 0.0
        %6158 = vmatprep.subr.mxu0 0.0
        %6159 = vmatpush1.xpose.msra.mxu0 0.0
        %6160 = vmatprep.subr.mxu0 0.0
        %6161 = vmatpush1.xpose.msra.mxu0 0.0
        %6162 = vmatprep.mubr.f32.mxu0 0.0
        %6163 = vmatmul.mubr.f32.gmra.mrb[0].mxu0 %v6090
        %v6164 = vpop.f32.mrb[0].mxu0
        %v6165 = vadd.f32 %v5706, %v6164
        %v6166 = vpop.f32.mrb[0].mxu0
        %6167 = vmatprep.mubr.f32.mxu0 0.0
        %6168 = vmatmul.mubr.f32.gmra.mrb[0].mxu0 %v6092
        %v6169 = vpop.f32.mrb[0].mxu0
        %v6170 = vadd.f32 %v5707, %v6169
        %v6171 = vpop.f32.mrb[0].mxu0
        %6172 = vdwg.mxu0
        %6175 = vrot.lane.b32.xlu0 %v5699, 104
        %v6176 = vpop.permute.xlu0 %6175
        %6177 = vrot.lane.b32.xlu0 %v5700, 104
        %v6178 = vpop.permute.xlu0 %6177
        %6179 = vrot.lane.b32.xlu0 %v5699, 72
        %v6180 = vpop.permute.xlu0 %6179
        %6181 = vrot.lane.b32.xlu0 %v5700, 72
        %v6182 = vpop.permute.xlu0 %6181
        %v6183 = vsel %vm613, %v6176, 0
        %v6185 = vsel %vm613, %v6178, 0
        %v6187 = vsel %vm613, %v6180, 0
        %v6189 = vsel %vm613, %v6182, 0
        %6191 = vmatprep.subr.mxu0 0.0
        %6192 = vmatpush1.xpose.msra.mxu0 %v6187
        %6193 = vmatprep.subr.mxu0 0.0
        %6194 = vmatpush1.xpose.msra.mxu0 %v6189
        %6195 = vmatprep.subr.mxu0 0.0
        %6196 = vmatpush1.xpose.msra.mxu0 0.0
        %6197 = vmatprep.subr.mxu0 0.0
        %6198 = vmatpush1.xpose.msra.mxu0 0.0
        %6199 = vmatprep.subr.mxu0 0.0
        %6200 = vmatpush1.xpose.msra.mxu0 0.0
        %6201 = vmatprep.subr.mxu0 0.0
        %6202 = vmatpush1.xpose.msra.mxu0 0.0
        %6203 = vmatprep.subr.mxu0 0.0
        %6204 = vmatpush1.xpose.msra.mxu0 0.0
        %6205 = vmatprep.subr.mxu0 0.0
        %6206 = vmatpush1.xpose.msra.mxu0 0.0
        %6207 = vmatprep.subr.mxu0 0.0
        %6208 = vmatpush1.xpose.msra.mxu0 0.0
        %6209 = vmatprep.subr.mxu0 0.0
        %6210 = vmatpush1.xpose.msra.mxu0 0.0
        %6211 = vmatprep.subr.mxu0 0.0
        %6212 = vmatpush1.xpose.msra.mxu0 0.0
        %6213 = vmatprep.subr.mxu0 0.0
        %6214 = vmatpush1.xpose.msra.mxu0 0.0
        %6215 = vmatprep.subr.mxu0 0.0
        %6216 = vmatpush1.xpose.msra.mxu0 0.0
        %6217 = vmatprep.subr.mxu0 0.0
        %6218 = vmatpush1.xpose.msra.mxu0 0.0
        %6219 = vmatprep.subr.mxu0 0.0
        %6220 = vmatpush1.xpose.msra.mxu0 0.0
        %6221 = vmatprep.subr.mxu0 0.0
        %6222 = vmatpush1.xpose.msra.mxu0 0.0
        %6223 = vmatprep.subr.mxu0 0.0
        %6224 = vmatpush1.xpose.msra.mxu0 0.0
        %6225 = vmatprep.subr.mxu0 0.0
        %6226 = vmatpush1.xpose.msra.mxu0 0.0
        %6227 = vmatprep.subr.mxu0 0.0
        %6228 = vmatpush1.xpose.msra.mxu0 0.0
        %6229 = vmatprep.subr.mxu0 0.0
        %6230 = vmatpush1.xpose.msra.mxu0 0.0
        %6231 = vmatprep.subr.mxu0 0.0
        %6232 = vmatpush1.xpose.msra.mxu0 0.0
        %6233 = vmatprep.subr.mxu0 0.0
        %6234 = vmatpush1.xpose.msra.mxu0 0.0
        %6235 = vmatprep.subr.mxu0 0.0
        %6236 = vmatpush1.xpose.msra.mxu0 0.0
        %6237 = vmatprep.subr.mxu0 0.0
        %6238 = vmatpush1.xpose.msra.mxu0 0.0
        %6239 = vmatprep.subr.mxu0 0.0
        %6240 = vmatpush1.xpose.msra.mxu0 0.0
        %6241 = vmatprep.subr.mxu0 0.0
        %6242 = vmatpush1.xpose.msra.mxu0 0.0
        %6243 = vmatprep.subr.mxu0 0.0
        %6244 = vmatpush1.xpose.msra.mxu0 0.0
        %6245 = vmatprep.subr.mxu0 0.0
        %6246 = vmatpush1.xpose.msra.mxu0 0.0
        %6247 = vmatprep.subr.mxu0 0.0
        %6248 = vmatpush1.xpose.msra.mxu0 0.0
        %6249 = vmatprep.subr.mxu0 0.0
        %6250 = vmatpush1.xpose.msra.mxu0 0.0
        %6251 = vmatprep.subr.mxu0 0.0
        %6252 = vmatpush1.xpose.msra.mxu0 0.0
        %6253 = vmatprep.subr.mxu0 0.0
        %6254 = vmatpush1.xpose.msra.mxu0 0.0
        %6255 = vmatprep.mubr.f32.mxu0 0.0
        %6256 = vmatmul.mubr.f32.gmra.mrb[0].mxu0 %v6183
        %v6257 = vpop.f32.mrb[0].mxu0
        %v6258 = vadd.f32 %v5706, %v6257
        %v6259 = vpop.f32.mrb[0].mxu0
        %6260 = vmatprep.mubr.f32.mxu0 0.0
        %6261 = vmatmul.mubr.f32.gmra.mrb[0].mxu0 %v6185
        %v6262 = vpop.f32.mrb[0].mxu0
        %v6263 = vadd.f32 %v5707, %v6262
        %v6264 = vpop.f32.mrb[0].mxu0
        %6265 = vdwg.mxu0
        %6268 = vrot.lane.b32.xlu0 %v5701, 104
        %v6269 = vpop.permute.xlu0 %6268
        %6270 = vrot.lane.b32.xlu0 %v5702, 104
        %v6271 = vpop.permute.xlu0 %6270
        %6272 = vrot.lane.b32.xlu0 %v5701, 72
        %v6273 = vpop.permute.xlu0 %6272
        %6274 = vrot.lane.b32.xlu0 %v5702, 72
        %v6275 = vpop.permute.xlu0 %6274
        %v6276 = vsel %vm613, %v6269, 0
        %v6278 = vsel %vm613, %v6271, 0
        %v6280 = vsel %vm613, %v6273, 0
        %v6282 = vsel %vm613, %v6275, 0
        %6284 = vmatprep.subr.mxu0 0.0
        %6285 = vmatpush1.xpose.msra.mxu0 %v6280
        %6286 = vmatprep.subr.mxu0 0.0
        %6287 = vmatpush1.xpose.msra.mxu0 %v6282
        %6288 = vmatprep.subr.mxu0 0.0
        %6289 = vmatpush1.xpose.msra.mxu0 0.0
        %6290 = vmatprep.subr.mxu0 0.0
        %6291 = vmatpush1.xpose.msra.mxu0 0.0
        %6292 = vmatprep.subr.mxu0 0.0
        %6293 = vmatpush1.xpose.msra.mxu0 0.0
        %6294 = vmatprep.subr.mxu0 0.0
        %6295 = vmatpush1.xpose.msra.mxu0 0.0
        %6296 = vmatprep.subr.mxu0 0.0
        %6297 = vmatpush1.xpose.msra.mxu0 0.0
        %6298 = vmatprep.subr.mxu0 0.0
        %6299 = vmatpush1.xpose.msra.mxu0 0.0
        %6300 = vmatprep.subr.mxu0 0.0
        %6301 = vmatpush1.xpose.msra.mxu0 0.0
        %6302 = vmatprep.subr.mxu0 0.0
        %6303 = vmatpush1.xpose.msra.mxu0 0.0
        %6304 = vmatprep.subr.mxu0 0.0
        %6305 = vmatpush1.xpose.msra.mxu0 0.0
        %6306 = vmatprep.subr.mxu0 0.0
        %6307 = vmatpush1.xpose.msra.mxu0 0.0
        %6308 = vmatprep.subr.mxu0 0.0
        %6309 = vmatpush1.xpose.msra.mxu0 0.0
        %6310 = vmatprep.subr.mxu0 0.0
        %6311 = vmatpush1.xpose.msra.mxu0 0.0
        %6312 = vmatprep.subr.mxu0 0.0
        %6313 = vmatpush1.xpose.msra.mxu0 0.0
        %6314 = vmatprep.subr.mxu0 0.0
        %6315 = vmatpush1.xpose.msra.mxu0 0.0
        %6316 = vmatprep.subr.mxu0 0.0
        %6317 = vmatpush1.xpose.msra.mxu0 0.0
        %6318 = vmatprep.subr.mxu0 0.0
        %6319 = vmatpush1.xpose.msra.mxu0 0.0
        %6320 = vmatprep.subr.mxu0 0.0
        %6321 = vmatpush1.xpose.msra.mxu0 0.0
        %6322 = vmatprep.subr.mxu0 0.0
        %6323 = vmatpush1.xpose.msra.mxu0 0.0
        %6324 = vmatprep.subr.mxu0 0.0
        %6325 = vmatpush1.xpose.msra.mxu0 0.0
        %6326 = vmatprep.subr.mxu0 0.0
        %6327 = vmatpush1.xpose.msra.mxu0 0.0
        %6328 = vmatprep.subr.mxu0 0.0
        %6329 = vmatpush1.xpose.msra.mxu0 0.0
        %6330 = vmatprep.subr.mxu0 0.0
        %6331 = vmatpush1.xpose.msra.mxu0 0.0
        %6332 = vmatprep.subr.mxu0 0.0
        %6333 = vmatpush1.xpose.msra.mxu0 0.0
        %6334 = vmatprep.subr.mxu0 0.0
        %6335 = vmatpush1.xpose.msra.mxu0 0.0
        %6336 = vmatprep.subr.mxu0 0.0
        %6337 = vmatpush1.xpose.msra.mxu0 0.0
        %6338 = vmatprep.subr.mxu0 0.0
        %6339 = vmatpush1.xpose.msra.mxu0 0.0
        %6340 = vmatprep.subr.mxu0 0.0
        %6341 = vmatpush1.xpose.msra.mxu0 0.0
        %6342 = vmatprep.subr.mxu0 0.0
        %6343 = vmatpush1.xpose.msra.mxu0 0.0
        %6344 = vmatprep.subr.mxu0 0.0
        %6345 = vmatpush1.xpose.msra.mxu0 0.0
        %6346 = vmatprep.subr.mxu0 0.0
        %6347 = vmatpush1.xpose.msra.mxu0 0.0
        %6348 = vmatprep.mubr.f32.mxu0 0.0
        %6349 = vmatmul.mubr.f32.gmra.mrb[0].mxu0 %v6276
        %v6350 = vpop.f32.mrb[0].mxu0
        %v6351 = vadd.f32 %v5706, %v6350
        %v6352 = vpop.f32.mrb[0].mxu0
        %6353 = vmatprep.mubr.f32.mxu0 0.0
        %6354 = vmatmul.mubr.f32.gmra.mrb[0].mxu0 %v6278
        %v6355 = vpop.f32.mrb[0].mxu0
        %v6356 = vadd.f32 %v5707, %v6355
        %v6357 = vpop.f32.mrb[0].mxu0
        %6358 = vdwg.mxu0
        %6361 = vrot.lane.b32.xlu0 %v5703, 104
        %v6362 = vpop.permute.xlu0 %6361
        %6363 = vrot.lane.b32.xlu0 %v5704, 104
        %v6364 = vpop.permute.xlu0 %6363
        %6365 = vrot.lane.b32.xlu0 %v5703, 72
        %v6366 = vpop.permute.xlu0 %6365
        %6367 = vrot.lane.b32.xlu0 %v5704, 72
        %v6368 = vpop.permute.xlu0 %6367
        %v6369 = vsel %vm613, %v6362, 0
        %v6371 = vsel %vm613, %v6364, 0
        %v6373 = vsel %vm613, %v6366, 0
        %v6375 = vsel %vm613, %v6368, 0
        %6377 = vmatprep.subr.mxu0 0.0
        %6378 = vmatpush1.xpose.msra.mxu0 %v6373
        %6379 = vmatprep.subr.mxu0 0.0
        %6380 = vmatpush1.xpose.msra.mxu0 %v6375
        %6381 = vmatprep.subr.mxu0 0.0
        %6382 = vmatpush1.xpose.msra.mxu0 0.0
        %6383 = vmatprep.subr.mxu0 0.0
        %6384 = vmatpush1.xpose.msra.mxu0 0.0
        %6385 = vmatprep.subr.mxu0 0.0
        %6386 = vmatpush1.xpose.msra.mxu0 0.0
        %6387 = vmatprep.subr.mxu0 0.0
        %6388 = vmatpush1.xpose.msra.mxu0 0.0
        %6389 = vmatprep.subr.mxu0 0.0
        %6390 = vmatpush1.xpose.msra.mxu0 0.0
        %6391 = vmatprep.subr.mxu0 0.0
        %6392 = vmatpush1.xpose.msra.mxu0 0.0
        %6393 = vmatprep.subr.mxu0 0.0
        %6394 = vmatpush1.xpose.msra.mxu0 0.0
        %6395 = vmatprep.subr.mxu0 0.0
        %6396 = vmatpush1.xpose.msra.mxu0 0.0
        %6397 = vmatprep.subr.mxu0 0.0
        %6398 = vmatpush1.xpose.msra.mxu0 0.0
        %6399 = vmatprep.subr.mxu0 0.0
        %6400 = vmatpush1.xpose.msra.mxu0 0.0
        %6401 = vmatprep.subr.mxu0 0.0
        %6402 = vmatpush1.xpose.msra.mxu0 0.0
        %6403 = vmatprep.subr.mxu0 0.0
        %6404 = vmatpush1.xpose.msra.mxu0 0.0
        %6405 = vmatprep.subr.mxu0 0.0
        %6406 = vmatpush1.xpose.msra.mxu0 0.0
        %6407 = vmatprep.subr.mxu0 0.0
        %6408 = vmatpush1.xpose.msra.mxu0 0.0
        %6409 = vmatprep.subr.mxu0 0.0
        %6410 = vmatpush1.xpose.msra.mxu0 0.0
        %6411 = vmatprep.subr.mxu0 0.0
        %6412 = vmatpush1.xpose.msra.mxu0 0.0
        %6413 = vmatprep.subr.mxu0 0.0
        %6414 = vmatpush1.xpose.msra.mxu0 0.0
        %6415 = vmatprep.subr.mxu0 0.0
        %6416 = vmatpush1.xpose.msra.mxu0 0.0
        %6417 = vmatprep.subr.mxu0 0.0
        %6418 = vmatpush1.xpose.msra.mxu0 0.0
        %6419 = vmatprep.subr.mxu0 0.0
        %6420 = vmatpush1.xpose.msra.mxu0 0.0
        %6421 = vmatprep.subr.mxu0 0.0
        %6422 = vmatpush1.xpose.msra.mxu0 0.0
        %6423 = vmatprep.subr.mxu0 0.0
        %6424 = vmatpush1.xpose.msra.mxu0 0.0
        %6425 = vmatprep.subr.mxu0 0.0
        %6426 = vmatpush1.xpose.msra.mxu0 0.0
        %6427 = vmatprep.subr.mxu0 0.0
        %6428 = vmatpush1.xpose.msra.mxu0 0.0
        %6429 = vmatprep.subr.mxu0 0.0
        %6430 = vmatpush1.xpose.msra.mxu0 0.0
        %6431 = vmatprep.subr.mxu0 0.0
        %6432 = vmatpush1.xpose.msra.mxu0 0.0
        %6433 = vmatprep.subr.mxu0 0.0
        %6434 = vmatpush1.xpose.msra.mxu0 0.0
        %6435 = vmatprep.subr.mxu0 0.0
        %6436 = vmatpush1.xpose.msra.mxu0 0.0
        %6437 = vmatprep.subr.mxu0 0.0
        %6438 = vmatpush1.xpose.msra.mxu0 0.0
        %6439 = vmatprep.subr.mxu0 0.0
        %6440 = vmatpush1.xpose.msra.mxu0 0.0
        %6441 = vmatprep.mubr.f32.mxu0 0.0
        %6442 = vmatmul.mubr.f32.gmra.mrb[0].mxu0 %v6369
        %v6443 = vpop.f32.mrb[0].mxu0
        %v6444 = vadd.f32 %v5706, %v6443
        %v6445 = vpop.f32.mrb[0].mxu0
        %6446 = vmatprep.mubr.f32.mxu0 0.0
        %6447 = vmatmul.mubr.f32.gmra.mrb[0].mxu0 %v6371
        %v6448 = vpop.f32.mrb[0].mxu0
        %v6449 = vadd.f32 %v5707, %v6448
        %v6450 = vpop.f32.mrb[0].mxu0
        %6451 = vdwg.mxu0
        %v6452 = vadd.f32 %v5793, %v573
        %v6453 = vadd.f32 %v5798, %v574
        %v6454 = vadd.f32 %v5886, %v575
        %v6455 = vadd.f32 %v5891, %v576
        %v6456 = vadd.f32 %v5979, %v577
        %v6457 = vadd.f32 %v5984, %v578
        %v6458 = vadd.f32 %v6072, %v579
        %v6459 = vadd.f32 %v6077, %v580
        %v6460 = vadd.f32 %v6165, %v581
        %v6461 = vadd.f32 %v6170, %v582
        %v6462 = vadd.f32 %v6258, %v583
        %v6463 = vadd.f32 %v6263, %v584
        %v6464 = vadd.f32 %v6351, %v585
        %v6465 = vadd.f32 %v6356, %v586
        %v6466 = vadd.f32 %v6444, %v587
        %v6467 = vadd.f32 %v6449, %v588
        %v6468 = vsel %vm1336, %v6452, -inf
        %6469 = vmax.xlane.f32.xlu0 %v6468
        %v6470 = vpop.xlane.xlu0 %6469
        %v6471 = vsel %vm1336, %v6453, -inf
        %6472 = vmax.xlane.f32.xlu0 %v6471
        %v6473 = vpop.xlane.xlu0 %6472
        %v6474 = vsel %vm1336, %v6454, -inf
        %6475 = vmax.xlane.f32.xlu0 %v6474
        %v6476 = vpop.xlane.xlu0 %6475
        %v6477 = vsel %vm1336, %v6455, -inf
        %6478 = vmax.xlane.f32.xlu0 %v6477
        %v6479 = vpop.xlane.xlu0 %6478
        %v6480 = vsel %vm1336, %v6456, -inf
        %6481 = vmax.xlane.f32.xlu0 %v6480
        %v6482 = vpop.xlane.xlu0 %6481
        %v6483 = vsel %vm1336, %v6457, -inf
        %6484 = vmax.xlane.f32.xlu0 %v6483
        %v6485 = vpop.xlane.xlu0 %6484
        %v6486 = vsel %vm1336, %v6458, -inf
        %6487 = vmax.xlane.f32.xlu0 %v6486
        %v6488 = vpop.xlane.xlu0 %6487
        %v6489 = vsel %vm1336, %v6459, -inf
        %6490 = vmax.xlane.f32.xlu0 %v6489
        %v6491 = vpop.xlane.xlu0 %6490
        %v6492 = vsel %vm1336, %v6460, -inf
        %6493 = vmax.xlane.f32.xlu0 %v6492
        %v6494 = vpop.xlane.xlu0 %6493
        %v6495 = vsel %vm1336, %v6461, -inf
        %6496 = vmax.xlane.f32.xlu0 %v6495
        %v6497 = vpop.xlane.xlu0 %6496
        %v6498 = vsel %vm1336, %v6462, -inf
        %6499 = vmax.xlane.f32.xlu0 %v6498
        %v6500 = vpop.xlane.xlu0 %6499
        %v6501 = vsel %vm1336, %v6463, -inf
        %6502 = vmax.xlane.f32.xlu0 %v6501
        %v6503 = vpop.xlane.xlu0 %6502
        %v6504 = vsel %vm1336, %v6464, -inf
        %6505 = vmax.xlane.f32.xlu0 %v6504
        %v6506 = vpop.xlane.xlu0 %6505
        %v6507 = vsel %vm1336, %v6465, -inf
        %6508 = vmax.xlane.f32.xlu0 %v6507
        %v6509 = vpop.xlane.xlu0 %6508
        %v6510 = vsel %vm1336, %v6466, -inf
        %6511 = vmax.xlane.f32.xlu0 %v6510
        %v6512 = vpop.xlane.xlu0 %6511
        %v6513 = vsel %vm1336, %v6467, -inf
        %6514 = vmax.xlane.f32.xlu0 %v6513
        %v6515 = vpop.xlane.xlu0 %6514
        %v6516 = vsub.f32 %v6452, %v6470
        %v6517 = vsub.f32 %v6453, %v6473
        %v6518 = vsub.f32 %v6454, %v6476
        %v6519 = vsub.f32 %v6455, %v6479
        %v6520 = vsub.f32 %v6456, %v6482
        %v6521 = vsub.f32 %v6457, %v6485
        %v6522 = vsub.f32 %v6458, %v6488
        %v6523 = vsub.f32 %v6459, %v6491
        %v6524 = vsub.f32 %v6460, %v6494
        %v6525 = vsub.f32 %v6461, %v6497
        %v6526 = vsub.f32 %v6462, %v6500
        %v6527 = vsub.f32 %v6463, %v6503
        %v6528 = vsub.f32 %v6464, %v6506
        %v6529 = vsub.f32 %v6465, %v6509
        %v6530 = vsub.f32 %v6466, %v6512
        %v6531 = vsub.f32 %v6467, %v6515
        %v6532 = vmul.f32 %v6516, 1.442695
        %v6533 = vpow.pop %v6532
        %v6534 = vmul.f32 %v6517, 1.442695
        %v6535 = vpow.pop %v6534
        %v6536 = vmul.f32 %v6518, 1.442695
        %v6537 = vpow.pop %v6536
        %v6538 = vmul.f32 %v6519, 1.442695
        %v6539 = vpow.pop %v6538
        %v6540 = vmul.f32 %v6520, 1.442695
        %v6541 = vpow.pop %v6540
        %v6542 = vmul.f32 %v6521, 1.442695
        %v6543 = vpow.pop %v6542
        %v6544 = vmul.f32 %v6522, 1.442695
        %v6545 = vpow.pop %v6544
        %v6546 = vmul.f32 %v6523, 1.442695
        %v6547 = vpow.pop %v6546
        %v6548 = vmul.f32 %v6524, 1.442695
        %v6549 = vpow.pop %v6548
        %v6550 = vmul.f32 %v6525, 1.442695
        %v6551 = vpow.pop %v6550
        %v6552 = vmul.f32 %v6526, 1.442695
        %v6553 = vpow.pop %v6552
        %v6554 = vmul.f32 %v6527, 1.442695
        %v6555 = vpow.pop %v6554
        %v6556 = vmul.f32 %v6528, 1.442695
        %v6557 = vpow.pop %v6556
        %v6558 = vmul.f32 %v6529, 1.442695
        %v6559 = vpow.pop %v6558
        %v6560 = vmul.f32 %v6530, 1.442695
        %v6561 = vpow.pop %v6560
        %v6562 = vmul.f32 %v6531, 1.442695
        %v6563 = vpow.pop %v6562
        %v6564 = vsel %vm1336, %v6533, 0.0
        %6565 = vadd.xlane.f32.xlu0 %v6564
        %v6566 = vpop.xlane.xlu0 %6565
        %v6567 = vsel %vm1336, %v6535, 0.0
        %6568 = vadd.xlane.f32.xlu0 %v6567
        %v6569 = vpop.xlane.xlu0 %6568
        %v6570 = vsel %vm1336, %v6537, 0.0
        %6571 = vadd.xlane.f32.xlu0 %v6570
        %v6572 = vpop.xlane.xlu0 %6571
        %v6573 = vsel %vm1336, %v6539, 0.0
        %6574 = vadd.xlane.f32.xlu0 %v6573
        %v6575 = vpop.xlane.xlu0 %6574
        %v6576 = vsel %vm1336, %v6541, 0.0
        %6577 = vadd.xlane.f32.xlu0 %v6576
        %v6578 = vpop.xlane.xlu0 %6577
        %v6579 = vsel %vm1336, %v6543, 0.0
        %6580 = vadd.xlane.f32.xlu0 %v6579
        %v6581 = vpop.xlane.xlu0 %6580
        %v6582 = vsel %vm1336, %v6545, 0.0
        %6583 = vadd.xlane.f32.xlu0 %v6582
        %v6584 = vpop.xlane.xlu0 %6583
        %v6585 = vsel %vm1336, %v6547, 0.0
        %6586 = vadd.xlane.f32.xlu0 %v6585
        %v6587 = vpop.xlane.xlu0 %6586
        %v6588 = vsel %vm1336, %v6549, 0.0
        %6589 = vadd.xlane.f32.xlu0 %v6588
        %v6590 = vpop.xlane.xlu0 %6589
        %v6591 = vsel %vm1336, %v6551, 0.0
        %6592 = vadd.xlane.f32.xlu0 %v6591
        %v6593 = vpop.xlane.xlu0 %6592
        %v6594 = vsel %vm1336, %v6553, 0.0
        %6595 = vadd.xlane.f32.xlu0 %v6594
        %v6596 = vpop.xlane.xlu0 %6595
        %v6597 = vsel %vm1336, %v6555, 0.0
        %6598 = vadd.xlane.f32.xlu0 %v6597
        %v6599 = vpop.xlane.xlu0 %6598
        %v6600 = vsel %vm1336, %v6557, 0.0
        %6601 = vadd.xlane.f32.xlu0 %v6600
        %v6602 = vpop.xlane.xlu0 %6601
        %v6603 = vsel %vm1336, %v6559, 0.0
        %6604 = vadd.xlane.f32.xlu0 %v6603
        %v6605 = vpop.xlane.xlu0 %6604
        %v6606 = vsel %vm1336, %v6561, 0.0
        %6607 = vadd.xlane.f32.xlu0 %v6606
        %v6608 = vpop.xlane.xlu0 %6607
        %v6609 = vsel %vm1336, %v6563, 0.0
        %6610 = vadd.xlane.f32.xlu0 %v6609
        %v6611 = vpop.xlane.xlu0 %6610
        %v6612 = vrcp.pop %v6566
        %v6613 = vrcp.pop %v6569
        %v6614 = vrcp.pop %v6572
        %v6615 = vrcp.pop %v6575
        %v6616 = vrcp.pop %v6578
        %v6617 = vrcp.pop %v6581
        %v6618 = vrcp.pop %v6584
        %v6619 = vrcp.pop %v6587
        %v6620 = vrcp.pop %v6590
        %v6621 = vrcp.pop %v6593
        %v6622 = vrcp.pop %v6596
        %v6623 = vrcp.pop %v6599
        %v6624 = vrcp.pop %v6602
        %v6625 = vrcp.pop %v6605
        %v6626 = vrcp.pop %v6608
        %v6627 = vrcp.pop %v6611
        %v6628 = vmul.f32 %v6533, %v6612
        %v6629 = vmul.f32 %v6535, %v6613
        %v6630 = vmul.f32 %v6537, %v6614
        %v6631 = vmul.f32 %v6539, %v6615
        %v6632 = vmul.f32 %v6541, %v6616
        %v6633 = vmul.f32 %v6543, %v6617
        %v6634 = vmul.f32 %v6545, %v6618
        %v6635 = vmul.f32 %v6547, %v6619
        %v6636 = vmul.f32 %v6549, %v6620
        %v6637 = vmul.f32 %v6551, %v6621
        %v6638 = vmul.f32 %v6553, %v6622
        %v6639 = vmul.f32 %v6555, %v6623
        %v6640 = vmul.f32 %v6557, %v6624
        %v6641 = vmul.f32 %v6559, %v6625
        %v6642 = vmul.f32 %v6561, %v6626
        %v6643 = vmul.f32 %v6563, %v6627
        %6644 = vrot.lane.b32.xlu0 %v5689, 40
        %v6645 = vpop.permute.xlu0 %6644
        %6646 = vrot.lane.b32.xlu0 %v5690, 40
        %v6647 = vpop.permute.xlu0 %6646
        %v6651 = vsel %vm1336, %v6628, 0
        %v6654 = vsel %vm1336, %v6629, 0
        %6656 = vmatprep.subr.mxu0 0.0
        %6657 = vmatpush1.msra.mxu0 %v6645
        %6658 = vmatprep.subr.mxu0 0.0
        %6659 = vmatpush1.msra.mxu0 %v6647
        %6660 = vmatprep.subr.mxu0 0.0
        %6661 = vmatpush1.msra.mxu0 0.0
        %6662 = vmatprep.subr.mxu0 0.0
        %6663 = vmatpush1.msra.mxu0 0.0
        %6664 = vmatprep.subr.mxu0 0.0
        %6665 = vmatpush1.msra.mxu0 0.0
        %6666 = vmatprep.subr.mxu0 0.0
        %6667 = vmatpush1.msra.mxu0 0.0
        %6668 = vmatprep.subr.mxu0 0.0
        %6669 = vmatpush1.msra.mxu0 0.0
        %6670 = vmatprep.subr.mxu0 0.0
        %6671 = vmatpush1.msra.mxu0 0.0
        %6672 = vmatprep.subr.mxu0 0.0
        %6673 = vmatpush1.msra.mxu0 0.0
        %6674 = vmatprep.subr.mxu0 0.0
        %6675 = vmatpush1.msra.mxu0 0.0
        %6676 = vmatprep.subr.mxu0 0.0
        %6677 = vmatpush1.msra.mxu0 0.0
        %6678 = vmatprep.subr.mxu0 0.0
        %6679 = vmatpush1.msra.mxu0 0.0
        %6680 = vmatprep.subr.mxu0 0.0
        %6681 = vmatpush1.msra.mxu0 0.0
        %6682 = vmatprep.subr.mxu0 0.0
        %6683 = vmatpush1.msra.mxu0 0.0
        %6684 = vmatprep.subr.mxu0 0.0
        %6685 = vmatpush1.msra.mxu0 0.0
        %6686 = vmatprep.subr.mxu0 0.0
        %6687 = vmatpush1.msra.mxu0 0.0
        %6688 = vmatprep.subr.mxu0 0.0
        %6689 = vmatpush1.msra.mxu0 0.0
        %6690 = vmatprep.subr.mxu0 0.0
        %6691 = vmatpush1.msra.mxu0 0.0
        %6692 = vmatprep.subr.mxu0 0.0
        %6693 = vmatpush1.msra.mxu0 0.0
        %6694 = vmatprep.subr.mxu0 0.0
        %6695 = vmatpush1.msra.mxu0 0.0
        %6696 = vmatprep.subr.mxu0 0.0
        %6697 = vmatpush1.msra.mxu0 0.0
        %6698 = vmatprep.subr.mxu0 0.0
        %6699 = vmatpush1.msra.mxu0 0.0
        %6700 = vmatprep.subr.mxu0 0.0
        %6701 = vmatpush1.msra.mxu0 0.0
        %6702 = vmatprep.subr.mxu0 0.0
        %6703 = vmatpush1.msra.mxu0 0.0
        %6704 = vmatprep.subr.mxu0 0.0
        %6705 = vmatpush1.msra.mxu0 0.0
        %6706 = vmatprep.subr.mxu0 0.0
        %6707 = vmatpush1.msra.mxu0 0.0
        %6708 = vmatprep.subr.mxu0 0.0
        %6709 = vmatpush1.msra.mxu0 0.0
        %6710 = vmatprep.subr.mxu0 0.0
        %6711 = vmatpush1.msra.mxu0 0.0
        %6712 = vmatprep.subr.mxu0 0.0
        %6713 = vmatpush1.msra.mxu0 0.0
        %6714 = vmatprep.subr.mxu0 0.0
        %6715 = vmatpush1.msra.mxu0 0.0
        %6716 = vmatprep.subr.mxu0 0.0
        %6717 = vmatpush1.msra.mxu0 0.0
        %6718 = vmatprep.subr.mxu0 0.0
        %6719 = vmatpush1.msra.mxu0 0.0
        %6720 = vmatprep.mubr.f32.mxu0 0.0
        %6721 = vmatmul.mubr.f32.gmra.mrb[0].mxu0 %v6651
        %v6722 = vpop.f32.mrb[0].mxu0
        %v6723 = vadd.f32 0.0, %v6722
        %v6724 = vpop.f32.mrb[0].mxu0
        %6725 = vmatprep.mubr.f32.mxu0 0.0
        %6726 = vmatmul.mubr.f32.gmra.mrb[0].mxu0 %v6654
        %v6727 = vpop.f32.mrb[0].mxu0
        %v6728 = vadd.f32 0.0, %v6727
        %v6729 = vpop.f32.mrb[0].mxu0
        %6730 = vdwg.mxu0
        %6731 = vrot.lane.b32.xlu0 %v5691, 40
        %v6732 = vpop.permute.xlu0 %6731
        %6733 = vrot.lane.b32.xlu0 %v5692, 40
        %v6734 = vpop.permute.xlu0 %6733
        %v6738 = vsel %vm1336, %v6630, 0
        %v6741 = vsel %vm1336, %v6631, 0
        %6743 = vmatprep.subr.mxu0 0.0
        %6744 = vmatpush1.msra.mxu0 %v6732
        %6745 = vmatprep.subr.mxu0 0.0
        %6746 = vmatpush1.msra.mxu0 %v6734
        %6747 = vmatprep.subr.mxu0 0.0
        %6748 = vmatpush1.msra.mxu0 0.0
        %6749 = vmatprep.subr.mxu0 0.0
        %6750 = vmatpush1.msra.mxu0 0.0
        %6751 = vmatprep.subr.mxu0 0.0
        %6752 = vmatpush1.msra.mxu0 0.0
        %6753 = vmatprep.subr.mxu0 0.0
        %6754 = vmatpush1.msra.mxu0 0.0
        %6755 = vmatprep.subr.mxu0 0.0
        %6756 = vmatpush1.msra.mxu0 0.0
        %6757 = vmatprep.subr.mxu0 0.0
        %6758 = vmatpush1.msra.mxu0 0.0
        %6759 = vmatprep.subr.mxu0 0.0
        %6760 = vmatpush1.msra.mxu0 0.0
        %6761 = vmatprep.subr.mxu0 0.0
        %6762 = vmatpush1.msra.mxu0 0.0
        %6763 = vmatprep.subr.mxu0 0.0
        %6764 = vmatpush1.msra.mxu0 0.0
        %6765 = vmatprep.subr.mxu0 0.0
        %6766 = vmatpush1.msra.mxu0 0.0
        %6767 = vmatprep.subr.mxu0 0.0
        %6768 = vmatpush1.msra.mxu0 0.0
        %6769 = vmatprep.subr.mxu0 0.0
        %6770 = vmatpush1.msra.mxu0 0.0
        %6771 = vmatprep.subr.mxu0 0.0
        %6772 = vmatpush1.msra.mxu0 0.0
        %6773 = vmatprep.subr.mxu0 0.0
        %6774 = vmatpush1.msra.mxu0 0.0
        %6775 = vmatprep.subr.mxu0 0.0
        %6776 = vmatpush1.msra.mxu0 0.0
        %6777 = vmatprep.subr.mxu0 0.0
        %6778 = vmatpush1.msra.mxu0 0.0
        %6779 = vmatprep.subr.mxu0 0.0
        %6780 = vmatpush1.msra.mxu0 0.0
        %6781 = vmatprep.subr.mxu0 0.0
        %6782 = vmatpush1.msra.mxu0 0.0
        %6783 = vmatprep.subr.mxu0 0.0
        %6784 = vmatpush1.msra.mxu0 0.0
        %6785 = vmatprep.subr.mxu0 0.0
        %6786 = vmatpush1.msra.mxu0 0.0
        %6787 = vmatprep.subr.mxu0 0.0
        %6788 = vmatpush1.msra.mxu0 0.0
        %6789 = vmatprep.subr.mxu0 0.0
        %6790 = vmatpush1.msra.mxu0 0.0
        %6791 = vmatprep.subr.mxu0 0.0
        %6792 = vmatpush1.msra.mxu0 0.0
        %6793 = vmatprep.subr.mxu0 0.0
        %6794 = vmatpush1.msra.mxu0 0.0
        %6795 = vmatprep.subr.mxu0 0.0
        %6796 = vmatpush1.msra.mxu0 0.0
        %6797 = vmatprep.subr.mxu0 0.0
        %6798 = vmatpush1.msra.mxu0 0.0
        %6799 = vmatprep.subr.mxu0 0.0
        %6800 = vmatpush1.msra.mxu0 0.0
        %6801 = vmatprep.subr.mxu0 0.0
        %6802 = vmatpush1.msra.mxu0 0.0
        %6803 = vmatprep.subr.mxu0 0.0
        %6804 = vmatpush1.msra.mxu0 0.0
        %6805 = vmatprep.subr.mxu0 0.0
        %6806 = vmatpush1.msra.mxu0 0.0
        %6807 = vmatprep.mubr.f32.mxu0 0.0
        %6808 = vmatmul.mubr.f32.gmra.mrb[0].mxu0 %v6738
        %v6809 = vpop.f32.mrb[0].mxu0
        %v6810 = vadd.f32 0.0, %v6809
        %v6811 = vpop.f32.mrb[0].mxu0
        %6812 = vmatprep.mubr.f32.mxu0 0.0
        %6813 = vmatmul.mubr.f32.gmra.mrb[0].mxu0 %v6741
        %v6814 = vpop.f32.mrb[0].mxu0
        %v6815 = vadd.f32 0.0, %v6814
        %v6816 = vpop.f32.mrb[0].mxu0
        %6817 = vdwg.mxu0
        %6818 = vrot.lane.b32.xlu0 %v5693, 40
        %v6819 = vpop.permute.xlu0 %6818
        %6820 = vrot.lane.b32.xlu0 %v5694, 40
        %v6821 = vpop.permute.xlu0 %6820
        %v6825 = vsel %vm1336, %v6632, 0
        %v6828 = vsel %vm1336, %v6633, 0
        %6830 = vmatprep.subr.mxu0 0.0
        %6831 = vmatpush1.msra.mxu0 %v6819
        %6832 = vmatprep.subr.mxu0 0.0
        %6833 = vmatpush1.msra.mxu0 %v6821
        %6834 = vmatprep.subr.mxu0 0.0
        %6835 = vmatpush1.msra.mxu0 0.0
        %6836 = vmatprep.subr.mxu0 0.0
        %6837 = vmatpush1.msra.mxu0 0.0
        %6838 = vmatprep.subr.mxu0 0.0
        %6839 = vmatpush1.msra.mxu0 0.0
        %6840 = vmatprep.subr.mxu0 0.0
        %6841 = vmatpush1.msra.mxu0 0.0
        %6842 = vmatprep.subr.mxu0 0.0
        %6843 = vmatpush1.msra.mxu0 0.0
        %6844 = vmatprep.subr.mxu0 0.0
        %6845 = vmatpush1.msra.mxu0 0.0
        %6846 = vmatprep.subr.mxu0 0.0
        %6847 = vmatpush1.msra.mxu0 0.0
        %6848 = vmatprep.subr.mxu0 0.0
        %6849 = vmatpush1.msra.mxu0 0.0
        %6850 = vmatprep.subr.mxu0 0.0
        %6851 = vmatpush1.msra.mxu0 0.0
        %6852 = vmatprep.subr.mxu0 0.0
        %6853 = vmatpush1.msra.mxu0 0.0
        %6854 = vmatprep.subr.mxu0 0.0
        %6855 = vmatpush1.msra.mxu0 0.0
        %6856 = vmatprep.subr.mxu0 0.0
        %6857 = vmatpush1.msra.mxu0 0.0
        %6858 = vmatprep.subr.mxu0 0.0
        %6859 = vmatpush1.msra.mxu0 0.0
        %6860 = vmatprep.subr.mxu0 0.0
        %6861 = vmatpush1.msra.mxu0 0.0
        %6862 = vmatprep.subr.mxu0 0.0
        %6863 = vmatpush1.msra.mxu0 0.0
        %6864 = vmatprep.subr.mxu0 0.0
        %6865 = vmatpush1.msra.mxu0 0.0
        %6866 = vmatprep.subr.mxu0 0.0
        %6867 = vmatpush1.msra.mxu0 0.0
        %6868 = vmatprep.subr.mxu0 0.0
        %6869 = vmatpush1.msra.mxu0 0.0
        %6870 = vmatprep.subr.mxu0 0.0
        %6871 = vmatpush1.msra.mxu0 0.0
        %6872 = vmatprep.subr.mxu0 0.0
        %6873 = vmatpush1.msra.mxu0 0.0
        %6874 = vmatprep.subr.mxu0 0.0
        %6875 = vmatpush1.msra.mxu0 0.0
        %6876 = vmatprep.subr.mxu0 0.0
        %6877 = vmatpush1.msra.mxu0 0.0
        %6878 = vmatprep.subr.mxu0 0.0
        %6879 = vmatpush1.msra.mxu0 0.0
        %6880 = vmatprep.subr.mxu0 0.0
        %6881 = vmatpush1.msra.mxu0 0.0
        %6882 = vmatprep.subr.mxu0 0.0
        %6883 = vmatpush1.msra.mxu0 0.0
        %6884 = vmatprep.subr.mxu0 0.0
        %6885 = vmatpush1.msra.mxu0 0.0
        %6886 = vmatprep.subr.mxu0 0.0
        %6887 = vmatpush1.msra.mxu0 0.0
        %6888 = vmatprep.subr.mxu0 0.0
        %6889 = vmatpush1.msra.mxu0 0.0
        %6890 = vmatprep.subr.mxu0 0.0
        %6891 = vmatpush1.msra.mxu0 0.0
        %6892 = vmatprep.subr.mxu0 0.0
        %6893 = vmatpush1.msra.mxu0 0.0
        %6894 = vmatprep.mubr.f32.mxu0 0.0
        %6895 = vmatmul.mubr.f32.gmra.mrb[0].mxu0 %v6825
        %v6896 = vpop.f32.mrb[0].mxu0
        %v6897 = vadd.f32 0.0, %v6896
        %v6898 = vpop.f32.mrb[0].mxu0
        %6899 = vmatprep.mubr.f32.mxu0 0.0
        %6900 = vmatmul.mubr.f32.gmra.mrb[0].mxu0 %v6828
        %v6901 = vpop.f32.mrb[0].mxu0
        %v6902 = vadd.f32 0.0, %v6901
        %v6903 = vpop.f32.mrb[0].mxu0
        %6904 = vdwg.mxu0
        %6905 = vrot.lane.b32.xlu0 %v5695, 40
        %v6906 = vpop.permute.xlu0 %6905
        %6907 = vrot.lane.b32.xlu0 %v5696, 40
        %v6908 = vpop.permute.xlu0 %6907
        %v6912 = vsel %vm1336, %v6634, 0
        %v6915 = vsel %vm1336, %v6635, 0
        %6917 = vmatprep.subr.mxu0 0.0
        %6918 = vmatpush1.msra.mxu0 %v6906
        %6919 = vmatprep.subr.mxu0 0.0
        %6920 = vmatpush1.msra.mxu0 %v6908
        %6921 = vmatprep.subr.mxu0 0.0
        %6922 = vmatpush1.msra.mxu0 0.0
        %6923 = vmatprep.subr.mxu0 0.0
        %6924 = vmatpush1.msra.mxu0 0.0
        %6925 = vmatprep.subr.mxu0 0.0
        %6926 = vmatpush1.msra.mxu0 0.0
        %6927 = vmatprep.subr.mxu0 0.0
        %6928 = vmatpush1.msra.mxu0 0.0
        %6929 = vmatprep.subr.mxu0 0.0
        %6930 = vmatpush1.msra.mxu0 0.0
        %6931 = vmatprep.subr.mxu0 0.0
        %6932 = vmatpush1.msra.mxu0 0.0
        %6933 = vmatprep.subr.mxu0 0.0
        %6934 = vmatpush1.msra.mxu0 0.0
        %6935 = vmatprep.subr.mxu0 0.0
        %6936 = vmatpush1.msra.mxu0 0.0
        %6937 = vmatprep.subr.mxu0 0.0
        %6938 = vmatpush1.msra.mxu0 0.0
        %6939 = vmatprep.subr.mxu0 0.0
        %6940 = vmatpush1.msra.mxu0 0.0
        %6941 = vmatprep.subr.mxu0 0.0
        %6942 = vmatpush1.msra.mxu0 0.0
        %6943 = vmatprep.subr.mxu0 0.0
        %6944 = vmatpush1.msra.mxu0 0.0
        %6945 = vmatprep.subr.mxu0 0.0
        %6946 = vmatpush1.msra.mxu0 0.0
        %6947 = vmatprep.subr.mxu0 0.0
        %6948 = vmatpush1.msra.mxu0 0.0
        %6949 = vmatprep.subr.mxu0 0.0
        %6950 = vmatpush1.msra.mxu0 0.0
        %6951 = vmatprep.subr.mxu0 0.0
        %6952 = vmatpush1.msra.mxu0 0.0
        %6953 = vmatprep.subr.mxu0 0.0
        %6954 = vmatpush1.msra.mxu0 0.0
        %6955 = vmatprep.subr.mxu0 0.0
        %6956 = vmatpush1.msra.mxu0 0.0
        %6957 = vmatprep.subr.mxu0 0.0
        %6958 = vmatpush1.msra.mxu0 0.0
        %6959 = vmatprep.subr.mxu0 0.0
        %6960 = vmatpush1.msra.mxu0 0.0
        %6961 = vmatprep.subr.mxu0 0.0
        %6962 = vmatpush1.msra.mxu0 0.0
        %6963 = vmatprep.subr.mxu0 0.0
        %6964 = vmatpush1.msra.mxu0 0.0
        %6965 = vmatprep.subr.mxu0 0.0
        %6966 = vmatpush1.msra.mxu0 0.0
        %6967 = vmatprep.subr.mxu0 0.0
        %6968 = vmatpush1.msra.mxu0 0.0
        %6969 = vmatprep.subr.mxu0 0.0
        %6970 = vmatpush1.msra.mxu0 0.0
        %6971 = vmatprep.subr.mxu0 0.0
        %6972 = vmatpush1.msra.mxu0 0.0
        %6973 = vmatprep.subr.mxu0 0.0
        %6974 = vmatpush1.msra.mxu0 0.0
        %6975 = vmatprep.subr.mxu0 0.0
        %6976 = vmatpush1.msra.mxu0 0.0
        %6977 = vmatprep.subr.mxu0 0.0
        %6978 = vmatpush1.msra.mxu0 0.0
        %6979 = vmatprep.subr.mxu0 0.0
        %6980 = vmatpush1.msra.mxu0 0.0
        %6981 = vmatprep.mubr.f32.mxu0 0.0
        %6982 = vmatmul.mubr.f32.gmra.mrb[0].mxu0 %v6912
        %v6983 = vpop.f32.mrb[0].mxu0
        %v6984 = vadd.f32 0.0, %v6983
        %v6985 = vpop.f32.mrb[0].mxu0
        %6986 = vmatprep.mubr.f32.mxu0 0.0
        %6987 = vmatmul.mubr.f32.gmra.mrb[0].mxu0 %v6915
        %v6988 = vpop.f32.mrb[0].mxu0
        %v6989 = vadd.f32 0.0, %v6988
        %v6990 = vpop.f32.mrb[0].mxu0
        %6991 = vdwg.mxu0
        %6992 = vrot.lane.b32.xlu0 %v5697, 40
        %v6993 = vpop.permute.xlu0 %6992
        %6994 = vrot.lane.b32.xlu0 %v5698, 40
        %v6995 = vpop.permute.xlu0 %6994
        %v6999 = vsel %vm1336, %v6636, 0
        %v7002 = vsel %vm1336, %v6637, 0
        %7004 = vmatprep.subr.mxu0 0.0
        %7005 = vmatpush1.msra.mxu0 %v6993
        %7006 = vmatprep.subr.mxu0 0.0
        %7007 = vmatpush1.msra.mxu0 %v6995
        %7008 = vmatprep.subr.mxu0 0.0
        %7009 = vmatpush1.msra.mxu0 0.0
        %7010 = vmatprep.subr.mxu0 0.0
        %7011 = vmatpush1.msra.mxu0 0.0
        %7012 = vmatprep.subr.mxu0 0.0
        %7013 = vmatpush1.msra.mxu0 0.0
        %7014 = vmatprep.subr.mxu0 0.0
        %7015 = vmatpush1.msra.mxu0 0.0
        %7016 = vmatprep.subr.mxu0 0.0
        %7017 = vmatpush1.msra.mxu0 0.0
        %7018 = vmatprep.subr.mxu0 0.0
        %7019 = vmatpush1.msra.mxu0 0.0
        %7020 = vmatprep.subr.mxu0 0.0
        %7021 = vmatpush1.msra.mxu0 0.0
        %7022 = vmatprep.subr.mxu0 0.0
        %7023 = vmatpush1.msra.mxu0 0.0
        %7024 = vmatprep.subr.mxu0 0.0
        %7025 = vmatpush1.msra.mxu0 0.0
        %7026 = vmatprep.subr.mxu0 0.0
        %7027 = vmatpush1.msra.mxu0 0.0
        %7028 = vmatprep.subr.mxu0 0.0
        %7029 = vmatpush1.msra.mxu0 0.0
        %7030 = vmatprep.subr.mxu0 0.0
        %7031 = vmatpush1.msra.mxu0 0.0
        %7032 = vmatprep.subr.mxu0 0.0
        %7033 = vmatpush1.msra.mxu0 0.0
        %7034 = vmatprep.subr.mxu0 0.0
        %7035 = vmatpush1.msra.mxu0 0.0
        %7036 = vmatprep.subr.mxu0 0.0
        %7037 = vmatpush1.msra.mxu0 0.0
        %7038 = vmatprep.subr.mxu0 0.0
        %7039 = vmatpush1.msra.mxu0 0.0
        %7040 = vmatprep.subr.mxu0 0.0
        %7041 = vmatpush1.msra.mxu0 0.0
        %7042 = vmatprep.subr.mxu0 0.0
        %7043 = vmatpush1.msra.mxu0 0.0
        %7044 = vmatprep.subr.mxu0 0.0
        %7045 = vmatpush1.msra.mxu0 0.0
        %7046 = vmatprep.subr.mxu0 0.0
        %7047 = vmatpush1.msra.mxu0 0.0
        %7048 = vmatprep.subr.mxu0 0.0
        %7049 = vmatpush1.msra.mxu0 0.0
        %7050 = vmatprep.subr.mxu0 0.0
        %7051 = vmatpush1.msra.mxu0 0.0
        %7052 = vmatprep.subr.mxu0 0.0
        %7053 = vmatpush1.msra.mxu0 0.0
        %7054 = vmatprep.subr.mxu0 0.0
        %7055 = vmatpush1.msra.mxu0 0.0
        %7056 = vmatprep.subr.mxu0 0.0
        %7057 = vmatpush1.msra.mxu0 0.0
        %7058 = vmatprep.subr.mxu0 0.0
        %7059 = vmatpush1.msra.mxu0 0.0
        %7060 = vmatprep.subr.mxu0 0.0
        %7061 = vmatpush1.msra.mxu0 0.0
        %7062 = vmatprep.subr.mxu0 0.0
        %7063 = vmatpush1.msra.mxu0 0.0
        %7064 = vmatprep.subr.mxu0 0.0
        %7065 = vmatpush1.msra.mxu0 0.0
        %7066 = vmatprep.subr.mxu0 0.0
        %7067 = vmatpush1.msra.mxu0 0.0
        %7068 = vmatprep.mubr.f32.mxu0 0.0
        %7069 = vmatmul.mubr.f32.gmra.mrb[0].mxu0 %v6999
        %v7070 = vpop.f32.mrb[0].mxu0
        %v7071 = vadd.f32 0.0, %v7070
        %v7072 = vpop.f32.mrb[0].mxu0
        %7073 = vmatprep.mubr.f32.mxu0 0.0
        %7074 = vmatmul.mubr.f32.gmra.mrb[0].mxu0 %v7002
        %v7075 = vpop.f32.mrb[0].mxu0
        %v7076 = vadd.f32 0.0, %v7075
        %v7077 = vpop.f32.mrb[0].mxu0
        %7078 = vdwg.mxu0
        %7079 = vrot.lane.b32.xlu0 %v5699, 40
        %v7080 = vpop.permute.xlu0 %7079
        %7081 = vrot.lane.b32.xlu0 %v5700, 40
        %v7082 = vpop.permute.xlu0 %7081
        %v7086 = vsel %vm1336, %v6638, 0
        %v7089 = vsel %vm1336, %v6639, 0
        %7091 = vmatprep.subr.mxu0 0.0
        %7092 = vmatpush1.msra.mxu0 %v7080
        %7093 = vmatprep.subr.mxu0 0.0
        %7094 = vmatpush1.msra.mxu0 %v7082
        %7095 = vmatprep.subr.mxu0 0.0
        %7096 = vmatpush1.msra.mxu0 0.0
        %7097 = vmatprep.subr.mxu0 0.0
        %7098 = vmatpush1.msra.mxu0 0.0
        %7099 = vmatprep.subr.mxu0 0.0
        %7100 = vmatpush1.msra.mxu0 0.0
        %7101 = vmatprep.subr.mxu0 0.0
        %7102 = vmatpush1.msra.mxu0 0.0
        %7103 = vmatprep.subr.mxu0 0.0
        %7104 = vmatpush1.msra.mxu0 0.0
        %7105 = vmatprep.subr.mxu0 0.0
        %7106 = vmatpush1.msra.mxu0 0.0
        %7107 = vmatprep.subr.mxu0 0.0
        %7108 = vmatpush1.msra.mxu0 0.0
        %7109 = vmatprep.subr.mxu0 0.0
        %7110 = vmatpush1.msra.mxu0 0.0
        %7111 = vmatprep.subr.mxu0 0.0
        %7112 = vmatpush1.msra.mxu0 0.0
        %7113 = vmatprep.subr.mxu0 0.0
        %7114 = vmatpush1.msra.mxu0 0.0
        %7115 = vmatprep.subr.mxu0 0.0
        %7116 = vmatpush1.msra.mxu0 0.0
        %7117 = vmatprep.subr.mxu0 0.0
        %7118 = vmatpush1.msra.mxu0 0.0
        %7119 = vmatprep.subr.mxu0 0.0
        %7120 = vmatpush1.msra.mxu0 0.0
        %7121 = vmatprep.subr.mxu0 0.0
        %7122 = vmatpush1.msra.mxu0 0.0
        %7123 = vmatprep.subr.mxu0 0.0
        %7124 = vmatpush1.msra.mxu0 0.0
        %7125 = vmatprep.subr.mxu0 0.0
        %7126 = vmatpush1.msra.mxu0 0.0
        %7127 = vmatprep.subr.mxu0 0.0
        %7128 = vmatpush1.msra.mxu0 0.0
        %7129 = vmatprep.subr.mxu0 0.0
        %7130 = vmatpush1.msra.mxu0 0.0
        %7131 = vmatprep.subr.mxu0 0.0
        %7132 = vmatpush1.msra.mxu0 0.0
        %7133 = vmatprep.subr.mxu0 0.0
        %7134 = vmatpush1.msra.mxu0 0.0
        %7135 = vmatprep.subr.mxu0 0.0
        %7136 = vmatpush1.msra.mxu0 0.0
        %7137 = vmatprep.subr.mxu0 0.0
        %7138 = vmatpush1.msra.mxu0 0.0
        %7139 = vmatprep.subr.mxu0 0.0
        %7140 = vmatpush1.msra.mxu0 0.0
        %7141 = vmatprep.subr.mxu0 0.0
        %7142 = vmatpush1.msra.mxu0 0.0
        %7143 = vmatprep.subr.mxu0 0.0
        %7144 = vmatpush1.msra.mxu0 0.0
        %7145 = vmatprep.subr.mxu0 0.0
        %7146 = vmatpush1.msra.mxu0 0.0
        %7147 = vmatprep.subr.mxu0 0.0
        %7148 = vmatpush1.msra.mxu0 0.0
        %7149 = vmatprep.subr.mxu0 0.0
        %7150 = vmatpush1.msra.mxu0 0.0
        %7151 = vmatprep.subr.mxu0 0.0
        %7152 = vmatpush1.msra.mxu0 0.0
        %7153 = vmatprep.subr.mxu0 0.0
        %7154 = vmatpush1.msra.mxu0 0.0
        %7155 = vmatprep.mubr.f32.mxu0 0.0
        %7156 = vmatmul.mubr.f32.gmra.mrb[0].mxu0 %v7086
        %v7157 = vpop.f32.mrb[0].mxu0
        %v7158 = vadd.f32 0.0, %v7157
        %v7159 = vpop.f32.mrb[0].mxu0
        %7160 = vmatprep.mubr.f32.mxu0 0.0
        %7161 = vmatmul.mubr.f32.gmra.mrb[0].mxu0 %v7089
        %v7162 = vpop.f32.mrb[0].mxu0
        %v7163 = vadd.f32 0.0, %v7162
        %v7164 = vpop.f32.mrb[0].mxu0
        %7165 = vdwg.mxu0
        %7166 = vrot.lane.b32.xlu0 %v5701, 40
        %v7167 = vpop.permute.xlu0 %7166
        %7168 = vrot.lane.b32.xlu0 %v5702, 40
        %v7169 = vpop.permute.xlu0 %7168
        %v7173 = vsel %vm1336, %v6640, 0
        %v7176 = vsel %vm1336, %v6641, 0
        %7178 = vmatprep.subr.mxu0 0.0
        %7179 = vmatpush1.msra.mxu0 %v7167
        %7180 = vmatprep.subr.mxu0 0.0
        %7181 = vmatpush1.msra.mxu0 %v7169
        %7182 = vmatprep.subr.mxu0 0.0
        %7183 = vmatpush1.msra.mxu0 0.0
        %7184 = vmatprep.subr.mxu0 0.0
        %7185 = vmatpush1.msra.mxu0 0.0
        %7186 = vmatprep.subr.mxu0 0.0
        %7187 = vmatpush1.msra.mxu0 0.0
        %7188 = vmatprep.subr.mxu0 0.0
        %7189 = vmatpush1.msra.mxu0 0.0
        %7190 = vmatprep.subr.mxu0 0.0
        %7191 = vmatpush1.msra.mxu0 0.0
        %7192 = vmatprep.subr.mxu0 0.0
        %7193 = vmatpush1.msra.mxu0 0.0
        %7194 = vmatprep.subr.mxu0 0.0
        %7195 = vmatpush1.msra.mxu0 0.0
        %7196 = vmatprep.subr.mxu0 0.0
        %7197 = vmatpush1.msra.mxu0 0.0
        %7198 = vmatprep.subr.mxu0 0.0
        %7199 = vmatpush1.msra.mxu0 0.0
        %7200 = vmatprep.subr.mxu0 0.0
        %7201 = vmatpush1.msra.mxu0 0.0
        %7202 = vmatprep.subr.mxu0 0.0
        %7203 = vmatpush1.msra.mxu0 0.0
        %7204 = vmatprep.subr.mxu0 0.0
        %7205 = vmatpush1.msra.mxu0 0.0
        %7206 = vmatprep.subr.mxu0 0.0
        %7207 = vmatpush1.msra.mxu0 0.0
        %7208 = vmatprep.subr.mxu0 0.0
        %7209 = vmatpush1.msra.mxu0 0.0
        %7210 = vmatprep.subr.mxu0 0.0
        %7211 = vmatpush1.msra.mxu0 0.0
        %7212 = vmatprep.subr.mxu0 0.0
        %7213 = vmatpush1.msra.mxu0 0.0
        %7214 = vmatprep.subr.mxu0 0.0
        %7215 = vmatpush1.msra.mxu0 0.0
        %7216 = vmatprep.subr.mxu0 0.0
        %7217 = vmatpush1.msra.mxu0 0.0
        %7218 = vmatprep.subr.mxu0 0.0
        %7219 = vmatpush1.msra.mxu0 0.0
        %7220 = vmatprep.subr.mxu0 0.0
        %7221 = vmatpush1.msra.mxu0 0.0
        %7222 = vmatprep.subr.mxu0 0.0
        %7223 = vmatpush1.msra.mxu0 0.0
        %7224 = vmatprep.subr.mxu0 0.0
        %7225 = vmatpush1.msra.mxu0 0.0
        %7226 = vmatprep.subr.mxu0 0.0
        %7227 = vmatpush1.msra.mxu0 0.0
        %7228 = vmatprep.subr.mxu0 0.0
        %7229 = vmatpush1.msra.mxu0 0.0
        %7230 = vmatprep.subr.mxu0 0.0
        %7231 = vmatpush1.msra.mxu0 0.0
        %7232 = vmatprep.subr.mxu0 0.0
        %7233 = vmatpush1.msra.mxu0 0.0
        %7234 = vmatprep.subr.mxu0 0.0
        %7235 = vmatpush1.msra.mxu0 0.0
        %7236 = vmatprep.subr.mxu0 0.0
        %7237 = vmatpush1.msra.mxu0 0.0
        %7238 = vmatprep.subr.mxu0 0.0
        %7239 = vmatpush1.msra.mxu0 0.0
        %7240 = vmatprep.subr.mxu0 0.0
        %7241 = vmatpush1.msra.mxu0 0.0
        %7242 = vmatprep.mubr.f32.mxu0 0.0
        %7243 = vmatmul.mubr.f32.gmra.mrb[0].mxu0 %v7173
        %v7244 = vpop.f32.mrb[0].mxu0
        %v7245 = vadd.f32 0.0, %v7244
        %v7246 = vpop.f32.mrb[0].mxu0
        %7247 = vmatprep.mubr.f32.mxu0 0.0
        %7248 = vmatmul.mubr.f32.gmra.mrb[0].mxu0 %v7176
        %v7249 = vpop.f32.mrb[0].mxu0
        %v7250 = vadd.f32 0.0, %v7249
        %v7251 = vpop.f32.mrb[0].mxu0
        %7252 = vdwg.mxu0
        %7253 = vrot.lane.b32.xlu0 %v5703, 40
        %v7254 = vpop.permute.xlu0 %7253
        %7255 = vrot.lane.b32.xlu0 %v5704, 40
        %v7256 = vpop.permute.xlu0 %7255
        %v7260 = vsel %vm1336, %v6642, 0
        %v7263 = vsel %vm1336, %v6643, 0
        %7265 = vmatprep.subr.mxu0 0.0
        %7266 = vmatpush1.msra.mxu0 %v7254
        %7267 = vmatprep.subr.mxu0 0.0
        %7268 = vmatpush1.msra.mxu0 %v7256
        %7269 = vmatprep.subr.mxu0 0.0
        %7270 = vmatpush1.msra.mxu0 0.0
        %7271 = vmatprep.subr.mxu0 0.0
        %7272 = vmatpush1.msra.mxu0 0.0
        %7273 = vmatprep.subr.mxu0 0.0
        %7274 = vmatpush1.msra.mxu0 0.0
        %7275 = vmatprep.subr.mxu0 0.0
        %7276 = vmatpush1.msra.mxu0 0.0
        %7277 = vmatprep.subr.mxu0 0.0
        %7278 = vmatpush1.msra.mxu0 0.0
        %7279 = vmatprep.subr.mxu0 0.0
        %7280 = vmatpush1.msra.mxu0 0.0
        %7281 = vmatprep.subr.mxu0 0.0
        %7282 = vmatpush1.msra.mxu0 0.0
        %7283 = vmatprep.subr.mxu0 0.0
        %7284 = vmatpush1.msra.mxu0 0.0
        %7285 = vmatprep.subr.mxu0 0.0
        %7286 = vmatpush1.msra.mxu0 0.0
        %7287 = vmatprep.subr.mxu0 0.0
        %7288 = vmatpush1.msra.mxu0 0.0
        %7289 = vmatprep.subr.mxu0 0.0
        %7290 = vmatpush1.msra.mxu0 0.0
        %7291 = vmatprep.subr.mxu0 0.0
        %7292 = vmatpush1.msra.mxu0 0.0
        %7293 = vmatprep.subr.mxu0 0.0
        %7294 = vmatpush1.msra.mxu0 0.0
        %7295 = vmatprep.subr.mxu0 0.0
        %7296 = vmatpush1.msra.mxu0 0.0
        %7297 = vmatprep.subr.mxu0 0.0
        %7298 = vmatpush1.msra.mxu0 0.0
        %7299 = vmatprep.subr.mxu0 0.0
        %7300 = vmatpush1.msra.mxu0 0.0
        %7301 = vmatprep.subr.mxu0 0.0
        %7302 = vmatpush1.msra.mxu0 0.0
        %7303 = vmatprep.subr.mxu0 0.0
        %7304 = vmatpush1.msra.mxu0 0.0
        %7305 = vmatprep.subr.mxu0 0.0
        %7306 = vmatpush1.msra.mxu0 0.0
        %7307 = vmatprep.subr.mxu0 0.0
        %7308 = vmatpush1.msra.mxu0 0.0
        %7309 = vmatprep.subr.mxu0 0.0
        %7310 = vmatpush1.msra.mxu0 0.0
        %7311 = vmatprep.subr.mxu0 0.0
        %7312 = vmatpush1.msra.mxu0 0.0
        %7313 = vmatprep.subr.mxu0 0.0
        %7314 = vmatpush1.msra.mxu0 0.0
        %7315 = vmatprep.subr.mxu0 0.0
        %7316 = vmatpush1.msra.mxu0 0.0
        %7317 = vmatprep.subr.mxu0 0.0
        %7318 = vmatpush1.msra.mxu0 0.0
        %7319 = vmatprep.subr.mxu0 0.0
        %7320 = vmatpush1.msra.mxu0 0.0
        %7321 = vmatprep.subr.mxu0 0.0
        %7322 = vmatpush1.msra.mxu0 0.0
        %7323 = vmatprep.subr.mxu0 0.0
        %7324 = vmatpush1.msra.mxu0 0.0
        %7325 = vmatprep.subr.mxu0 0.0
        %7326 = vmatpush1.msra.mxu0 0.0
        %7327 = vmatprep.subr.mxu0 0.0
        %7328 = vmatpush1.msra.mxu0 0.0
        %7329 = vmatprep.mubr.f32.mxu0 0.0
        %7330 = vmatmul.mubr.f32.gmra.mrb[0].mxu0 %v7260
        %v7331 = vpop.f32.mrb[0].mxu0
        %v7332 = vadd.f32 0.0, %v7331
        %v7333 = vpop.f32.mrb[0].mxu0
        %7334 = vmatprep.mubr.f32.mxu0 0.0
        %7335 = vmatmul.mubr.f32.gmra.mrb[0].mxu0 %v7263
        %v7336 = vpop.f32.mrb[0].mxu0
        %v7337 = vadd.f32 0.0, %v7336
        %v7338 = vpop.f32.mrb[0].mxu0
        %7339 = vdwg.mxu0
        %7356 = vrot.lane.b32.xlu0 %v6723, 24
        %v7357 = vpop.permute.xlu0 %7356
        %7358 = vrot.lane.b32.xlu0 %v6728, 24
        %v7359 = vpop.permute.xlu0 %7358
        %7360 = vrot.lane.b32.xlu0 %v6810, 24
        %v7361 = vpop.permute.xlu0 %7360
        %7362 = vrot.lane.b32.xlu0 %v6815, 24
        %v7363 = vpop.permute.xlu0 %7362
        %7364 = vrot.lane.b32.xlu0 %v6897, 24
        %v7365 = vpop.permute.xlu0 %7364
        %7366 = vrot.lane.b32.xlu0 %v6902, 24
        %v7367 = vpop.permute.xlu0 %7366
        %7368 = vrot.lane.b32.xlu0 %v6984, 24
        %v7369 = vpop.permute.xlu0 %7368
        %7370 = vrot.lane.b32.xlu0 %v6989, 24
        %v7371 = vpop.permute.xlu0 %7370
        %7372 = vrot.lane.b32.xlu0 %v7071, 24
        %v7373 = vpop.permute.xlu0 %7372
        %7374 = vrot.lane.b32.xlu0 %v7076, 24
        %v7375 = vpop.permute.xlu0 %7374
        %7376 = vrot.lane.b32.xlu0 %v7158, 24
        %v7377 = vpop.permute.xlu0 %7376
        %7378 = vrot.lane.b32.xlu0 %v7163, 24
        %v7379 = vpop.permute.xlu0 %7378
        %7380 = vrot.lane.b32.xlu0 %v7245, 24
        %v7381 = vpop.permute.xlu0 %7380
        %7382 = vrot.lane.b32.xlu0 %v7250, 24
        %v7383 = vpop.permute.xlu0 %7382
        %7384 = vrot.lane.b32.xlu0 %v7332, 24
        %v7385 = vpop.permute.xlu0 %7384
        %7386 = vrot.lane.b32.xlu0 %v7337, 24
        %v7387 = vpop.permute.xlu0 %7386
        %vm7404 = vcmask 261312
        %7405 = vst.msk [vmem:[#allocation3] sm:$0xff] %vm7404, %v7357
        %7406 = vst.msk [vmem:[#allocation3 + $0x8] sm:$0xff] %vm7404, %v7359
        %7407 = vst.msk [vmem:[#allocation3 + $0x10] sm:$0xff] %vm7404, %v7361
        %7408 = vst.msk [vmem:[#allocation3 + $0x18] sm:$0xff] %vm7404, %v7363
        %7409 = vst.msk [vmem:[#allocation3 + $0x20] sm:$0xff] %vm7404, %v7365
        %7410 = vst.msk [vmem:[#allocation3 + $0x28] sm:$0xff] %vm7404, %v7367
        %7411 = vst.msk [vmem:[#allocation3 + $0x30] sm:$0xff] %vm7404, %v7369
        %7412 = vst.msk [vmem:[#allocation3 + $0x38] sm:$0xff] %vm7404, %v7371
        %7413 = vst.msk [vmem:[#allocation3 + $0x40] sm:$0xff] %vm7404, %v7373
        %7414 = vst.msk [vmem:[#allocation3 + $0x48] sm:$0xff] %vm7404, %v7375
        %7415 = vst.msk [vmem:[#allocation3 + $0x50] sm:$0xff] %vm7404, %v7377
        %7416 = vst.msk [vmem:[#allocation3 + $0x58] sm:$0xff] %vm7404, %v7379
        %7417 = vst.msk [vmem:[#allocation3 + $0x60] sm:$0xff] %vm7404, %v7381
        %7418 = vst.msk [vmem:[#allocation3 + $0x68] sm:$0xff] %vm7404, %v7383
        %7419 = vst.msk [vmem:[#allocation3 + $0x70] sm:$0xff] %vm7404, %v7385
        %7420 = vst.msk [vmem:[#allocation3 + $0x78] sm:$0xff] %vm7404, %v7387
        %v7421 = vld [vmem:[#allocation3] sm:$0xff]
        %v7422 = vld [vmem:[#allocation3 + $0x8] sm:$0xff]
        %v7423 = vld [vmem:[#allocation3 + $0x10] sm:$0xff]
        %v7424 = vld [vmem:[#allocation3 + $0x18] sm:$0xff]
        %v7425 = vld [vmem:[#allocation3 + $0x20] sm:$0xff]
        %v7426 = vld [vmem:[#allocation3 + $0x28] sm:$0xff]
        %v7427 = vld [vmem:[#allocation3 + $0x30] sm:$0xff]
        %v7428 = vld [vmem:[#allocation3 + $0x38] sm:$0xff]
        %v7429 = vld [vmem:[#allocation3 + $0x40] sm:$0xff]
        %v7430 = vld [vmem:[#allocation3 + $0x48] sm:$0xff]
        %v7431 = vld [vmem:[#allocation3 + $0x50] sm:$0xff]
        %v7432 = vld [vmem:[#allocation3 + $0x58] sm:$0xff]
        %v7433 = vld [vmem:[#allocation3 + $0x60] sm:$0xff]
        %v7434 = vld [vmem:[#allocation3 + $0x68] sm:$0xff]
        %v7435 = vld [vmem:[#allocation3 + $0x70] sm:$0xff]
        %v7436 = vld [vmem:[#allocation3 + $0x78] sm:$0xff]
        %v7437 = vld [vmem:[#allocation7] sm:$0xff]
        %v7438 = vld [vmem:[#allocation7 + $0x8] sm:$0xff]
        %v7439 = vld [vmem:[#allocation7 + $0x10] sm:$0xff]
        %v7440 = vld [vmem:[#allocation7 + $0x18] sm:$0xff]
        %v7441 = vld [vmem:[%s6] sm:$0x1]
        %v7443 = vlaneseq
        %v7444 = vshrl.u32 %v7443, 7
        %v7445 = vsub.s32 0, %v7444
        %v7446 = vrot.slane %v7441, %v7445
        %v7449 = vsel %vm362, %v7421, 0
        %v7452 = vsel %vm362, %v7422, 0
        %v7455 = vsel %vm362, %v7423, 0
        %v7458 = vsel %vm362, %v7424, 0
        %v7461 = vsel %vm362, %v7425, 0
        %v7464 = vsel %vm362, %v7426, 0
        %v7467 = vsel %vm362, %v7427, 0
        %v7470 = vsel %vm362, %v7428, 0
        %v7473 = vsel %vm362, %v7429, 0
        %v7476 = vsel %vm362, %v7430, 0
        %v7479 = vsel %vm362, %v7431, 0
        %v7482 = vsel %vm362, %v7432, 0
        %v7485 = vsel %vm362, %v7433, 0
        %v7488 = vsel %vm362, %v7434, 0
        %v7491 = vsel %vm362, %v7435, 0
        %v7494 = vsel %vm362, %v7436, 0
        %7496 = vmatprep.subr.mxu0 0.0
        %7497 = vmatpush1.msra.mxu0 %v7437
        %7498 = vmatprep.subr.mxu0 0.0
        %7499 = vmatpush1.msra.mxu0 %v7438
        %7500 = vmatprep.subr.mxu0 0.0
        %7501 = vmatpush1.msra.mxu0 %v7439
        %7502 = vmatprep.subr.mxu0 0.0
        %7503 = vmatpush1.msra.mxu0 %v7440
        %7504 = vmatprep.subr.mxu0 0.0
        %7505 = vmatpush1.msra.mxu0 0.0
        %7506 = vmatprep.subr.mxu0 0.0
        %7507 = vmatpush1.msra.mxu0 0.0
        %7508 = vmatprep.subr.mxu0 0.0
        %7509 = vmatpush1.msra.mxu0 0.0
        %7510 = vmatprep.subr.mxu0 0.0
        %7511 = vmatpush1.msra.mxu0 0.0
        %7512 = vmatprep.subr.mxu0 0.0
        %7513 = vmatpush1.msra.mxu0 0.0
        %7514 = vmatprep.subr.mxu0 0.0
        %7515 = vmatpush1.msra.mxu0 0.0
        %7516 = vmatprep.subr.mxu0 0.0
        %7517 = vmatpush1.msra.mxu0 0.0
        %7518 = vmatprep.subr.mxu0 0.0
        %7519 = vmatpush1.msra.mxu0 0.0
        %7520 = vmatprep.subr.mxu0 0.0
        %7521 = vmatpush1.msra.mxu0 0.0
        %7522 = vmatprep.subr.mxu0 0.0
        %7523 = vmatpush1.msra.mxu0 0.0
        %7524 = vmatprep.subr.mxu0 0.0
        %7525 = vmatpush1.msra.mxu0 0.0
        %7526 = vmatprep.subr.mxu0 0.0
        %7527 = vmatpush1.msra.mxu0 0.0
        %7528 = vmatprep.subr.mxu0 0.0
        %7529 = vmatpush1.msra.mxu0 0.0
        %7530 = vmatprep.subr.mxu0 0.0
        %7531 = vmatpush1.msra.mxu0 0.0
        %7532 = vmatprep.subr.mxu0 0.0
        %7533 = vmatpush1.msra.mxu0 0.0
        %7534 = vmatprep.subr.mxu0 0.0
        %7535 = vmatpush1.msra.mxu0 0.0
        %7536 = vmatprep.subr.mxu0 0.0
        %7537 = vmatpush1.msra.mxu0 0.0
        %7538 = vmatprep.subr.mxu0 0.0
        %7539 = vmatpush1.msra.mxu0 0.0
        %7540 = vmatprep.subr.mxu0 0.0
        %7541 = vmatpush1.msra.mxu0 0.0
        %7542 = vmatprep.subr.mxu0 0.0
        %7543 = vmatpush1.msra.mxu0 0.0
        %7544 = vmatprep.subr.mxu0 0.0
        %7545 = vmatpush1.msra.mxu0 0.0
        %7546 = vmatprep.subr.mxu0 0.0
        %7547 = vmatpush1.msra.mxu0 0.0
        %7548 = vmatprep.subr.mxu0 0.0
        %7549 = vmatpush1.msra.mxu0 0.0
        %7550 = vmatprep.subr.mxu0 0.0
        %7551 = vmatpush1.msra.mxu0 0.0
        %7552 = vmatprep.subr.mxu0 0.0
        %7553 = vmatpush1.msra.mxu0 0.0
        %7554 = vmatprep.subr.mxu0 0.0
        %7555 = vmatpush1.msra.mxu0 0.0
        %7556 = vmatprep.subr.mxu0 0.0
        %7557 = vmatpush1.msra.mxu0 0.0
        %7558 = vmatprep.subr.mxu0 0.0
        %7559 = vmatpush1.msra.mxu0 0.0
        %7560 = vmatprep.mubr.f32.mxu0 0.0
        %7561 = vmatmul.mubr.f32.gmra.mrb[0].mxu0 %v7449
        %v7562 = vpop.f32.mrb[0].mxu0
        %v7563 = vadd.f32 %v7446, %v7562
        %v7564 = vpop.f32.mrb[0].mxu0
        %7565 = vmatprep.mubr.f32.mxu0 0.0
        %7566 = vmatmul.mubr.f32.gmra.mrb[0].mxu0 %v7452
        %v7567 = vpop.f32.mrb[0].mxu0
        %v7568 = vadd.f32 %v7446, %v7567
        %v7569 = vpop.f32.mrb[0].mxu0
        %7570 = vmatprep.mubr.f32.mxu0 0.0
        %7571 = vmatmul.mubr.f32.gmra.mrb[0].mxu0 %v7455
        %v7572 = vpop.f32.mrb[0].mxu0
        %v7573 = vadd.f32 %v7446, %v7572
        %v7574 = vpop.f32.mrb[0].mxu0
        %7575 = vmatprep.mubr.f32.mxu0 0.0
        %7576 = vmatmul.mubr.f32.gmra.mrb[0].mxu0 %v7458
        %v7577 = vpop.f32.mrb[0].mxu0
        %v7578 = vadd.f32 %v7446, %v7577
        %v7579 = vpop.f32.mrb[0].mxu0
        %7580 = vmatprep.mubr.f32.mxu0 0.0
        %7581 = vmatmul.mubr.f32.gmra.mrb[0].mxu0 %v7461
        %v7582 = vpop.f32.mrb[0].mxu0
        %v7583 = vadd.f32 %v7446, %v7582
        %v7584 = vpop.f32.mrb[0].mxu0
        %7585 = vmatprep.mubr.f32.mxu0 0.0
        %7586 = vmatmul.mubr.f32.gmra.mrb[0].mxu0 %v7464
        %v7587 = vpop.f32.mrb[0].mxu0
        %v7588 = vadd.f32 %v7446, %v7587
        %v7589 = vpop.f32.mrb[0].mxu0
        %7590 = vmatprep.mubr.f32.mxu0 0.0
        %7591 = vmatmul.mubr.f32.gmra.mrb[0].mxu0 %v7467
        %v7592 = vpop.f32.mrb[0].mxu0
        %v7593 = vadd.f32 %v7446, %v7592
        %v7594 = vpop.f32.mrb[0].mxu0
        %7595 = vmatprep.mubr.f32.mxu0 0.0
        %7596 = vmatmul.mubr.f32.gmra.mrb[0].mxu0 %v7470
        %v7597 = vpop.f32.mrb[0].mxu0
        %v7598 = vadd.f32 %v7446, %v7597
        %v7599 = vpop.f32.mrb[0].mxu0
        %7600 = vmatprep.mubr.f32.mxu0 0.0
        %7601 = vmatmul.mubr.f32.gmra.mrb[0].mxu0 %v7473
        %v7602 = vpop.f32.mrb[0].mxu0
        %v7603 = vadd.f32 %v7446, %v7602
        %v7604 = vpop.f32.mrb[0].mxu0
        %7605 = vmatprep.mubr.f32.mxu0 0.0
        %7606 = vmatmul.mubr.f32.gmra.mrb[0].mxu0 %v7476
        %v7607 = vpop.f32.mrb[0].mxu0
        %v7608 = vadd.f32 %v7446, %v7607
        %v7609 = vpop.f32.mrb[0].mxu0
        %7610 = vmatprep.mubr.f32.mxu0 0.0
        %7611 = vmatmul.mubr.f32.gmra.mrb[0].mxu0 %v7479
        %v7612 = vpop.f32.mrb[0].mxu0
        %v7613 = vadd.f32 %v7446, %v7612
        %v7614 = vpop.f32.mrb[0].mxu0
        %7615 = vmatprep.mubr.f32.mxu0 0.0
        %7616 = vmatmul.mubr.f32.gmra.mrb[0].mxu0 %v7482
        %v7617 = vpop.f32.mrb[0].mxu0
        %v7618 = vadd.f32 %v7446, %v7617
        %v7619 = vpop.f32.mrb[0].mxu0
        %7620 = vmatprep.mubr.f32.mxu0 0.0
        %7621 = vmatmul.mubr.f32.gmra.mrb[0].mxu0 %v7485
        %v7622 = vpop.f32.mrb[0].mxu0
        %v7623 = vadd.f32 %v7446, %v7622
        %v7624 = vpop.f32.mrb[0].mxu0
        %7625 = vmatprep.mubr.f32.mxu0 0.0
        %7626 = vmatmul.mubr.f32.gmra.mrb[0].mxu0 %v7488
        %v7627 = vpop.f32.mrb[0].mxu0
        %v7628 = vadd.f32 %v7446, %v7627
        %v7629 = vpop.f32.mrb[0].mxu0
        %7630 = vmatprep.mubr.f32.mxu0 0.0
        %7631 = vmatmul.mubr.f32.gmra.mrb[0].mxu0 %v7491
        %v7632 = vpop.f32.mrb[0].mxu0
        %v7633 = vadd.f32 %v7446, %v7632
        %v7634 = vpop.f32.mrb[0].mxu0
        %7635 = vmatprep.mubr.f32.mxu0 0.0
        %7636 = vmatmul.mubr.f32.gmra.mrb[0].mxu0 %v7494
        %v7637 = vpop.f32.mrb[0].mxu0
        %v7638 = vadd.f32 %v7446, %v7637
        %v7639 = vpop.f32.mrb[0].mxu0
        %7640 = vdwg.mxu0
        %7641 = vst [vmem:[%s320] sm:$0xff] %v7563
        %7642 = vst [vmem:[%s320 + $0x8] sm:$0xff] %v7568
        %7643 = vst [vmem:[%s320 + $0x10] sm:$0xff] %v7573
        %7644 = vst [vmem:[%s320 + $0x18] sm:$0xff] %v7578
        %7645 = vst [vmem:[%s320 + $0x20] sm:$0xff] %v7583
        %7646 = vst [vmem:[%s320 + $0x28] sm:$0xff] %v7588
        %7647 = vst [vmem:[%s320 + $0x30] sm:$0xff] %v7593
        %7648 = vst [vmem:[%s320 + $0x38] sm:$0xff] %v7598
        %7649 = vst [vmem:[%s320 + $0x40] sm:$0xff] %v7603
        %7650 = vst [vmem:[%s320 + $0x48] sm:$0xff] %v7608
        %7651 = vst [vmem:[%s320 + $0x50] sm:$0xff] %v7613
        %7652 = vst [vmem:[%s320 + $0x58] sm:$0xff] %v7618
        %7653 = vst [vmem:[%s320 + $0x60] sm:$0xff] %v7623
        %7654 = vst [vmem:[%s320 + $0x68] sm:$0xff] %v7628
        %7655 = vst [vmem:[%s320 + $0x70] sm:$0xff] %v7633
        %7656 = vst [vmem:[%s320 + $0x78] sm:$0xff] %v7638
        %s7657 = sand.u32 %s188, 1
        %s7658 = scalar_lea.sflag [#allocation6], %s7657
        %s7659 = sand.u32 %s188, 1
        %s7660 = smul.addr %s7659, 128
        %s7661 = scalar_lea.vmem [#allocation9], %s7660
        // Predicated region
        $region57: #{tpu_custom_call.1} parent=47 // pred_check
          %p7662 = pneg %p198
        $region58: #{tpu_custom_call.1} parent=47 // pred_check_branch
          %7664 = sbr.rel (%p7662) target = $region60
        $region59: #{tpu_custom_call.1} parent=47 // pred_region
          %s7665 = smul.u32 16, %s23
          %s7667 = ssub.s32 2048, 2048
          %7668 = vsyncadd %s7658, %s7667
          %s7669 = smul.addr %s7665, 128
          %s7670 = scalar_lea.hbm %s7, %s7669
          %s7671 = sshll.u32 %s7661, 4
          %s7672 = int_to_ptr.vmem [resolvable:$true] %s7671
          %7677 = dma.vmem_to_hbm [thread:$0]  %s7672, 2048, %s7670, %s7658, 128, 128, 8
        $region60: #{tpu_custom_call.1} parent=47 // pred_fallthru
          _
      $region48: #{tpu_custom_call.1} parent=5 // pred_fallthru
        _
      %p7678 = scmp.le.s32.totalorder 2, %s18
      // Predicated region
      $region61: #{tpu_custom_call.1} parent=5 // pred_check
        %p7679 = pneg %p7678
      $region62: #{tpu_custom_call.1} parent=5 // pred_check_branch
        %7681 = sbr.rel (%p7679) target = $region64
      $region63: #{tpu_custom_call.1} parent=5 // pred_region
        %s7682 = ssub.s32 %s18, 2
        // Predicated region
        $region65: #{tpu_custom_call.1} parent=63 // pred_check
          %p7683 = pneg %p204
        $region66: #{tpu_custom_call.1} parent=63 // pred_check_branch
          %7685 = sbr.rel (%p7683) target = $region68
        $region67: #{tpu_custom_call.1} parent=63 // pred_region
          %s7686 = sand.u32 %s189, 1
          %s7687 = scalar_lea.sflag [#allocation6], %s7686
          %s7688 = sand.u32 %s189, 1
          %s7689 = smul.addr %s7688, 128
          %s7690 = scalar_lea.vmem [#allocation9], %s7689
          %7691 = dma.done %s7687, 2048
        $region68: #{tpu_custom_call.1} parent=63 // pred_fallthru
          _
      $region64: #{tpu_custom_call.1} parent=5 // pred_fallthru
        _
    $region6: #{tpu_custom_call.1} parent=1 // loop_footer
      %s22 = sadd.s32 1, %s18
    $region7: #{tpu_custom_call.1} parent=1 // loop_footer_branch
      %17 = sbr.rel target = $region3
    $region8: #{tpu_custom_call.1} parent=1 // loop_exit
      _
    %7692 = vsyncpa [#allocation5], 1
    %s7693 = scalar_lea.sflag [#allocation5], 1
    %7694 = vsyncpa %s7693, 1
    %7695 = vsyncpa [#allocation8], 1
    %7696 = vsyncpa [#allocation6], 1
    %s7697 = scalar_lea.sflag [#allocation6], 1
    %7698 = vsyncpa %s7697, 1

</llo_original>
